<compile_context>
chip_gen: v6e
topology: v6e:2x2x1
jax: 0.10.0
libtpu: 0.0.40
codegen_flags: <defaults>
</compile_context>

<pallas_src>
import jax
import jax.numpy as jnp
from jax.experimental import pallas as pl
from jax.experimental.pallas import tpu as pltpu

_BN_EPS = 1e-5
_LEAKY_SLOPE = 0.01
_LANE = 128


def _round_up(x, m):
    return (x + m - 1) // m * m


# --------------------------------------------------------------------------
# Fused MLP kernel: one batch tile goes through all 5 layers entirely in VMEM.
# --------------------------------------------------------------------------
def _mlp_kernel(x_ref,
                w1_ref, b1_ref, w2_ref, b2_ref, w3_ref, b3_ref,
                w4_ref, b4_ref, w5_ref, b5_ref,
                o_ref):
    def dense(h, w_ref, b_ref):
        # bf16 x bf16 -> f32 accumulation on the MXU, bias add in f32.
        y = jnp.dot(h, w_ref[...], preferred_element_type=jnp.float32)
        return y + b_ref[...]

    def hidden(h, w_ref, b_ref):
        y = dense(h, w_ref, b_ref)
        y = jnp.maximum(y, _LEAKY_SLOPE * y)           # LeakyReLU(0.01)
        return y.astype(jnp.bfloat16)                   # bf16 operand for next MXU

    # x arrives in its HBM dtype (f32); cast in-kernel (VPU filler under MXU).
    h = x_ref[...].astype(jnp.bfloat16)                 # (TB, 3072)
    h = hidden(h, w1_ref, b1_ref)                       # (TB, 1024)
    h = hidden(h, w2_ref, b2_ref)                       # (TB, 512)
    h = hidden(h, w3_ref, b3_ref)                       # (TB, 256)
    h = hidden(h, w4_ref, b4_ref)                       # (TB, 128)
    o_ref[...] = dense(h, w5_ref, b5_ref).astype(o_ref.dtype)   # (TB, 128) bf16


# --------------------------------------------------------------------------
# One-time weight preparation (hoisted out of the per-call forward path):
# fold inference-mode BN into the preceding Linear, cast to bf16, lane-pad
# the tiny head (10 -> 128), reshape biases to row vectors.
# --------------------------------------------------------------------------
def prepare_mlp_params(params):
    layers = []
    for i in range(1, 5):
        w, b = params[f"w{i}"], params[f"b{i}"]
        g = params[f"bn{i}_gamma"]
        bt = params[f"bn{i}_beta"]
        mu = params[f"bn{i}_mean"]
        vr = params[f"bn{i}_var"]
        s = g / jnp.sqrt(vr + _BN_EPS)
        layers.append((w * s[None, :], b * s + (bt - mu * s)))

    w5, b5 = params["w5"], params["b5"]
    n_out = w5.shape[1]
    n_pad = _round_up(n_out, _LANE)
    layers.append((jnp.pad(w5, ((0, 0), (0, n_pad - n_out))),
                   jnp.pad(b5, (0, n_pad - n_out))))

    ws = tuple(w.astype(jnp.bfloat16) for w, _ in layers)
    bs = tuple(b.reshape(1, -1).astype(jnp.float32) for _, b in layers)
    return {"ws": ws, "bs": bs, "n_out": n_out, "n_pad": n_pad}


# --------------------------------------------------------------------------
# Forward: flatten, pad batch, tile over batch, call the fused kernel.
# --------------------------------------------------------------------------
def mlp_forward(x_raw, prepared, *, batch_tile=256):
    ws, bs = prepared["ws"], prepared["bs"]
    n_out, n_pad = prepared["n_out"], prepared["n_pad"]

    B = x_raw.shape[0]
    x = x_raw.reshape(B, -1).astype(jnp.float32)        # torch.flatten(x, 1)
    D = x.shape[1]

    # Batch tile: multiple of 16 (bf16 sublane packing), capped by batch_tile.
    TB = max(16, min(batch_tile, _round_up(B, 16)))
    Bp = _round_up(B, TB)
    if Bp != B:
        x = jnp.pad(x, ((0, Bp - B), (0, 0)))
    grid_n = Bp // TB

    in_specs = [pl.BlockSpec((TB, D), lambda i: (i, 0))]
    operands = [x]
    for w, b in zip(ws, bs):
        # Constant index_map: weights/biases stay resident across grid steps.
        in_specs.append(pl.BlockSpec(w.shape, lambda i: (0, 0)))
        in_specs.append(pl.BlockSpec(b.shape, lambda i: (0, 0)))
        operands.append(w)
        operands.append(b)

    # Tiny grids: keep the whole grid on one TC so the ~7.7 MB weight fetch is
    # not duplicated across the two v7x TensorCores; large grids: megacore.
    sem = ("arbitrary",) if grid_n <= 2 else ("parallel",)

    out = pl.pallas_call(
        _mlp_kernel,
        out_shape=jax.ShapeDtypeStruct((Bp, n_pad), jnp.bfloat16),
        grid=(grid_n,),
        in_specs=in_specs,
        out_specs=pl.BlockSpec((TB, n_pad), lambda i: (i, 0)),
        compiler_params=pltpu.CompilerParams(
            dimension_semantics=sem,
            vmem_limit_bytes=40 * 1024 * 1024),
    )(*operands)

    return out[:B, :n_out].astype(jnp.float32)


# --------------------------------------------------------------------------
# Deterministic synthetic parameters (PyTorch layout -> (in, out) layout).
# --------------------------------------------------------------------------
def make_params(key):
    dims = [3072, 1024, 512, 256, 128, 10]
    keys = jax.random.split(key, 32)
    ki = iter(keys)
    p = {}
    for i in range(5):
        fan_in, fan_out = dims[i], dims[i + 1]
        bound = 1.0 / (fan_in ** 0.5)
        p[f"w{i+1}"] = jax.random.uniform(next(ki), (fan_in, fan_out),
                                          jnp.float32, minval=-bound, maxval=bound)
        p[f"b{i+1}"] = jax.random.uniform(next(ki), (fan_out,),
                                          jnp.float32, minval=-bound, maxval=bound)
        if i < 4:  # BatchNorm1d after the first four Linears
            p[f"bn{i+1}_gamma"] = 1.0 + 0.1 * jax.random.normal(next(ki), (fan_out,), jnp.float32)
            p[f"bn{i+1}_beta"] = 0.1 * jax.random.normal(next(ki), (fan_out,), jnp.float32)
            p[f"bn{i+1}_mean"] = 0.1 * jax.random.normal(next(ki), (fan_out,), jnp.float32)
            p[f"bn{i+1}_var"] = jax.random.uniform(next(ki), (fan_out,),
                                                   jnp.float32, minval=0.5, maxval=1.5)
    return p


# --------------------------------------------------------------------------
# Pure-JAX reference with the same bf16-operand / f32-accumulate precision.
# --------------------------------------------------------------------------
def _ref_mlp(x_raw, params):
    B = x_raw.shape[0]
    h = x_raw.reshape(B, -1).astype(jnp.bfloat16)
    for i in range(1, 5):
        w, b = params[f"w{i}"], params[f"b{i}"]
        g = params[f"bn{i}_gamma"]
        bt = params[f"bn{i}_beta"]
        mu = params[f"bn{i}_mean"]
        vr = params[f"bn{i}_var"]
        s = g / jnp.sqrt(vr + _BN_EPS)
        wf = (w * s[None, :]).astype(jnp.bfloat16)
        bf = b * s + (bt - mu * s)
        y = jnp.dot(h, wf, preferred_element_type=jnp.float32) + bf
        y = jnp.maximum(y, _LEAKY_SLOPE * y)
        h = y.astype(jnp.bfloat16)
    w5 = params["w5"].astype(jnp.bfloat16)
    return jnp.dot(h, w5, preferred_element_type=jnp.float32) + params["b5"]


if __name__ == "__main__":
    key = jax.random.PRNGKey(0)
    kx, kx2, kx3, kp = jax.random.split(key, 4)
    params = make_params(kp)
    prepared = prepare_mlp_params(params)       # one-time weight prep (hoisted)

    # Case 1: small image batch (flattens to 3072 features, as the MLP expects).
    B = 16
    x = jax.random.normal(kx, (B, 3, 32, 32), jnp.float32)
    y = mlp_forward(x, prepared)
    jax.block_until_ready(y)
    ref = _ref_mlp(x, params)
    assert y.shape == (B, 10)
    assert jnp.allclose(y, ref, atol=2e-2, rtol=2e-2), "MLP mismatch (B=16)"

    # Case 2: batch not a multiple of the sublane tile (exercises batch padding).
    B2 = 5
    x2 = jax.random.normal(kx2, (B2, 3, 32, 32), jnp.float32)
    y2 = mlp_forward(x2, prepared)
    jax.block_until_ready(y2)
    ref2 = _ref_mlp(x2, params)
    assert y2.shape == (B2, 10)
    assert jnp.allclose(y2, ref2, atol=2e-2, rtol=2e-2), "MLP mismatch (B=5)"

    # Case 3: multi-step grid (exercises the "parallel" batch-tiling path).
    B3 = 40
    x3 = jax.random.normal(kx3, (B3, 3, 32, 32), jnp.float32)
    y3 = mlp_forward(x3, prepared, batch_tile=16)   # TB=16 -> grid of 3 steps
    jax.block_until_ready(y3)
    ref3 = _ref_mlp(x3, params)
    assert y3.shape == (B3, 10)
    assert jnp.allclose(y3, ref3, atol=2e-2, rtol=2e-2), "MLP mismatch (B=40)"

    print("KERNEL_OK")
</pallas_src>

<mosaic_0001>
module attributes {stable_mosaic.version = 11 : i64} {
  func.func @_mlp_kernel(%arg0: i32, %arg1: memref<16x3072xf32, #tpu.memory_space<vmem>>, %arg2: memref<3072x1024xbf16, #tpu.memory_space<vmem>>, %arg3: memref<1x1024xf32, #tpu.memory_space<vmem>>, %arg4: memref<1024x512xbf16, #tpu.memory_space<vmem>>, %arg5: memref<1x512xf32, #tpu.memory_space<vmem>>, %arg6: memref<512x256xbf16, #tpu.memory_space<vmem>>, %arg7: memref<1x256xf32, #tpu.memory_space<vmem>>, %arg8: memref<256x128xbf16, #tpu.memory_space<vmem>>, %arg9: memref<1x128xf32, #tpu.memory_space<vmem>>, %arg10: memref<128x128xbf16, #tpu.memory_space<vmem>>, %arg11: memref<1x128xf32, #tpu.memory_space<vmem>>, %arg12: memref<16x128xbf16, #tpu.memory_space<vmem>>) attributes {dimension_semantics = [#tpu.dimension_semantics<arbitrary>], iteration_bounds = array<i64: 1>, scalar_prefetch = 0 : i64, scratch_operands = 0 : i64, tpu.core_type = #tpu.core_type<tc>, window_params = [{transform_indices = @transform_0, window_bounds = array<i64: 16, 3072>}, {pipeline_mode = #tpu.pipeline_mode<synchronous>, transform_indices = @transform_1, window_bounds = array<i64: 3072, 1024>}, {pipeline_mode = #tpu.pipeline_mode<synchronous>, transform_indices = @transform_2, window_bounds = array<i64: 1, 1024>}, {pipeline_mode = #tpu.pipeline_mode<synchronous>, transform_indices = @transform_3, window_bounds = array<i64: 1024, 512>}, {pipeline_mode = #tpu.pipeline_mode<synchronous>, transform_indices = @transform_4, window_bounds = array<i64: 1, 512>}, {pipeline_mode = #tpu.pipeline_mode<synchronous>, transform_indices = @transform_5, window_bounds = array<i64: 512, 256>}, {pipeline_mode = #tpu.pipeline_mode<synchronous>, transform_indices = @transform_6, window_bounds = array<i64: 1, 256>}, {pipeline_mode = #tpu.pipeline_mode<synchronous>, transform_indices = @transform_7, window_bounds = array<i64: 256, 128>}, {pipeline_mode = #tpu.pipeline_mode<synchronous>, transform_indices = @transform_8, window_bounds = array<i64: 1, 128>}, {pipeline_mode = #tpu.pipeline_mode<synchronous>, transform_indices = @transform_9, window_bounds = array<i64: 128, 128>}, {pipeline_mode = #tpu.pipeline_mode<synchronous>, transform_indices = @transform_10, window_bounds = array<i64: 1, 128>}, {transform_indices = @transform_11, window_bounds = array<i64: 16, 128>}]} {
    %c0 = arith.constant 0 : index
    %c0_0 = arith.constant 0 : index
    %0 = vector.load %arg1[%c0, %c0_0] : memref<16x3072xf32, #tpu.memory_space<vmem>>, vector<16x3072xf32>
    %1 = arith.truncf %0 : vector<16x3072xf32> to vector<16x3072xbf16>
    %c0_1 = arith.constant 0 : index
    %c0_2 = arith.constant 0 : index
    %2 = vector.load %arg2[%c0_1, %c0_2] : memref<3072x1024xbf16, #tpu.memory_space<vmem>>, vector<3072x1024xbf16>
    %cst = arith.constant dense<0.000000e+00> : vector<16x1024xf32>
    %3 = tpu.matmul %1, %2, %cst {dimension_numbers = #tpu.dot_dimension_numbers<[1], [0], [0], [1], [0, 0, 1, 1], [], []>} : vector<16x3072xbf16>, vector<3072x1024xbf16>, vector<16x1024xf32> -> vector<16x1024xf32>
    %c0_3 = arith.constant 0 : index
    %c0_4 = arith.constant 0 : index
    %4 = vector.load %arg3[%c0_3, %c0_4] : memref<1x1024xf32, #tpu.memory_space<vmem>>, vector<1x1024xf32>
    %5 = vector.broadcast %4 : vector<1x1024xf32> to vector<16x1024xf32>
    %6 = arith.addf %3, %5 : vector<16x1024xf32>
    %cst_5 = arith.constant 0.00999999977 : f32
    %7 = vector.broadcast %cst_5 : f32 to vector<16x1024xf32>
    %8 = arith.mulf %7, %6 : vector<16x1024xf32>
    %9 = arith.maximumf %6, %8 : vector<16x1024xf32>
    %10 = arith.truncf %9 : vector<16x1024xf32> to vector<16x1024xbf16>
    %c0_6 = arith.constant 0 : index
    %c0_7 = arith.constant 0 : index
    %11 = vector.load %arg4[%c0_6, %c0_7] : memref<1024x512xbf16, #tpu.memory_space<vmem>>, vector<1024x512xbf16>
    %cst_8 = arith.constant dense<0.000000e+00> : vector<16x512xf32>
    %12 = tpu.matmul %10, %11, %cst_8 {dimension_numbers = #tpu.dot_dimension_numbers<[1], [0], [0], [1], [0, 0, 1, 1], [], []>} : vector<16x1024xbf16>, vector<1024x512xbf16>, vector<16x512xf32> -> vector<16x512xf32>
    %c0_9 = arith.constant 0 : index
    %c0_10 = arith.constant 0 : index
    %13 = vector.load %arg5[%c0_9, %c0_10] : memref<1x512xf32, #tpu.memory_space<vmem>>, vector<1x512xf32>
    %14 = vector.broadcast %13 : vector<1x512xf32> to vector<16x512xf32>
    %15 = arith.addf %12, %14 : vector<16x512xf32>
    %cst_11 = arith.constant 0.00999999977 : f32
    %16 = vector.broadcast %cst_11 : f32 to vector<16x512xf32>
    %17 = arith.mulf %16, %15 : vector<16x512xf32>
    %18 = arith.maximumf %15, %17 : vector<16x512xf32>
    %19 = arith.truncf %18 : vector<16x512xf32> to vector<16x512xbf16>
    %c0_12 = arith.constant 0 : index
    %c0_13 = arith.constant 0 : index
    %20 = vector.load %arg6[%c0_12, %c0_13] : memref<512x256xbf16, #tpu.memory_space<vmem>>, vector<512x256xbf16>
    %cst_14 = arith.constant dense<0.000000e+00> : vector<16x256xf32>
    %21 = tpu.matmul %19, %20, %cst_14 {dimension_numbers = #tpu.dot_dimension_numbers<[1], [0], [0], [1], [0, 0, 1, 1], [], []>} : vector<16x512xbf16>, vector<512x256xbf16>, vector<16x256xf32> -> vector<16x256xf32>
    %c0_15 = arith.constant 0 : index
    %c0_16 = arith.constant 0 : index
    %22 = vector.load %arg7[%c0_15, %c0_16] : memref<1x256xf32, #tpu.memory_space<vmem>>, vector<1x256xf32>
    %23 = vector.broadcast %22 : vector<1x256xf32> to vector<16x256xf32>
    %24 = arith.addf %21, %23 : vector<16x256xf32>
    %cst_17 = arith.constant 0.00999999977 : f32
    %25 = vector.broadcast %cst_17 : f32 to vector<16x256xf32>
    %26 = arith.mulf %25, %24 : vector<16x256xf32>
    %27 = arith.maximumf %24, %26 : vector<16x256xf32>
    %28 = arith.truncf %27 : vector<16x256xf32> to vector<16x256xbf16>
    %c0_18 = arith.constant 0 : index
    %c0_19 = arith.constant 0 : index
    %29 = vector.load %arg8[%c0_18, %c0_19] : memref<256x128xbf16, #tpu.memory_space<vmem>>, vector<256x128xbf16>
    %cst_20 = arith.constant dense<0.000000e+00> : vector<16x128xf32>
    %30 = tpu.matmul %28, %29, %cst_20 {dimension_numbers = #tpu.dot_dimension_numbers<[1], [0], [0], [1], [0, 0, 1, 1], [], []>} : vector<16x256xbf16>, vector<256x128xbf16>, vector<16x128xf32> -> vector<16x128xf32>
    %c0_21 = arith.constant 0 : index
    %c0_22 = arith.constant 0 : index
    %31 = vector.load %arg9[%c0_21, %c0_22] : memref<1x128xf32, #tpu.memory_space<vmem>>, vector<1x128xf32>
    %32 = vector.broadcast %31 : vector<1x128xf32> to vector<16x128xf32>
    %33 = arith.addf %30, %32 : vector<16x128xf32>
    %cst_23 = arith.constant 0.00999999977 : f32
    %34 = vector.broadcast %cst_23 : f32 to vector<16x128xf32>
    %35 = arith.mulf %34, %33 : vector<16x128xf32>
    %36 = arith.maximumf %33, %35 : vector<16x128xf32>
    %37 = arith.truncf %36 : vector<16x128xf32> to vector<16x128xbf16>
    %c0_24 = arith.constant 0 : index
    %c0_25 = arith.constant 0 : index
    %38 = vector.load %arg10[%c0_24, %c0_25] : memref<128x128xbf16, #tpu.memory_space<vmem>>, vector<128x128xbf16>
    %cst_26 = arith.constant dense<0.000000e+00> : vector<16x128xf32>
    %39 = tpu.matmul %37, %38, %cst_26 {dimension_numbers = #tpu.dot_dimension_numbers<[1], [0], [0], [1], [0, 0, 1, 1], [], []>} : vector<16x128xbf16>, vector<128x128xbf16>, vector<16x128xf32> -> vector<16x128xf32>
    %c0_27 = arith.constant 0 : index
    %c0_28 = arith.constant 0 : index
    %40 = vector.load %arg11[%c0_27, %c0_28] : memref<1x128xf32, #tpu.memory_space<vmem>>, vector<1x128xf32>
    %41 = vector.broadcast %40 : vector<1x128xf32> to vector<16x128xf32>
    %42 = arith.addf %39, %41 : vector<16x128xf32>
    %43 = arith.truncf %42 : vector<16x128xf32> to vector<16x128xbf16>
    %c0_29 = arith.constant 0 : index
    %c0_30 = arith.constant 0 : index
    %44 = vector.load %arg12[%c0_29, %c0_30] : memref<16x128xbf16, #tpu.memory_space<vmem>>, vector<16x128xbf16>
    tpu.vector_store %arg12[%c0_29, %c0_30], %43 {strides = array<i32>} : memref<16x128xbf16, #tpu.memory_space<vmem>>, vector<16x128xbf16>,
    return
  }
  func.func @transform_0(%arg0: i32) -> (i32, i32) {
    %c0_i32 = arith.constant 0 : i32
    %c0_i32_0 = arith.constant 0 : i32
    return %arg0, %c0_i32 : i32, i32
  }
  func.func @transform_1(%arg0: i32) -> (i32, i32) {
    %c0_i32 = arith.constant 0 : i32
    %c0_i32_0 = arith.constant 0 : i32
    %c0_i32_1 = arith.constant 0 : i32
    return %c0_i32, %c0_i32_0 : i32, i32
  }
  func.func @transform_2(%arg0: i32) -> (i32, i32) {
    %c0_i32 = arith.constant 0 : i32
    %c0_i32_0 = arith.constant 0 : i32
    %c0_i32_1 = arith.constant 0 : i32
    return %c0_i32, %c0_i32_0 : i32, i32
  }
  func.func @transform_3(%arg0: i32) -> (i32, i32) {
    %c0_i32 = arith.constant 0 : i32
    %c0_i32_0 = arith.constant 0 : i32
    %c0_i32_1 = arith.constant 0 : i32
    return %c0_i32, %c0_i32_0 : i32, i32
  }
  func.func @transform_4(%arg0: i32) -> (i32, i32) {
    %c0_i32 = arith.constant 0 : i32
    %c0_i32_0 = arith.constant 0 : i32
    %c0_i32_1 = arith.constant 0 : i32
    return %c0_i32, %c0_i32_0 : i32, i32
  }
  func.func @transform_5(%arg0: i32) -> (i32, i32) {
    %c0_i32 = arith.constant 0 : i32
    %c0_i32_0 = arith.constant 0 : i32
    %c0_i32_1 = arith.constant 0 : i32
    return %c0_i32, %c0_i32_0 : i32, i32
  }
  func.func @transform_6(%arg0: i32) -> (i32, i32) {
    %c0_i32 = arith.constant 0 : i32
    %c0_i32_0 = arith.constant 0 : i32
    %c0_i32_1 = arith.constant 0 : i32
    return %c0_i32, %c0_i32_0 : i32, i32
  }
  func.func @transform_7(%arg0: i32) -> (i32, i32) {
    %c0_i32 = arith.constant 0 : i32
    %c0_i32_0 = arith.constant 0 : i32
    %c0_i32_1 = arith.constant 0 : i32
    return %c0_i32, %c0_i32_0 : i32, i32
  }
  func.func @transform_8(%arg0: i32) -> (i32, i32) {
    %c0_i32 = arith.constant 0 : i32
    %c0_i32_0 = arith.constant 0 : i32
    %c0_i32_1 = arith.constant 0 : i32
    return %c0_i32, %c0_i32_0 : i32, i32
  }
  func.func @transform_9(%arg0: i32) -> (i32, i32) {
    %c0_i32 = arith.constant 0 : i32
    %c0_i32_0 = arith.constant 0 : i32
    %c0_i32_1 = arith.constant 0 : i32
    return %c0_i32, %c0_i32_0 : i32, i32
  }
  func.func @transform_10(%arg0: i32) -> (i32, i32) {
    %c0_i32 = arith.constant 0 : i32
    %c0_i32_0 = arith.constant 0 : i32
    %c0_i32_1 = arith.constant 0 : i32
    return %c0_i32, %c0_i32_0 : i32, i32
  }
  func.func @transform_11(%arg0: i32) -> (i32, i32) {
    %c0_i32 = arith.constant 0 : i32
    %c0_i32_0 = arith.constant 0 : i32
    return %arg0, %c0_i32 : i32, i32
  }
}

</mosaic_0001>

<llo_original>
// kernel: tpu_custom_call.1
$region0: #{tpu_custom_call.1}
  #allocation0 [shape = 'u32[]', space=smem, size = 0x4, offset = 0x4, fixed_abs, tag = 'smem constant byte address 0x4 - core index']
  #allocation1 [shape = 'u32[144,128]{1,0:T(1,128)}', space=vmem, size = 0x12000, scoped, tag = 'internal scratch']
  %s0 = inlined_call_operand.hbm [shape: f32[16,3072], index: 0, kind: input, shape index: {}]
  %s1 = inlined_call_operand.hbm [shape: bf16[3072,1024], index: 1, kind: input, shape index: {}]
  %s2 = inlined_call_operand.hbm [shape: f32[1,1024], index: 2, kind: input, shape index: {}]
  %s3 = inlined_call_operand.hbm [shape: bf16[1024,512], index: 3, kind: input, shape index: {}]
  %s4 = inlined_call_operand.hbm [shape: f32[1,512], index: 4, kind: input, shape index: {}]
  %s5 = inlined_call_operand.hbm [shape: bf16[512,256], index: 5, kind: input, shape index: {}]
  %s6 = inlined_call_operand.hbm [shape: f32[1,256], index: 6, kind: input, shape index: {}]
  %s7 = inlined_call_operand.hbm [shape: bf16[256,128], index: 7, kind: input, shape index: {}]
  %s8 = inlined_call_operand.hbm [shape: f32[1,128], index: 8, kind: input, shape index: {}]
  %s9 = inlined_call_operand.hbm [shape: bf16[128,128], index: 9, kind: input, shape index: {}]
  %s10 = inlined_call_operand.hbm [shape: f32[1,128], index: 10, kind: input, shape index: {}]
  %s11 = inlined_call_operand.hbm [shape: bf16[16,128], index: 11, kind: output, shape index: {}]
  %s12 = sld [smem:[#allocation0]]
  $region98: #{tpu_custom_call.1} parent=0
    _
  %s14 = ssub.s32 1, %s12
  %s15 = scalar_select 0, %s14, %s12
  $region1: #{tpu_custom_call.1} parent=0
    #allocation2 [shape = 'u8[196608]{0}', space=vmem, size = 0x30000, scoped, tag = 'input window, operand 0, single buffered']
    #allocation3 [shape = 's32[1]{0}', space=sflag, size = 0x4, scoped, tag = 'scoped memory for tpu_custom_call.1']
    #allocation4 [shape = 's32[1]{0}', space=sflag, size = 0x4, scoped, tag = 'scoped memory for tpu_custom_call.1']
    #allocation5 [shape = 'u8[6291456]{0}', space=vmem, size = 0x600000, scoped, tag = 'input window, operand 1, single buffered']
    #allocation6 [shape = 's32[1]{0}', space=sflag, size = 0x4, scoped, tag = 'scoped memory for tpu_custom_call.1']
    #allocation7 [shape = 'u8[4096]{0}', space=vmem, size = 0x1000, scoped, tag = 'input window, operand 2, single buffered']
    #allocation8 [shape = 'u8[1048576]{0}', space=vmem, size = 0x100000, scoped, tag = 'input window, operand 3, single buffered']
    #allocation9 [shape = 's32[1]{0}', space=sflag, size = 0x4, scoped, tag = 'scoped memory for tpu_custom_call.1']
    #allocation10 [shape = 'u8[2048]{0}', space=vmem, size = 0x800, scoped, tag = 'input window, operand 4, single buffered']
    #allocation11 [shape = 'u8[262144]{0}', space=vmem, size = 0x40000, scoped, tag = 'input window, operand 5, single buffered']
    #allocation12 [shape = 's32[1]{0}', space=sflag, size = 0x4, scoped, tag = 'scoped memory for tpu_custom_call.1']
    #allocation13 [shape = 'u8[1024]{0}', space=vmem, size = 0x400, scoped, tag = 'input window, operand 6, single buffered']
    #allocation14 [shape = 'u8[65536]{0}', space=vmem, size = 0x10000, scoped, tag = 'input window, operand 7, single buffered']
    #allocation15 [shape = 's32[1]{0}', space=sflag, size = 0x4, scoped, tag = 'scoped memory for tpu_custom_call.1']
    #allocation16 [shape = 'u8[512]{0}', space=vmem, size = 0x400, scoped, tag = 'input window, operand 8, single buffered']
    #allocation17 [shape = 'u8[32768]{0}', space=vmem, size = 0x8000, scoped, tag = 'input window, operand 9, single buffered']
    #allocation18 [shape = 's32[1]{0}', space=sflag, size = 0x4, scoped, tag = 'scoped memory for tpu_custom_call.1']
    #allocation19 [shape = 'u8[512]{0}', space=vmem, size = 0x400, scoped, tag = 'input window, operand 10, single buffered']
    #allocation20 [shape = 'u8[4096]{0}', space=vmem, size = 0x1000, scoped, tag = 'output window, operand 0, single buffered']
    %16 = vsyncpa [#allocation3], 0
    %17 = vsyncpa [#allocation6], 0
    %18 = vsyncpa [#allocation9], 0
    %19 = vsyncpa [#allocation12], 0
    %20 = vsyncpa [#allocation15], 0
    %21 = vsyncpa [#allocation18], 0
    %22 = vsyncpa [#allocation4], 0
    // Predicated region
    $region2: #{tpu_custom_call.1} parent=1 // pred_check
      _
    $region3: #{tpu_custom_call.1} parent=1 // pred_check_branch
      %24 = sbr.rel (0) target = $region5
    $region4: #{tpu_custom_call.1} parent=1 // pred_region
      %s26 = ssub.s32 6144, 6144
      %27 = vsyncadd [#allocation3], %s26
      %s28 = sshll.u32 [#allocation2], 4
      %s29 = int_to_ptr.vmem [resolvable:$true] %s28
      %34 = dma.hbm_to_vmem [thread:$0]  %s0, 6144, %s29, [#allocation3], 3072, 3072, 192
    $region5: #{tpu_custom_call.1} parent=1 // pred_fallthru
      _
    // Predicated region
    $region6: #{tpu_custom_call.1} parent=1 // pred_check
      _
    $region7: #{tpu_custom_call.1} parent=1 // pred_check_branch
      %36 = sbr.rel (0) target = $region9
    $region8: #{tpu_custom_call.1} parent=1 // pred_region
      %s38 = ssub.s32 196608, 196608
      %39 = vsyncadd [#allocation6], %s38
      %s40 = sshll.u32 [#allocation5], 4
      %s41 = int_to_ptr.vmem [resolvable:$true] %s40
      %46 = dma.hbm_to_vmem [thread:$0]  %s1, 196608, %s41, [#allocation6], 512, 512, 32
    $region9: #{tpu_custom_call.1} parent=1 // pred_fallthru
      _
    // Predicated region
    $region10: #{tpu_custom_call.1} parent=1 // pred_check
      _
    $region11: #{tpu_custom_call.1} parent=1 // pred_check_branch
      %48 = sbr.rel (0) target = $region13
    $region12: #{tpu_custom_call.1} parent=1 // pred_region
      %s50 = ssub.s32 128, 128
      %51 = vsyncadd [#allocation6], %s50
      %s53 = sshll.u32 [#allocation7], 4
      %s54 = int_to_ptr.vmem [resolvable:$true] %s53
      %56 = dma.hbm_to_vmem [thread:$0]  %s2, 128, %s54, [#allocation6]
    $region13: #{tpu_custom_call.1} parent=1 // pred_fallthru
      _
    // Predicated region
    $region14: #{tpu_custom_call.1} parent=1 // pred_check
      _
    $region15: #{tpu_custom_call.1} parent=1 // pred_check_branch
      %58 = sbr.rel (0) target = $region17
    $region16: #{tpu_custom_call.1} parent=1 // pred_region
      %s60 = ssub.s32 32768, 32768
      %61 = vsyncadd [#allocation9], %s60
      %s62 = sshll.u32 [#allocation8], 4
      %s63 = int_to_ptr.vmem [resolvable:$true] %s62
      %68 = dma.hbm_to_vmem [thread:$0]  %s3, 32768, %s63, [#allocation9], 256, 256, 16
    $region17: #{tpu_custom_call.1} parent=1 // pred_fallthru
      _
    // Predicated region
    $region18: #{tpu_custom_call.1} parent=1 // pred_check
      _
    $region19: #{tpu_custom_call.1} parent=1 // pred_check_branch
      %70 = sbr.rel (0) target = $region21
    $region20: #{tpu_custom_call.1} parent=1 // pred_region
      %s72 = ssub.s32 64, 64
      %73 = vsyncadd [#allocation9], %s72
      %s75 = sshll.u32 [#allocation10], 4
      %s76 = int_to_ptr.vmem [resolvable:$true] %s75
      %78 = dma.hbm_to_vmem [thread:$0]  %s4, 64, %s76, [#allocation9]
    $region21: #{tpu_custom_call.1} parent=1 // pred_fallthru
      _
    // Predicated region
    $region22: #{tpu_custom_call.1} parent=1 // pred_check
      _
    $region23: #{tpu_custom_call.1} parent=1 // pred_check_branch
      %80 = sbr.rel (0) target = $region25
    $region24: #{tpu_custom_call.1} parent=1 // pred_region
      %s82 = ssub.s32 8192, 8192
      %83 = vsyncadd [#allocation12], %s82
      %s84 = sshll.u32 [#allocation11], 4
      %s85 = int_to_ptr.vmem [resolvable:$true] %s84
      %90 = dma.hbm_to_vmem [thread:$0]  %s5, 8192, %s85, [#allocation12], 128, 128, 8
    $region25: #{tpu_custom_call.1} parent=1 // pred_fallthru
      _
    // Predicated region
    $region26: #{tpu_custom_call.1} parent=1 // pred_check
      _
    $region27: #{tpu_custom_call.1} parent=1 // pred_check_branch
      %92 = sbr.rel (0) target = $region29
    $region28: #{tpu_custom_call.1} parent=1 // pred_region
      %s94 = ssub.s32 32, 32
      %95 = vsyncadd [#allocation12], %s94
      %s97 = sshll.u32 [#allocation13], 4
      %s98 = int_to_ptr.vmem [resolvable:$true] %s97
      %100 = dma.hbm_to_vmem [thread:$0]  %s6, 32, %s98, [#allocation12]
    $region29: #{tpu_custom_call.1} parent=1 // pred_fallthru
      _
    // Predicated region
    $region30: #{tpu_custom_call.1} parent=1 // pred_check
      _
    $region31: #{tpu_custom_call.1} parent=1 // pred_check_branch
      %102 = sbr.rel (0) target = $region33
    $region32: #{tpu_custom_call.1} parent=1 // pred_region
      %s104 = ssub.s32 2048, 2048
      %105 = vsyncadd [#allocation15], %s104
      %s106 = sshll.u32 [#allocation14], 4
      %s107 = int_to_ptr.vmem [resolvable:$true] %s106
      %112 = dma.hbm_to_vmem [thread:$0]  %s7, 2048, %s107, [#allocation15], 64, 64, 4
    $region33: #{tpu_custom_call.1} parent=1 // pred_fallthru
      _
    // Predicated region
    $region34: #{tpu_custom_call.1} parent=1 // pred_check
      _
    $region35: #{tpu_custom_call.1} parent=1 // pred_check_branch
      %114 = sbr.rel (0) target = $region37
    $region36: #{tpu_custom_call.1} parent=1 // pred_region
      %s116 = ssub.s32 16, 16
      %117 = vsyncadd [#allocation15], %s116
      %s119 = sshll.u32 [#allocation16], 4
      %s120 = int_to_ptr.vmem [resolvable:$true] %s119
      %122 = dma.hbm_to_vmem [thread:$0]  %s8, 16, %s120, [#allocation15]
    $region37: #{tpu_custom_call.1} parent=1 // pred_fallthru
      _
    // Predicated region
    $region38: #{tpu_custom_call.1} parent=1 // pred_check
      _
    $region39: #{tpu_custom_call.1} parent=1 // pred_check_branch
      %124 = sbr.rel (0) target = $region41
    $region40: #{tpu_custom_call.1} parent=1 // pred_region
      %s126 = ssub.s32 1024, 1024
      %127 = vsyncadd [#allocation18], %s126
      %s128 = sshll.u32 [#allocation17], 4
      %s129 = int_to_ptr.vmem [resolvable:$true] %s128
      %134 = dma.hbm_to_vmem [thread:$0]  %s9, 1024, %s129, [#allocation18], 64, 64, 4
    $region41: #{tpu_custom_call.1} parent=1 // pred_fallthru
      _
    // Predicated region
    $region42: #{tpu_custom_call.1} parent=1 // pred_check
      _
    $region43: #{tpu_custom_call.1} parent=1 // pred_check_branch
      %136 = sbr.rel (0) target = $region45
    $region44: #{tpu_custom_call.1} parent=1 // pred_region
      %s138 = ssub.s32 16, 16
      %139 = vsyncadd [#allocation18], %s138
      %s141 = sshll.u32 [#allocation19], 4
      %s142 = int_to_ptr.vmem [resolvable:$true] %s141
      %144 = dma.hbm_to_vmem [thread:$0]  %s10, 16, %s142, [#allocation18]
    $region45: #{tpu_custom_call.1} parent=1 // pred_fallthru
      _
    // Predicated region
    $region46: #{tpu_custom_call.1} parent=1 // pred_check
      _
    $region47: #{tpu_custom_call.1} parent=1 // pred_check_branch
      %146 = sbr.rel (0) target = $region49
    $region48: #{tpu_custom_call.1} parent=1 // pred_region
      %147 = dma.done [#allocation3], 6144
    $region49: #{tpu_custom_call.1} parent=1 // pred_fallthru
      _
    // Predicated region
    $region50: #{tpu_custom_call.1} parent=1 // pred_check
      _
    $region51: #{tpu_custom_call.1} parent=1 // pred_check_branch
      %149 = sbr.rel (0) target = $region53
    $region52: #{tpu_custom_call.1} parent=1 // pred_region
      %150 = dma.done [#allocation6], 196608
    $region53: #{tpu_custom_call.1} parent=1 // pred_fallthru
      _
    // Predicated region
    $region54: #{tpu_custom_call.1} parent=1 // pred_check
      _
    $region55: #{tpu_custom_call.1} parent=1 // pred_check_branch
      %152 = sbr.rel (0) target = $region57
    $region56: #{tpu_custom_call.1} parent=1 // pred_region
      %153 = dma.done [#allocation6], 128
    $region57: #{tpu_custom_call.1} parent=1 // pred_fallthru
      _
    // Predicated region
    $region58: #{tpu_custom_call.1} parent=1 // pred_check
      _
    $region59: #{tpu_custom_call.1} parent=1 // pred_check_branch
      %155 = sbr.rel (0) target = $region61
    $region60: #{tpu_custom_call.1} parent=1 // pred_region
      %156 = dma.done [#allocation9], 32768
    $region61: #{tpu_custom_call.1} parent=1 // pred_fallthru
      _
    // Predicated region
    $region62: #{tpu_custom_call.1} parent=1 // pred_check
      _
    $region63: #{tpu_custom_call.1} parent=1 // pred_check_branch
      %158 = sbr.rel (0) target = $region65
    $region64: #{tpu_custom_call.1} parent=1 // pred_region
      %159 = dma.done [#allocation9], 64
    $region65: #{tpu_custom_call.1} parent=1 // pred_fallthru
      _
    // Predicated region
    $region66: #{tpu_custom_call.1} parent=1 // pred_check
      _
    $region67: #{tpu_custom_call.1} parent=1 // pred_check_branch
      %161 = sbr.rel (0) target = $region69
    $region68: #{tpu_custom_call.1} parent=1 // pred_region
      %162 = dma.done [#allocation12], 8192
    $region69: #{tpu_custom_call.1} parent=1 // pred_fallthru
      _
    // Predicated region
    $region70: #{tpu_custom_call.1} parent=1 // pred_check
      _
    $region71: #{tpu_custom_call.1} parent=1 // pred_check_branch
      %164 = sbr.rel (0) target = $region73
    $region72: #{tpu_custom_call.1} parent=1 // pred_region
      %165 = dma.done [#allocation12], 32
    $region73: #{tpu_custom_call.1} parent=1 // pred_fallthru
      _
    // Predicated region
    $region74: #{tpu_custom_call.1} parent=1 // pred_check
      _
    $region75: #{tpu_custom_call.1} parent=1 // pred_check_branch
      %167 = sbr.rel (0) target = $region77
    $region76: #{tpu_custom_call.1} parent=1 // pred_region
      %168 = dma.done [#allocation15], 2048
    $region77: #{tpu_custom_call.1} parent=1 // pred_fallthru
      _
    // Predicated region
    $region78: #{tpu_custom_call.1} parent=1 // pred_check
      _
    $region79: #{tpu_custom_call.1} parent=1 // pred_check_branch
      %170 = sbr.rel (0) target = $region81
    $region80: #{tpu_custom_call.1} parent=1 // pred_region
      %171 = dma.done [#allocation15], 16
    $region81: #{tpu_custom_call.1} parent=1 // pred_fallthru
      _
    // Predicated region
    $region82: #{tpu_custom_call.1} parent=1 // pred_check
      _
    $region83: #{tpu_custom_call.1} parent=1 // pred_check_branch
      %173 = sbr.rel (0) target = $region85
    $region84: #{tpu_custom_call.1} parent=1 // pred_region
      %174 = dma.done [#allocation18], 1024
    $region85: #{tpu_custom_call.1} parent=1 // pred_fallthru
      _
    // Predicated region
    $region86: #{tpu_custom_call.1} parent=1 // pred_check
      _
    $region87: #{tpu_custom_call.1} parent=1 // pred_check_branch
      %176 = sbr.rel (0) target = $region89
    $region88: #{tpu_custom_call.1} parent=1 // pred_region
      %177 = dma.done [#allocation18], 16
    $region89: #{tpu_custom_call.1} parent=1 // pred_fallthru
      _
    %v179 = vld [vmem:[#allocation2] sm:$0xff]
    %v180 = vld [vmem:[#allocation2 + $0x8] sm:$0xff]
    %v181 = vld [vmem:[#allocation2 + $0x10] sm:$0xff]
    %v182 = vld [vmem:[#allocation2 + $0x18] sm:$0xff]
    %v183 = vld [vmem:[#allocation2 + $0x20] sm:$0xff]
    %v184 = vld [vmem:[#allocation2 + $0x28] sm:$0xff]
    %v185 = vld [vmem:[#allocation2 + $0x30] sm:$0xff]
    %v186 = vld [vmem:[#allocation2 + $0x38] sm:$0xff]
    %v187 = vld [vmem:[#allocation2 + $0x40] sm:$0xff]
    %v188 = vld [vmem:[#allocation2 + $0x48] sm:$0xff]
    %v189 = vld [vmem:[#allocation2 + $0x50] sm:$0xff]
    %v190 = vld [vmem:[#allocation2 + $0x58] sm:$0xff]
    %v191 = vld [vmem:[#allocation2 + $0x60] sm:$0xff]
    %v192 = vld [vmem:[#allocation2 + $0x68] sm:$0xff]
    %v193 = vld [vmem:[#allocation2 + $0x70] sm:$0xff]
    %v194 = vld [vmem:[#allocation2 + $0x78] sm:$0xff]
    %v195 = vld [vmem:[#allocation2 + $0x80] sm:$0xff]
    %v196 = vld [vmem:[#allocation2 + $0x88] sm:$0xff]
    %v197 = vld [vmem:[#allocation2 + $0x90] sm:$0xff]
    %v198 = vld [vmem:[#allocation2 + $0x98] sm:$0xff]
    %v199 = vld [vmem:[#allocation2 + $0xa0] sm:$0xff]
    %v200 = vld [vmem:[#allocation2 + $0xa8] sm:$0xff]
    %v201 = vld [vmem:[#allocation2 + $0xb0] sm:$0xff]
    %v202 = vld [vmem:[#allocation2 + $0xb8] sm:$0xff]
    %v203 = vld [vmem:[#allocation2 + $0xc0] sm:$0xff]
    %v204 = vld [vmem:[#allocation2 + $0xc8] sm:$0xff]
    %v205 = vld [vmem:[#allocation2 + $0xd0] sm:$0xff]
    %v206 = vld [vmem:[#allocation2 + $0xd8] sm:$0xff]
    %v207 = vld [vmem:[#allocation2 + $0xe0] sm:$0xff]
    %v208 = vld [vmem:[#allocation2 + $0xe8] sm:$0xff]
    %v209 = vld [vmem:[#allocation2 + $0xf0] sm:$0xff]
    %v210 = vld [vmem:[#allocation2 + $0xf8] sm:$0xff]
    %v211 = vld [vmem:[#allocation2 + $0x100] sm:$0xff]
    %v212 = vld [vmem:[#allocation2 + $0x108] sm:$0xff]
    %v213 = vld [vmem:[#allocation2 + $0x110] sm:$0xff]
    %v214 = vld [vmem:[#allocation2 + $0x118] sm:$0xff]
    %v215 = vld [vmem:[#allocation2 + $0x120] sm:$0xff]
    %v216 = vld [vmem:[#allocation2 + $0x128] sm:$0xff]
    %v217 = vld [vmem:[#allocation2 + $0x130] sm:$0xff]
    %v218 = vld [vmem:[#allocation2 + $0x138] sm:$0xff]
    %v219 = vld [vmem:[#allocation2 + $0x140] sm:$0xff]
    %v220 = vld [vmem:[#allocation2 + $0x148] sm:$0xff]
    %v221 = vld [vmem:[#allocation2 + $0x150] sm:$0xff]
    %v222 = vld [vmem:[#allocation2 + $0x158] sm:$0xff]
    %v223 = vld [vmem:[#allocation2 + $0x160] sm:$0xff]
    %v224 = vld [vmem:[#allocation2 + $0x168] sm:$0xff]
    %v225 = vld [vmem:[#allocation2 + $0x170] sm:$0xff]
    %v226 = vld [vmem:[#allocation2 + $0x178] sm:$0xff]
    %v227 = vpack.c.bf16 %v203, %v179
    %v228 = vpack.c.bf16 %v204, %v180
    %v229 = vpack.c.bf16 %v205, %v181
    %v230 = vpack.c.bf16 %v206, %v182
    %v231 = vpack.c.bf16 %v207, %v183
    %v232 = vpack.c.bf16 %v208, %v184
    %v233 = vpack.c.bf16 %v209, %v185
    %v234 = vpack.c.bf16 %v210, %v186
    %v235 = vpack.c.bf16 %v211, %v187
    %v236 = vpack.c.bf16 %v212, %v188
    %v237 = vpack.c.bf16 %v213, %v189
    %v238 = vpack.c.bf16 %v214, %v190
    %v239 = vpack.c.bf16 %v215, %v191
    %v240 = vpack.c.bf16 %v216, %v192
    %v241 = vpack.c.bf16 %v217, %v193
    %v242 = vpack.c.bf16 %v218, %v194
    %v243 = vpack.c.bf16 %v219, %v195
    %v244 = vpack.c.bf16 %v220, %v196
    %v245 = vpack.c.bf16 %v221, %v197
    %v246 = vpack.c.bf16 %v222, %v198
    %v247 = vpack.c.bf16 %v223, %v199
    %v248 = vpack.c.bf16 %v224, %v200
    %v249 = vpack.c.bf16 %v225, %v201
    %v250 = vpack.c.bf16 %v226, %v202
    %v251 = vld [vmem:[#allocation5] sm:$0xff]
    %v252 = vld [vmem:[#allocation5 + $0x8] sm:$0xff]
    %v253 = vld [vmem:[#allocation5 + $0x10] sm:$0xff]
    %v254 = vld [vmem:[#allocation5 + $0x18] sm:$0xff]
    %v255 = vld [vmem:[#allocation5 + $0x20] sm:$0xff]
    %v256 = vld [vmem:[#allocation5 + $0x28] sm:$0xff]
    %v257 = vld [vmem:[#allocation5 + $0x30] sm:$0xff]
    %v258 = vld [vmem:[#allocation5 + $0x38] sm:$0xff]
    %v259 = vld [vmem:[#allocation5 + $0x40] sm:$0xff]
    %v260 = vld [vmem:[#allocation5 + $0x48] sm:$0xff]
    %v261 = vld [vmem:[#allocation5 + $0x50] sm:$0xff]
    %v262 = vld [vmem:[#allocation5 + $0x58] sm:$0xff]
    %v263 = vld [vmem:[#allocation5 + $0x60] sm:$0xff]
    %v264 = vld [vmem:[#allocation5 + $0x68] sm:$0xff]
    %v265 = vld [vmem:[#allocation5 + $0x70] sm:$0xff]
    %v266 = vld [vmem:[#allocation5 + $0x78] sm:$0xff]
    %v267 = vld [vmem:[#allocation5 + $0x80] sm:$0xff]
    %v268 = vld [vmem:[#allocation5 + $0x88] sm:$0xff]
    %v269 = vld [vmem:[#allocation5 + $0x90] sm:$0xff]
    %v270 = vld [vmem:[#allocation5 + $0x98] sm:$0xff]
    %v271 = vld [vmem:[#allocation5 + $0xa0] sm:$0xff]
    %v272 = vld [vmem:[#allocation5 + $0xa8] sm:$0xff]
    %v273 = vld [vmem:[#allocation5 + $0xb0] sm:$0xff]
    %v274 = vld [vmem:[#allocation5 + $0xb8] sm:$0xff]
    %v275 = vld [vmem:[#allocation5 + $0xc0] sm:$0xff]
    %v276 = vld [vmem:[#allocation5 + $0xc8] sm:$0xff]
    %v277 = vld [vmem:[#allocation5 + $0xd0] sm:$0xff]
    %v278 = vld [vmem:[#allocation5 + $0xd8] sm:$0xff]
    %v279 = vld [vmem:[#allocation5 + $0xe0] sm:$0xff]
    %v280 = vld [vmem:[#allocation5 + $0xe8] sm:$0xff]
    %v281 = vld [vmem:[#allocation5 + $0xf0] sm:$0xff]
    %v282 = vld [vmem:[#allocation5 + $0xf8] sm:$0xff]
    %v283 = vld [vmem:[#allocation5 + $0x100] sm:$0xff]
    %v284 = vld [vmem:[#allocation5 + $0x108] sm:$0xff]
    %v285 = vld [vmem:[#allocation5 + $0x110] sm:$0xff]
    %v286 = vld [vmem:[#allocation5 + $0x118] sm:$0xff]
    %v287 = vld [vmem:[#allocation5 + $0x120] sm:$0xff]
    %v288 = vld [vmem:[#allocation5 + $0x128] sm:$0xff]
    %v289 = vld [vmem:[#allocation5 + $0x130] sm:$0xff]
    %v290 = vld [vmem:[#allocation5 + $0x138] sm:$0xff]
    %v291 = vld [vmem:[#allocation5 + $0x140] sm:$0xff]
    %v292 = vld [vmem:[#allocation5 + $0x148] sm:$0xff]
    %v293 = vld [vmem:[#allocation5 + $0x150] sm:$0xff]
    %v294 = vld [vmem:[#allocation5 + $0x158] sm:$0xff]
    %v295 = vld [vmem:[#allocation5 + $0x160] sm:$0xff]
    %v296 = vld [vmem:[#allocation5 + $0x168] sm:$0xff]
    %v297 = vld [vmem:[#allocation5 + $0x170] sm:$0xff]
    %v298 = vld [vmem:[#allocation5 + $0x178] sm:$0xff]
    %v299 = vld [vmem:[#allocation5 + $0x180] sm:$0xff]
    %v300 = vld [vmem:[#allocation5 + $0x188] sm:$0xff]
    %v301 = vld [vmem:[#allocation5 + $0x190] sm:$0xff]
    %v302 = vld [vmem:[#allocation5 + $0x198] sm:$0xff]
    %v303 = vld [vmem:[#allocation5 + $0x1a0] sm:$0xff]
    %v304 = vld [vmem:[#allocation5 + $0x1a8] sm:$0xff]
    %v305 = vld [vmem:[#allocation5 + $0x1b0] sm:$0xff]
    %v306 = vld [vmem:[#allocation5 + $0x1b8] sm:$0xff]
    %v307 = vld [vmem:[#allocation5 + $0x1c0] sm:$0xff]
    %v308 = vld [vmem:[#allocation5 + $0x1c8] sm:$0xff]
    %v309 = vld [vmem:[#allocation5 + $0x1d0] sm:$0xff]
    %v310 = vld [vmem:[#allocation5 + $0x1d8] sm:$0xff]
    %v311 = vld [vmem:[#allocation5 + $0x1e0] sm:$0xff]
    %v312 = vld [vmem:[#allocation5 + $0x1e8] sm:$0xff]
    %v313 = vld [vmem:[#allocation5 + $0x1f0] sm:$0xff]
    %v314 = vld [vmem:[#allocation5 + $0x1f8] sm:$0xff]
    %v315 = vld [vmem:[#allocation5 + $0x200] sm:$0xff]
    %v316 = vld [vmem:[#allocation5 + $0x208] sm:$0xff]
    %v317 = vld [vmem:[#allocation5 + $0x210] sm:$0xff]
    %v318 = vld [vmem:[#allocation5 + $0x218] sm:$0xff]
    %v319 = vld [vmem:[#allocation5 + $0x220] sm:$0xff]
    %v320 = vld [vmem:[#allocation5 + $0x228] sm:$0xff]
    %v321 = vld [vmem:[#allocation5 + $0x230] sm:$0xff]
    %v322 = vld [vmem:[#allocation5 + $0x238] sm:$0xff]
    %v323 = vld [vmem:[#allocation5 + $0x240] sm:$0xff]
    %v324 = vld [vmem:[#allocation5 + $0x248] sm:$0xff]
    %v325 = vld [vmem:[#allocation5 + $0x250] sm:$0xff]
    %v326 = vld [vmem:[#allocation5 + $0x258] sm:$0xff]
    %v327 = vld [vmem:[#allocation5 + $0x260] sm:$0xff]
    %v328 = vld [vmem:[#allocation5 + $0x268] sm:$0xff]
    %v329 = vld [vmem:[#allocation5 + $0x270] sm:$0xff]
    %v330 = vld [vmem:[#allocation5 + $0x278] sm:$0xff]
    %v331 = vld [vmem:[#allocation5 + $0x280] sm:$0xff]
    %v332 = vld [vmem:[#allocation5 + $0x288] sm:$0xff]
    %v333 = vld [vmem:[#allocation5 + $0x290] sm:$0xff]
    %v334 = vld [vmem:[#allocation5 + $0x298] sm:$0xff]
    %v335 = vld [vmem:[#allocation5 + $0x2a0] sm:$0xff]
    %v336 = vld [vmem:[#allocation5 + $0x2a8] sm:$0xff]
    %v337 = vld [vmem:[#allocation5 + $0x2b0] sm:$0xff]
    %v338 = vld [vmem:[#allocation5 + $0x2b8] sm:$0xff]
    %v339 = vld [vmem:[#allocation5 + $0x2c0] sm:$0xff]
    %v340 = vld [vmem:[#allocation5 + $0x2c8] sm:$0xff]
    %v341 = vld [vmem:[#allocation5 + $0x2d0] sm:$0xff]
    %v342 = vld [vmem:[#allocation5 + $0x2d8] sm:$0xff]
    %v343 = vld [vmem:[#allocation5 + $0x2e0] sm:$0xff]
    %v344 = vld [vmem:[#allocation5 + $0x2e8] sm:$0xff]
    %v345 = vld [vmem:[#allocation5 + $0x2f0] sm:$0xff]
    %v346 = vld [vmem:[#allocation5 + $0x2f8] sm:$0xff]
    %v347 = vld [vmem:[#allocation5 + $0x300] sm:$0xff]
    %v348 = vld [vmem:[#allocation5 + $0x308] sm:$0xff]
    %v349 = vld [vmem:[#allocation5 + $0x310] sm:$0xff]
    %v350 = vld [vmem:[#allocation5 + $0x318] sm:$0xff]
    %v351 = vld [vmem:[#allocation5 + $0x320] sm:$0xff]
    %v352 = vld [vmem:[#allocation5 + $0x328] sm:$0xff]
    %v353 = vld [vmem:[#allocation5 + $0x330] sm:$0xff]
    %v354 = vld [vmem:[#allocation5 + $0x338] sm:$0xff]
    %v355 = vld [vmem:[#allocation5 + $0x340] sm:$0xff]
    %v356 = vld [vmem:[#allocation5 + $0x348] sm:$0xff]
    %v357 = vld [vmem:[#allocation5 + $0x350] sm:$0xff]
    %v358 = vld [vmem:[#allocation5 + $0x358] sm:$0xff]
    %v359 = vld [vmem:[#allocation5 + $0x360] sm:$0xff]
    %v360 = vld [vmem:[#allocation5 + $0x368] sm:$0xff]
    %v361 = vld [vmem:[#allocation5 + $0x370] sm:$0xff]
    %v362 = vld [vmem:[#allocation5 + $0x378] sm:$0xff]
    %v363 = vld [vmem:[#allocation5 + $0x380] sm:$0xff]
    %v364 = vld [vmem:[#allocation5 + $0x388] sm:$0xff]
    %v365 = vld [vmem:[#allocation5 + $0x390] sm:$0xff]
    %v366 = vld [vmem:[#allocation5 + $0x398] sm:$0xff]
    %v367 = vld [vmem:[#allocation5 + $0x3a0] sm:$0xff]
    %v368 = vld [vmem:[#allocation5 + $0x3a8] sm:$0xff]
    %v369 = vld [vmem:[#allocation5 + $0x3b0] sm:$0xff]
    %v370 = vld [vmem:[#allocation5 + $0x3b8] sm:$0xff]
    %v371 = vld [vmem:[#allocation5 + $0x3c0] sm:$0xff]
    %v372 = vld [vmem:[#allocation5 + $0x3c8] sm:$0xff]
    %v373 = vld [vmem:[#allocation5 + $0x3d0] sm:$0xff]
    %v374 = vld [vmem:[#allocation5 + $0x3d8] sm:$0xff]
    %v375 = vld [vmem:[#allocation5 + $0x3e0] sm:$0xff]
    %v376 = vld [vmem:[#allocation5 + $0x3e8] sm:$0xff]
    %v377 = vld [vmem:[#allocation5 + $0x3f0] sm:$0xff]
    %v378 = vld [vmem:[#allocation5 + $0x3f8] sm:$0xff]
    %v379 = vld [vmem:[#allocation5 + $0x400] sm:$0xff]
    %v380 = vld [vmem:[#allocation5 + $0x408] sm:$0xff]
    %v381 = vld [vmem:[#allocation5 + $0x410] sm:$0xff]
    %v382 = vld [vmem:[#allocation5 + $0x418] sm:$0xff]
    %v383 = vld [vmem:[#allocation5 + $0x420] sm:$0xff]
    %v384 = vld [vmem:[#allocation5 + $0x428] sm:$0xff]
    %v385 = vld [vmem:[#allocation5 + $0x430] sm:$0xff]
    %v386 = vld [vmem:[#allocation5 + $0x438] sm:$0xff]
    %v387 = vld [vmem:[#allocation5 + $0x440] sm:$0xff]
    %v388 = vld [vmem:[#allocation5 + $0x448] sm:$0xff]
    %v389 = vld [vmem:[#allocation5 + $0x450] sm:$0xff]
    %v390 = vld [vmem:[#allocation5 + $0x458] sm:$0xff]
    %v391 = vld [vmem:[#allocation5 + $0x460] sm:$0xff]
    %v392 = vld [vmem:[#allocation5 + $0x468] sm:$0xff]
    %v393 = vld [vmem:[#allocation5 + $0x470] sm:$0xff]
    %v394 = vld [vmem:[#allocation5 + $0x478] sm:$0xff]
    %v395 = vld [vmem:[#allocation5 + $0x480] sm:$0xff]
    %v396 = vld [vmem:[#allocation5 + $0x488] sm:$0xff]
    %v397 = vld [vmem:[#allocation5 + $0x490] sm:$0xff]
    %v398 = vld [vmem:[#allocation5 + $0x498] sm:$0xff]
    %v399 = vld [vmem:[#allocation5 + $0x4a0] sm:$0xff]
    %v400 = vld [vmem:[#allocation5 + $0x4a8] sm:$0xff]
    %v401 = vld [vmem:[#allocation5 + $0x4b0] sm:$0xff]
    %v402 = vld [vmem:[#allocation5 + $0x4b8] sm:$0xff]
    %v403 = vld [vmem:[#allocation5 + $0x4c0] sm:$0xff]
    %v404 = vld [vmem:[#allocation5 + $0x4c8] sm:$0xff]
    %v405 = vld [vmem:[#allocation5 + $0x4d0] sm:$0xff]
    %v406 = vld [vmem:[#allocation5 + $0x4d8] sm:$0xff]
    %v407 = vld [vmem:[#allocation5 + $0x4e0] sm:$0xff]
    %v408 = vld [vmem:[#allocation5 + $0x4e8] sm:$0xff]
    %v409 = vld [vmem:[#allocation5 + $0x4f0] sm:$0xff]
    %v410 = vld [vmem:[#allocation5 + $0x4f8] sm:$0xff]
    %v411 = vld [vmem:[#allocation5 + $0x500] sm:$0xff]
    %v412 = vld [vmem:[#allocation5 + $0x508] sm:$0xff]
    %v413 = vld [vmem:[#allocation5 + $0x510] sm:$0xff]
    %v414 = vld [vmem:[#allocation5 + $0x518] sm:$0xff]
    %v415 = vld [vmem:[#allocation5 + $0x520] sm:$0xff]
    %v416 = vld [vmem:[#allocation5 + $0x528] sm:$0xff]
    %v417 = vld [vmem:[#allocation5 + $0x530] sm:$0xff]
    %v418 = vld [vmem:[#allocation5 + $0x538] sm:$0xff]
    %v419 = vld [vmem:[#allocation5 + $0x540] sm:$0xff]
    %v420 = vld [vmem:[#allocation5 + $0x548] sm:$0xff]
    %v421 = vld [vmem:[#allocation5 + $0x550] sm:$0xff]
    %v422 = vld [vmem:[#allocation5 + $0x558] sm:$0xff]
    %v423 = vld [vmem:[#allocation5 + $0x560] sm:$0xff]
    %v424 = vld [vmem:[#allocation5 + $0x568] sm:$0xff]
    %v425 = vld [vmem:[#allocation5 + $0x570] sm:$0xff]
    %v426 = vld [vmem:[#allocation5 + $0x578] sm:$0xff]
    %v427 = vld [vmem:[#allocation5 + $0x580] sm:$0xff]
    %v428 = vld [vmem:[#allocation5 + $0x588] sm:$0xff]
    %v429 = vld [vmem:[#allocation5 + $0x590] sm:$0xff]
    %v430 = vld [vmem:[#allocation5 + $0x598] sm:$0xff]
    %v431 = vld [vmem:[#allocation5 + $0x5a0] sm:$0xff]
    %v432 = vld [vmem:[#allocation5 + $0x5a8] sm:$0xff]
    %v433 = vld [vmem:[#allocation5 + $0x5b0] sm:$0xff]
    %v434 = vld [vmem:[#allocation5 + $0x5b8] sm:$0xff]
    %v435 = vld [vmem:[#allocation5 + $0x5c0] sm:$0xff]
    %v436 = vld [vmem:[#allocation5 + $0x5c8] sm:$0xff]
    %v437 = vld [vmem:[#allocation5 + $0x5d0] sm:$0xff]
    %v438 = vld [vmem:[#allocation5 + $0x5d8] sm:$0xff]
    %v439 = vld [vmem:[#allocation5 + $0x5e0] sm:$0xff]
    %v440 = vld [vmem:[#allocation5 + $0x5e8] sm:$0xff]
    %v441 = vld [vmem:[#allocation5 + $0x5f0] sm:$0xff]
    %v442 = vld [vmem:[#allocation5 + $0x5f8] sm:$0xff]
    %v443 = vld [vmem:[#allocation5 + $0x600] sm:$0xff]
    %v444 = vld [vmem:[#allocation5 + $0x608] sm:$0xff]
    %v445 = vld [vmem:[#allocation5 + $0x610] sm:$0xff]
    %v446 = vld [vmem:[#allocation5 + $0x618] sm:$0xff]
    %v447 = vld [vmem:[#allocation5 + $0x620] sm:$0xff]
    %v448 = vld [vmem:[#allocation5 + $0x628] sm:$0xff]
    %v449 = vld [vmem:[#allocation5 + $0x630] sm:$0xff]
    %v450 = vld [vmem:[#allocation5 + $0x638] sm:$0xff]
    %v451 = vld [vmem:[#allocation5 + $0x640] sm:$0xff]
    %v452 = vld [vmem:[#allocation5 + $0x648] sm:$0xff]
    %v453 = vld [vmem:[#allocation5 + $0x650] sm:$0xff]
    %v454 = vld [vmem:[#allocation5 + $0x658] sm:$0xff]
    %v455 = vld [vmem:[#allocation5 + $0x660] sm:$0xff]
    %v456 = vld [vmem:[#allocation5 + $0x668] sm:$0xff]
    %v457 = vld [vmem:[#allocation5 + $0x670] sm:$0xff]
    %v458 = vld [vmem:[#allocation5 + $0x678] sm:$0xff]
    %v459 = vld [vmem:[#allocation5 + $0x680] sm:$0xff]
    %v460 = vld [vmem:[#allocation5 + $0x688] sm:$0xff]
    %v461 = vld [vmem:[#allocation5 + $0x690] sm:$0xff]
    %v462 = vld [vmem:[#allocation5 + $0x698] sm:$0xff]
    %v463 = vld [vmem:[#allocation5 + $0x6a0] sm:$0xff]
    %v464 = vld [vmem:[#allocation5 + $0x6a8] sm:$0xff]
    %v465 = vld [vmem:[#allocation5 + $0x6b0] sm:$0xff]
    %v466 = vld [vmem:[#allocation5 + $0x6b8] sm:$0xff]
    %v467 = vld [vmem:[#allocation5 + $0x6c0] sm:$0xff]
    %v468 = vld [vmem:[#allocation5 + $0x6c8] sm:$0xff]
    %v469 = vld [vmem:[#allocation5 + $0x6d0] sm:$0xff]
    %v470 = vld [vmem:[#allocation5 + $0x6d8] sm:$0xff]
    %v471 = vld [vmem:[#allocation5 + $0x6e0] sm:$0xff]
    %v472 = vld [vmem:[#allocation5 + $0x6e8] sm:$0xff]
    %v473 = vld [vmem:[#allocation5 + $0x6f0] sm:$0xff]
    %v474 = vld [vmem:[#allocation5 + $0x6f8] sm:$0xff]
    %v475 = vld [vmem:[#allocation5 + $0x700] sm:$0xff]
    %v476 = vld [vmem:[#allocation5 + $0x708] sm:$0xff]
    %v477 = vld [vmem:[#allocation5 + $0x710] sm:$0xff]
    %v478 = vld [vmem:[#allocation5 + $0x718] sm:$0xff]
    %v479 = vld [vmem:[#allocation5 + $0x720] sm:$0xff]
    %v480 = vld [vmem:[#allocation5 + $0x728] sm:$0xff]
    %v481 = vld [vmem:[#allocation5 + $0x730] sm:$0xff]
    %v482 = vld [vmem:[#allocation5 + $0x738] sm:$0xff]
    %v483 = vld [vmem:[#allocation5 + $0x740] sm:$0xff]
    %v484 = vld [vmem:[#allocation5 + $0x748] sm:$0xff]
    %v485 = vld [vmem:[#allocation5 + $0x750] sm:$0xff]
    %v486 = vld [vmem:[#allocation5 + $0x758] sm:$0xff]
    %v487 = vld [vmem:[#allocation5 + $0x760] sm:$0xff]
    %v488 = vld [vmem:[#allocation5 + $0x768] sm:$0xff]
    %v489 = vld [vmem:[#allocation5 + $0x770] sm:$0xff]
    %v490 = vld [vmem:[#allocation5 + $0x778] sm:$0xff]
    %v491 = vld [vmem:[#allocation5 + $0x780] sm:$0xff]
    %v492 = vld [vmem:[#allocation5 + $0x788] sm:$0xff]
    %v493 = vld [vmem:[#allocation5 + $0x790] sm:$0xff]
    %v494 = vld [vmem:[#allocation5 + $0x798] sm:$0xff]
    %v495 = vld [vmem:[#allocation5 + $0x7a0] sm:$0xff]
    %v496 = vld [vmem:[#allocation5 + $0x7a8] sm:$0xff]
    %v497 = vld [vmem:[#allocation5 + $0x7b0] sm:$0xff]
    %v498 = vld [vmem:[#allocation5 + $0x7b8] sm:$0xff]
    %v499 = vld [vmem:[#allocation5 + $0x7c0] sm:$0xff]
    %v500 = vld [vmem:[#allocation5 + $0x7c8] sm:$0xff]
    %v501 = vld [vmem:[#allocation5 + $0x7d0] sm:$0xff]
    %v502 = vld [vmem:[#allocation5 + $0x7d8] sm:$0xff]
    %v503 = vld [vmem:[#allocation5 + $0x7e0] sm:$0xff]
    %v504 = vld [vmem:[#allocation5 + $0x7e8] sm:$0xff]
    %v505 = vld [vmem:[#allocation5 + $0x7f0] sm:$0xff]
    %v506 = vld [vmem:[#allocation5 + $0x7f8] sm:$0xff]
    %v507 = vld [vmem:[#allocation5 + $0x800] sm:$0xff]
    %v508 = vld [vmem:[#allocation5 + $0x808] sm:$0xff]
    %v509 = vld [vmem:[#allocation5 + $0x810] sm:$0xff]
    %v510 = vld [vmem:[#allocation5 + $0x818] sm:$0xff]
    %v511 = vld [vmem:[#allocation5 + $0x820] sm:$0xff]
    %v512 = vld [vmem:[#allocation5 + $0x828] sm:$0xff]
    %v513 = vld [vmem:[#allocation5 + $0x830] sm:$0xff]
    %v514 = vld [vmem:[#allocation5 + $0x838] sm:$0xff]
    %v515 = vld [vmem:[#allocation5 + $0x840] sm:$0xff]
    %v516 = vld [vmem:[#allocation5 + $0x848] sm:$0xff]
    %v517 = vld [vmem:[#allocation5 + $0x850] sm:$0xff]
    %v518 = vld [vmem:[#allocation5 + $0x858] sm:$0xff]
    %v519 = vld [vmem:[#allocation5 + $0x860] sm:$0xff]
    %v520 = vld [vmem:[#allocation5 + $0x868] sm:$0xff]
    %v521 = vld [vmem:[#allocation5 + $0x870] sm:$0xff]
    %v522 = vld [vmem:[#allocation5 + $0x878] sm:$0xff]
    %v523 = vld [vmem:[#allocation5 + $0x880] sm:$0xff]
    %v524 = vld [vmem:[#allocation5 + $0x888] sm:$0xff]
    %v525 = vld [vmem:[#allocation5 + $0x890] sm:$0xff]
    %v526 = vld [vmem:[#allocation5 + $0x898] sm:$0xff]
    %v527 = vld [vmem:[#allocation5 + $0x8a0] sm:$0xff]
    %v528 = vld [vmem:[#allocation5 + $0x8a8] sm:$0xff]
    %v529 = vld [vmem:[#allocation5 + $0x8b0] sm:$0xff]
    %v530 = vld [vmem:[#allocation5 + $0x8b8] sm:$0xff]
    %v531 = vld [vmem:[#allocation5 + $0x8c0] sm:$0xff]
    %v532 = vld [vmem:[#allocation5 + $0x8c8] sm:$0xff]
    %v533 = vld [vmem:[#allocation5 + $0x8d0] sm:$0xff]
    %v534 = vld [vmem:[#allocation5 + $0x8d8] sm:$0xff]
    %v535 = vld [vmem:[#allocation5 + $0x8e0] sm:$0xff]
    %v536 = vld [vmem:[#allocation5 + $0x8e8] sm:$0xff]
    %v537 = vld [vmem:[#allocation5 + $0x8f0] sm:$0xff]
    %v538 = vld [vmem:[#allocation5 + $0x8f8] sm:$0xff]
    %v539 = vld [vmem:[#allocation5 + $0x900] sm:$0xff]
    %v540 = vld [vmem:[#allocation5 + $0x908] sm:$0xff]
    %v541 = vld [vmem:[#allocation5 + $0x910] sm:$0xff]
    %v542 = vld [vmem:[#allocation5 + $0x918] sm:$0xff]
    %v543 = vld [vmem:[#allocation5 + $0x920] sm:$0xff]
    %v544 = vld [vmem:[#allocation5 + $0x928] sm:$0xff]
    %v545 = vld [vmem:[#allocation5 + $0x930] sm:$0xff]
    %v546 = vld [vmem:[#allocation5 + $0x938] sm:$0xff]
    %v547 = vld [vmem:[#allocation5 + $0x940] sm:$0xff]
    %v548 = vld [vmem:[#allocation5 + $0x948] sm:$0xff]
    %v549 = vld [vmem:[#allocation5 + $0x950] sm:$0xff]
    %v550 = vld [vmem:[#allocation5 + $0x958] sm:$0xff]
    %v551 = vld [vmem:[#allocation5 + $0x960] sm:$0xff]
    %v552 = vld [vmem:[#allocation5 + $0x968] sm:$0xff]
    %v553 = vld [vmem:[#allocation5 + $0x970] sm:$0xff]
    %v554 = vld [vmem:[#allocation5 + $0x978] sm:$0xff]
    %v555 = vld [vmem:[#allocation5 + $0x980] sm:$0xff]
    %v556 = vld [vmem:[#allocation5 + $0x988] sm:$0xff]
    %v557 = vld [vmem:[#allocation5 + $0x990] sm:$0xff]
    %v558 = vld [vmem:[#allocation5 + $0x998] sm:$0xff]
    %v559 = vld [vmem:[#allocation5 + $0x9a0] sm:$0xff]
    %v560 = vld [vmem:[#allocation5 + $0x9a8] sm:$0xff]
    %v561 = vld [vmem:[#allocation5 + $0x9b0] sm:$0xff]
    %v562 = vld [vmem:[#allocation5 + $0x9b8] sm:$0xff]
    %v563 = vld [vmem:[#allocation5 + $0x9c0] sm:$0xff]
    %v564 = vld [vmem:[#allocation5 + $0x9c8] sm:$0xff]
    %v565 = vld [vmem:[#allocation5 + $0x9d0] sm:$0xff]
    %v566 = vld [vmem:[#allocation5 + $0x9d8] sm:$0xff]
    %v567 = vld [vmem:[#allocation5 + $0x9e0] sm:$0xff]
    %v568 = vld [vmem:[#allocation5 + $0x9e8] sm:$0xff]
    %v569 = vld [vmem:[#allocation5 + $0x9f0] sm:$0xff]
    %v570 = vld [vmem:[#allocation5 + $0x9f8] sm:$0xff]
    %v571 = vld [vmem:[#allocation5 + $0xa00] sm:$0xff]
    %v572 = vld [vmem:[#allocation5 + $0xa08] sm:$0xff]
    %v573 = vld [vmem:[#allocation5 + $0xa10] sm:$0xff]
    %v574 = vld [vmem:[#allocation5 + $0xa18] sm:$0xff]
    %v575 = vld [vmem:[#allocation5 + $0xa20] sm:$0xff]
    %v576 = vld [vmem:[#allocation5 + $0xa28] sm:$0xff]
    %v577 = vld [vmem:[#allocation5 + $0xa30] sm:$0xff]
    %v578 = vld [vmem:[#allocation5 + $0xa38] sm:$0xff]
    %v579 = vld [vmem:[#allocation5 + $0xa40] sm:$0xff]
    %v580 = vld [vmem:[#allocation5 + $0xa48] sm:$0xff]
    %v581 = vld [vmem:[#allocation5 + $0xa50] sm:$0xff]
    %v582 = vld [vmem:[#allocation5 + $0xa58] sm:$0xff]
    %v583 = vld [vmem:[#allocation5 + $0xa60] sm:$0xff]
    %v584 = vld [vmem:[#allocation5 + $0xa68] sm:$0xff]
    %v585 = vld [vmem:[#allocation5 + $0xa70] sm:$0xff]
    %v586 = vld [vmem:[#allocation5 + $0xa78] sm:$0xff]
    %v587 = vld [vmem:[#allocation5 + $0xa80] sm:$0xff]
    %v588 = vld [vmem:[#allocation5 + $0xa88] sm:$0xff]
    %v589 = vld [vmem:[#allocation5 + $0xa90] sm:$0xff]
    %v590 = vld [vmem:[#allocation5 + $0xa98] sm:$0xff]
    %v591 = vld [vmem:[#allocation5 + $0xaa0] sm:$0xff]
    %v592 = vld [vmem:[#allocation5 + $0xaa8] sm:$0xff]
    %v593 = vld [vmem:[#allocation5 + $0xab0] sm:$0xff]
    %v594 = vld [vmem:[#allocation5 + $0xab8] sm:$0xff]
    %v595 = vld [vmem:[#allocation5 + $0xac0] sm:$0xff]
    %v596 = vld [vmem:[#allocation5 + $0xac8] sm:$0xff]
    %v597 = vld [vmem:[#allocation5 + $0xad0] sm:$0xff]
    %v598 = vld [vmem:[#allocation5 + $0xad8] sm:$0xff]
    %v599 = vld [vmem:[#allocation5 + $0xae0] sm:$0xff]
    %v600 = vld [vmem:[#allocation5 + $0xae8] sm:$0xff]
    %v601 = vld [vmem:[#allocation5 + $0xaf0] sm:$0xff]
    %v602 = vld [vmem:[#allocation5 + $0xaf8] sm:$0xff]
    %v603 = vld [vmem:[#allocation5 + $0xb00] sm:$0xff]
    %v604 = vld [vmem:[#allocation5 + $0xb08] sm:$0xff]
    %v605 = vld [vmem:[#allocation5 + $0xb10] sm:$0xff]
    %v606 = vld [vmem:[#allocation5 + $0xb18] sm:$0xff]
    %v607 = vld [vmem:[#allocation5 + $0xb20] sm:$0xff]
    %v608 = vld [vmem:[#allocation5 + $0xb28] sm:$0xff]
    %v609 = vld [vmem:[#allocation5 + $0xb30] sm:$0xff]
    %v610 = vld [vmem:[#allocation5 + $0xb38] sm:$0xff]
    %v611 = vld [vmem:[#allocation5 + $0xb40] sm:$0xff]
    %v612 = vld [vmem:[#allocation5 + $0xb48] sm:$0xff]
    %v613 = vld [vmem:[#allocation5 + $0xb50] sm:$0xff]
    %v614 = vld [vmem:[#allocation5 + $0xb58] sm:$0xff]
    %v615 = vld [vmem:[#allocation5 + $0xb60] sm:$0xff]
    %v616 = vld [vmem:[#allocation5 + $0xb68] sm:$0xff]
    %v617 = vld [vmem:[#allocation5 + $0xb70] sm:$0xff]
    %v618 = vld [vmem:[#allocation5 + $0xb78] sm:$0xff]
    %v619 = vld [vmem:[#allocation5 + $0xb80] sm:$0xff]
    %v620 = vld [vmem:[#allocation5 + $0xb88] sm:$0xff]
    %v621 = vld [vmem:[#allocation5 + $0xb90] sm:$0xff]
    %v622 = vld [vmem:[#allocation5 + $0xb98] sm:$0xff]
    %v623 = vld [vmem:[#allocation5 + $0xba0] sm:$0xff]
    %v624 = vld [vmem:[#allocation5 + $0xba8] sm:$0xff]
    %v625 = vld [vmem:[#allocation5 + $0xbb0] sm:$0xff]
    %v626 = vld [vmem:[#allocation5 + $0xbb8] sm:$0xff]
    %v627 = vld [vmem:[#allocation5 + $0xbc0] sm:$0xff]
    %v628 = vld [vmem:[#allocation5 + $0xbc8] sm:$0xff]
    %v629 = vld [vmem:[#allocation5 + $0xbd0] sm:$0xff]
    %v630 = vld [vmem:[#allocation5 + $0xbd8] sm:$0xff]
    %v631 = vld [vmem:[#allocation5 + $0xbe0] sm:$0xff]
    %v632 = vld [vmem:[#allocation5 + $0xbe8] sm:$0xff]
    %v633 = vld [vmem:[#allocation5 + $0xbf0] sm:$0xff]
    %v634 = vld [vmem:[#allocation5 + $0xbf8] sm:$0xff]
    %v635 = vld [vmem:[#allocation5 + $0xc00] sm:$0xff]
    %v636 = vld [vmem:[#allocation5 + $0xc08] sm:$0xff]
    %v637 = vld [vmem:[#allocation5 + $0xc10] sm:$0xff]
    %v638 = vld [vmem:[#allocation5 + $0xc18] sm:$0xff]
    %v639 = vld [vmem:[#allocation5 + $0xc20] sm:$0xff]
    %v640 = vld [vmem:[#allocation5 + $0xc28] sm:$0xff]
    %v641 = vld [vmem:[#allocation5 + $0xc30] sm:$0xff]
    %v642 = vld [vmem:[#allocation5 + $0xc38] sm:$0xff]
    %v643 = vld [vmem:[#allocation5 + $0xc40] sm:$0xff]
    %v644 = vld [vmem:[#allocation5 + $0xc48] sm:$0xff]
    %v645 = vld [vmem:[#allocation5 + $0xc50] sm:$0xff]
    %v646 = vld [vmem:[#allocation5 + $0xc58] sm:$0xff]
    %v647 = vld [vmem:[#allocation5 + $0xc60] sm:$0xff]
    %v648 = vld [vmem:[#allocation5 + $0xc68] sm:$0xff]
    %v649 = vld [vmem:[#allocation5 + $0xc70] sm:$0xff]
    %v650 = vld [vmem:[#allocation5 + $0xc78] sm:$0xff]
    %v651 = vld [vmem:[#allocation5 + $0xc80] sm:$0xff]
    %v652 = vld [vmem:[#allocation5 + $0xc88] sm:$0xff]
    %v653 = vld [vmem:[#allocation5 + $0xc90] sm:$0xff]
    %v654 = vld [vmem:[#allocation5 + $0xc98] sm:$0xff]
    %v655 = vld [vmem:[#allocation5 + $0xca0] sm:$0xff]
    %v656 = vld [vmem:[#allocation5 + $0xca8] sm:$0xff]
    %v657 = vld [vmem:[#allocation5 + $0xcb0] sm:$0xff]
    %v658 = vld [vmem:[#allocation5 + $0xcb8] sm:$0xff]
    %v659 = vld [vmem:[#allocation5 + $0xcc0] sm:$0xff]
    %v660 = vld [vmem:[#allocation5 + $0xcc8] sm:$0xff]
    %v661 = vld [vmem:[#allocation5 + $0xcd0] sm:$0xff]
    %v662 = vld [vmem:[#allocation5 + $0xcd8] sm:$0xff]
    %v663 = vld [vmem:[#allocation5 + $0xce0] sm:$0xff]
    %v664 = vld [vmem:[#allocation5 + $0xce8] sm:$0xff]
    %v665 = vld [vmem:[#allocation5 + $0xcf0] sm:$0xff]
    %v666 = vld [vmem:[#allocation5 + $0xcf8] sm:$0xff]
    %v667 = vld [vmem:[#allocation5 + $0xd00] sm:$0xff]
    %v668 = vld [vmem:[#allocation5 + $0xd08] sm:$0xff]
    %v669 = vld [vmem:[#allocation5 + $0xd10] sm:$0xff]
    %v670 = vld [vmem:[#allocation5 + $0xd18] sm:$0xff]
    %v671 = vld [vmem:[#allocation5 + $0xd20] sm:$0xff]
    %v672 = vld [vmem:[#allocation5 + $0xd28] sm:$0xff]
    %v673 = vld [vmem:[#allocation5 + $0xd30] sm:$0xff]
    %v674 = vld [vmem:[#allocation5 + $0xd38] sm:$0xff]
    %v675 = vld [vmem:[#allocation5 + $0xd40] sm:$0xff]
    %v676 = vld [vmem:[#allocation5 + $0xd48] sm:$0xff]
    %v677 = vld [vmem:[#allocation5 + $0xd50] sm:$0xff]
    %v678 = vld [vmem:[#allocation5 + $0xd58] sm:$0xff]
    %v679 = vld [vmem:[#allocation5 + $0xd60] sm:$0xff]
    %v680 = vld [vmem:[#allocation5 + $0xd68] sm:$0xff]
    %v681 = vld [vmem:[#allocation5 + $0xd70] sm:$0xff]
    %v682 = vld [vmem:[#allocation5 + $0xd78] sm:$0xff]
    %v683 = vld [vmem:[#allocation5 + $0xd80] sm:$0xff]
    %v684 = vld [vmem:[#allocation5 + $0xd88] sm:$0xff]
    %v685 = vld [vmem:[#allocation5 + $0xd90] sm:$0xff]
    %v686 = vld [vmem:[#allocation5 + $0xd98] sm:$0xff]
    %v687 = vld [vmem:[#allocation5 + $0xda0] sm:$0xff]
    %v688 = vld [vmem:[#allocation5 + $0xda8] sm:$0xff]
    %v689 = vld [vmem:[#allocation5 + $0xdb0] sm:$0xff]
    %v690 = vld [vmem:[#allocation5 + $0xdb8] sm:$0xff]
    %v691 = vld [vmem:[#allocation5 + $0xdc0] sm:$0xff]
    %v692 = vld [vmem:[#allocation5 + $0xdc8] sm:$0xff]
    %v693 = vld [vmem:[#allocation5 + $0xdd0] sm:$0xff]
    %v694 = vld [vmem:[#allocation5 + $0xdd8] sm:$0xff]
    %v695 = vld [vmem:[#allocation5 + $0xde0] sm:$0xff]
    %v696 = vld [vmem:[#allocation5 + $0xde8] sm:$0xff]
    %v697 = vld [vmem:[#allocation5 + $0xdf0] sm:$0xff]
    %v698 = vld [vmem:[#allocation5 + $0xdf8] sm:$0xff]
    %v699 = vld [vmem:[#allocation5 + $0xe00] sm:$0xff]
    %v700 = vld [vmem:[#allocation5 + $0xe08] sm:$0xff]
    %v701 = vld [vmem:[#allocation5 + $0xe10] sm:$0xff]
    %v702 = vld [vmem:[#allocation5 + $0xe18] sm:$0xff]
    %v703 = vld [vmem:[#allocation5 + $0xe20] sm:$0xff]
    %v704 = vld [vmem:[#allocation5 + $0xe28] sm:$0xff]
    %v705 = vld [vmem:[#allocation5 + $0xe30] sm:$0xff]
    %v706 = vld [vmem:[#allocation5 + $0xe38] sm:$0xff]
    %v707 = vld [vmem:[#allocation5 + $0xe40] sm:$0xff]
    %v708 = vld [vmem:[#allocation5 + $0xe48] sm:$0xff]
    %v709 = vld [vmem:[#allocation5 + $0xe50] sm:$0xff]
    %v710 = vld [vmem:[#allocation5 + $0xe58] sm:$0xff]
    %v711 = vld [vmem:[#allocation5 + $0xe60] sm:$0xff]
    %v712 = vld [vmem:[#allocation5 + $0xe68] sm:$0xff]
    %v713 = vld [vmem:[#allocation5 + $0xe70] sm:$0xff]
    %v714 = vld [vmem:[#allocation5 + $0xe78] sm:$0xff]
    %v715 = vld [vmem:[#allocation5 + $0xe80] sm:$0xff]
    %v716 = vld [vmem:[#allocation5 + $0xe88] sm:$0xff]
    %v717 = vld [vmem:[#allocation5 + $0xe90] sm:$0xff]
    %v718 = vld [vmem:[#allocation5 + $0xe98] sm:$0xff]
    %v719 = vld [vmem:[#allocation5 + $0xea0] sm:$0xff]
    %v720 = vld [vmem:[#allocation5 + $0xea8] sm:$0xff]
    %v721 = vld [vmem:[#allocation5 + $0xeb0] sm:$0xff]
    %v722 = vld [vmem:[#allocation5 + $0xeb8] sm:$0xff]
    %v723 = vld [vmem:[#allocation5 + $0xec0] sm:$0xff]
    %v724 = vld [vmem:[#allocation5 + $0xec8] sm:$0xff]
    %v725 = vld [vmem:[#allocation5 + $0xed0] sm:$0xff]
    %v726 = vld [vmem:[#allocation5 + $0xed8] sm:$0xff]
    %v727 = vld [vmem:[#allocation5 + $0xee0] sm:$0xff]
    %v728 = vld [vmem:[#allocation5 + $0xee8] sm:$0xff]
    %v729 = vld [vmem:[#allocation5 + $0xef0] sm:$0xff]
    %v730 = vld [vmem:[#allocation5 + $0xef8] sm:$0xff]
    %v731 = vld [vmem:[#allocation5 + $0xf00] sm:$0xff]
    %v732 = vld [vmem:[#allocation5 + $0xf08] sm:$0xff]
    %v733 = vld [vmem:[#allocation5 + $0xf10] sm:$0xff]
    %v734 = vld [vmem:[#allocation5 + $0xf18] sm:$0xff]
    %v735 = vld [vmem:[#allocation5 + $0xf20] sm:$0xff]
    %v736 = vld [vmem:[#allocation5 + $0xf28] sm:$0xff]
    %v737 = vld [vmem:[#allocation5 + $0xf30] sm:$0xff]
    %v738 = vld [vmem:[#allocation5 + $0xf38] sm:$0xff]
    %v739 = vld [vmem:[#allocation5 + $0xf40] sm:$0xff]
    %v740 = vld [vmem:[#allocation5 + $0xf48] sm:$0xff]
    %v741 = vld [vmem:[#allocation5 + $0xf50] sm:$0xff]
    %v742 = vld [vmem:[#allocation5 + $0xf58] sm:$0xff]
    %v743 = vld [vmem:[#allocation5 + $0xf60] sm:$0xff]
    %v744 = vld [vmem:[#allocation5 + $0xf68] sm:$0xff]
    %v745 = vld [vmem:[#allocation5 + $0xf70] sm:$0xff]
    %v746 = vld [vmem:[#allocation5 + $0xf78] sm:$0xff]
    %v747 = vld [vmem:[#allocation5 + $0xf80] sm:$0xff]
    %v748 = vld [vmem:[#allocation5 + $0xf88] sm:$0xff]
    %v749 = vld [vmem:[#allocation5 + $0xf90] sm:$0xff]
    %v750 = vld [vmem:[#allocation5 + $0xf98] sm:$0xff]
    %v751 = vld [vmem:[#allocation5 + $0xfa0] sm:$0xff]
    %v752 = vld [vmem:[#allocation5 + $0xfa8] sm:$0xff]
    %v753 = vld [vmem:[#allocation5 + $0xfb0] sm:$0xff]
    %v754 = vld [vmem:[#allocation5 + $0xfb8] sm:$0xff]
    %v755 = vld [vmem:[#allocation5 + $0xfc0] sm:$0xff]
    %v756 = vld [vmem:[#allocation5 + $0xfc8] sm:$0xff]
    %v757 = vld [vmem:[#allocation5 + $0xfd0] sm:$0xff]
    %v758 = vld [vmem:[#allocation5 + $0xfd8] sm:$0xff]
    %v759 = vld [vmem:[#allocation5 + $0xfe0] sm:$0xff]
    %v760 = vld [vmem:[#allocation5 + $0xfe8] sm:$0xff]
    %v761 = vld [vmem:[#allocation5 + $0xff0] sm:$0xff]
    %v762 = vld [vmem:[#allocation5 + $0xff8] sm:$0xff]
    %v763 = vld [vmem:[#allocation5 + $0x1000] sm:$0xff]
    %v764 = vld [vmem:[#allocation5 + $0x1008] sm:$0xff]
    %v765 = vld [vmem:[#allocation5 + $0x1010] sm:$0xff]
    %v766 = vld [vmem:[#allocation5 + $0x1018] sm:$0xff]
    %v767 = vld [vmem:[#allocation5 + $0x1020] sm:$0xff]
    %v768 = vld [vmem:[#allocation5 + $0x1028] sm:$0xff]
    %v769 = vld [vmem:[#allocation5 + $0x1030] sm:$0xff]
    %v770 = vld [vmem:[#allocation5 + $0x1038] sm:$0xff]
    %v771 = vld [vmem:[#allocation5 + $0x1040] sm:$0xff]
    %v772 = vld [vmem:[#allocation5 + $0x1048] sm:$0xff]
    %v773 = vld [vmem:[#allocation5 + $0x1050] sm:$0xff]
    %v774 = vld [vmem:[#allocation5 + $0x1058] sm:$0xff]
    %v775 = vld [vmem:[#allocation5 + $0x1060] sm:$0xff]
    %v776 = vld [vmem:[#allocation5 + $0x1068] sm:$0xff]
    %v777 = vld [vmem:[#allocation5 + $0x1070] sm:$0xff]
    %v778 = vld [vmem:[#allocation5 + $0x1078] sm:$0xff]
    %v779 = vld [vmem:[#allocation5 + $0x1080] sm:$0xff]
    %v780 = vld [vmem:[#allocation5 + $0x1088] sm:$0xff]
    %v781 = vld [vmem:[#allocation5 + $0x1090] sm:$0xff]
    %v782 = vld [vmem:[#allocation5 + $0x1098] sm:$0xff]
    %v783 = vld [vmem:[#allocation5 + $0x10a0] sm:$0xff]
    %v784 = vld [vmem:[#allocation5 + $0x10a8] sm:$0xff]
    %v785 = vld [vmem:[#allocation5 + $0x10b0] sm:$0xff]
    %v786 = vld [vmem:[#allocation5 + $0x10b8] sm:$0xff]
    %v787 = vld [vmem:[#allocation5 + $0x10c0] sm:$0xff]
    %v788 = vld [vmem:[#allocation5 + $0x10c8] sm:$0xff]
    %v789 = vld [vmem:[#allocation5 + $0x10d0] sm:$0xff]
    %v790 = vld [vmem:[#allocation5 + $0x10d8] sm:$0xff]
    %v791 = vld [vmem:[#allocation5 + $0x10e0] sm:$0xff]
    %v792 = vld [vmem:[#allocation5 + $0x10e8] sm:$0xff]
    %v793 = vld [vmem:[#allocation5 + $0x10f0] sm:$0xff]
    %v794 = vld [vmem:[#allocation5 + $0x10f8] sm:$0xff]
    %v795 = vld [vmem:[#allocation5 + $0x1100] sm:$0xff]
    %v796 = vld [vmem:[#allocation5 + $0x1108] sm:$0xff]
    %v797 = vld [vmem:[#allocation5 + $0x1110] sm:$0xff]
    %v798 = vld [vmem:[#allocation5 + $0x1118] sm:$0xff]
    %v799 = vld [vmem:[#allocation5 + $0x1120] sm:$0xff]
    %v800 = vld [vmem:[#allocation5 + $0x1128] sm:$0xff]
    %v801 = vld [vmem:[#allocation5 + $0x1130] sm:$0xff]
    %v802 = vld [vmem:[#allocation5 + $0x1138] sm:$0xff]
    %v803 = vld [vmem:[#allocation5 + $0x1140] sm:$0xff]
    %v804 = vld [vmem:[#allocation5 + $0x1148] sm:$0xff]
    %v805 = vld [vmem:[#allocation5 + $0x1150] sm:$0xff]
    %v806 = vld [vmem:[#allocation5 + $0x1158] sm:$0xff]
    %v807 = vld [vmem:[#allocation5 + $0x1160] sm:$0xff]
    %v808 = vld [vmem:[#allocation5 + $0x1168] sm:$0xff]
    %v809 = vld [vmem:[#allocation5 + $0x1170] sm:$0xff]
    %v810 = vld [vmem:[#allocation5 + $0x1178] sm:$0xff]
    %v811 = vld [vmem:[#allocation5 + $0x1180] sm:$0xff]
    %v812 = vld [vmem:[#allocation5 + $0x1188] sm:$0xff]
    %v813 = vld [vmem:[#allocation5 + $0x1190] sm:$0xff]
    %v814 = vld [vmem:[#allocation5 + $0x1198] sm:$0xff]
    %v815 = vld [vmem:[#allocation5 + $0x11a0] sm:$0xff]
    %v816 = vld [vmem:[#allocation5 + $0x11a8] sm:$0xff]
    %v817 = vld [vmem:[#allocation5 + $0x11b0] sm:$0xff]
    %v818 = vld [vmem:[#allocation5 + $0x11b8] sm:$0xff]
    %v819 = vld [vmem:[#allocation5 + $0x11c0] sm:$0xff]
    %v820 = vld [vmem:[#allocation5 + $0x11c8] sm:$0xff]
    %v821 = vld [vmem:[#allocation5 + $0x11d0] sm:$0xff]
    %v822 = vld [vmem:[#allocation5 + $0x11d8] sm:$0xff]
    %v823 = vld [vmem:[#allocation5 + $0x11e0] sm:$0xff]
    %v824 = vld [vmem:[#allocation5 + $0x11e8] sm:$0xff]
    %v825 = vld [vmem:[#allocation5 + $0x11f0] sm:$0xff]
    %v826 = vld [vmem:[#allocation5 + $0x11f8] sm:$0xff]
    %v827 = vld [vmem:[#allocation5 + $0x1200] sm:$0xff]
    %v828 = vld [vmem:[#allocation5 + $0x1208] sm:$0xff]
    %v829 = vld [vmem:[#allocation5 + $0x1210] sm:$0xff]
    %v830 = vld [vmem:[#allocation5 + $0x1218] sm:$0xff]
    %v831 = vld [vmem:[#allocation5 + $0x1220] sm:$0xff]
    %v832 = vld [vmem:[#allocation5 + $0x1228] sm:$0xff]
    %v833 = vld [vmem:[#allocation5 + $0x1230] sm:$0xff]
    %v834 = vld [vmem:[#allocation5 + $0x1238] sm:$0xff]
    %v835 = vld [vmem:[#allocation5 + $0x1240] sm:$0xff]
    %v836 = vld [vmem:[#allocation5 + $0x1248] sm:$0xff]
    %v837 = vld [vmem:[#allocation5 + $0x1250] sm:$0xff]
    %v838 = vld [vmem:[#allocation5 + $0x1258] sm:$0xff]
    %v839 = vld [vmem:[#allocation5 + $0x1260] sm:$0xff]
    %v840 = vld [vmem:[#allocation5 + $0x1268] sm:$0xff]
    %v841 = vld [vmem:[#allocation5 + $0x1270] sm:$0xff]
    %v842 = vld [vmem:[#allocation5 + $0x1278] sm:$0xff]
    %v843 = vld [vmem:[#allocation5 + $0x1280] sm:$0xff]
    %v844 = vld [vmem:[#allocation5 + $0x1288] sm:$0xff]
    %v845 = vld [vmem:[#allocation5 + $0x1290] sm:$0xff]
    %v846 = vld [vmem:[#allocation5 + $0x1298] sm:$0xff]
    %v847 = vld [vmem:[#allocation5 + $0x12a0] sm:$0xff]
    %v848 = vld [vmem:[#allocation5 + $0x12a8] sm:$0xff]
    %v849 = vld [vmem:[#allocation5 + $0x12b0] sm:$0xff]
    %v850 = vld [vmem:[#allocation5 + $0x12b8] sm:$0xff]
    %v851 = vld [vmem:[#allocation5 + $0x12c0] sm:$0xff]
    %v852 = vld [vmem:[#allocation5 + $0x12c8] sm:$0xff]
    %v853 = vld [vmem:[#allocation5 + $0x12d0] sm:$0xff]
    %v854 = vld [vmem:[#allocation5 + $0x12d8] sm:$0xff]
    %v855 = vld [vmem:[#allocation5 + $0x12e0] sm:$0xff]
    %v856 = vld [vmem:[#allocation5 + $0x12e8] sm:$0xff]
    %v857 = vld [vmem:[#allocation5 + $0x12f0] sm:$0xff]
    %v858 = vld [vmem:[#allocation5 + $0x12f8] sm:$0xff]
    %v859 = vld [vmem:[#allocation5 + $0x1300] sm:$0xff]
    %v860 = vld [vmem:[#allocation5 + $0x1308] sm:$0xff]
    %v861 = vld [vmem:[#allocation5 + $0x1310] sm:$0xff]
    %v862 = vld [vmem:[#allocation5 + $0x1318] sm:$0xff]
    %v863 = vld [vmem:[#allocation5 + $0x1320] sm:$0xff]
    %v864 = vld [vmem:[#allocation5 + $0x1328] sm:$0xff]
    %v865 = vld [vmem:[#allocation5 + $0x1330] sm:$0xff]
    %v866 = vld [vmem:[#allocation5 + $0x1338] sm:$0xff]
    %v867 = vld [vmem:[#allocation5 + $0x1340] sm:$0xff]
    %v868 = vld [vmem:[#allocation5 + $0x1348] sm:$0xff]
    %v869 = vld [vmem:[#allocation5 + $0x1350] sm:$0xff]
    %v870 = vld [vmem:[#allocation5 + $0x1358] sm:$0xff]
    %v871 = vld [vmem:[#allocation5 + $0x1360] sm:$0xff]
    %v872 = vld [vmem:[#allocation5 + $0x1368] sm:$0xff]
    %v873 = vld [vmem:[#allocation5 + $0x1370] sm:$0xff]
    %v874 = vld [vmem:[#allocation5 + $0x1378] sm:$0xff]
    %v875 = vld [vmem:[#allocation5 + $0x1380] sm:$0xff]
    %v876 = vld [vmem:[#allocation5 + $0x1388] sm:$0xff]
    %v877 = vld [vmem:[#allocation5 + $0x1390] sm:$0xff]
    %v878 = vld [vmem:[#allocation5 + $0x1398] sm:$0xff]
    %v879 = vld [vmem:[#allocation5 + $0x13a0] sm:$0xff]
    %v880 = vld [vmem:[#allocation5 + $0x13a8] sm:$0xff]
    %v881 = vld [vmem:[#allocation5 + $0x13b0] sm:$0xff]
    %v882 = vld [vmem:[#allocation5 + $0x13b8] sm:$0xff]
    %v883 = vld [vmem:[#allocation5 + $0x13c0] sm:$0xff]
    %v884 = vld [vmem:[#allocation5 + $0x13c8] sm:$0xff]
    %v885 = vld [vmem:[#allocation5 + $0x13d0] sm:$0xff]
    %v886 = vld [vmem:[#allocation5 + $0x13d8] sm:$0xff]
    %v887 = vld [vmem:[#allocation5 + $0x13e0] sm:$0xff]
    %v888 = vld [vmem:[#allocation5 + $0x13e8] sm:$0xff]
    %v889 = vld [vmem:[#allocation5 + $0x13f0] sm:$0xff]
    %v890 = vld [vmem:[#allocation5 + $0x13f8] sm:$0xff]
    %v891 = vld [vmem:[#allocation5 + $0x1400] sm:$0xff]
    %v892 = vld [vmem:[#allocation5 + $0x1408] sm:$0xff]
    %v893 = vld [vmem:[#allocation5 + $0x1410] sm:$0xff]
    %v894 = vld [vmem:[#allocation5 + $0x1418] sm:$0xff]
    %v895 = vld [vmem:[#allocation5 + $0x1420] sm:$0xff]
    %v896 = vld [vmem:[#allocation5 + $0x1428] sm:$0xff]
    %v897 = vld [vmem:[#allocation5 + $0x1430] sm:$0xff]
    %v898 = vld [vmem:[#allocation5 + $0x1438] sm:$0xff]
    %v899 = vld [vmem:[#allocation5 + $0x1440] sm:$0xff]
    %v900 = vld [vmem:[#allocation5 + $0x1448] sm:$0xff]
    %v901 = vld [vmem:[#allocation5 + $0x1450] sm:$0xff]
    %v902 = vld [vmem:[#allocation5 + $0x1458] sm:$0xff]
    %v903 = vld [vmem:[#allocation5 + $0x1460] sm:$0xff]
    %v904 = vld [vmem:[#allocation5 + $0x1468] sm:$0xff]
    %v905 = vld [vmem:[#allocation5 + $0x1470] sm:$0xff]
    %v906 = vld [vmem:[#allocation5 + $0x1478] sm:$0xff]
    %v907 = vld [vmem:[#allocation5 + $0x1480] sm:$0xff]
    %v908 = vld [vmem:[#allocation5 + $0x1488] sm:$0xff]
    %v909 = vld [vmem:[#allocation5 + $0x1490] sm:$0xff]
    %v910 = vld [vmem:[#allocation5 + $0x1498] sm:$0xff]
    %v911 = vld [vmem:[#allocation5 + $0x14a0] sm:$0xff]
    %v912 = vld [vmem:[#allocation5 + $0x14a8] sm:$0xff]
    %v913 = vld [vmem:[#allocation5 + $0x14b0] sm:$0xff]
    %v914 = vld [vmem:[#allocation5 + $0x14b8] sm:$0xff]
    %v915 = vld [vmem:[#allocation5 + $0x14c0] sm:$0xff]
    %v916 = vld [vmem:[#allocation5 + $0x14c8] sm:$0xff]
    %v917 = vld [vmem:[#allocation5 + $0x14d0] sm:$0xff]
    %v918 = vld [vmem:[#allocation5 + $0x14d8] sm:$0xff]
    %v919 = vld [vmem:[#allocation5 + $0x14e0] sm:$0xff]
    %v920 = vld [vmem:[#allocation5 + $0x14e8] sm:$0xff]
    %v921 = vld [vmem:[#allocation5 + $0x14f0] sm:$0xff]
    %v922 = vld [vmem:[#allocation5 + $0x14f8] sm:$0xff]
    %v923 = vld [vmem:[#allocation5 + $0x1500] sm:$0xff]
    %v924 = vld [vmem:[#allocation5 + $0x1508] sm:$0xff]
    %v925 = vld [vmem:[#allocation5 + $0x1510] sm:$0xff]
    %v926 = vld [vmem:[#allocation5 + $0x1518] sm:$0xff]
    %v927 = vld [vmem:[#allocation5 + $0x1520] sm:$0xff]
    %v928 = vld [vmem:[#allocation5 + $0x1528] sm:$0xff]
    %v929 = vld [vmem:[#allocation5 + $0x1530] sm:$0xff]
    %v930 = vld [vmem:[#allocation5 + $0x1538] sm:$0xff]
    %v931 = vld [vmem:[#allocation5 + $0x1540] sm:$0xff]
    %v932 = vld [vmem:[#allocation5 + $0x1548] sm:$0xff]
    %v933 = vld [vmem:[#allocation5 + $0x1550] sm:$0xff]
    %v934 = vld [vmem:[#allocation5 + $0x1558] sm:$0xff]
    %v935 = vld [vmem:[#allocation5 + $0x1560] sm:$0xff]
    %v936 = vld [vmem:[#allocation5 + $0x1568] sm:$0xff]
    %v937 = vld [vmem:[#allocation5 + $0x1570] sm:$0xff]
    %v938 = vld [vmem:[#allocation5 + $0x1578] sm:$0xff]
    %v939 = vld [vmem:[#allocation5 + $0x1580] sm:$0xff]
    %v940 = vld [vmem:[#allocation5 + $0x1588] sm:$0xff]
    %v941 = vld [vmem:[#allocation5 + $0x1590] sm:$0xff]
    %v942 = vld [vmem:[#allocation5 + $0x1598] sm:$0xff]
    %v943 = vld [vmem:[#allocation5 + $0x15a0] sm:$0xff]
    %v944 = vld [vmem:[#allocation5 + $0x15a8] sm:$0xff]
    %v945 = vld [vmem:[#allocation5 + $0x15b0] sm:$0xff]
    %v946 = vld [vmem:[#allocation5 + $0x15b8] sm:$0xff]
    %v947 = vld [vmem:[#allocation5 + $0x15c0] sm:$0xff]
    %v948 = vld [vmem:[#allocation5 + $0x15c8] sm:$0xff]
    %v949 = vld [vmem:[#allocation5 + $0x15d0] sm:$0xff]
    %v950 = vld [vmem:[#allocation5 + $0x15d8] sm:$0xff]
    %v951 = vld [vmem:[#allocation5 + $0x15e0] sm:$0xff]
    %v952 = vld [vmem:[#allocation5 + $0x15e8] sm:$0xff]
    %v953 = vld [vmem:[#allocation5 + $0x15f0] sm:$0xff]
    %v954 = vld [vmem:[#allocation5 + $0x15f8] sm:$0xff]
    %v955 = vld [vmem:[#allocation5 + $0x1600] sm:$0xff]
    %v956 = vld [vmem:[#allocation5 + $0x1608] sm:$0xff]
    %v957 = vld [vmem:[#allocation5 + $0x1610] sm:$0xff]
    %v958 = vld [vmem:[#allocation5 + $0x1618] sm:$0xff]
    %v959 = vld [vmem:[#allocation5 + $0x1620] sm:$0xff]
    %v960 = vld [vmem:[#allocation5 + $0x1628] sm:$0xff]
    %v961 = vld [vmem:[#allocation5 + $0x1630] sm:$0xff]
    %v962 = vld [vmem:[#allocation5 + $0x1638] sm:$0xff]
    %v963 = vld [vmem:[#allocation5 + $0x1640] sm:$0xff]
    %v964 = vld [vmem:[#allocation5 + $0x1648] sm:$0xff]
    %v965 = vld [vmem:[#allocation5 + $0x1650] sm:$0xff]
    %v966 = vld [vmem:[#allocation5 + $0x1658] sm:$0xff]
    %v967 = vld [vmem:[#allocation5 + $0x1660] sm:$0xff]
    %v968 = vld [vmem:[#allocation5 + $0x1668] sm:$0xff]
    %v969 = vld [vmem:[#allocation5 + $0x1670] sm:$0xff]
    %v970 = vld [vmem:[#allocation5 + $0x1678] sm:$0xff]
    %v971 = vld [vmem:[#allocation5 + $0x1680] sm:$0xff]
    %v972 = vld [vmem:[#allocation5 + $0x1688] sm:$0xff]
    %v973 = vld [vmem:[#allocation5 + $0x1690] sm:$0xff]
    %v974 = vld [vmem:[#allocation5 + $0x1698] sm:$0xff]
    %v975 = vld [vmem:[#allocation5 + $0x16a0] sm:$0xff]
    %v976 = vld [vmem:[#allocation5 + $0x16a8] sm:$0xff]
    %v977 = vld [vmem:[#allocation5 + $0x16b0] sm:$0xff]
    %v978 = vld [vmem:[#allocation5 + $0x16b8] sm:$0xff]
    %v979 = vld [vmem:[#allocation5 + $0x16c0] sm:$0xff]
    %v980 = vld [vmem:[#allocation5 + $0x16c8] sm:$0xff]
    %v981 = vld [vmem:[#allocation5 + $0x16d0] sm:$0xff]
    %v982 = vld [vmem:[#allocation5 + $0x16d8] sm:$0xff]
    %v983 = vld [vmem:[#allocation5 + $0x16e0] sm:$0xff]
    %v984 = vld [vmem:[#allocation5 + $0x16e8] sm:$0xff]
    %v985 = vld [vmem:[#allocation5 + $0x16f0] sm:$0xff]
    %v986 = vld [vmem:[#allocation5 + $0x16f8] sm:$0xff]
    %v987 = vld [vmem:[#allocation5 + $0x1700] sm:$0xff]
    %v988 = vld [vmem:[#allocation5 + $0x1708] sm:$0xff]
    %v989 = vld [vmem:[#allocation5 + $0x1710] sm:$0xff]
    %v990 = vld [vmem:[#allocation5 + $0x1718] sm:$0xff]
    %v991 = vld [vmem:[#allocation5 + $0x1720] sm:$0xff]
    %v992 = vld [vmem:[#allocation5 + $0x1728] sm:$0xff]
    %v993 = vld [vmem:[#allocation5 + $0x1730] sm:$0xff]
    %v994 = vld [vmem:[#allocation5 + $0x1738] sm:$0xff]
    %v995 = vld [vmem:[#allocation5 + $0x1740] sm:$0xff]
    %v996 = vld [vmem:[#allocation5 + $0x1748] sm:$0xff]
    %v997 = vld [vmem:[#allocation5 + $0x1750] sm:$0xff]
    %v998 = vld [vmem:[#allocation5 + $0x1758] sm:$0xff]
    %v999 = vld [vmem:[#allocation5 + $0x1760] sm:$0xff]
    %v1000 = vld [vmem:[#allocation5 + $0x1768] sm:$0xff]
    %v1001 = vld [vmem:[#allocation5 + $0x1770] sm:$0xff]
    %v1002 = vld [vmem:[#allocation5 + $0x1778] sm:$0xff]
    %v1003 = vld [vmem:[#allocation5 + $0x1780] sm:$0xff]
    %v1004 = vld [vmem:[#allocation5 + $0x1788] sm:$0xff]
    %v1005 = vld [vmem:[#allocation5 + $0x1790] sm:$0xff]
    %v1006 = vld [vmem:[#allocation5 + $0x1798] sm:$0xff]
    %v1007 = vld [vmem:[#allocation5 + $0x17a0] sm:$0xff]
    %v1008 = vld [vmem:[#allocation5 + $0x17a8] sm:$0xff]
    %v1009 = vld [vmem:[#allocation5 + $0x17b0] sm:$0xff]
    %v1010 = vld [vmem:[#allocation5 + $0x17b8] sm:$0xff]
    %v1011 = vld [vmem:[#allocation5 + $0x17c0] sm:$0xff]
    %v1012 = vld [vmem:[#allocation5 + $0x17c8] sm:$0xff]
    %v1013 = vld [vmem:[#allocation5 + $0x17d0] sm:$0xff]
    %v1014 = vld [vmem:[#allocation5 + $0x17d8] sm:$0xff]
    %v1015 = vld [vmem:[#allocation5 + $0x17e0] sm:$0xff]
    %v1016 = vld [vmem:[#allocation5 + $0x17e8] sm:$0xff]
    %v1017 = vld [vmem:[#allocation5 + $0x17f0] sm:$0xff]
    %v1018 = vld [vmem:[#allocation5 + $0x17f8] sm:$0xff]
    %v1019 = vld [vmem:[#allocation5 + $0x1800] sm:$0xff]
    %v1020 = vld [vmem:[#allocation5 + $0x1808] sm:$0xff]
    %v1021 = vld [vmem:[#allocation5 + $0x1810] sm:$0xff]
    %v1022 = vld [vmem:[#allocation5 + $0x1818] sm:$0xff]
    %v1023 = vld [vmem:[#allocation5 + $0x1820] sm:$0xff]
    %v1024 = vld [vmem:[#allocation5 + $0x1828] sm:$0xff]
    %v1025 = vld [vmem:[#allocation5 + $0x1830] sm:$0xff]
    %v1026 = vld [vmem:[#allocation5 + $0x1838] sm:$0xff]
    %v1027 = vld [vmem:[#allocation5 + $0x1840] sm:$0xff]
    %v1028 = vld [vmem:[#allocation5 + $0x1848] sm:$0xff]
    %v1029 = vld [vmem:[#allocation5 + $0x1850] sm:$0xff]
    %v1030 = vld [vmem:[#allocation5 + $0x1858] sm:$0xff]
    %v1031 = vld [vmem:[#allocation5 + $0x1860] sm:$0xff]
    %v1032 = vld [vmem:[#allocation5 + $0x1868] sm:$0xff]
    %v1033 = vld [vmem:[#allocation5 + $0x1870] sm:$0xff]
    %v1034 = vld [vmem:[#allocation5 + $0x1878] sm:$0xff]
    %v1035 = vld [vmem:[#allocation5 + $0x1880] sm:$0xff]
    %v1036 = vld [vmem:[#allocation5 + $0x1888] sm:$0xff]
    %v1037 = vld [vmem:[#allocation5 + $0x1890] sm:$0xff]
    %v1038 = vld [vmem:[#allocation5 + $0x1898] sm:$0xff]
    %v1039 = vld [vmem:[#allocation5 + $0x18a0] sm:$0xff]
    %v1040 = vld [vmem:[#allocation5 + $0x18a8] sm:$0xff]
    %v1041 = vld [vmem:[#allocation5 + $0x18b0] sm:$0xff]
    %v1042 = vld [vmem:[#allocation5 + $0x18b8] sm:$0xff]
    %v1043 = vld [vmem:[#allocation5 + $0x18c0] sm:$0xff]
    %v1044 = vld [vmem:[#allocation5 + $0x18c8] sm:$0xff]
    %v1045 = vld [vmem:[#allocation5 + $0x18d0] sm:$0xff]
    %v1046 = vld [vmem:[#allocation5 + $0x18d8] sm:$0xff]
    %v1047 = vld [vmem:[#allocation5 + $0x18e0] sm:$0xff]
    %v1048 = vld [vmem:[#allocation5 + $0x18e8] sm:$0xff]
    %v1049 = vld [vmem:[#allocation5 + $0x18f0] sm:$0xff]
    %v1050 = vld [vmem:[#allocation5 + $0x18f8] sm:$0xff]
    %v1051 = vld [vmem:[#allocation5 + $0x1900] sm:$0xff]
    %v1052 = vld [vmem:[#allocation5 + $0x1908] sm:$0xff]
    %v1053 = vld [vmem:[#allocation5 + $0x1910] sm:$0xff]
    %v1054 = vld [vmem:[#allocation5 + $0x1918] sm:$0xff]
    %v1055 = vld [vmem:[#allocation5 + $0x1920] sm:$0xff]
    %v1056 = vld [vmem:[#allocation5 + $0x1928] sm:$0xff]
    %v1057 = vld [vmem:[#allocation5 + $0x1930] sm:$0xff]
    %v1058 = vld [vmem:[#allocation5 + $0x1938] sm:$0xff]
    %v1059 = vld [vmem:[#allocation5 + $0x1940] sm:$0xff]
    %v1060 = vld [vmem:[#allocation5 + $0x1948] sm:$0xff]
    %v1061 = vld [vmem:[#allocation5 + $0x1950] sm:$0xff]
    %v1062 = vld [vmem:[#allocation5 + $0x1958] sm:$0xff]
    %v1063 = vld [vmem:[#allocation5 + $0x1960] sm:$0xff]
    %v1064 = vld [vmem:[#allocation5 + $0x1968] sm:$0xff]
    %v1065 = vld [vmem:[#allocation5 + $0x1970] sm:$0xff]
    %v1066 = vld [vmem:[#allocation5 + $0x1978] sm:$0xff]
    %v1067 = vld [vmem:[#allocation5 + $0x1980] sm:$0xff]
    %v1068 = vld [vmem:[#allocation5 + $0x1988] sm:$0xff]
    %v1069 = vld [vmem:[#allocation5 + $0x1990] sm:$0xff]
    %v1070 = vld [vmem:[#allocation5 + $0x1998] sm:$0xff]
    %v1071 = vld [vmem:[#allocation5 + $0x19a0] sm:$0xff]
    %v1072 = vld [vmem:[#allocation5 + $0x19a8] sm:$0xff]
    %v1073 = vld [vmem:[#allocation5 + $0x19b0] sm:$0xff]
    %v1074 = vld [vmem:[#allocation5 + $0x19b8] sm:$0xff]
    %v1075 = vld [vmem:[#allocation5 + $0x19c0] sm:$0xff]
    %v1076 = vld [vmem:[#allocation5 + $0x19c8] sm:$0xff]
    %v1077 = vld [vmem:[#allocation5 + $0x19d0] sm:$0xff]
    %v1078 = vld [vmem:[#allocation5 + $0x19d8] sm:$0xff]
    %v1079 = vld [vmem:[#allocation5 + $0x19e0] sm:$0xff]
    %v1080 = vld [vmem:[#allocation5 + $0x19e8] sm:$0xff]
    %v1081 = vld [vmem:[#allocation5 + $0x19f0] sm:$0xff]
    %v1082 = vld [vmem:[#allocation5 + $0x19f8] sm:$0xff]
    %v1083 = vld [vmem:[#allocation5 + $0x1a00] sm:$0xff]
    %v1084 = vld [vmem:[#allocation5 + $0x1a08] sm:$0xff]
    %v1085 = vld [vmem:[#allocation5 + $0x1a10] sm:$0xff]
    %v1086 = vld [vmem:[#allocation5 + $0x1a18] sm:$0xff]
    %v1087 = vld [vmem:[#allocation5 + $0x1a20] sm:$0xff]
    %v1088 = vld [vmem:[#allocation5 + $0x1a28] sm:$0xff]
    %v1089 = vld [vmem:[#allocation5 + $0x1a30] sm:$0xff]
    %v1090 = vld [vmem:[#allocation5 + $0x1a38] sm:$0xff]
    %v1091 = vld [vmem:[#allocation5 + $0x1a40] sm:$0xff]
    %v1092 = vld [vmem:[#allocation5 + $0x1a48] sm:$0xff]
    %v1093 = vld [vmem:[#allocation5 + $0x1a50] sm:$0xff]
    %v1094 = vld [vmem:[#allocation5 + $0x1a58] sm:$0xff]
    %v1095 = vld [vmem:[#allocation5 + $0x1a60] sm:$0xff]
    %v1096 = vld [vmem:[#allocation5 + $0x1a68] sm:$0xff]
    %v1097 = vld [vmem:[#allocation5 + $0x1a70] sm:$0xff]
    %v1098 = vld [vmem:[#allocation5 + $0x1a78] sm:$0xff]
    %v1099 = vld [vmem:[#allocation5 + $0x1a80] sm:$0xff]
    %v1100 = vld [vmem:[#allocation5 + $0x1a88] sm:$0xff]
    %v1101 = vld [vmem:[#allocation5 + $0x1a90] sm:$0xff]
    %v1102 = vld [vmem:[#allocation5 + $0x1a98] sm:$0xff]
    %v1103 = vld [vmem:[#allocation5 + $0x1aa0] sm:$0xff]
    %v1104 = vld [vmem:[#allocation5 + $0x1aa8] sm:$0xff]
    %v1105 = vld [vmem:[#allocation5 + $0x1ab0] sm:$0xff]
    %v1106 = vld [vmem:[#allocation5 + $0x1ab8] sm:$0xff]
    %v1107 = vld [vmem:[#allocation5 + $0x1ac0] sm:$0xff]
    %v1108 = vld [vmem:[#allocation5 + $0x1ac8] sm:$0xff]
    %v1109 = vld [vmem:[#allocation5 + $0x1ad0] sm:$0xff]
    %v1110 = vld [vmem:[#allocation5 + $0x1ad8] sm:$0xff]
    %v1111 = vld [vmem:[#allocation5 + $0x1ae0] sm:$0xff]
    %v1112 = vld [vmem:[#allocation5 + $0x1ae8] sm:$0xff]
    %v1113 = vld [vmem:[#allocation5 + $0x1af0] sm:$0xff]
    %v1114 = vld [vmem:[#allocation5 + $0x1af8] sm:$0xff]
    %v1115 = vld [vmem:[#allocation5 + $0x1b00] sm:$0xff]
    %v1116 = vld [vmem:[#allocation5 + $0x1b08] sm:$0xff]
    %v1117 = vld [vmem:[#allocation5 + $0x1b10] sm:$0xff]
    %v1118 = vld [vmem:[#allocation5 + $0x1b18] sm:$0xff]
    %v1119 = vld [vmem:[#allocation5 + $0x1b20] sm:$0xff]
    %v1120 = vld [vmem:[#allocation5 + $0x1b28] sm:$0xff]
    %v1121 = vld [vmem:[#allocation5 + $0x1b30] sm:$0xff]
    %v1122 = vld [vmem:[#allocation5 + $0x1b38] sm:$0xff]
    %v1123 = vld [vmem:[#allocation5 + $0x1b40] sm:$0xff]
    %v1124 = vld [vmem:[#allocation5 + $0x1b48] sm:$0xff]
    %v1125 = vld [vmem:[#allocation5 + $0x1b50] sm:$0xff]
    %v1126 = vld [vmem:[#allocation5 + $0x1b58] sm:$0xff]
    %v1127 = vld [vmem:[#allocation5 + $0x1b60] sm:$0xff]
    %v1128 = vld [vmem:[#allocation5 + $0x1b68] sm:$0xff]
    %v1129 = vld [vmem:[#allocation5 + $0x1b70] sm:$0xff]
    %v1130 = vld [vmem:[#allocation5 + $0x1b78] sm:$0xff]
    %v1131 = vld [vmem:[#allocation5 + $0x1b80] sm:$0xff]
    %v1132 = vld [vmem:[#allocation5 + $0x1b88] sm:$0xff]
    %v1133 = vld [vmem:[#allocation5 + $0x1b90] sm:$0xff]
    %v1134 = vld [vmem:[#allocation5 + $0x1b98] sm:$0xff]
    %v1135 = vld [vmem:[#allocation5 + $0x1ba0] sm:$0xff]
    %v1136 = vld [vmem:[#allocation5 + $0x1ba8] sm:$0xff]
    %v1137 = vld [vmem:[#allocation5 + $0x1bb0] sm:$0xff]
    %v1138 = vld [vmem:[#allocation5 + $0x1bb8] sm:$0xff]
    %v1139 = vld [vmem:[#allocation5 + $0x1bc0] sm:$0xff]
    %v1140 = vld [vmem:[#allocation5 + $0x1bc8] sm:$0xff]
    %v1141 = vld [vmem:[#allocation5 + $0x1bd0] sm:$0xff]
    %v1142 = vld [vmem:[#allocation5 + $0x1bd8] sm:$0xff]
    %v1143 = vld [vmem:[#allocation5 + $0x1be0] sm:$0xff]
    %v1144 = vld [vmem:[#allocation5 + $0x1be8] sm:$0xff]
    %v1145 = vld [vmem:[#allocation5 + $0x1bf0] sm:$0xff]
    %v1146 = vld [vmem:[#allocation5 + $0x1bf8] sm:$0xff]
    %v1147 = vld [vmem:[#allocation5 + $0x1c00] sm:$0xff]
    %v1148 = vld [vmem:[#allocation5 + $0x1c08] sm:$0xff]
    %v1149 = vld [vmem:[#allocation5 + $0x1c10] sm:$0xff]
    %v1150 = vld [vmem:[#allocation5 + $0x1c18] sm:$0xff]
    %v1151 = vld [vmem:[#allocation5 + $0x1c20] sm:$0xff]
    %v1152 = vld [vmem:[#allocation5 + $0x1c28] sm:$0xff]
    %v1153 = vld [vmem:[#allocation5 + $0x1c30] sm:$0xff]
    %v1154 = vld [vmem:[#allocation5 + $0x1c38] sm:$0xff]
    %v1155 = vld [vmem:[#allocation5 + $0x1c40] sm:$0xff]
    %v1156 = vld [vmem:[#allocation5 + $0x1c48] sm:$0xff]
    %v1157 = vld [vmem:[#allocation5 + $0x1c50] sm:$0xff]
    %v1158 = vld [vmem:[#allocation5 + $0x1c58] sm:$0xff]
    %v1159 = vld [vmem:[#allocation5 + $0x1c60] sm:$0xff]
    %v1160 = vld [vmem:[#allocation5 + $0x1c68] sm:$0xff]
    %v1161 = vld [vmem:[#allocation5 + $0x1c70] sm:$0xff]
    %v1162 = vld [vmem:[#allocation5 + $0x1c78] sm:$0xff]
    %v1163 = vld [vmem:[#allocation5 + $0x1c80] sm:$0xff]
    %v1164 = vld [vmem:[#allocation5 + $0x1c88] sm:$0xff]
    %v1165 = vld [vmem:[#allocation5 + $0x1c90] sm:$0xff]
    %v1166 = vld [vmem:[#allocation5 + $0x1c98] sm:$0xff]
    %v1167 = vld [vmem:[#allocation5 + $0x1ca0] sm:$0xff]
    %v1168 = vld [vmem:[#allocation5 + $0x1ca8] sm:$0xff]
    %v1169 = vld [vmem:[#allocation5 + $0x1cb0] sm:$0xff]
    %v1170 = vld [vmem:[#allocation5 + $0x1cb8] sm:$0xff]
    %v1171 = vld [vmem:[#allocation5 + $0x1cc0] sm:$0xff]
    %v1172 = vld [vmem:[#allocation5 + $0x1cc8] sm:$0xff]
    %v1173 = vld [vmem:[#allocation5 + $0x1cd0] sm:$0xff]
    %v1174 = vld [vmem:[#allocation5 + $0x1cd8] sm:$0xff]
    %v1175 = vld [vmem:[#allocation5 + $0x1ce0] sm:$0xff]
    %v1176 = vld [vmem:[#allocation5 + $0x1ce8] sm:$0xff]
    %v1177 = vld [vmem:[#allocation5 + $0x1cf0] sm:$0xff]
    %v1178 = vld [vmem:[#allocation5 + $0x1cf8] sm:$0xff]
    %v1179 = vld [vmem:[#allocation5 + $0x1d00] sm:$0xff]
    %v1180 = vld [vmem:[#allocation5 + $0x1d08] sm:$0xff]
    %v1181 = vld [vmem:[#allocation5 + $0x1d10] sm:$0xff]
    %v1182 = vld [vmem:[#allocation5 + $0x1d18] sm:$0xff]
    %v1183 = vld [vmem:[#allocation5 + $0x1d20] sm:$0xff]
    %v1184 = vld [vmem:[#allocation5 + $0x1d28] sm:$0xff]
    %v1185 = vld [vmem:[#allocation5 + $0x1d30] sm:$0xff]
    %v1186 = vld [vmem:[#allocation5 + $0x1d38] sm:$0xff]
    %v1187 = vld [vmem:[#allocation5 + $0x1d40] sm:$0xff]
    %v1188 = vld [vmem:[#allocation5 + $0x1d48] sm:$0xff]
    %v1189 = vld [vmem:[#allocation5 + $0x1d50] sm:$0xff]
    %v1190 = vld [vmem:[#allocation5 + $0x1d58] sm:$0xff]
    %v1191 = vld [vmem:[#allocation5 + $0x1d60] sm:$0xff]
    %v1192 = vld [vmem:[#allocation5 + $0x1d68] sm:$0xff]
    %v1193 = vld [vmem:[#allocation5 + $0x1d70] sm:$0xff]
    %v1194 = vld [vmem:[#allocation5 + $0x1d78] sm:$0xff]
    %v1195 = vld [vmem:[#allocation5 + $0x1d80] sm:$0xff]
    %v1196 = vld [vmem:[#allocation5 + $0x1d88] sm:$0xff]
    %v1197 = vld [vmem:[#allocation5 + $0x1d90] sm:$0xff]
    %v1198 = vld [vmem:[#allocation5 + $0x1d98] sm:$0xff]
    %v1199 = vld [vmem:[#allocation5 + $0x1da0] sm:$0xff]
    %v1200 = vld [vmem:[#allocation5 + $0x1da8] sm:$0xff]
    %v1201 = vld [vmem:[#allocation5 + $0x1db0] sm:$0xff]
    %v1202 = vld [vmem:[#allocation5 + $0x1db8] sm:$0xff]
    %v1203 = vld [vmem:[#allocation5 + $0x1dc0] sm:$0xff]
    %v1204 = vld [vmem:[#allocation5 + $0x1dc8] sm:$0xff]
    %v1205 = vld [vmem:[#allocation5 + $0x1dd0] sm:$0xff]
    %v1206 = vld [vmem:[#allocation5 + $0x1dd8] sm:$0xff]
    %v1207 = vld [vmem:[#allocation5 + $0x1de0] sm:$0xff]
    %v1208 = vld [vmem:[#allocation5 + $0x1de8] sm:$0xff]
    %v1209 = vld [vmem:[#allocation5 + $0x1df0] sm:$0xff]
    %v1210 = vld [vmem:[#allocation5 + $0x1df8] sm:$0xff]
    %v1211 = vld [vmem:[#allocation5 + $0x1e00] sm:$0xff]
    %v1212 = vld [vmem:[#allocation5 + $0x1e08] sm:$0xff]
    %v1213 = vld [vmem:[#allocation5 + $0x1e10] sm:$0xff]
    %v1214 = vld [vmem:[#allocation5 + $0x1e18] sm:$0xff]
    %v1215 = vld [vmem:[#allocation5 + $0x1e20] sm:$0xff]
    %v1216 = vld [vmem:[#allocation5 + $0x1e28] sm:$0xff]
    %v1217 = vld [vmem:[#allocation5 + $0x1e30] sm:$0xff]
    %v1218 = vld [vmem:[#allocation5 + $0x1e38] sm:$0xff]
    %v1219 = vld [vmem:[#allocation5 + $0x1e40] sm:$0xff]
    %v1220 = vld [vmem:[#allocation5 + $0x1e48] sm:$0xff]
    %v1221 = vld [vmem:[#allocation5 + $0x1e50] sm:$0xff]
    %v1222 = vld [vmem:[#allocation5 + $0x1e58] sm:$0xff]
    %v1223 = vld [vmem:[#allocation5 + $0x1e60] sm:$0xff]
    %v1224 = vld [vmem:[#allocation5 + $0x1e68] sm:$0xff]
    %v1225 = vld [vmem:[#allocation5 + $0x1e70] sm:$0xff]
    %v1226 = vld [vmem:[#allocation5 + $0x1e78] sm:$0xff]
    %v1227 = vld [vmem:[#allocation5 + $0x1e80] sm:$0xff]
    %v1228 = vld [vmem:[#allocation5 + $0x1e88] sm:$0xff]
    %v1229 = vld [vmem:[#allocation5 + $0x1e90] sm:$0xff]
    %v1230 = vld [vmem:[#allocation5 + $0x1e98] sm:$0xff]
    %v1231 = vld [vmem:[#allocation5 + $0x1ea0] sm:$0xff]
    %v1232 = vld [vmem:[#allocation5 + $0x1ea8] sm:$0xff]
    %v1233 = vld [vmem:[#allocation5 + $0x1eb0] sm:$0xff]
    %v1234 = vld [vmem:[#allocation5 + $0x1eb8] sm:$0xff]
    %v1235 = vld [vmem:[#allocation5 + $0x1ec0] sm:$0xff]
    %v1236 = vld [vmem:[#allocation5 + $0x1ec8] sm:$0xff]
    %v1237 = vld [vmem:[#allocation5 + $0x1ed0] sm:$0xff]
    %v1238 = vld [vmem:[#allocation5 + $0x1ed8] sm:$0xff]
    %v1239 = vld [vmem:[#allocation5 + $0x1ee0] sm:$0xff]
    %v1240 = vld [vmem:[#allocation5 + $0x1ee8] sm:$0xff]
    %v1241 = vld [vmem:[#allocation5 + $0x1ef0] sm:$0xff]
    %v1242 = vld [vmem:[#allocation5 + $0x1ef8] sm:$0xff]
    %v1243 = vld [vmem:[#allocation5 + $0x1f00] sm:$0xff]
    %v1244 = vld [vmem:[#allocation5 + $0x1f08] sm:$0xff]
    %v1245 = vld [vmem:[#allocation5 + $0x1f10] sm:$0xff]
    %v1246 = vld [vmem:[#allocation5 + $0x1f18] sm:$0xff]
    %v1247 = vld [vmem:[#allocation5 + $0x1f20] sm:$0xff]
    %v1248 = vld [vmem:[#allocation5 + $0x1f28] sm:$0xff]
    %v1249 = vld [vmem:[#allocation5 + $0x1f30] sm:$0xff]
    %v1250 = vld [vmem:[#allocation5 + $0x1f38] sm:$0xff]
    %v1251 = vld [vmem:[#allocation5 + $0x1f40] sm:$0xff]
    %v1252 = vld [vmem:[#allocation5 + $0x1f48] sm:$0xff]
    %v1253 = vld [vmem:[#allocation5 + $0x1f50] sm:$0xff]
    %v1254 = vld [vmem:[#allocation5 + $0x1f58] sm:$0xff]
    %v1255 = vld [vmem:[#allocation5 + $0x1f60] sm:$0xff]
    %v1256 = vld [vmem:[#allocation5 + $0x1f68] sm:$0xff]
    %v1257 = vld [vmem:[#allocation5 + $0x1f70] sm:$0xff]
    %v1258 = vld [vmem:[#allocation5 + $0x1f78] sm:$0xff]
    %v1259 = vld [vmem:[#allocation5 + $0x1f80] sm:$0xff]
    %v1260 = vld [vmem:[#allocation5 + $0x1f88] sm:$0xff]
    %v1261 = vld [vmem:[#allocation5 + $0x1f90] sm:$0xff]
    %v1262 = vld [vmem:[#allocation5 + $0x1f98] sm:$0xff]
    %v1263 = vld [vmem:[#allocation5 + $0x1fa0] sm:$0xff]
    %v1264 = vld [vmem:[#allocation5 + $0x1fa8] sm:$0xff]
    %v1265 = vld [vmem:[#allocation5 + $0x1fb0] sm:$0xff]
    %v1266 = vld [vmem:[#allocation5 + $0x1fb8] sm:$0xff]
    %v1267 = vld [vmem:[#allocation5 + $0x1fc0] sm:$0xff]
    %v1268 = vld [vmem:[#allocation5 + $0x1fc8] sm:$0xff]
    %v1269 = vld [vmem:[#allocation5 + $0x1fd0] sm:$0xff]
    %v1270 = vld [vmem:[#allocation5 + $0x1fd8] sm:$0xff]
    %v1271 = vld [vmem:[#allocation5 + $0x1fe0] sm:$0xff]
    %v1272 = vld [vmem:[#allocation5 + $0x1fe8] sm:$0xff]
    %v1273 = vld [vmem:[#allocation5 + $0x1ff0] sm:$0xff]
    %v1274 = vld [vmem:[#allocation5 + $0x1ff8] sm:$0xff]
    %v1275 = vld [vmem:[#allocation5 + $0x2000] sm:$0xff]
    %v1276 = vld [vmem:[#allocation5 + $0x2008] sm:$0xff]
    %v1277 = vld [vmem:[#allocation5 + $0x2010] sm:$0xff]
    %v1278 = vld [vmem:[#allocation5 + $0x2018] sm:$0xff]
    %v1279 = vld [vmem:[#allocation5 + $0x2020] sm:$0xff]
    %v1280 = vld [vmem:[#allocation5 + $0x2028] sm:$0xff]
    %v1281 = vld [vmem:[#allocation5 + $0x2030] sm:$0xff]
    %v1282 = vld [vmem:[#allocation5 + $0x2038] sm:$0xff]
    %v1283 = vld [vmem:[#allocation5 + $0x2040] sm:$0xff]
    %v1284 = vld [vmem:[#allocation5 + $0x2048] sm:$0xff]
    %v1285 = vld [vmem:[#allocation5 + $0x2050] sm:$0xff]
    %v1286 = vld [vmem:[#allocation5 + $0x2058] sm:$0xff]
    %v1287 = vld [vmem:[#allocation5 + $0x2060] sm:$0xff]
    %v1288 = vld [vmem:[#allocation5 + $0x2068] sm:$0xff]
    %v1289 = vld [vmem:[#allocation5 + $0x2070] sm:$0xff]
    %v1290 = vld [vmem:[#allocation5 + $0x2078] sm:$0xff]
    %v1291 = vld [vmem:[#allocation5 + $0x2080] sm:$0xff]
    %v1292 = vld [vmem:[#allocation5 + $0x2088] sm:$0xff]
    %v1293 = vld [vmem:[#allocation5 + $0x2090] sm:$0xff]
    %v1294 = vld [vmem:[#allocation5 + $0x2098] sm:$0xff]
    %v1295 = vld [vmem:[#allocation5 + $0x20a0] sm:$0xff]
    %v1296 = vld [vmem:[#allocation5 + $0x20a8] sm:$0xff]
    %v1297 = vld [vmem:[#allocation5 + $0x20b0] sm:$0xff]
    %v1298 = vld [vmem:[#allocation5 + $0x20b8] sm:$0xff]
    %v1299 = vld [vmem:[#allocation5 + $0x20c0] sm:$0xff]
    %v1300 = vld [vmem:[#allocation5 + $0x20c8] sm:$0xff]
    %v1301 = vld [vmem:[#allocation5 + $0x20d0] sm:$0xff]
    %v1302 = vld [vmem:[#allocation5 + $0x20d8] sm:$0xff]
    %v1303 = vld [vmem:[#allocation5 + $0x20e0] sm:$0xff]
    %v1304 = vld [vmem:[#allocation5 + $0x20e8] sm:$0xff]
    %v1305 = vld [vmem:[#allocation5 + $0x20f0] sm:$0xff]
    %v1306 = vld [vmem:[#allocation5 + $0x20f8] sm:$0xff]
    %v1307 = vld [vmem:[#allocation5 + $0x2100] sm:$0xff]
    %v1308 = vld [vmem:[#allocation5 + $0x2108] sm:$0xff]
    %v1309 = vld [vmem:[#allocation5 + $0x2110] sm:$0xff]
    %v1310 = vld [vmem:[#allocation5 + $0x2118] sm:$0xff]
    %v1311 = vld [vmem:[#allocation5 + $0x2120] sm:$0xff]
    %v1312 = vld [vmem:[#allocation5 + $0x2128] sm:$0xff]
    %v1313 = vld [vmem:[#allocation5 + $0x2130] sm:$0xff]
    %v1314 = vld [vmem:[#allocation5 + $0x2138] sm:$0xff]
    %v1315 = vld [vmem:[#allocation5 + $0x2140] sm:$0xff]
    %v1316 = vld [vmem:[#allocation5 + $0x2148] sm:$0xff]
    %v1317 = vld [vmem:[#allocation5 + $0x2150] sm:$0xff]
    %v1318 = vld [vmem:[#allocation5 + $0x2158] sm:$0xff]
    %v1319 = vld [vmem:[#allocation5 + $0x2160] sm:$0xff]
    %v1320 = vld [vmem:[#allocation5 + $0x2168] sm:$0xff]
    %v1321 = vld [vmem:[#allocation5 + $0x2170] sm:$0xff]
    %v1322 = vld [vmem:[#allocation5 + $0x2178] sm:$0xff]
    %v1323 = vld [vmem:[#allocation5 + $0x2180] sm:$0xff]
    %v1324 = vld [vmem:[#allocation5 + $0x2188] sm:$0xff]
    %v1325 = vld [vmem:[#allocation5 + $0x2190] sm:$0xff]
    %v1326 = vld [vmem:[#allocation5 + $0x2198] sm:$0xff]
    %v1327 = vld [vmem:[#allocation5 + $0x21a0] sm:$0xff]
    %v1328 = vld [vmem:[#allocation5 + $0x21a8] sm:$0xff]
    %v1329 = vld [vmem:[#allocation5 + $0x21b0] sm:$0xff]
    %v1330 = vld [vmem:[#allocation5 + $0x21b8] sm:$0xff]
    %v1331 = vld [vmem:[#allocation5 + $0x21c0] sm:$0xff]
    %v1332 = vld [vmem:[#allocation5 + $0x21c8] sm:$0xff]
    %v1333 = vld [vmem:[#allocation5 + $0x21d0] sm:$0xff]
    %v1334 = vld [vmem:[#allocation5 + $0x21d8] sm:$0xff]
    %v1335 = vld [vmem:[#allocation5 + $0x21e0] sm:$0xff]
    %v1336 = vld [vmem:[#allocation5 + $0x21e8] sm:$0xff]
    %v1337 = vld [vmem:[#allocation5 + $0x21f0] sm:$0xff]
    %v1338 = vld [vmem:[#allocation5 + $0x21f8] sm:$0xff]
    %v1339 = vld [vmem:[#allocation5 + $0x2200] sm:$0xff]
    %v1340 = vld [vmem:[#allocation5 + $0x2208] sm:$0xff]
    %v1341 = vld [vmem:[#allocation5 + $0x2210] sm:$0xff]
    %v1342 = vld [vmem:[#allocation5 + $0x2218] sm:$0xff]
    %v1343 = vld [vmem:[#allocation5 + $0x2220] sm:$0xff]
    %v1344 = vld [vmem:[#allocation5 + $0x2228] sm:$0xff]
    %v1345 = vld [vmem:[#allocation5 + $0x2230] sm:$0xff]
    %v1346 = vld [vmem:[#allocation5 + $0x2238] sm:$0xff]
    %v1347 = vld [vmem:[#allocation5 + $0x2240] sm:$0xff]
    %v1348 = vld [vmem:[#allocation5 + $0x2248] sm:$0xff]
    %v1349 = vld [vmem:[#allocation5 + $0x2250] sm:$0xff]
    %v1350 = vld [vmem:[#allocation5 + $0x2258] sm:$0xff]
    %v1351 = vld [vmem:[#allocation5 + $0x2260] sm:$0xff]
    %v1352 = vld [vmem:[#allocation5 + $0x2268] sm:$0xff]
    %v1353 = vld [vmem:[#allocation5 + $0x2270] sm:$0xff]
    %v1354 = vld [vmem:[#allocation5 + $0x2278] sm:$0xff]
    %v1355 = vld [vmem:[#allocation5 + $0x2280] sm:$0xff]
    %v1356 = vld [vmem:[#allocation5 + $0x2288] sm:$0xff]
    %v1357 = vld [vmem:[#allocation5 + $0x2290] sm:$0xff]
    %v1358 = vld [vmem:[#allocation5 + $0x2298] sm:$0xff]
    %v1359 = vld [vmem:[#allocation5 + $0x22a0] sm:$0xff]
    %v1360 = vld [vmem:[#allocation5 + $0x22a8] sm:$0xff]
    %v1361 = vld [vmem:[#allocation5 + $0x22b0] sm:$0xff]
    %v1362 = vld [vmem:[#allocation5 + $0x22b8] sm:$0xff]
    %v1363 = vld [vmem:[#allocation5 + $0x22c0] sm:$0xff]
    %v1364 = vld [vmem:[#allocation5 + $0x22c8] sm:$0xff]
    %v1365 = vld [vmem:[#allocation5 + $0x22d0] sm:$0xff]
    %v1366 = vld [vmem:[#allocation5 + $0x22d8] sm:$0xff]
    %v1367 = vld [vmem:[#allocation5 + $0x22e0] sm:$0xff]
    %v1368 = vld [vmem:[#allocation5 + $0x22e8] sm:$0xff]
    %v1369 = vld [vmem:[#allocation5 + $0x22f0] sm:$0xff]
    %v1370 = vld [vmem:[#allocation5 + $0x22f8] sm:$0xff]
    %v1371 = vld [vmem:[#allocation5 + $0x2300] sm:$0xff]
    %v1372 = vld [vmem:[#allocation5 + $0x2308] sm:$0xff]
    %v1373 = vld [vmem:[#allocation5 + $0x2310] sm:$0xff]
    %v1374 = vld [vmem:[#allocation5 + $0x2318] sm:$0xff]
    %v1375 = vld [vmem:[#allocation5 + $0x2320] sm:$0xff]
    %v1376 = vld [vmem:[#allocation5 + $0x2328] sm:$0xff]
    %v1377 = vld [vmem:[#allocation5 + $0x2330] sm:$0xff]
    %v1378 = vld [vmem:[#allocation5 + $0x2338] sm:$0xff]
    %v1379 = vld [vmem:[#allocation5 + $0x2340] sm:$0xff]
    %v1380 = vld [vmem:[#allocation5 + $0x2348] sm:$0xff]
    %v1381 = vld [vmem:[#allocation5 + $0x2350] sm:$0xff]
    %v1382 = vld [vmem:[#allocation5 + $0x2358] sm:$0xff]
    %v1383 = vld [vmem:[#allocation5 + $0x2360] sm:$0xff]
    %v1384 = vld [vmem:[#allocation5 + $0x2368] sm:$0xff]
    %v1385 = vld [vmem:[#allocation5 + $0x2370] sm:$0xff]
    %v1386 = vld [vmem:[#allocation5 + $0x2378] sm:$0xff]
    %v1387 = vld [vmem:[#allocation5 + $0x2380] sm:$0xff]
    %v1388 = vld [vmem:[#allocation5 + $0x2388] sm:$0xff]
    %v1389 = vld [vmem:[#allocation5 + $0x2390] sm:$0xff]
    %v1390 = vld [vmem:[#allocation5 + $0x2398] sm:$0xff]
    %v1391 = vld [vmem:[#allocation5 + $0x23a0] sm:$0xff]
    %v1392 = vld [vmem:[#allocation5 + $0x23a8] sm:$0xff]
    %v1393 = vld [vmem:[#allocation5 + $0x23b0] sm:$0xff]
    %v1394 = vld [vmem:[#allocation5 + $0x23b8] sm:$0xff]
    %v1395 = vld [vmem:[#allocation5 + $0x23c0] sm:$0xff]
    %v1396 = vld [vmem:[#allocation5 + $0x23c8] sm:$0xff]
    %v1397 = vld [vmem:[#allocation5 + $0x23d0] sm:$0xff]
    %v1398 = vld [vmem:[#allocation5 + $0x23d8] sm:$0xff]
    %v1399 = vld [vmem:[#allocation5 + $0x23e0] sm:$0xff]
    %v1400 = vld [vmem:[#allocation5 + $0x23e8] sm:$0xff]
    %v1401 = vld [vmem:[#allocation5 + $0x23f0] sm:$0xff]
    %v1402 = vld [vmem:[#allocation5 + $0x23f8] sm:$0xff]
    %v1403 = vld [vmem:[#allocation5 + $0x2400] sm:$0xff]
    %v1404 = vld [vmem:[#allocation5 + $0x2408] sm:$0xff]
    %v1405 = vld [vmem:[#allocation5 + $0x2410] sm:$0xff]
    %v1406 = vld [vmem:[#allocation5 + $0x2418] sm:$0xff]
    %v1407 = vld [vmem:[#allocation5 + $0x2420] sm:$0xff]
    %v1408 = vld [vmem:[#allocation5 + $0x2428] sm:$0xff]
    %v1409 = vld [vmem:[#allocation5 + $0x2430] sm:$0xff]
    %v1410 = vld [vmem:[#allocation5 + $0x2438] sm:$0xff]
    %v1411 = vld [vmem:[#allocation5 + $0x2440] sm:$0xff]
    %v1412 = vld [vmem:[#allocation5 + $0x2448] sm:$0xff]
    %v1413 = vld [vmem:[#allocation5 + $0x2450] sm:$0xff]
    %v1414 = vld [vmem:[#allocation5 + $0x2458] sm:$0xff]
    %v1415 = vld [vmem:[#allocation5 + $0x2460] sm:$0xff]
    %v1416 = vld [vmem:[#allocation5 + $0x2468] sm:$0xff]
    %v1417 = vld [vmem:[#allocation5 + $0x2470] sm:$0xff]
    %v1418 = vld [vmem:[#allocation5 + $0x2478] sm:$0xff]
    %v1419 = vld [vmem:[#allocation5 + $0x2480] sm:$0xff]
    %v1420 = vld [vmem:[#allocation5 + $0x2488] sm:$0xff]
    %v1421 = vld [vmem:[#allocation5 + $0x2490] sm:$0xff]
    %v1422 = vld [vmem:[#allocation5 + $0x2498] sm:$0xff]
    %v1423 = vld [vmem:[#allocation5 + $0x24a0] sm:$0xff]
    %v1424 = vld [vmem:[#allocation5 + $0x24a8] sm:$0xff]
    %v1425 = vld [vmem:[#allocation5 + $0x24b0] sm:$0xff]
    %v1426 = vld [vmem:[#allocation5 + $0x24b8] sm:$0xff]
    %v1427 = vld [vmem:[#allocation5 + $0x24c0] sm:$0xff]
    %v1428 = vld [vmem:[#allocation5 + $0x24c8] sm:$0xff]
    %v1429 = vld [vmem:[#allocation5 + $0x24d0] sm:$0xff]
    %v1430 = vld [vmem:[#allocation5 + $0x24d8] sm:$0xff]
    %v1431 = vld [vmem:[#allocation5 + $0x24e0] sm:$0xff]
    %v1432 = vld [vmem:[#allocation5 + $0x24e8] sm:$0xff]
    %v1433 = vld [vmem:[#allocation5 + $0x24f0] sm:$0xff]
    %v1434 = vld [vmem:[#allocation5 + $0x24f8] sm:$0xff]
    %v1435 = vld [vmem:[#allocation5 + $0x2500] sm:$0xff]
    %v1436 = vld [vmem:[#allocation5 + $0x2508] sm:$0xff]
    %v1437 = vld [vmem:[#allocation5 + $0x2510] sm:$0xff]
    %v1438 = vld [vmem:[#allocation5 + $0x2518] sm:$0xff]
    %v1439 = vld [vmem:[#allocation5 + $0x2520] sm:$0xff]
    %v1440 = vld [vmem:[#allocation5 + $0x2528] sm:$0xff]
    %v1441 = vld [vmem:[#allocation5 + $0x2530] sm:$0xff]
    %v1442 = vld [vmem:[#allocation5 + $0x2538] sm:$0xff]
    %v1443 = vld [vmem:[#allocation5 + $0x2540] sm:$0xff]
    %v1444 = vld [vmem:[#allocation5 + $0x2548] sm:$0xff]
    %v1445 = vld [vmem:[#allocation5 + $0x2550] sm:$0xff]
    %v1446 = vld [vmem:[#allocation5 + $0x2558] sm:$0xff]
    %v1447 = vld [vmem:[#allocation5 + $0x2560] sm:$0xff]
    %v1448 = vld [vmem:[#allocation5 + $0x2568] sm:$0xff]
    %v1449 = vld [vmem:[#allocation5 + $0x2570] sm:$0xff]
    %v1450 = vld [vmem:[#allocation5 + $0x2578] sm:$0xff]
    %v1451 = vld [vmem:[#allocation5 + $0x2580] sm:$0xff]
    %v1452 = vld [vmem:[#allocation5 + $0x2588] sm:$0xff]
    %v1453 = vld [vmem:[#allocation5 + $0x2590] sm:$0xff]
    %v1454 = vld [vmem:[#allocation5 + $0x2598] sm:$0xff]
    %v1455 = vld [vmem:[#allocation5 + $0x25a0] sm:$0xff]
    %v1456 = vld [vmem:[#allocation5 + $0x25a8] sm:$0xff]
    %v1457 = vld [vmem:[#allocation5 + $0x25b0] sm:$0xff]
    %v1458 = vld [vmem:[#allocation5 + $0x25b8] sm:$0xff]
    %v1459 = vld [vmem:[#allocation5 + $0x25c0] sm:$0xff]
    %v1460 = vld [vmem:[#allocation5 + $0x25c8] sm:$0xff]
    %v1461 = vld [vmem:[#allocation5 + $0x25d0] sm:$0xff]
    %v1462 = vld [vmem:[#allocation5 + $0x25d8] sm:$0xff]
    %v1463 = vld [vmem:[#allocation5 + $0x25e0] sm:$0xff]
    %v1464 = vld [vmem:[#allocation5 + $0x25e8] sm:$0xff]
    %v1465 = vld [vmem:[#allocation5 + $0x25f0] sm:$0xff]
    %v1466 = vld [vmem:[#allocation5 + $0x25f8] sm:$0xff]
    %v1467 = vld [vmem:[#allocation5 + $0x2600] sm:$0xff]
    %v1468 = vld [vmem:[#allocation5 + $0x2608] sm:$0xff]
    %v1469 = vld [vmem:[#allocation5 + $0x2610] sm:$0xff]
    %v1470 = vld [vmem:[#allocation5 + $0x2618] sm:$0xff]
    %v1471 = vld [vmem:[#allocation5 + $0x2620] sm:$0xff]
    %v1472 = vld [vmem:[#allocation5 + $0x2628] sm:$0xff]
    %v1473 = vld [vmem:[#allocation5 + $0x2630] sm:$0xff]
    %v1474 = vld [vmem:[#allocation5 + $0x2638] sm:$0xff]
    %v1475 = vld [vmem:[#allocation5 + $0x2640] sm:$0xff]
    %v1476 = vld [vmem:[#allocation5 + $0x2648] sm:$0xff]
    %v1477 = vld [vmem:[#allocation5 + $0x2650] sm:$0xff]
    %v1478 = vld [vmem:[#allocation5 + $0x2658] sm:$0xff]
    %v1479 = vld [vmem:[#allocation5 + $0x2660] sm:$0xff]
    %v1480 = vld [vmem:[#allocation5 + $0x2668] sm:$0xff]
    %v1481 = vld [vmem:[#allocation5 + $0x2670] sm:$0xff]
    %v1482 = vld [vmem:[#allocation5 + $0x2678] sm:$0xff]
    %v1483 = vld [vmem:[#allocation5 + $0x2680] sm:$0xff]
    %v1484 = vld [vmem:[#allocation5 + $0x2688] sm:$0xff]
    %v1485 = vld [vmem:[#allocation5 + $0x2690] sm:$0xff]
    %v1486 = vld [vmem:[#allocation5 + $0x2698] sm:$0xff]
    %v1487 = vld [vmem:[#allocation5 + $0x26a0] sm:$0xff]
    %v1488 = vld [vmem:[#allocation5 + $0x26a8] sm:$0xff]
    %v1489 = vld [vmem:[#allocation5 + $0x26b0] sm:$0xff]
    %v1490 = vld [vmem:[#allocation5 + $0x26b8] sm:$0xff]
    %v1491 = vld [vmem:[#allocation5 + $0x26c0] sm:$0xff]
    %v1492 = vld [vmem:[#allocation5 + $0x26c8] sm:$0xff]
    %v1493 = vld [vmem:[#allocation5 + $0x26d0] sm:$0xff]
    %v1494 = vld [vmem:[#allocation5 + $0x26d8] sm:$0xff]
    %v1495 = vld [vmem:[#allocation5 + $0x26e0] sm:$0xff]
    %v1496 = vld [vmem:[#allocation5 + $0x26e8] sm:$0xff]
    %v1497 = vld [vmem:[#allocation5 + $0x26f0] sm:$0xff]
    %v1498 = vld [vmem:[#allocation5 + $0x26f8] sm:$0xff]
    %v1499 = vld [vmem:[#allocation5 + $0x2700] sm:$0xff]
    %v1500 = vld [vmem:[#allocation5 + $0x2708] sm:$0xff]
    %v1501 = vld [vmem:[#allocation5 + $0x2710] sm:$0xff]
    %v1502 = vld [vmem:[#allocation5 + $0x2718] sm:$0xff]
    %v1503 = vld [vmem:[#allocation5 + $0x2720] sm:$0xff]
    %v1504 = vld [vmem:[#allocation5 + $0x2728] sm:$0xff]
    %v1505 = vld [vmem:[#allocation5 + $0x2730] sm:$0xff]
    %v1506 = vld [vmem:[#allocation5 + $0x2738] sm:$0xff]
    %v1507 = vld [vmem:[#allocation5 + $0x2740] sm:$0xff]
    %v1508 = vld [vmem:[#allocation5 + $0x2748] sm:$0xff]
    %v1509 = vld [vmem:[#allocation5 + $0x2750] sm:$0xff]
    %v1510 = vld [vmem:[#allocation5 + $0x2758] sm:$0xff]
    %v1511 = vld [vmem:[#allocation5 + $0x2760] sm:$0xff]
    %v1512 = vld [vmem:[#allocation5 + $0x2768] sm:$0xff]
    %v1513 = vld [vmem:[#allocation5 + $0x2770] sm:$0xff]
    %v1514 = vld [vmem:[#allocation5 + $0x2778] sm:$0xff]
    %v1515 = vld [vmem:[#allocation5 + $0x2780] sm:$0xff]
    %v1516 = vld [vmem:[#allocation5 + $0x2788] sm:$0xff]
    %v1517 = vld [vmem:[#allocation5 + $0x2790] sm:$0xff]
    %v1518 = vld [vmem:[#allocation5 + $0x2798] sm:$0xff]
    %v1519 = vld [vmem:[#allocation5 + $0x27a0] sm:$0xff]
    %v1520 = vld [vmem:[#allocation5 + $0x27a8] sm:$0xff]
    %v1521 = vld [vmem:[#allocation5 + $0x27b0] sm:$0xff]
    %v1522 = vld [vmem:[#allocation5 + $0x27b8] sm:$0xff]
    %v1523 = vld [vmem:[#allocation5 + $0x27c0] sm:$0xff]
    %v1524 = vld [vmem:[#allocation5 + $0x27c8] sm:$0xff]
    %v1525 = vld [vmem:[#allocation5 + $0x27d0] sm:$0xff]
    %v1526 = vld [vmem:[#allocation5 + $0x27d8] sm:$0xff]
    %v1527 = vld [vmem:[#allocation5 + $0x27e0] sm:$0xff]
    %v1528 = vld [vmem:[#allocation5 + $0x27e8] sm:$0xff]
    %v1529 = vld [vmem:[#allocation5 + $0x27f0] sm:$0xff]
    %v1530 = vld [vmem:[#allocation5 + $0x27f8] sm:$0xff]
    %v1531 = vld [vmem:[#allocation5 + $0x2800] sm:$0xff]
    %v1532 = vld [vmem:[#allocation5 + $0x2808] sm:$0xff]
    %v1533 = vld [vmem:[#allocation5 + $0x2810] sm:$0xff]
    %v1534 = vld [vmem:[#allocation5 + $0x2818] sm:$0xff]
    %v1535 = vld [vmem:[#allocation5 + $0x2820] sm:$0xff]
    %v1536 = vld [vmem:[#allocation5 + $0x2828] sm:$0xff]
    %v1537 = vld [vmem:[#allocation5 + $0x2830] sm:$0xff]
    %v1538 = vld [vmem:[#allocation5 + $0x2838] sm:$0xff]
    %v1539 = vld [vmem:[#allocation5 + $0x2840] sm:$0xff]
    %v1540 = vld [vmem:[#allocation5 + $0x2848] sm:$0xff]
    %v1541 = vld [vmem:[#allocation5 + $0x2850] sm:$0xff]
    %v1542 = vld [vmem:[#allocation5 + $0x2858] sm:$0xff]
    %v1543 = vld [vmem:[#allocation5 + $0x2860] sm:$0xff]
    %v1544 = vld [vmem:[#allocation5 + $0x2868] sm:$0xff]
    %v1545 = vld [vmem:[#allocation5 + $0x2870] sm:$0xff]
    %v1546 = vld [vmem:[#allocation5 + $0x2878] sm:$0xff]
    %v1547 = vld [vmem:[#allocation5 + $0x2880] sm:$0xff]
    %v1548 = vld [vmem:[#allocation5 + $0x2888] sm:$0xff]
    %v1549 = vld [vmem:[#allocation5 + $0x2890] sm:$0xff]
    %v1550 = vld [vmem:[#allocation5 + $0x2898] sm:$0xff]
    %v1551 = vld [vmem:[#allocation5 + $0x28a0] sm:$0xff]
    %v1552 = vld [vmem:[#allocation5 + $0x28a8] sm:$0xff]
    %v1553 = vld [vmem:[#allocation5 + $0x28b0] sm:$0xff]
    %v1554 = vld [vmem:[#allocation5 + $0x28b8] sm:$0xff]
    %v1555 = vld [vmem:[#allocation5 + $0x28c0] sm:$0xff]
    %v1556 = vld [vmem:[#allocation5 + $0x28c8] sm:$0xff]
    %v1557 = vld [vmem:[#allocation5 + $0x28d0] sm:$0xff]
    %v1558 = vld [vmem:[#allocation5 + $0x28d8] sm:$0xff]
    %v1559 = vld [vmem:[#allocation5 + $0x28e0] sm:$0xff]
    %v1560 = vld [vmem:[#allocation5 + $0x28e8] sm:$0xff]
    %v1561 = vld [vmem:[#allocation5 + $0x28f0] sm:$0xff]
    %v1562 = vld [vmem:[#allocation5 + $0x28f8] sm:$0xff]
    %v1563 = vld [vmem:[#allocation5 + $0x2900] sm:$0xff]
    %v1564 = vld [vmem:[#allocation5 + $0x2908] sm:$0xff]
    %v1565 = vld [vmem:[#allocation5 + $0x2910] sm:$0xff]
    %v1566 = vld [vmem:[#allocation5 + $0x2918] sm:$0xff]
    %v1567 = vld [vmem:[#allocation5 + $0x2920] sm:$0xff]
    %v1568 = vld [vmem:[#allocation5 + $0x2928] sm:$0xff]
    %v1569 = vld [vmem:[#allocation5 + $0x2930] sm:$0xff]
    %v1570 = vld [vmem:[#allocation5 + $0x2938] sm:$0xff]
    %v1571 = vld [vmem:[#allocation5 + $0x2940] sm:$0xff]
    %v1572 = vld [vmem:[#allocation5 + $0x2948] sm:$0xff]
    %v1573 = vld [vmem:[#allocation5 + $0x2950] sm:$0xff]
    %v1574 = vld [vmem:[#allocation5 + $0x2958] sm:$0xff]
    %v1575 = vld [vmem:[#allocation5 + $0x2960] sm:$0xff]
    %v1576 = vld [vmem:[#allocation5 + $0x2968] sm:$0xff]
    %v1577 = vld [vmem:[#allocation5 + $0x2970] sm:$0xff]
    %v1578 = vld [vmem:[#allocation5 + $0x2978] sm:$0xff]
    %v1579 = vld [vmem:[#allocation5 + $0x2980] sm:$0xff]
    %v1580 = vld [vmem:[#allocation5 + $0x2988] sm:$0xff]
    %v1581 = vld [vmem:[#allocation5 + $0x2990] sm:$0xff]
    %v1582 = vld [vmem:[#allocation5 + $0x2998] sm:$0xff]
    %v1583 = vld [vmem:[#allocation5 + $0x29a0] sm:$0xff]
    %v1584 = vld [vmem:[#allocation5 + $0x29a8] sm:$0xff]
    %v1585 = vld [vmem:[#allocation5 + $0x29b0] sm:$0xff]
    %v1586 = vld [vmem:[#allocation5 + $0x29b8] sm:$0xff]
    %v1587 = vld [vmem:[#allocation5 + $0x29c0] sm:$0xff]
    %v1588 = vld [vmem:[#allocation5 + $0x29c8] sm:$0xff]
    %v1589 = vld [vmem:[#allocation5 + $0x29d0] sm:$0xff]
    %v1590 = vld [vmem:[#allocation5 + $0x29d8] sm:$0xff]
    %v1591 = vld [vmem:[#allocation5 + $0x29e0] sm:$0xff]
    %v1592 = vld [vmem:[#allocation5 + $0x29e8] sm:$0xff]
    %v1593 = vld [vmem:[#allocation5 + $0x29f0] sm:$0xff]
    %v1594 = vld [vmem:[#allocation5 + $0x29f8] sm:$0xff]
    %v1595 = vld [vmem:[#allocation5 + $0x2a00] sm:$0xff]
    %v1596 = vld [vmem:[#allocation5 + $0x2a08] sm:$0xff]
    %v1597 = vld [vmem:[#allocation5 + $0x2a10] sm:$0xff]
    %v1598 = vld [vmem:[#allocation5 + $0x2a18] sm:$0xff]
    %v1599 = vld [vmem:[#allocation5 + $0x2a20] sm:$0xff]
    %v1600 = vld [vmem:[#allocation5 + $0x2a28] sm:$0xff]
    %v1601 = vld [vmem:[#allocation5 + $0x2a30] sm:$0xff]
    %v1602 = vld [vmem:[#allocation5 + $0x2a38] sm:$0xff]
    %v1603 = vld [vmem:[#allocation5 + $0x2a40] sm:$0xff]
    %v1604 = vld [vmem:[#allocation5 + $0x2a48] sm:$0xff]
    %v1605 = vld [vmem:[#allocation5 + $0x2a50] sm:$0xff]
    %v1606 = vld [vmem:[#allocation5 + $0x2a58] sm:$0xff]
    %v1607 = vld [vmem:[#allocation5 + $0x2a60] sm:$0xff]
    %v1608 = vld [vmem:[#allocation5 + $0x2a68] sm:$0xff]
    %v1609 = vld [vmem:[#allocation5 + $0x2a70] sm:$0xff]
    %v1610 = vld [vmem:[#allocation5 + $0x2a78] sm:$0xff]
    %v1611 = vld [vmem:[#allocation5 + $0x2a80] sm:$0xff]
    %v1612 = vld [vmem:[#allocation5 + $0x2a88] sm:$0xff]
    %v1613 = vld [vmem:[#allocation5 + $0x2a90] sm:$0xff]
    %v1614 = vld [vmem:[#allocation5 + $0x2a98] sm:$0xff]
    %v1615 = vld [vmem:[#allocation5 + $0x2aa0] sm:$0xff]
    %v1616 = vld [vmem:[#allocation5 + $0x2aa8] sm:$0xff]
    %v1617 = vld [vmem:[#allocation5 + $0x2ab0] sm:$0xff]
    %v1618 = vld [vmem:[#allocation5 + $0x2ab8] sm:$0xff]
    %v1619 = vld [vmem:[#allocation5 + $0x2ac0] sm:$0xff]
    %v1620 = vld [vmem:[#allocation5 + $0x2ac8] sm:$0xff]
    %v1621 = vld [vmem:[#allocation5 + $0x2ad0] sm:$0xff]
    %v1622 = vld [vmem:[#allocation5 + $0x2ad8] sm:$0xff]
    %v1623 = vld [vmem:[#allocation5 + $0x2ae0] sm:$0xff]
    %v1624 = vld [vmem:[#allocation5 + $0x2ae8] sm:$0xff]
    %v1625 = vld [vmem:[#allocation5 + $0x2af0] sm:$0xff]
    %v1626 = vld [vmem:[#allocation5 + $0x2af8] sm:$0xff]
    %v1627 = vld [vmem:[#allocation5 + $0x2b00] sm:$0xff]
    %v1628 = vld [vmem:[#allocation5 + $0x2b08] sm:$0xff]
    %v1629 = vld [vmem:[#allocation5 + $0x2b10] sm:$0xff]
    %v1630 = vld [vmem:[#allocation5 + $0x2b18] sm:$0xff]
    %v1631 = vld [vmem:[#allocation5 + $0x2b20] sm:$0xff]
    %v1632 = vld [vmem:[#allocation5 + $0x2b28] sm:$0xff]
    %v1633 = vld [vmem:[#allocation5 + $0x2b30] sm:$0xff]
    %v1634 = vld [vmem:[#allocation5 + $0x2b38] sm:$0xff]
    %v1635 = vld [vmem:[#allocation5 + $0x2b40] sm:$0xff]
    %v1636 = vld [vmem:[#allocation5 + $0x2b48] sm:$0xff]
    %v1637 = vld [vmem:[#allocation5 + $0x2b50] sm:$0xff]
    %v1638 = vld [vmem:[#allocation5 + $0x2b58] sm:$0xff]
    %v1639 = vld [vmem:[#allocation5 + $0x2b60] sm:$0xff]
    %v1640 = vld [vmem:[#allocation5 + $0x2b68] sm:$0xff]
    %v1641 = vld [vmem:[#allocation5 + $0x2b70] sm:$0xff]
    %v1642 = vld [vmem:[#allocation5 + $0x2b78] sm:$0xff]
    %v1643 = vld [vmem:[#allocation5 + $0x2b80] sm:$0xff]
    %v1644 = vld [vmem:[#allocation5 + $0x2b88] sm:$0xff]
    %v1645 = vld [vmem:[#allocation5 + $0x2b90] sm:$0xff]
    %v1646 = vld [vmem:[#allocation5 + $0x2b98] sm:$0xff]
    %v1647 = vld [vmem:[#allocation5 + $0x2ba0] sm:$0xff]
    %v1648 = vld [vmem:[#allocation5 + $0x2ba8] sm:$0xff]
    %v1649 = vld [vmem:[#allocation5 + $0x2bb0] sm:$0xff]
    %v1650 = vld [vmem:[#allocation5 + $0x2bb8] sm:$0xff]
    %v1651 = vld [vmem:[#allocation5 + $0x2bc0] sm:$0xff]
    %v1652 = vld [vmem:[#allocation5 + $0x2bc8] sm:$0xff]
    %v1653 = vld [vmem:[#allocation5 + $0x2bd0] sm:$0xff]
    %v1654 = vld [vmem:[#allocation5 + $0x2bd8] sm:$0xff]
    %v1655 = vld [vmem:[#allocation5 + $0x2be0] sm:$0xff]
    %v1656 = vld [vmem:[#allocation5 + $0x2be8] sm:$0xff]
    %v1657 = vld [vmem:[#allocation5 + $0x2bf0] sm:$0xff]
    %v1658 = vld [vmem:[#allocation5 + $0x2bf8] sm:$0xff]
    %v1659 = vld [vmem:[#allocation5 + $0x2c00] sm:$0xff]
    %v1660 = vld [vmem:[#allocation5 + $0x2c08] sm:$0xff]
    %v1661 = vld [vmem:[#allocation5 + $0x2c10] sm:$0xff]
    %v1662 = vld [vmem:[#allocation5 + $0x2c18] sm:$0xff]
    %v1663 = vld [vmem:[#allocation5 + $0x2c20] sm:$0xff]
    %v1664 = vld [vmem:[#allocation5 + $0x2c28] sm:$0xff]
    %v1665 = vld [vmem:[#allocation5 + $0x2c30] sm:$0xff]
    %v1666 = vld [vmem:[#allocation5 + $0x2c38] sm:$0xff]
    %v1667 = vld [vmem:[#allocation5 + $0x2c40] sm:$0xff]
    %v1668 = vld [vmem:[#allocation5 + $0x2c48] sm:$0xff]
    %v1669 = vld [vmem:[#allocation5 + $0x2c50] sm:$0xff]
    %v1670 = vld [vmem:[#allocation5 + $0x2c58] sm:$0xff]
    %v1671 = vld [vmem:[#allocation5 + $0x2c60] sm:$0xff]
    %v1672 = vld [vmem:[#allocation5 + $0x2c68] sm:$0xff]
    %v1673 = vld [vmem:[#allocation5 + $0x2c70] sm:$0xff]
    %v1674 = vld [vmem:[#allocation5 + $0x2c78] sm:$0xff]
    %v1675 = vld [vmem:[#allocation5 + $0x2c80] sm:$0xff]
    %v1676 = vld [vmem:[#allocation5 + $0x2c88] sm:$0xff]
    %v1677 = vld [vmem:[#allocation5 + $0x2c90] sm:$0xff]
    %v1678 = vld [vmem:[#allocation5 + $0x2c98] sm:$0xff]
    %v1679 = vld [vmem:[#allocation5 + $0x2ca0] sm:$0xff]
    %v1680 = vld [vmem:[#allocation5 + $0x2ca8] sm:$0xff]
    %v1681 = vld [vmem:[#allocation5 + $0x2cb0] sm:$0xff]
    %v1682 = vld [vmem:[#allocation5 + $0x2cb8] sm:$0xff]
    %v1683 = vld [vmem:[#allocation5 + $0x2cc0] sm:$0xff]
    %v1684 = vld [vmem:[#allocation5 + $0x2cc8] sm:$0xff]
    %v1685 = vld [vmem:[#allocation5 + $0x2cd0] sm:$0xff]
    %v1686 = vld [vmem:[#allocation5 + $0x2cd8] sm:$0xff]
    %v1687 = vld [vmem:[#allocation5 + $0x2ce0] sm:$0xff]
    %v1688 = vld [vmem:[#allocation5 + $0x2ce8] sm:$0xff]
    %v1689 = vld [vmem:[#allocation5 + $0x2cf0] sm:$0xff]
    %v1690 = vld [vmem:[#allocation5 + $0x2cf8] sm:$0xff]
    %v1691 = vld [vmem:[#allocation5 + $0x2d00] sm:$0xff]
    %v1692 = vld [vmem:[#allocation5 + $0x2d08] sm:$0xff]
    %v1693 = vld [vmem:[#allocation5 + $0x2d10] sm:$0xff]
    %v1694 = vld [vmem:[#allocation5 + $0x2d18] sm:$0xff]
    %v1695 = vld [vmem:[#allocation5 + $0x2d20] sm:$0xff]
    %v1696 = vld [vmem:[#allocation5 + $0x2d28] sm:$0xff]
    %v1697 = vld [vmem:[#allocation5 + $0x2d30] sm:$0xff]
    %v1698 = vld [vmem:[#allocation5 + $0x2d38] sm:$0xff]
    %v1699 = vld [vmem:[#allocation5 + $0x2d40] sm:$0xff]
    %v1700 = vld [vmem:[#allocation5 + $0x2d48] sm:$0xff]
    %v1701 = vld [vmem:[#allocation5 + $0x2d50] sm:$0xff]
    %v1702 = vld [vmem:[#allocation5 + $0x2d58] sm:$0xff]
    %v1703 = vld [vmem:[#allocation5 + $0x2d60] sm:$0xff]
    %v1704 = vld [vmem:[#allocation5 + $0x2d68] sm:$0xff]
    %v1705 = vld [vmem:[#allocation5 + $0x2d70] sm:$0xff]
    %v1706 = vld [vmem:[#allocation5 + $0x2d78] sm:$0xff]
    %v1707 = vld [vmem:[#allocation5 + $0x2d80] sm:$0xff]
    %v1708 = vld [vmem:[#allocation5 + $0x2d88] sm:$0xff]
    %v1709 = vld [vmem:[#allocation5 + $0x2d90] sm:$0xff]
    %v1710 = vld [vmem:[#allocation5 + $0x2d98] sm:$0xff]
    %v1711 = vld [vmem:[#allocation5 + $0x2da0] sm:$0xff]
    %v1712 = vld [vmem:[#allocation5 + $0x2da8] sm:$0xff]
    %v1713 = vld [vmem:[#allocation5 + $0x2db0] sm:$0xff]
    %v1714 = vld [vmem:[#allocation5 + $0x2db8] sm:$0xff]
    %v1715 = vld [vmem:[#allocation5 + $0x2dc0] sm:$0xff]
    %v1716 = vld [vmem:[#allocation5 + $0x2dc8] sm:$0xff]
    %v1717 = vld [vmem:[#allocation5 + $0x2dd0] sm:$0xff]
    %v1718 = vld [vmem:[#allocation5 + $0x2dd8] sm:$0xff]
    %v1719 = vld [vmem:[#allocation5 + $0x2de0] sm:$0xff]
    %v1720 = vld [vmem:[#allocation5 + $0x2de8] sm:$0xff]
    %v1721 = vld [vmem:[#allocation5 + $0x2df0] sm:$0xff]
    %v1722 = vld [vmem:[#allocation5 + $0x2df8] sm:$0xff]
    %v1723 = vld [vmem:[#allocation5 + $0x2e00] sm:$0xff]
    %v1724 = vld [vmem:[#allocation5 + $0x2e08] sm:$0xff]
    %v1725 = vld [vmem:[#allocation5 + $0x2e10] sm:$0xff]
    %v1726 = vld [vmem:[#allocation5 + $0x2e18] sm:$0xff]
    %v1727 = vld [vmem:[#allocation5 + $0x2e20] sm:$0xff]
    %v1728 = vld [vmem:[#allocation5 + $0x2e28] sm:$0xff]
    %v1729 = vld [vmem:[#allocation5 + $0x2e30] sm:$0xff]
    %v1730 = vld [vmem:[#allocation5 + $0x2e38] sm:$0xff]
    %v1731 = vld [vmem:[#allocation5 + $0x2e40] sm:$0xff]
    %v1732 = vld [vmem:[#allocation5 + $0x2e48] sm:$0xff]
    %v1733 = vld [vmem:[#allocation5 + $0x2e50] sm:$0xff]
    %v1734 = vld [vmem:[#allocation5 + $0x2e58] sm:$0xff]
    %v1735 = vld [vmem:[#allocation5 + $0x2e60] sm:$0xff]
    %v1736 = vld [vmem:[#allocation5 + $0x2e68] sm:$0xff]
    %v1737 = vld [vmem:[#allocation5 + $0x2e70] sm:$0xff]
    %v1738 = vld [vmem:[#allocation5 + $0x2e78] sm:$0xff]
    %v1739 = vld [vmem:[#allocation5 + $0x2e80] sm:$0xff]
    %v1740 = vld [vmem:[#allocation5 + $0x2e88] sm:$0xff]
    %v1741 = vld [vmem:[#allocation5 + $0x2e90] sm:$0xff]
    %v1742 = vld [vmem:[#allocation5 + $0x2e98] sm:$0xff]
    %v1743 = vld [vmem:[#allocation5 + $0x2ea0] sm:$0xff]
    %v1744 = vld [vmem:[#allocation5 + $0x2ea8] sm:$0xff]
    %v1745 = vld [vmem:[#allocation5 + $0x2eb0] sm:$0xff]
    %v1746 = vld [vmem:[#allocation5 + $0x2eb8] sm:$0xff]
    %v1747 = vld [vmem:[#allocation5 + $0x2ec0] sm:$0xff]
    %v1748 = vld [vmem:[#allocation5 + $0x2ec8] sm:$0xff]
    %v1749 = vld [vmem:[#allocation5 + $0x2ed0] sm:$0xff]
    %v1750 = vld [vmem:[#allocation5 + $0x2ed8] sm:$0xff]
    %v1751 = vld [vmem:[#allocation5 + $0x2ee0] sm:$0xff]
    %v1752 = vld [vmem:[#allocation5 + $0x2ee8] sm:$0xff]
    %v1753 = vld [vmem:[#allocation5 + $0x2ef0] sm:$0xff]
    %v1754 = vld [vmem:[#allocation5 + $0x2ef8] sm:$0xff]
    %v1755 = vld [vmem:[#allocation5 + $0x2f00] sm:$0xff]
    %v1756 = vld [vmem:[#allocation5 + $0x2f08] sm:$0xff]
    %v1757 = vld [vmem:[#allocation5 + $0x2f10] sm:$0xff]
    %v1758 = vld [vmem:[#allocation5 + $0x2f18] sm:$0xff]
    %v1759 = vld [vmem:[#allocation5 + $0x2f20] sm:$0xff]
    %v1760 = vld [vmem:[#allocation5 + $0x2f28] sm:$0xff]
    %v1761 = vld [vmem:[#allocation5 + $0x2f30] sm:$0xff]
    %v1762 = vld [vmem:[#allocation5 + $0x2f38] sm:$0xff]
    %v1763 = vld [vmem:[#allocation5 + $0x2f40] sm:$0xff]
    %v1764 = vld [vmem:[#allocation5 + $0x2f48] sm:$0xff]
    %v1765 = vld [vmem:[#allocation5 + $0x2f50] sm:$0xff]
    %v1766 = vld [vmem:[#allocation5 + $0x2f58] sm:$0xff]
    %v1767 = vld [vmem:[#allocation5 + $0x2f60] sm:$0xff]
    %v1768 = vld [vmem:[#allocation5 + $0x2f68] sm:$0xff]
    %v1769 = vld [vmem:[#allocation5 + $0x2f70] sm:$0xff]
    %v1770 = vld [vmem:[#allocation5 + $0x2f78] sm:$0xff]
    %v1771 = vld [vmem:[#allocation5 + $0x2f80] sm:$0xff]
    %v1772 = vld [vmem:[#allocation5 + $0x2f88] sm:$0xff]
    %v1773 = vld [vmem:[#allocation5 + $0x2f90] sm:$0xff]
    %v1774 = vld [vmem:[#allocation5 + $0x2f98] sm:$0xff]
    %v1775 = vld [vmem:[#allocation5 + $0x2fa0] sm:$0xff]
    %v1776 = vld [vmem:[#allocation5 + $0x2fa8] sm:$0xff]
    %v1777 = vld [vmem:[#allocation5 + $0x2fb0] sm:$0xff]
    %v1778 = vld [vmem:[#allocation5 + $0x2fb8] sm:$0xff]
    %v1779 = vld [vmem:[#allocation5 + $0x2fc0] sm:$0xff]
    %v1780 = vld [vmem:[#allocation5 + $0x2fc8] sm:$0xff]
    %v1781 = vld [vmem:[#allocation5 + $0x2fd0] sm:$0xff]
    %v1782 = vld [vmem:[#allocation5 + $0x2fd8] sm:$0xff]
    %v1783 = vld [vmem:[#allocation5 + $0x2fe0] sm:$0xff]
    %v1784 = vld [vmem:[#allocation5 + $0x2fe8] sm:$0xff]
    %v1785 = vld [vmem:[#allocation5 + $0x2ff0] sm:$0xff]
    %v1786 = vld [vmem:[#allocation5 + $0x2ff8] sm:$0xff]
    %v1787 = vld [vmem:[#allocation7] sm:$0xff]
    %v1789 = vlaneseq
    %v1790 = vshrl.u32 %v1789, 7
    %v1791 = vsub.s32 0, %v1790
    %v1792 = vrot.slane %v1787, %v1791
    %v1793 = vlaneseq
    %v1794 = vshrl.u32 %v1793, 7
    %v1795 = vsub.s32 1, %v1794
    %v1796 = vrot.slane %v1787, %v1795
    %v1797 = vlaneseq
    %v1798 = vshrl.u32 %v1797, 7
    %v1799 = vsub.s32 2, %v1798
    %v1800 = vrot.slane %v1787, %v1799
    %v1801 = vlaneseq
    %v1802 = vshrl.u32 %v1801, 7
    %v1803 = vsub.s32 3, %v1802
    %v1804 = vrot.slane %v1787, %v1803
    %v1805 = vlaneseq
    %v1806 = vshrl.u32 %v1805, 7
    %v1807 = vsub.s32 4, %v1806
    %v1808 = vrot.slane %v1787, %v1807
    %v1809 = vlaneseq
    %v1810 = vshrl.u32 %v1809, 7
    %v1811 = vsub.s32 5, %v1810
    %v1812 = vrot.slane %v1787, %v1811
    %v1813 = vlaneseq
    %v1814 = vshrl.u32 %v1813, 7
    %v1815 = vsub.s32 6, %v1814
    %v1816 = vrot.slane %v1787, %v1815
    %v1817 = vlaneseq
    %v1818 = vshrl.u32 %v1817, 7
    %v1819 = vsub.s32 7, %v1818
    %v1820 = vrot.slane %v1787, %v1819
    %v3365 = vunpack.c.l.b16 %v251
    %v3366 = vunpack.c.h.b16 %v251
    %v3367 = vunpack.c.l.b16 %v252
    %v3368 = vunpack.c.h.b16 %v252
    %v3369 = vunpack.c.l.b16 %v253
    %v3370 = vunpack.c.h.b16 %v253
    %v3371 = vunpack.c.l.b16 %v254
    %v3372 = vunpack.c.h.b16 %v254
    %v3373 = vunpack.c.l.b16 %v255
    %v3374 = vunpack.c.h.b16 %v255
    %v3375 = vunpack.c.l.b16 %v256
    %v3376 = vunpack.c.h.b16 %v256
    %v3377 = vunpack.c.l.b16 %v257
    %v3378 = vunpack.c.h.b16 %v257
    %v3379 = vunpack.c.l.b16 %v258
    %v3380 = vunpack.c.h.b16 %v258
    %v3381 = vunpack.c.l.b16 %v259
    %v3382 = vunpack.c.h.b16 %v259
    %v3383 = vunpack.c.l.b16 %v260
    %v3384 = vunpack.c.h.b16 %v260
    %v3385 = vunpack.c.l.b16 %v261
    %v3386 = vunpack.c.h.b16 %v261
    %v3387 = vunpack.c.l.b16 %v262
    %v3388 = vunpack.c.h.b16 %v262
    %v3389 = vunpack.c.l.b16 %v263
    %v3390 = vunpack.c.h.b16 %v263
    %v3391 = vunpack.c.l.b16 %v264
    %v3392 = vunpack.c.h.b16 %v264
    %v3393 = vunpack.c.l.b16 %v265
    %v3394 = vunpack.c.h.b16 %v265
    %v3395 = vunpack.c.l.b16 %v266
    %v3396 = vunpack.c.h.b16 %v266
    %v3397 = vunpack.c.l.b16 %v267
    %v3398 = vunpack.c.h.b16 %v267
    %v3399 = vunpack.c.l.b16 %v268
    %v3400 = vunpack.c.h.b16 %v268
    %v3401 = vunpack.c.l.b16 %v269
    %v3402 = vunpack.c.h.b16 %v269
    %v3403 = vunpack.c.l.b16 %v270
    %v3404 = vunpack.c.h.b16 %v270
    %v3405 = vunpack.c.l.b16 %v271
    %v3406 = vunpack.c.h.b16 %v271
    %v3407 = vunpack.c.l.b16 %v272
    %v3408 = vunpack.c.h.b16 %v272
    %v3409 = vunpack.c.l.b16 %v273
    %v3410 = vunpack.c.h.b16 %v273
    %v3411 = vunpack.c.l.b16 %v274
    %v3412 = vunpack.c.h.b16 %v274
    %v3413 = vunpack.c.l.b16 %v275
    %v3414 = vunpack.c.h.b16 %v275
    %v3415 = vunpack.c.l.b16 %v276
    %v3416 = vunpack.c.h.b16 %v276
    %v3417 = vunpack.c.l.b16 %v277
    %v3418 = vunpack.c.h.b16 %v277
    %v3419 = vunpack.c.l.b16 %v278
    %v3420 = vunpack.c.h.b16 %v278
    %v3421 = vunpack.c.l.b16 %v279
    %v3422 = vunpack.c.h.b16 %v279
    %v3423 = vunpack.c.l.b16 %v280
    %v3424 = vunpack.c.h.b16 %v280
    %v3425 = vunpack.c.l.b16 %v281
    %v3426 = vunpack.c.h.b16 %v281
    %v3427 = vunpack.c.l.b16 %v282
    %v3428 = vunpack.c.h.b16 %v282
    %v3429 = vunpack.c.l.b16 %v283
    %v3430 = vunpack.c.h.b16 %v283
    %v3431 = vunpack.c.l.b16 %v284
    %v3432 = vunpack.c.h.b16 %v284
    %v3433 = vunpack.c.l.b16 %v285
    %v3434 = vunpack.c.h.b16 %v285
    %v3435 = vunpack.c.l.b16 %v286
    %v3436 = vunpack.c.h.b16 %v286
    %v3437 = vunpack.c.l.b16 %v287
    %v3438 = vunpack.c.h.b16 %v287
    %v3439 = vunpack.c.l.b16 %v288
    %v3440 = vunpack.c.h.b16 %v288
    %v3441 = vunpack.c.l.b16 %v289
    %v3442 = vunpack.c.h.b16 %v289
    %v3443 = vunpack.c.l.b16 %v290
    %v3444 = vunpack.c.h.b16 %v290
    %v3445 = vunpack.c.l.b16 %v291
    %v3446 = vunpack.c.h.b16 %v291
    %v3447 = vunpack.c.l.b16 %v292
    %v3448 = vunpack.c.h.b16 %v292
    %v3449 = vunpack.c.l.b16 %v293
    %v3450 = vunpack.c.h.b16 %v293
    %v3451 = vunpack.c.l.b16 %v294
    %v3452 = vunpack.c.h.b16 %v294
    %v3453 = vunpack.c.l.b16 %v295
    %v3454 = vunpack.c.h.b16 %v295
    %v3455 = vunpack.c.l.b16 %v296
    %v3456 = vunpack.c.h.b16 %v296
    %v3457 = vunpack.c.l.b16 %v297
    %v3458 = vunpack.c.h.b16 %v297
    %v3459 = vunpack.c.l.b16 %v298
    %v3460 = vunpack.c.h.b16 %v298
    %v3461 = vunpack.c.l.b16 %v299
    %v3462 = vunpack.c.h.b16 %v299
    %v3463 = vunpack.c.l.b16 %v300
    %v3464 = vunpack.c.h.b16 %v300
    %v3465 = vunpack.c.l.b16 %v301
    %v3466 = vunpack.c.h.b16 %v301
    %v3467 = vunpack.c.l.b16 %v302
    %v3468 = vunpack.c.h.b16 %v302
    %v3469 = vunpack.c.l.b16 %v303
    %v3470 = vunpack.c.h.b16 %v303
    %v3471 = vunpack.c.l.b16 %v304
    %v3472 = vunpack.c.h.b16 %v304
    %v3473 = vunpack.c.l.b16 %v305
    %v3474 = vunpack.c.h.b16 %v305
    %v3475 = vunpack.c.l.b16 %v306
    %v3476 = vunpack.c.h.b16 %v306
    %v3477 = vunpack.c.l.b16 %v307
    %v3478 = vunpack.c.h.b16 %v307
    %v3479 = vunpack.c.l.b16 %v308
    %v3480 = vunpack.c.h.b16 %v308
    %v3481 = vunpack.c.l.b16 %v309
    %v3482 = vunpack.c.h.b16 %v309
    %v3483 = vunpack.c.l.b16 %v310
    %v3484 = vunpack.c.h.b16 %v310
    %v3485 = vunpack.c.l.b16 %v311
    %v3486 = vunpack.c.h.b16 %v311
    %v3487 = vunpack.c.l.b16 %v312
    %v3488 = vunpack.c.h.b16 %v312
    %v3489 = vunpack.c.l.b16 %v313
    %v3490 = vunpack.c.h.b16 %v313
    %v3491 = vunpack.c.l.b16 %v314
    %v3492 = vunpack.c.h.b16 %v314
    %v3493 = vunpack.c.l.b16 %v315
    %v3494 = vunpack.c.h.b16 %v315
    %v3495 = vunpack.c.l.b16 %v316
    %v3496 = vunpack.c.h.b16 %v316
    %v3497 = vunpack.c.l.b16 %v317
    %v3498 = vunpack.c.h.b16 %v317
    %v3499 = vunpack.c.l.b16 %v318
    %v3500 = vunpack.c.h.b16 %v318
    %v3501 = vunpack.c.l.b16 %v319
    %v3502 = vunpack.c.h.b16 %v319
    %v3503 = vunpack.c.l.b16 %v320
    %v3504 = vunpack.c.h.b16 %v320
    %v3505 = vunpack.c.l.b16 %v321
    %v3506 = vunpack.c.h.b16 %v321
    %v3507 = vunpack.c.l.b16 %v322
    %v3508 = vunpack.c.h.b16 %v322
    %v3509 = vunpack.c.l.b16 %v323
    %v3510 = vunpack.c.h.b16 %v323
    %v3511 = vunpack.c.l.b16 %v324
    %v3512 = vunpack.c.h.b16 %v324
    %v3513 = vunpack.c.l.b16 %v325
    %v3514 = vunpack.c.h.b16 %v325
    %v3515 = vunpack.c.l.b16 %v326
    %v3516 = vunpack.c.h.b16 %v326
    %v3517 = vunpack.c.l.b16 %v327
    %v3518 = vunpack.c.h.b16 %v327
    %v3519 = vunpack.c.l.b16 %v328
    %v3520 = vunpack.c.h.b16 %v328
    %v3521 = vunpack.c.l.b16 %v329
    %v3522 = vunpack.c.h.b16 %v329
    %v3523 = vunpack.c.l.b16 %v330
    %v3524 = vunpack.c.h.b16 %v330
    %v3525 = vunpack.c.l.b16 %v331
    %v3526 = vunpack.c.h.b16 %v331
    %v3527 = vunpack.c.l.b16 %v332
    %v3528 = vunpack.c.h.b16 %v332
    %v3529 = vunpack.c.l.b16 %v333
    %v3530 = vunpack.c.h.b16 %v333
    %v3531 = vunpack.c.l.b16 %v334
    %v3532 = vunpack.c.h.b16 %v334
    %v3533 = vunpack.c.l.b16 %v335
    %v3534 = vunpack.c.h.b16 %v335
    %v3535 = vunpack.c.l.b16 %v336
    %v3536 = vunpack.c.h.b16 %v336
    %v3537 = vunpack.c.l.b16 %v337
    %v3538 = vunpack.c.h.b16 %v337
    %v3539 = vunpack.c.l.b16 %v338
    %v3540 = vunpack.c.h.b16 %v338
    %v3541 = vunpack.c.l.b16 %v339
    %v3542 = vunpack.c.h.b16 %v339
    %v3543 = vunpack.c.l.b16 %v340
    %v3544 = vunpack.c.h.b16 %v340
    %v3545 = vunpack.c.l.b16 %v341
    %v3546 = vunpack.c.h.b16 %v341
    %v3547 = vunpack.c.l.b16 %v342
    %v3548 = vunpack.c.h.b16 %v342
    %v3549 = vunpack.c.l.b16 %v343
    %v3550 = vunpack.c.h.b16 %v343
    %v3551 = vunpack.c.l.b16 %v344
    %v3552 = vunpack.c.h.b16 %v344
    %v3553 = vunpack.c.l.b16 %v345
    %v3554 = vunpack.c.h.b16 %v345
    %v3555 = vunpack.c.l.b16 %v346
    %v3556 = vunpack.c.h.b16 %v346
    %v3557 = vunpack.c.l.b16 %v347
    %v3558 = vunpack.c.h.b16 %v347
    %v3559 = vunpack.c.l.b16 %v348
    %v3560 = vunpack.c.h.b16 %v348
    %v3561 = vunpack.c.l.b16 %v349
    %v3562 = vunpack.c.h.b16 %v349
    %v3563 = vunpack.c.l.b16 %v350
    %v3564 = vunpack.c.h.b16 %v350
    %v3565 = vunpack.c.l.b16 %v351
    %v3566 = vunpack.c.h.b16 %v351
    %v3567 = vunpack.c.l.b16 %v352
    %v3568 = vunpack.c.h.b16 %v352
    %v3569 = vunpack.c.l.b16 %v353
    %v3570 = vunpack.c.h.b16 %v353
    %v3571 = vunpack.c.l.b16 %v354
    %v3572 = vunpack.c.h.b16 %v354
    %v3573 = vunpack.c.l.b16 %v355
    %v3574 = vunpack.c.h.b16 %v355
    %v3575 = vunpack.c.l.b16 %v356
    %v3576 = vunpack.c.h.b16 %v356
    %v3577 = vunpack.c.l.b16 %v357
    %v3578 = vunpack.c.h.b16 %v357
    %v3579 = vunpack.c.l.b16 %v358
    %v3580 = vunpack.c.h.b16 %v358
    %v3581 = vunpack.c.l.b16 %v359
    %v3582 = vunpack.c.h.b16 %v359
    %v3583 = vunpack.c.l.b16 %v360
    %v3584 = vunpack.c.h.b16 %v360
    %v3585 = vunpack.c.l.b16 %v361
    %v3586 = vunpack.c.h.b16 %v361
    %v3587 = vunpack.c.l.b16 %v362
    %v3588 = vunpack.c.h.b16 %v362
    %v3589 = vunpack.c.l.b16 %v363
    %v3590 = vunpack.c.h.b16 %v363
    %v3591 = vunpack.c.l.b16 %v364
    %v3592 = vunpack.c.h.b16 %v364
    %v3593 = vunpack.c.l.b16 %v365
    %v3594 = vunpack.c.h.b16 %v365
    %v3595 = vunpack.c.l.b16 %v366
    %v3596 = vunpack.c.h.b16 %v366
    %v3597 = vunpack.c.l.b16 %v367
    %v3598 = vunpack.c.h.b16 %v367
    %v3599 = vunpack.c.l.b16 %v368
    %v3600 = vunpack.c.h.b16 %v368
    %v3601 = vunpack.c.l.b16 %v369
    %v3602 = vunpack.c.h.b16 %v369
    %v3603 = vunpack.c.l.b16 %v370
    %v3604 = vunpack.c.h.b16 %v370
    %v3605 = vunpack.c.l.b16 %v371
    %v3606 = vunpack.c.h.b16 %v371
    %v3607 = vunpack.c.l.b16 %v372
    %v3608 = vunpack.c.h.b16 %v372
    %v3609 = vunpack.c.l.b16 %v373
    %v3610 = vunpack.c.h.b16 %v373
    %v3611 = vunpack.c.l.b16 %v374
    %v3612 = vunpack.c.h.b16 %v374
    %v3613 = vunpack.c.l.b16 %v375
    %v3614 = vunpack.c.h.b16 %v375
    %v3615 = vunpack.c.l.b16 %v376
    %v3616 = vunpack.c.h.b16 %v376
    %v3617 = vunpack.c.l.b16 %v377
    %v3618 = vunpack.c.h.b16 %v377
    %v3619 = vunpack.c.l.b16 %v378
    %v3620 = vunpack.c.h.b16 %v378
    %v3621 = vunpack.c.l.b16 %v379
    %v3622 = vunpack.c.h.b16 %v379
    %v3623 = vunpack.c.l.b16 %v380
    %v3624 = vunpack.c.h.b16 %v380
    %v3625 = vunpack.c.l.b16 %v381
    %v3626 = vunpack.c.h.b16 %v381
    %v3627 = vunpack.c.l.b16 %v382
    %v3628 = vunpack.c.h.b16 %v382
    %v3629 = vunpack.c.l.b16 %v383
    %v3630 = vunpack.c.h.b16 %v383
    %v3631 = vunpack.c.l.b16 %v384
    %v3632 = vunpack.c.h.b16 %v384
    %v3633 = vunpack.c.l.b16 %v385
    %v3634 = vunpack.c.h.b16 %v385
    %v3635 = vunpack.c.l.b16 %v386
    %v3636 = vunpack.c.h.b16 %v386
    %v3637 = vunpack.c.l.b16 %v387
    %v3638 = vunpack.c.h.b16 %v387
    %v3639 = vunpack.c.l.b16 %v388
    %v3640 = vunpack.c.h.b16 %v388
    %v3641 = vunpack.c.l.b16 %v389
    %v3642 = vunpack.c.h.b16 %v389
    %v3643 = vunpack.c.l.b16 %v390
    %v3644 = vunpack.c.h.b16 %v390
    %v3645 = vunpack.c.l.b16 %v391
    %v3646 = vunpack.c.h.b16 %v391
    %v3647 = vunpack.c.l.b16 %v392
    %v3648 = vunpack.c.h.b16 %v392
    %v3649 = vunpack.c.l.b16 %v393
    %v3650 = vunpack.c.h.b16 %v393
    %v3651 = vunpack.c.l.b16 %v394
    %v3652 = vunpack.c.h.b16 %v394
    %v3653 = vunpack.c.l.b16 %v395
    %v3654 = vunpack.c.h.b16 %v395
    %v3655 = vunpack.c.l.b16 %v396
    %v3656 = vunpack.c.h.b16 %v396
    %v3657 = vunpack.c.l.b16 %v397
    %v3658 = vunpack.c.h.b16 %v397
    %v3659 = vunpack.c.l.b16 %v398
    %v3660 = vunpack.c.h.b16 %v398
    %v3661 = vunpack.c.l.b16 %v399
    %v3662 = vunpack.c.h.b16 %v399
    %v3663 = vunpack.c.l.b16 %v400
    %v3664 = vunpack.c.h.b16 %v400
    %v3665 = vunpack.c.l.b16 %v401
    %v3666 = vunpack.c.h.b16 %v401
    %v3667 = vunpack.c.l.b16 %v402
    %v3668 = vunpack.c.h.b16 %v402
    %v3669 = vunpack.c.l.b16 %v403
    %v3670 = vunpack.c.h.b16 %v403
    %v3671 = vunpack.c.l.b16 %v404
    %v3672 = vunpack.c.h.b16 %v404
    %v3673 = vunpack.c.l.b16 %v405
    %v3674 = vunpack.c.h.b16 %v405
    %v3675 = vunpack.c.l.b16 %v406
    %v3676 = vunpack.c.h.b16 %v406
    %v3677 = vunpack.c.l.b16 %v407
    %v3678 = vunpack.c.h.b16 %v407
    %v3679 = vunpack.c.l.b16 %v408
    %v3680 = vunpack.c.h.b16 %v408
    %v3681 = vunpack.c.l.b16 %v409
    %v3682 = vunpack.c.h.b16 %v409
    %v3683 = vunpack.c.l.b16 %v410
    %v3684 = vunpack.c.h.b16 %v410
    %v3685 = vunpack.c.l.b16 %v411
    %v3686 = vunpack.c.h.b16 %v411
    %v3687 = vunpack.c.l.b16 %v412
    %v3688 = vunpack.c.h.b16 %v412
    %v3689 = vunpack.c.l.b16 %v413
    %v3690 = vunpack.c.h.b16 %v413
    %v3691 = vunpack.c.l.b16 %v414
    %v3692 = vunpack.c.h.b16 %v414
    %v3693 = vunpack.c.l.b16 %v415
    %v3694 = vunpack.c.h.b16 %v415
    %v3695 = vunpack.c.l.b16 %v416
    %v3696 = vunpack.c.h.b16 %v416
    %v3697 = vunpack.c.l.b16 %v417
    %v3698 = vunpack.c.h.b16 %v417
    %v3699 = vunpack.c.l.b16 %v418
    %v3700 = vunpack.c.h.b16 %v418
    %v3701 = vunpack.c.l.b16 %v419
    %v3702 = vunpack.c.h.b16 %v419
    %v3703 = vunpack.c.l.b16 %v420
    %v3704 = vunpack.c.h.b16 %v420
    %v3705 = vunpack.c.l.b16 %v421
    %v3706 = vunpack.c.h.b16 %v421
    %v3707 = vunpack.c.l.b16 %v422
    %v3708 = vunpack.c.h.b16 %v422
    %v3709 = vunpack.c.l.b16 %v423
    %v3710 = vunpack.c.h.b16 %v423
    %v3711 = vunpack.c.l.b16 %v424
    %v3712 = vunpack.c.h.b16 %v424
    %v3713 = vunpack.c.l.b16 %v425
    %v3714 = vunpack.c.h.b16 %v425
    %v3715 = vunpack.c.l.b16 %v426
    %v3716 = vunpack.c.h.b16 %v426
    %v3717 = vunpack.c.l.b16 %v427
    %v3718 = vunpack.c.h.b16 %v427
    %v3719 = vunpack.c.l.b16 %v428
    %v3720 = vunpack.c.h.b16 %v428
    %v3721 = vunpack.c.l.b16 %v429
    %v3722 = vunpack.c.h.b16 %v429
    %v3723 = vunpack.c.l.b16 %v430
    %v3724 = vunpack.c.h.b16 %v430
    %v3725 = vunpack.c.l.b16 %v431
    %v3726 = vunpack.c.h.b16 %v431
    %v3727 = vunpack.c.l.b16 %v432
    %v3728 = vunpack.c.h.b16 %v432
    %v3729 = vunpack.c.l.b16 %v433
    %v3730 = vunpack.c.h.b16 %v433
    %v3731 = vunpack.c.l.b16 %v434
    %v3732 = vunpack.c.h.b16 %v434
    %v3733 = vunpack.c.l.b16 %v435
    %v3734 = vunpack.c.h.b16 %v435
    %v3735 = vunpack.c.l.b16 %v436
    %v3736 = vunpack.c.h.b16 %v436
    %v3737 = vunpack.c.l.b16 %v437
    %v3738 = vunpack.c.h.b16 %v437
    %v3739 = vunpack.c.l.b16 %v438
    %v3740 = vunpack.c.h.b16 %v438
    %v3741 = vunpack.c.l.b16 %v439
    %v3742 = vunpack.c.h.b16 %v439
    %v3743 = vunpack.c.l.b16 %v440
    %v3744 = vunpack.c.h.b16 %v440
    %v3745 = vunpack.c.l.b16 %v441
    %v3746 = vunpack.c.h.b16 %v441
    %v3747 = vunpack.c.l.b16 %v442
    %v3748 = vunpack.c.h.b16 %v442
    %v3749 = vunpack.c.l.b16 %v443
    %v3750 = vunpack.c.h.b16 %v443
    %v3751 = vunpack.c.l.b16 %v444
    %v3752 = vunpack.c.h.b16 %v444
    %v3753 = vunpack.c.l.b16 %v445
    %v3754 = vunpack.c.h.b16 %v445
    %v3755 = vunpack.c.l.b16 %v446
    %v3756 = vunpack.c.h.b16 %v446
    %v3757 = vunpack.c.l.b16 %v447
    %v3758 = vunpack.c.h.b16 %v447
    %v3759 = vunpack.c.l.b16 %v448
    %v3760 = vunpack.c.h.b16 %v448
    %v3761 = vunpack.c.l.b16 %v449
    %v3762 = vunpack.c.h.b16 %v449
    %v3763 = vunpack.c.l.b16 %v450
    %v3764 = vunpack.c.h.b16 %v450
    %v3765 = vunpack.c.l.b16 %v451
    %v3766 = vunpack.c.h.b16 %v451
    %v3767 = vunpack.c.l.b16 %v452
    %v3768 = vunpack.c.h.b16 %v452
    %v3769 = vunpack.c.l.b16 %v453
    %v3770 = vunpack.c.h.b16 %v453
    %v3771 = vunpack.c.l.b16 %v454
    %v3772 = vunpack.c.h.b16 %v454
    %v3773 = vunpack.c.l.b16 %v455
    %v3774 = vunpack.c.h.b16 %v455
    %v3775 = vunpack.c.l.b16 %v456
    %v3776 = vunpack.c.h.b16 %v456
    %v3777 = vunpack.c.l.b16 %v457
    %v3778 = vunpack.c.h.b16 %v457
    %v3779 = vunpack.c.l.b16 %v458
    %v3780 = vunpack.c.h.b16 %v458
    %v3781 = vunpack.c.l.b16 %v459
    %v3782 = vunpack.c.h.b16 %v459
    %v3783 = vunpack.c.l.b16 %v460
    %v3784 = vunpack.c.h.b16 %v460
    %v3785 = vunpack.c.l.b16 %v461
    %v3786 = vunpack.c.h.b16 %v461
    %v3787 = vunpack.c.l.b16 %v462
    %v3788 = vunpack.c.h.b16 %v462
    %v3789 = vunpack.c.l.b16 %v463
    %v3790 = vunpack.c.h.b16 %v463
    %v3791 = vunpack.c.l.b16 %v464
    %v3792 = vunpack.c.h.b16 %v464
    %v3793 = vunpack.c.l.b16 %v465
    %v3794 = vunpack.c.h.b16 %v465
    %v3795 = vunpack.c.l.b16 %v466
    %v3796 = vunpack.c.h.b16 %v466
    %v3797 = vunpack.c.l.b16 %v467
    %v3798 = vunpack.c.h.b16 %v467
    %v3799 = vunpack.c.l.b16 %v468
    %v3800 = vunpack.c.h.b16 %v468
    %v3801 = vunpack.c.l.b16 %v469
    %v3802 = vunpack.c.h.b16 %v469
    %v3803 = vunpack.c.l.b16 %v470
    %v3804 = vunpack.c.h.b16 %v470
    %v3805 = vunpack.c.l.b16 %v471
    %v3806 = vunpack.c.h.b16 %v471
    %v3807 = vunpack.c.l.b16 %v472
    %v3808 = vunpack.c.h.b16 %v472
    %v3809 = vunpack.c.l.b16 %v473
    %v3810 = vunpack.c.h.b16 %v473
    %v3811 = vunpack.c.l.b16 %v474
    %v3812 = vunpack.c.h.b16 %v474
    %v3813 = vunpack.c.l.b16 %v475
    %v3814 = vunpack.c.h.b16 %v475
    %v3815 = vunpack.c.l.b16 %v476
    %v3816 = vunpack.c.h.b16 %v476
    %v3817 = vunpack.c.l.b16 %v477
    %v3818 = vunpack.c.h.b16 %v477
    %v3819 = vunpack.c.l.b16 %v478
    %v3820 = vunpack.c.h.b16 %v478
    %v3821 = vunpack.c.l.b16 %v479
    %v3822 = vunpack.c.h.b16 %v479
    %v3823 = vunpack.c.l.b16 %v480
    %v3824 = vunpack.c.h.b16 %v480
    %v3825 = vunpack.c.l.b16 %v481
    %v3826 = vunpack.c.h.b16 %v481
    %v3827 = vunpack.c.l.b16 %v482
    %v3828 = vunpack.c.h.b16 %v482
    %v3829 = vunpack.c.l.b16 %v483
    %v3830 = vunpack.c.h.b16 %v483
    %v3831 = vunpack.c.l.b16 %v484
    %v3832 = vunpack.c.h.b16 %v484
    %v3833 = vunpack.c.l.b16 %v485
    %v3834 = vunpack.c.h.b16 %v485
    %v3835 = vunpack.c.l.b16 %v486
    %v3836 = vunpack.c.h.b16 %v486
    %v3837 = vunpack.c.l.b16 %v487
    %v3838 = vunpack.c.h.b16 %v487
    %v3839 = vunpack.c.l.b16 %v488
    %v3840 = vunpack.c.h.b16 %v488
    %v3841 = vunpack.c.l.b16 %v489
    %v3842 = vunpack.c.h.b16 %v489
    %v3843 = vunpack.c.l.b16 %v490
    %v3844 = vunpack.c.h.b16 %v490
    %v3845 = vunpack.c.l.b16 %v491
    %v3846 = vunpack.c.h.b16 %v491
    %v3847 = vunpack.c.l.b16 %v492
    %v3848 = vunpack.c.h.b16 %v492
    %v3849 = vunpack.c.l.b16 %v493
    %v3850 = vunpack.c.h.b16 %v493
    %v3851 = vunpack.c.l.b16 %v494
    %v3852 = vunpack.c.h.b16 %v494
    %v3853 = vunpack.c.l.b16 %v495
    %v3854 = vunpack.c.h.b16 %v495
    %v3855 = vunpack.c.l.b16 %v496
    %v3856 = vunpack.c.h.b16 %v496
    %v3857 = vunpack.c.l.b16 %v497
    %v3858 = vunpack.c.h.b16 %v497
    %v3859 = vunpack.c.l.b16 %v498
    %v3860 = vunpack.c.h.b16 %v498
    %v3861 = vunpack.c.l.b16 %v499
    %v3862 = vunpack.c.h.b16 %v499
    %v3863 = vunpack.c.l.b16 %v500
    %v3864 = vunpack.c.h.b16 %v500
    %v3865 = vunpack.c.l.b16 %v501
    %v3866 = vunpack.c.h.b16 %v501
    %v3867 = vunpack.c.l.b16 %v502
    %v3868 = vunpack.c.h.b16 %v502
    %v3869 = vunpack.c.l.b16 %v503
    %v3870 = vunpack.c.h.b16 %v503
    %v3871 = vunpack.c.l.b16 %v504
    %v3872 = vunpack.c.h.b16 %v504
    %v3873 = vunpack.c.l.b16 %v505
    %v3874 = vunpack.c.h.b16 %v505
    %v3875 = vunpack.c.l.b16 %v506
    %v3876 = vunpack.c.h.b16 %v506
    %v3877 = vunpack.c.l.b16 %v507
    %v3878 = vunpack.c.h.b16 %v507
    %v3879 = vunpack.c.l.b16 %v508
    %v3880 = vunpack.c.h.b16 %v508
    %v3881 = vunpack.c.l.b16 %v509
    %v3882 = vunpack.c.h.b16 %v509
    %v3883 = vunpack.c.l.b16 %v510
    %v3884 = vunpack.c.h.b16 %v510
    %v3885 = vunpack.c.l.b16 %v511
    %v3886 = vunpack.c.h.b16 %v511
    %v3887 = vunpack.c.l.b16 %v512
    %v3888 = vunpack.c.h.b16 %v512
    %v3889 = vunpack.c.l.b16 %v513
    %v3890 = vunpack.c.h.b16 %v513
    %v3891 = vunpack.c.l.b16 %v514
    %v3892 = vunpack.c.h.b16 %v514
    %v3893 = vunpack.c.l.b16 %v515
    %v3894 = vunpack.c.h.b16 %v515
    %v3895 = vunpack.c.l.b16 %v516
    %v3896 = vunpack.c.h.b16 %v516
    %v3897 = vunpack.c.l.b16 %v517
    %v3898 = vunpack.c.h.b16 %v517
    %v3899 = vunpack.c.l.b16 %v518
    %v3900 = vunpack.c.h.b16 %v518
    %v3901 = vunpack.c.l.b16 %v519
    %v3902 = vunpack.c.h.b16 %v519
    %v3903 = vunpack.c.l.b16 %v520
    %v3904 = vunpack.c.h.b16 %v520
    %v3905 = vunpack.c.l.b16 %v521
    %v3906 = vunpack.c.h.b16 %v521
    %v3907 = vunpack.c.l.b16 %v522
    %v3908 = vunpack.c.h.b16 %v522
    %v3909 = vunpack.c.l.b16 %v523
    %v3910 = vunpack.c.h.b16 %v523
    %v3911 = vunpack.c.l.b16 %v524
    %v3912 = vunpack.c.h.b16 %v524
    %v3913 = vunpack.c.l.b16 %v525
    %v3914 = vunpack.c.h.b16 %v525
    %v3915 = vunpack.c.l.b16 %v526
    %v3916 = vunpack.c.h.b16 %v526
    %v3917 = vunpack.c.l.b16 %v527
    %v3918 = vunpack.c.h.b16 %v527
    %v3919 = vunpack.c.l.b16 %v528
    %v3920 = vunpack.c.h.b16 %v528
    %v3921 = vunpack.c.l.b16 %v529
    %v3922 = vunpack.c.h.b16 %v529
    %v3923 = vunpack.c.l.b16 %v530
    %v3924 = vunpack.c.h.b16 %v530
    %v3925 = vunpack.c.l.b16 %v531
    %v3926 = vunpack.c.h.b16 %v531
    %v3927 = vunpack.c.l.b16 %v532
    %v3928 = vunpack.c.h.b16 %v532
    %v3929 = vunpack.c.l.b16 %v533
    %v3930 = vunpack.c.h.b16 %v533
    %v3931 = vunpack.c.l.b16 %v534
    %v3932 = vunpack.c.h.b16 %v534
    %v3933 = vunpack.c.l.b16 %v535
    %v3934 = vunpack.c.h.b16 %v535
    %v3935 = vunpack.c.l.b16 %v536
    %v3936 = vunpack.c.h.b16 %v536
    %v3937 = vunpack.c.l.b16 %v537
    %v3938 = vunpack.c.h.b16 %v537
    %v3939 = vunpack.c.l.b16 %v538
    %v3940 = vunpack.c.h.b16 %v538
    %v3941 = vunpack.c.l.b16 %v539
    %v3942 = vunpack.c.h.b16 %v539
    %v3943 = vunpack.c.l.b16 %v540
    %v3944 = vunpack.c.h.b16 %v540
    %v3945 = vunpack.c.l.b16 %v541
    %v3946 = vunpack.c.h.b16 %v541
    %v3947 = vunpack.c.l.b16 %v542
    %v3948 = vunpack.c.h.b16 %v542
    %v3949 = vunpack.c.l.b16 %v543
    %v3950 = vunpack.c.h.b16 %v543
    %v3951 = vunpack.c.l.b16 %v544
    %v3952 = vunpack.c.h.b16 %v544
    %v3953 = vunpack.c.l.b16 %v545
    %v3954 = vunpack.c.h.b16 %v545
    %v3955 = vunpack.c.l.b16 %v546
    %v3956 = vunpack.c.h.b16 %v546
    %v3957 = vunpack.c.l.b16 %v547
    %v3958 = vunpack.c.h.b16 %v547
    %v3959 = vunpack.c.l.b16 %v548
    %v3960 = vunpack.c.h.b16 %v548
    %v3961 = vunpack.c.l.b16 %v549
    %v3962 = vunpack.c.h.b16 %v549
    %v3963 = vunpack.c.l.b16 %v550
    %v3964 = vunpack.c.h.b16 %v550
    %v3965 = vunpack.c.l.b16 %v551
    %v3966 = vunpack.c.h.b16 %v551
    %v3967 = vunpack.c.l.b16 %v552
    %v3968 = vunpack.c.h.b16 %v552
    %v3969 = vunpack.c.l.b16 %v553
    %v3970 = vunpack.c.h.b16 %v553
    %v3971 = vunpack.c.l.b16 %v554
    %v3972 = vunpack.c.h.b16 %v554
    %v3973 = vunpack.c.l.b16 %v555
    %v3974 = vunpack.c.h.b16 %v555
    %v3975 = vunpack.c.l.b16 %v556
    %v3976 = vunpack.c.h.b16 %v556
    %v3977 = vunpack.c.l.b16 %v557
    %v3978 = vunpack.c.h.b16 %v557
    %v3979 = vunpack.c.l.b16 %v558
    %v3980 = vunpack.c.h.b16 %v558
    %v3981 = vunpack.c.l.b16 %v559
    %v3982 = vunpack.c.h.b16 %v559
    %v3983 = vunpack.c.l.b16 %v560
    %v3984 = vunpack.c.h.b16 %v560
    %v3985 = vunpack.c.l.b16 %v561
    %v3986 = vunpack.c.h.b16 %v561
    %v3987 = vunpack.c.l.b16 %v562
    %v3988 = vunpack.c.h.b16 %v562
    %v3989 = vunpack.c.l.b16 %v563
    %v3990 = vunpack.c.h.b16 %v563
    %v3991 = vunpack.c.l.b16 %v564
    %v3992 = vunpack.c.h.b16 %v564
    %v3993 = vunpack.c.l.b16 %v565
    %v3994 = vunpack.c.h.b16 %v565
    %v3995 = vunpack.c.l.b16 %v566
    %v3996 = vunpack.c.h.b16 %v566
    %v3997 = vunpack.c.l.b16 %v567
    %v3998 = vunpack.c.h.b16 %v567
    %v3999 = vunpack.c.l.b16 %v568
    %v4000 = vunpack.c.h.b16 %v568
    %v4001 = vunpack.c.l.b16 %v569
    %v4002 = vunpack.c.h.b16 %v569
    %v4003 = vunpack.c.l.b16 %v570
    %v4004 = vunpack.c.h.b16 %v570
    %v4005 = vunpack.c.l.b16 %v571
    %v4006 = vunpack.c.h.b16 %v571
    %v4007 = vunpack.c.l.b16 %v572
    %v4008 = vunpack.c.h.b16 %v572
    %v4009 = vunpack.c.l.b16 %v573
    %v4010 = vunpack.c.h.b16 %v573
    %v4011 = vunpack.c.l.b16 %v574
    %v4012 = vunpack.c.h.b16 %v574
    %v4013 = vunpack.c.l.b16 %v575
    %v4014 = vunpack.c.h.b16 %v575
    %v4015 = vunpack.c.l.b16 %v576
    %v4016 = vunpack.c.h.b16 %v576
    %v4017 = vunpack.c.l.b16 %v577
    %v4018 = vunpack.c.h.b16 %v577
    %v4019 = vunpack.c.l.b16 %v578
    %v4020 = vunpack.c.h.b16 %v578
    %v4021 = vunpack.c.l.b16 %v579
    %v4022 = vunpack.c.h.b16 %v579
    %v4023 = vunpack.c.l.b16 %v580
    %v4024 = vunpack.c.h.b16 %v580
    %v4025 = vunpack.c.l.b16 %v581
    %v4026 = vunpack.c.h.b16 %v581
    %v4027 = vunpack.c.l.b16 %v582
    %v4028 = vunpack.c.h.b16 %v582
    %v4029 = vunpack.c.l.b16 %v583
    %v4030 = vunpack.c.h.b16 %v583
    %v4031 = vunpack.c.l.b16 %v584
    %v4032 = vunpack.c.h.b16 %v584
    %v4033 = vunpack.c.l.b16 %v585
    %v4034 = vunpack.c.h.b16 %v585
    %v4035 = vunpack.c.l.b16 %v586
    %v4036 = vunpack.c.h.b16 %v586
    %v4037 = vunpack.c.l.b16 %v587
    %v4038 = vunpack.c.h.b16 %v587
    %v4039 = vunpack.c.l.b16 %v588
    %v4040 = vunpack.c.h.b16 %v588
    %v4041 = vunpack.c.l.b16 %v589
    %v4042 = vunpack.c.h.b16 %v589
    %v4043 = vunpack.c.l.b16 %v590
    %v4044 = vunpack.c.h.b16 %v590
    %v4045 = vunpack.c.l.b16 %v591
    %v4046 = vunpack.c.h.b16 %v591
    %v4047 = vunpack.c.l.b16 %v592
    %v4048 = vunpack.c.h.b16 %v592
    %v4049 = vunpack.c.l.b16 %v593
    %v4050 = vunpack.c.h.b16 %v593
    %v4051 = vunpack.c.l.b16 %v594
    %v4052 = vunpack.c.h.b16 %v594
    %v4053 = vunpack.c.l.b16 %v595
    %v4054 = vunpack.c.h.b16 %v595
    %v4055 = vunpack.c.l.b16 %v596
    %v4056 = vunpack.c.h.b16 %v596
    %v4057 = vunpack.c.l.b16 %v597
    %v4058 = vunpack.c.h.b16 %v597
    %v4059 = vunpack.c.l.b16 %v598
    %v4060 = vunpack.c.h.b16 %v598
    %v4061 = vunpack.c.l.b16 %v599
    %v4062 = vunpack.c.h.b16 %v599
    %v4063 = vunpack.c.l.b16 %v600
    %v4064 = vunpack.c.h.b16 %v600
    %v4065 = vunpack.c.l.b16 %v601
    %v4066 = vunpack.c.h.b16 %v601
    %v4067 = vunpack.c.l.b16 %v602
    %v4068 = vunpack.c.h.b16 %v602
    %v4069 = vunpack.c.l.b16 %v603
    %v4070 = vunpack.c.h.b16 %v603
    %v4071 = vunpack.c.l.b16 %v604
    %v4072 = vunpack.c.h.b16 %v604
    %v4073 = vunpack.c.l.b16 %v605
    %v4074 = vunpack.c.h.b16 %v605
    %v4075 = vunpack.c.l.b16 %v606
    %v4076 = vunpack.c.h.b16 %v606
    %v4077 = vunpack.c.l.b16 %v607
    %v4078 = vunpack.c.h.b16 %v607
    %v4079 = vunpack.c.l.b16 %v608
    %v4080 = vunpack.c.h.b16 %v608
    %v4081 = vunpack.c.l.b16 %v609
    %v4082 = vunpack.c.h.b16 %v609
    %v4083 = vunpack.c.l.b16 %v610
    %v4084 = vunpack.c.h.b16 %v610
    %v4085 = vunpack.c.l.b16 %v611
    %v4086 = vunpack.c.h.b16 %v611
    %v4087 = vunpack.c.l.b16 %v612
    %v4088 = vunpack.c.h.b16 %v612
    %v4089 = vunpack.c.l.b16 %v613
    %v4090 = vunpack.c.h.b16 %v613
    %v4091 = vunpack.c.l.b16 %v614
    %v4092 = vunpack.c.h.b16 %v614
    %v4093 = vunpack.c.l.b16 %v615
    %v4094 = vunpack.c.h.b16 %v615
    %v4095 = vunpack.c.l.b16 %v616
    %v4096 = vunpack.c.h.b16 %v616
    %v4097 = vunpack.c.l.b16 %v617
    %v4098 = vunpack.c.h.b16 %v617
    %v4099 = vunpack.c.l.b16 %v618
    %v4100 = vunpack.c.h.b16 %v618
    %v4101 = vunpack.c.l.b16 %v619
    %v4102 = vunpack.c.h.b16 %v619
    %v4103 = vunpack.c.l.b16 %v620
    %v4104 = vunpack.c.h.b16 %v620
    %v4105 = vunpack.c.l.b16 %v621
    %v4106 = vunpack.c.h.b16 %v621
    %v4107 = vunpack.c.l.b16 %v622
    %v4108 = vunpack.c.h.b16 %v622
    %v4109 = vunpack.c.l.b16 %v623
    %v4110 = vunpack.c.h.b16 %v623
    %v4111 = vunpack.c.l.b16 %v624
    %v4112 = vunpack.c.h.b16 %v624
    %v4113 = vunpack.c.l.b16 %v625
    %v4114 = vunpack.c.h.b16 %v625
    %v4115 = vunpack.c.l.b16 %v626
    %v4116 = vunpack.c.h.b16 %v626
    %v4117 = vunpack.c.l.b16 %v627
    %v4118 = vunpack.c.h.b16 %v627
    %v4119 = vunpack.c.l.b16 %v628
    %v4120 = vunpack.c.h.b16 %v628
    %v4121 = vunpack.c.l.b16 %v629
    %v4122 = vunpack.c.h.b16 %v629
    %v4123 = vunpack.c.l.b16 %v630
    %v4124 = vunpack.c.h.b16 %v630
    %v4125 = vunpack.c.l.b16 %v631
    %v4126 = vunpack.c.h.b16 %v631
    %v4127 = vunpack.c.l.b16 %v632
    %v4128 = vunpack.c.h.b16 %v632
    %v4129 = vunpack.c.l.b16 %v633
    %v4130 = vunpack.c.h.b16 %v633
    %v4131 = vunpack.c.l.b16 %v634
    %v4132 = vunpack.c.h.b16 %v634
    %v4133 = vunpack.c.l.b16 %v635
    %v4134 = vunpack.c.h.b16 %v635
    %v4135 = vunpack.c.l.b16 %v636
    %v4136 = vunpack.c.h.b16 %v636
    %v4137 = vunpack.c.l.b16 %v637
    %v4138 = vunpack.c.h.b16 %v637
    %v4139 = vunpack.c.l.b16 %v638
    %v4140 = vunpack.c.h.b16 %v638
    %v4141 = vunpack.c.l.b16 %v639
    %v4142 = vunpack.c.h.b16 %v639
    %v4143 = vunpack.c.l.b16 %v640
    %v4144 = vunpack.c.h.b16 %v640
    %v4145 = vunpack.c.l.b16 %v641
    %v4146 = vunpack.c.h.b16 %v641
    %v4147 = vunpack.c.l.b16 %v642
    %v4148 = vunpack.c.h.b16 %v642
    %v4149 = vunpack.c.l.b16 %v643
    %v4150 = vunpack.c.h.b16 %v643
    %v4151 = vunpack.c.l.b16 %v644
    %v4152 = vunpack.c.h.b16 %v644
    %v4153 = vunpack.c.l.b16 %v645
    %v4154 = vunpack.c.h.b16 %v645
    %v4155 = vunpack.c.l.b16 %v646
    %v4156 = vunpack.c.h.b16 %v646
    %v4157 = vunpack.c.l.b16 %v647
    %v4158 = vunpack.c.h.b16 %v647
    %v4159 = vunpack.c.l.b16 %v648
    %v4160 = vunpack.c.h.b16 %v648
    %v4161 = vunpack.c.l.b16 %v649
    %v4162 = vunpack.c.h.b16 %v649
    %v4163 = vunpack.c.l.b16 %v650
    %v4164 = vunpack.c.h.b16 %v650
    %v4165 = vunpack.c.l.b16 %v651
    %v4166 = vunpack.c.h.b16 %v651
    %v4167 = vunpack.c.l.b16 %v652
    %v4168 = vunpack.c.h.b16 %v652
    %v4169 = vunpack.c.l.b16 %v653
    %v4170 = vunpack.c.h.b16 %v653
    %v4171 = vunpack.c.l.b16 %v654
    %v4172 = vunpack.c.h.b16 %v654
    %v4173 = vunpack.c.l.b16 %v655
    %v4174 = vunpack.c.h.b16 %v655
    %v4175 = vunpack.c.l.b16 %v656
    %v4176 = vunpack.c.h.b16 %v656
    %v4177 = vunpack.c.l.b16 %v657
    %v4178 = vunpack.c.h.b16 %v657
    %v4179 = vunpack.c.l.b16 %v658
    %v4180 = vunpack.c.h.b16 %v658
    %v4181 = vunpack.c.l.b16 %v659
    %v4182 = vunpack.c.h.b16 %v659
    %v4183 = vunpack.c.l.b16 %v660
    %v4184 = vunpack.c.h.b16 %v660
    %v4185 = vunpack.c.l.b16 %v661
    %v4186 = vunpack.c.h.b16 %v661
    %v4187 = vunpack.c.l.b16 %v662
    %v4188 = vunpack.c.h.b16 %v662
    %v4189 = vunpack.c.l.b16 %v663
    %v4190 = vunpack.c.h.b16 %v663
    %v4191 = vunpack.c.l.b16 %v664
    %v4192 = vunpack.c.h.b16 %v664
    %v4193 = vunpack.c.l.b16 %v665
    %v4194 = vunpack.c.h.b16 %v665
    %v4195 = vunpack.c.l.b16 %v666
    %v4196 = vunpack.c.h.b16 %v666
    %v4197 = vunpack.c.l.b16 %v667
    %v4198 = vunpack.c.h.b16 %v667
    %v4199 = vunpack.c.l.b16 %v668
    %v4200 = vunpack.c.h.b16 %v668
    %v4201 = vunpack.c.l.b16 %v669
    %v4202 = vunpack.c.h.b16 %v669
    %v4203 = vunpack.c.l.b16 %v670
    %v4204 = vunpack.c.h.b16 %v670
    %v4205 = vunpack.c.l.b16 %v671
    %v4206 = vunpack.c.h.b16 %v671
    %v4207 = vunpack.c.l.b16 %v672
    %v4208 = vunpack.c.h.b16 %v672
    %v4209 = vunpack.c.l.b16 %v673
    %v4210 = vunpack.c.h.b16 %v673
    %v4211 = vunpack.c.l.b16 %v674
    %v4212 = vunpack.c.h.b16 %v674
    %v4213 = vunpack.c.l.b16 %v675
    %v4214 = vunpack.c.h.b16 %v675
    %v4215 = vunpack.c.l.b16 %v676
    %v4216 = vunpack.c.h.b16 %v676
    %v4217 = vunpack.c.l.b16 %v677
    %v4218 = vunpack.c.h.b16 %v677
    %v4219 = vunpack.c.l.b16 %v678
    %v4220 = vunpack.c.h.b16 %v678
    %v4221 = vunpack.c.l.b16 %v679
    %v4222 = vunpack.c.h.b16 %v679
    %v4223 = vunpack.c.l.b16 %v680
    %v4224 = vunpack.c.h.b16 %v680
    %v4225 = vunpack.c.l.b16 %v681
    %v4226 = vunpack.c.h.b16 %v681
    %v4227 = vunpack.c.l.b16 %v682
    %v4228 = vunpack.c.h.b16 %v682
    %v4229 = vunpack.c.l.b16 %v683
    %v4230 = vunpack.c.h.b16 %v683
    %v4231 = vunpack.c.l.b16 %v684
    %v4232 = vunpack.c.h.b16 %v684
    %v4233 = vunpack.c.l.b16 %v685
    %v4234 = vunpack.c.h.b16 %v685
    %v4235 = vunpack.c.l.b16 %v686
    %v4236 = vunpack.c.h.b16 %v686
    %v4237 = vunpack.c.l.b16 %v687
    %v4238 = vunpack.c.h.b16 %v687
    %v4239 = vunpack.c.l.b16 %v688
    %v4240 = vunpack.c.h.b16 %v688
    %v4241 = vunpack.c.l.b16 %v689
    %v4242 = vunpack.c.h.b16 %v689
    %v4243 = vunpack.c.l.b16 %v690
    %v4244 = vunpack.c.h.b16 %v690
    %v4245 = vunpack.c.l.b16 %v691
    %v4246 = vunpack.c.h.b16 %v691
    %v4247 = vunpack.c.l.b16 %v692
    %v4248 = vunpack.c.h.b16 %v692
    %v4249 = vunpack.c.l.b16 %v693
    %v4250 = vunpack.c.h.b16 %v693
    %v4251 = vunpack.c.l.b16 %v694
    %v4252 = vunpack.c.h.b16 %v694
    %v4253 = vunpack.c.l.b16 %v695
    %v4254 = vunpack.c.h.b16 %v695
    %v4255 = vunpack.c.l.b16 %v696
    %v4256 = vunpack.c.h.b16 %v696
    %v4257 = vunpack.c.l.b16 %v697
    %v4258 = vunpack.c.h.b16 %v697
    %v4259 = vunpack.c.l.b16 %v698
    %v4260 = vunpack.c.h.b16 %v698
    %v4261 = vunpack.c.l.b16 %v699
    %v4262 = vunpack.c.h.b16 %v699
    %v4263 = vunpack.c.l.b16 %v700
    %v4264 = vunpack.c.h.b16 %v700
    %v4265 = vunpack.c.l.b16 %v701
    %v4266 = vunpack.c.h.b16 %v701
    %v4267 = vunpack.c.l.b16 %v702
    %v4268 = vunpack.c.h.b16 %v702
    %v4269 = vunpack.c.l.b16 %v703
    %v4270 = vunpack.c.h.b16 %v703
    %v4271 = vunpack.c.l.b16 %v704
    %v4272 = vunpack.c.h.b16 %v704
    %v4273 = vunpack.c.l.b16 %v705
    %v4274 = vunpack.c.h.b16 %v705
    %v4275 = vunpack.c.l.b16 %v706
    %v4276 = vunpack.c.h.b16 %v706
    %v4277 = vunpack.c.l.b16 %v707
    %v4278 = vunpack.c.h.b16 %v707
    %v4279 = vunpack.c.l.b16 %v708
    %v4280 = vunpack.c.h.b16 %v708
    %v4281 = vunpack.c.l.b16 %v709
    %v4282 = vunpack.c.h.b16 %v709
    %v4283 = vunpack.c.l.b16 %v710
    %v4284 = vunpack.c.h.b16 %v710
    %v4285 = vunpack.c.l.b16 %v711
    %v4286 = vunpack.c.h.b16 %v711
    %v4287 = vunpack.c.l.b16 %v712
    %v4288 = vunpack.c.h.b16 %v712
    %v4289 = vunpack.c.l.b16 %v713
    %v4290 = vunpack.c.h.b16 %v713
    %v4291 = vunpack.c.l.b16 %v714
    %v4292 = vunpack.c.h.b16 %v714
    %v4293 = vunpack.c.l.b16 %v715
    %v4294 = vunpack.c.h.b16 %v715
    %v4295 = vunpack.c.l.b16 %v716
    %v4296 = vunpack.c.h.b16 %v716
    %v4297 = vunpack.c.l.b16 %v717
    %v4298 = vunpack.c.h.b16 %v717
    %v4299 = vunpack.c.l.b16 %v718
    %v4300 = vunpack.c.h.b16 %v718
    %v4301 = vunpack.c.l.b16 %v719
    %v4302 = vunpack.c.h.b16 %v719
    %v4303 = vunpack.c.l.b16 %v720
    %v4304 = vunpack.c.h.b16 %v720
    %v4305 = vunpack.c.l.b16 %v721
    %v4306 = vunpack.c.h.b16 %v721
    %v4307 = vunpack.c.l.b16 %v722
    %v4308 = vunpack.c.h.b16 %v722
    %v4309 = vunpack.c.l.b16 %v723
    %v4310 = vunpack.c.h.b16 %v723
    %v4311 = vunpack.c.l.b16 %v724
    %v4312 = vunpack.c.h.b16 %v724
    %v4313 = vunpack.c.l.b16 %v725
    %v4314 = vunpack.c.h.b16 %v725
    %v4315 = vunpack.c.l.b16 %v726
    %v4316 = vunpack.c.h.b16 %v726
    %v4317 = vunpack.c.l.b16 %v727
    %v4318 = vunpack.c.h.b16 %v727
    %v4319 = vunpack.c.l.b16 %v728
    %v4320 = vunpack.c.h.b16 %v728
    %v4321 = vunpack.c.l.b16 %v729
    %v4322 = vunpack.c.h.b16 %v729
    %v4323 = vunpack.c.l.b16 %v730
    %v4324 = vunpack.c.h.b16 %v730
    %v4325 = vunpack.c.l.b16 %v731
    %v4326 = vunpack.c.h.b16 %v731
    %v4327 = vunpack.c.l.b16 %v732
    %v4328 = vunpack.c.h.b16 %v732
    %v4329 = vunpack.c.l.b16 %v733
    %v4330 = vunpack.c.h.b16 %v733
    %v4331 = vunpack.c.l.b16 %v734
    %v4332 = vunpack.c.h.b16 %v734
    %v4333 = vunpack.c.l.b16 %v735
    %v4334 = vunpack.c.h.b16 %v735
    %v4335 = vunpack.c.l.b16 %v736
    %v4336 = vunpack.c.h.b16 %v736
    %v4337 = vunpack.c.l.b16 %v737
    %v4338 = vunpack.c.h.b16 %v737
    %v4339 = vunpack.c.l.b16 %v738
    %v4340 = vunpack.c.h.b16 %v738
    %v4341 = vunpack.c.l.b16 %v739
    %v4342 = vunpack.c.h.b16 %v739
    %v4343 = vunpack.c.l.b16 %v740
    %v4344 = vunpack.c.h.b16 %v740
    %v4345 = vunpack.c.l.b16 %v741
    %v4346 = vunpack.c.h.b16 %v741
    %v4347 = vunpack.c.l.b16 %v742
    %v4348 = vunpack.c.h.b16 %v742
    %v4349 = vunpack.c.l.b16 %v743
    %v4350 = vunpack.c.h.b16 %v743
    %v4351 = vunpack.c.l.b16 %v744
    %v4352 = vunpack.c.h.b16 %v744
    %v4353 = vunpack.c.l.b16 %v745
    %v4354 = vunpack.c.h.b16 %v745
    %v4355 = vunpack.c.l.b16 %v746
    %v4356 = vunpack.c.h.b16 %v746
    %v4357 = vunpack.c.l.b16 %v747
    %v4358 = vunpack.c.h.b16 %v747
    %v4359 = vunpack.c.l.b16 %v748
    %v4360 = vunpack.c.h.b16 %v748
    %v4361 = vunpack.c.l.b16 %v749
    %v4362 = vunpack.c.h.b16 %v749
    %v4363 = vunpack.c.l.b16 %v750
    %v4364 = vunpack.c.h.b16 %v750
    %v4365 = vunpack.c.l.b16 %v751
    %v4366 = vunpack.c.h.b16 %v751
    %v4367 = vunpack.c.l.b16 %v752
    %v4368 = vunpack.c.h.b16 %v752
    %v4369 = vunpack.c.l.b16 %v753
    %v4370 = vunpack.c.h.b16 %v753
    %v4371 = vunpack.c.l.b16 %v754
    %v4372 = vunpack.c.h.b16 %v754
    %v4373 = vunpack.c.l.b16 %v755
    %v4374 = vunpack.c.h.b16 %v755
    %v4375 = vunpack.c.l.b16 %v756
    %v4376 = vunpack.c.h.b16 %v756
    %v4377 = vunpack.c.l.b16 %v757
    %v4378 = vunpack.c.h.b16 %v757
    %v4379 = vunpack.c.l.b16 %v758
    %v4380 = vunpack.c.h.b16 %v758
    %v4381 = vunpack.c.l.b16 %v759
    %v4382 = vunpack.c.h.b16 %v759
    %v4383 = vunpack.c.l.b16 %v760
    %v4384 = vunpack.c.h.b16 %v760
    %v4385 = vunpack.c.l.b16 %v761
    %v4386 = vunpack.c.h.b16 %v761
    %v4387 = vunpack.c.l.b16 %v762
    %v4388 = vunpack.c.h.b16 %v762
    %v4389 = vunpack.c.l.b16 %v763
    %v4390 = vunpack.c.h.b16 %v763
    %v4391 = vunpack.c.l.b16 %v764
    %v4392 = vunpack.c.h.b16 %v764
    %v4393 = vunpack.c.l.b16 %v765
    %v4394 = vunpack.c.h.b16 %v765
    %v4395 = vunpack.c.l.b16 %v766
    %v4396 = vunpack.c.h.b16 %v766
    %v4397 = vunpack.c.l.b16 %v767
    %v4398 = vunpack.c.h.b16 %v767
    %v4399 = vunpack.c.l.b16 %v768
    %v4400 = vunpack.c.h.b16 %v768
    %v4401 = vunpack.c.l.b16 %v769
    %v4402 = vunpack.c.h.b16 %v769
    %v4403 = vunpack.c.l.b16 %v770
    %v4404 = vunpack.c.h.b16 %v770
    %v4405 = vunpack.c.l.b16 %v771
    %v4406 = vunpack.c.h.b16 %v771
    %v4407 = vunpack.c.l.b16 %v772
    %v4408 = vunpack.c.h.b16 %v772
    %v4409 = vunpack.c.l.b16 %v773
    %v4410 = vunpack.c.h.b16 %v773
    %v4411 = vunpack.c.l.b16 %v774
    %v4412 = vunpack.c.h.b16 %v774
    %v4413 = vunpack.c.l.b16 %v775
    %v4414 = vunpack.c.h.b16 %v775
    %v4415 = vunpack.c.l.b16 %v776
    %v4416 = vunpack.c.h.b16 %v776
    %v4417 = vunpack.c.l.b16 %v777
    %v4418 = vunpack.c.h.b16 %v777
    %v4419 = vunpack.c.l.b16 %v778
    %v4420 = vunpack.c.h.b16 %v778
    %v4421 = vunpack.c.l.b16 %v779
    %v4422 = vunpack.c.h.b16 %v779
    %v4423 = vunpack.c.l.b16 %v780
    %v4424 = vunpack.c.h.b16 %v780
    %v4425 = vunpack.c.l.b16 %v781
    %v4426 = vunpack.c.h.b16 %v781
    %v4427 = vunpack.c.l.b16 %v782
    %v4428 = vunpack.c.h.b16 %v782
    %v4429 = vunpack.c.l.b16 %v783
    %v4430 = vunpack.c.h.b16 %v783
    %v4431 = vunpack.c.l.b16 %v784
    %v4432 = vunpack.c.h.b16 %v784
    %v4433 = vunpack.c.l.b16 %v785
    %v4434 = vunpack.c.h.b16 %v785
    %v4435 = vunpack.c.l.b16 %v786
    %v4436 = vunpack.c.h.b16 %v786
    %v4437 = vunpack.c.l.b16 %v787
    %v4438 = vunpack.c.h.b16 %v787
    %v4439 = vunpack.c.l.b16 %v788
    %v4440 = vunpack.c.h.b16 %v788
    %v4441 = vunpack.c.l.b16 %v789
    %v4442 = vunpack.c.h.b16 %v789
    %v4443 = vunpack.c.l.b16 %v790
    %v4444 = vunpack.c.h.b16 %v790
    %v4445 = vunpack.c.l.b16 %v791
    %v4446 = vunpack.c.h.b16 %v791
    %v4447 = vunpack.c.l.b16 %v792
    %v4448 = vunpack.c.h.b16 %v792
    %v4449 = vunpack.c.l.b16 %v793
    %v4450 = vunpack.c.h.b16 %v793
    %v4451 = vunpack.c.l.b16 %v794
    %v4452 = vunpack.c.h.b16 %v794
    %v4453 = vunpack.c.l.b16 %v795
    %v4454 = vunpack.c.h.b16 %v795
    %v4455 = vunpack.c.l.b16 %v796
    %v4456 = vunpack.c.h.b16 %v796
    %v4457 = vunpack.c.l.b16 %v797
    %v4458 = vunpack.c.h.b16 %v797
    %v4459 = vunpack.c.l.b16 %v798
    %v4460 = vunpack.c.h.b16 %v798
    %v4461 = vunpack.c.l.b16 %v799
    %v4462 = vunpack.c.h.b16 %v799
    %v4463 = vunpack.c.l.b16 %v800
    %v4464 = vunpack.c.h.b16 %v800
    %v4465 = vunpack.c.l.b16 %v801
    %v4466 = vunpack.c.h.b16 %v801
    %v4467 = vunpack.c.l.b16 %v802
    %v4468 = vunpack.c.h.b16 %v802
    %v4469 = vunpack.c.l.b16 %v803
    %v4470 = vunpack.c.h.b16 %v803
    %v4471 = vunpack.c.l.b16 %v804
    %v4472 = vunpack.c.h.b16 %v804
    %v4473 = vunpack.c.l.b16 %v805
    %v4474 = vunpack.c.h.b16 %v805
    %v4475 = vunpack.c.l.b16 %v806
    %v4476 = vunpack.c.h.b16 %v806
    %v4477 = vunpack.c.l.b16 %v807
    %v4478 = vunpack.c.h.b16 %v807
    %v4479 = vunpack.c.l.b16 %v808
    %v4480 = vunpack.c.h.b16 %v808
    %v4481 = vunpack.c.l.b16 %v809
    %v4482 = vunpack.c.h.b16 %v809
    %v4483 = vunpack.c.l.b16 %v810
    %v4484 = vunpack.c.h.b16 %v810
    %v4485 = vunpack.c.l.b16 %v811
    %v4486 = vunpack.c.h.b16 %v811
    %v4487 = vunpack.c.l.b16 %v812
    %v4488 = vunpack.c.h.b16 %v812
    %v4489 = vunpack.c.l.b16 %v813
    %v4490 = vunpack.c.h.b16 %v813
    %v4491 = vunpack.c.l.b16 %v814
    %v4492 = vunpack.c.h.b16 %v814
    %v4493 = vunpack.c.l.b16 %v815
    %v4494 = vunpack.c.h.b16 %v815
    %v4495 = vunpack.c.l.b16 %v816
    %v4496 = vunpack.c.h.b16 %v816
    %v4497 = vunpack.c.l.b16 %v817
    %v4498 = vunpack.c.h.b16 %v817
    %v4499 = vunpack.c.l.b16 %v818
    %v4500 = vunpack.c.h.b16 %v818
    %v4501 = vunpack.c.l.b16 %v819
    %v4502 = vunpack.c.h.b16 %v819
    %v4503 = vunpack.c.l.b16 %v820
    %v4504 = vunpack.c.h.b16 %v820
    %v4505 = vunpack.c.l.b16 %v821
    %v4506 = vunpack.c.h.b16 %v821
    %v4507 = vunpack.c.l.b16 %v822
    %v4508 = vunpack.c.h.b16 %v822
    %v4509 = vunpack.c.l.b16 %v823
    %v4510 = vunpack.c.h.b16 %v823
    %v4511 = vunpack.c.l.b16 %v824
    %v4512 = vunpack.c.h.b16 %v824
    %v4513 = vunpack.c.l.b16 %v825
    %v4514 = vunpack.c.h.b16 %v825
    %v4515 = vunpack.c.l.b16 %v826
    %v4516 = vunpack.c.h.b16 %v826
    %v4517 = vunpack.c.l.b16 %v827
    %v4518 = vunpack.c.h.b16 %v827
    %v4519 = vunpack.c.l.b16 %v828
    %v4520 = vunpack.c.h.b16 %v828
    %v4521 = vunpack.c.l.b16 %v829
    %v4522 = vunpack.c.h.b16 %v829
    %v4523 = vunpack.c.l.b16 %v830
    %v4524 = vunpack.c.h.b16 %v830
    %v4525 = vunpack.c.l.b16 %v831
    %v4526 = vunpack.c.h.b16 %v831
    %v4527 = vunpack.c.l.b16 %v832
    %v4528 = vunpack.c.h.b16 %v832
    %v4529 = vunpack.c.l.b16 %v833
    %v4530 = vunpack.c.h.b16 %v833
    %v4531 = vunpack.c.l.b16 %v834
    %v4532 = vunpack.c.h.b16 %v834
    %v4533 = vunpack.c.l.b16 %v835
    %v4534 = vunpack.c.h.b16 %v835
    %v4535 = vunpack.c.l.b16 %v836
    %v4536 = vunpack.c.h.b16 %v836
    %v4537 = vunpack.c.l.b16 %v837
    %v4538 = vunpack.c.h.b16 %v837
    %v4539 = vunpack.c.l.b16 %v838
    %v4540 = vunpack.c.h.b16 %v838
    %v4541 = vunpack.c.l.b16 %v839
    %v4542 = vunpack.c.h.b16 %v839
    %v4543 = vunpack.c.l.b16 %v840
    %v4544 = vunpack.c.h.b16 %v840
    %v4545 = vunpack.c.l.b16 %v841
    %v4546 = vunpack.c.h.b16 %v841
    %v4547 = vunpack.c.l.b16 %v842
    %v4548 = vunpack.c.h.b16 %v842
    %v4549 = vunpack.c.l.b16 %v843
    %v4550 = vunpack.c.h.b16 %v843
    %v4551 = vunpack.c.l.b16 %v844
    %v4552 = vunpack.c.h.b16 %v844
    %v4553 = vunpack.c.l.b16 %v845
    %v4554 = vunpack.c.h.b16 %v845
    %v4555 = vunpack.c.l.b16 %v846
    %v4556 = vunpack.c.h.b16 %v846
    %v4557 = vunpack.c.l.b16 %v847
    %v4558 = vunpack.c.h.b16 %v847
    %v4559 = vunpack.c.l.b16 %v848
    %v4560 = vunpack.c.h.b16 %v848
    %v4561 = vunpack.c.l.b16 %v849
    %v4562 = vunpack.c.h.b16 %v849
    %v4563 = vunpack.c.l.b16 %v850
    %v4564 = vunpack.c.h.b16 %v850
    %v4565 = vunpack.c.l.b16 %v851
    %v4566 = vunpack.c.h.b16 %v851
    %v4567 = vunpack.c.l.b16 %v852
    %v4568 = vunpack.c.h.b16 %v852
    %v4569 = vunpack.c.l.b16 %v853
    %v4570 = vunpack.c.h.b16 %v853
    %v4571 = vunpack.c.l.b16 %v854
    %v4572 = vunpack.c.h.b16 %v854
    %v4573 = vunpack.c.l.b16 %v855
    %v4574 = vunpack.c.h.b16 %v855
    %v4575 = vunpack.c.l.b16 %v856
    %v4576 = vunpack.c.h.b16 %v856
    %v4577 = vunpack.c.l.b16 %v857
    %v4578 = vunpack.c.h.b16 %v857
    %v4579 = vunpack.c.l.b16 %v858
    %v4580 = vunpack.c.h.b16 %v858
    %v4581 = vunpack.c.l.b16 %v859
    %v4582 = vunpack.c.h.b16 %v859
    %v4583 = vunpack.c.l.b16 %v860
    %v4584 = vunpack.c.h.b16 %v860
    %v4585 = vunpack.c.l.b16 %v861
    %v4586 = vunpack.c.h.b16 %v861
    %v4587 = vunpack.c.l.b16 %v862
    %v4588 = vunpack.c.h.b16 %v862
    %v4589 = vunpack.c.l.b16 %v863
    %v4590 = vunpack.c.h.b16 %v863
    %v4591 = vunpack.c.l.b16 %v864
    %v4592 = vunpack.c.h.b16 %v864
    %v4593 = vunpack.c.l.b16 %v865
    %v4594 = vunpack.c.h.b16 %v865
    %v4595 = vunpack.c.l.b16 %v866
    %v4596 = vunpack.c.h.b16 %v866
    %v4597 = vunpack.c.l.b16 %v867
    %v4598 = vunpack.c.h.b16 %v867
    %v4599 = vunpack.c.l.b16 %v868
    %v4600 = vunpack.c.h.b16 %v868
    %v4601 = vunpack.c.l.b16 %v869
    %v4602 = vunpack.c.h.b16 %v869
    %v4603 = vunpack.c.l.b16 %v870
    %v4604 = vunpack.c.h.b16 %v870
    %v4605 = vunpack.c.l.b16 %v871
    %v4606 = vunpack.c.h.b16 %v871
    %v4607 = vunpack.c.l.b16 %v872
    %v4608 = vunpack.c.h.b16 %v872
    %v4609 = vunpack.c.l.b16 %v873
    %v4610 = vunpack.c.h.b16 %v873
    %v4611 = vunpack.c.l.b16 %v874
    %v4612 = vunpack.c.h.b16 %v874
    %v4613 = vunpack.c.l.b16 %v875
    %v4614 = vunpack.c.h.b16 %v875
    %v4615 = vunpack.c.l.b16 %v876
    %v4616 = vunpack.c.h.b16 %v876
    %v4617 = vunpack.c.l.b16 %v877
    %v4618 = vunpack.c.h.b16 %v877
    %v4619 = vunpack.c.l.b16 %v878
    %v4620 = vunpack.c.h.b16 %v878
    %v4621 = vunpack.c.l.b16 %v879
    %v4622 = vunpack.c.h.b16 %v879
    %v4623 = vunpack.c.l.b16 %v880
    %v4624 = vunpack.c.h.b16 %v880
    %v4625 = vunpack.c.l.b16 %v881
    %v4626 = vunpack.c.h.b16 %v881
    %v4627 = vunpack.c.l.b16 %v882
    %v4628 = vunpack.c.h.b16 %v882
    %v4629 = vunpack.c.l.b16 %v883
    %v4630 = vunpack.c.h.b16 %v883
    %v4631 = vunpack.c.l.b16 %v884
    %v4632 = vunpack.c.h.b16 %v884
    %v4633 = vunpack.c.l.b16 %v885
    %v4634 = vunpack.c.h.b16 %v885
    %v4635 = vunpack.c.l.b16 %v886
    %v4636 = vunpack.c.h.b16 %v886
    %v4637 = vunpack.c.l.b16 %v887
    %v4638 = vunpack.c.h.b16 %v887
    %v4639 = vunpack.c.l.b16 %v888
    %v4640 = vunpack.c.h.b16 %v888
    %v4641 = vunpack.c.l.b16 %v889
    %v4642 = vunpack.c.h.b16 %v889
    %v4643 = vunpack.c.l.b16 %v890
    %v4644 = vunpack.c.h.b16 %v890
    %v4645 = vunpack.c.l.b16 %v891
    %v4646 = vunpack.c.h.b16 %v891
    %v4647 = vunpack.c.l.b16 %v892
    %v4648 = vunpack.c.h.b16 %v892
    %v4649 = vunpack.c.l.b16 %v893
    %v4650 = vunpack.c.h.b16 %v893
    %v4651 = vunpack.c.l.b16 %v894
    %v4652 = vunpack.c.h.b16 %v894
    %v4653 = vunpack.c.l.b16 %v895
    %v4654 = vunpack.c.h.b16 %v895
    %v4655 = vunpack.c.l.b16 %v896
    %v4656 = vunpack.c.h.b16 %v896
    %v4657 = vunpack.c.l.b16 %v897
    %v4658 = vunpack.c.h.b16 %v897
    %v4659 = vunpack.c.l.b16 %v898
    %v4660 = vunpack.c.h.b16 %v898
    %v4661 = vunpack.c.l.b16 %v899
    %v4662 = vunpack.c.h.b16 %v899
    %v4663 = vunpack.c.l.b16 %v900
    %v4664 = vunpack.c.h.b16 %v900
    %v4665 = vunpack.c.l.b16 %v901
    %v4666 = vunpack.c.h.b16 %v901
    %v4667 = vunpack.c.l.b16 %v902
    %v4668 = vunpack.c.h.b16 %v902
    %v4669 = vunpack.c.l.b16 %v903
    %v4670 = vunpack.c.h.b16 %v903
    %v4671 = vunpack.c.l.b16 %v904
    %v4672 = vunpack.c.h.b16 %v904
    %v4673 = vunpack.c.l.b16 %v905
    %v4674 = vunpack.c.h.b16 %v905
    %v4675 = vunpack.c.l.b16 %v906
    %v4676 = vunpack.c.h.b16 %v906
    %v4677 = vunpack.c.l.b16 %v907
    %v4678 = vunpack.c.h.b16 %v907
    %v4679 = vunpack.c.l.b16 %v908
    %v4680 = vunpack.c.h.b16 %v908
    %v4681 = vunpack.c.l.b16 %v909
    %v4682 = vunpack.c.h.b16 %v909
    %v4683 = vunpack.c.l.b16 %v910
    %v4684 = vunpack.c.h.b16 %v910
    %v4685 = vunpack.c.l.b16 %v911
    %v4686 = vunpack.c.h.b16 %v911
    %v4687 = vunpack.c.l.b16 %v912
    %v4688 = vunpack.c.h.b16 %v912
    %v4689 = vunpack.c.l.b16 %v913
    %v4690 = vunpack.c.h.b16 %v913
    %v4691 = vunpack.c.l.b16 %v914
    %v4692 = vunpack.c.h.b16 %v914
    %v4693 = vunpack.c.l.b16 %v915
    %v4694 = vunpack.c.h.b16 %v915
    %v4695 = vunpack.c.l.b16 %v916
    %v4696 = vunpack.c.h.b16 %v916
    %v4697 = vunpack.c.l.b16 %v917
    %v4698 = vunpack.c.h.b16 %v917
    %v4699 = vunpack.c.l.b16 %v918
    %v4700 = vunpack.c.h.b16 %v918
    %v4701 = vunpack.c.l.b16 %v919
    %v4702 = vunpack.c.h.b16 %v919
    %v4703 = vunpack.c.l.b16 %v920
    %v4704 = vunpack.c.h.b16 %v920
    %v4705 = vunpack.c.l.b16 %v921
    %v4706 = vunpack.c.h.b16 %v921
    %v4707 = vunpack.c.l.b16 %v922
    %v4708 = vunpack.c.h.b16 %v922
    %v4709 = vunpack.c.l.b16 %v923
    %v4710 = vunpack.c.h.b16 %v923
    %v4711 = vunpack.c.l.b16 %v924
    %v4712 = vunpack.c.h.b16 %v924
    %v4713 = vunpack.c.l.b16 %v925
    %v4714 = vunpack.c.h.b16 %v925
    %v4715 = vunpack.c.l.b16 %v926
    %v4716 = vunpack.c.h.b16 %v926
    %v4717 = vunpack.c.l.b16 %v927
    %v4718 = vunpack.c.h.b16 %v927
    %v4719 = vunpack.c.l.b16 %v928
    %v4720 = vunpack.c.h.b16 %v928
    %v4721 = vunpack.c.l.b16 %v929
    %v4722 = vunpack.c.h.b16 %v929
    %v4723 = vunpack.c.l.b16 %v930
    %v4724 = vunpack.c.h.b16 %v930
    %v4725 = vunpack.c.l.b16 %v931
    %v4726 = vunpack.c.h.b16 %v931
    %v4727 = vunpack.c.l.b16 %v932
    %v4728 = vunpack.c.h.b16 %v932
    %v4729 = vunpack.c.l.b16 %v933
    %v4730 = vunpack.c.h.b16 %v933
    %v4731 = vunpack.c.l.b16 %v934
    %v4732 = vunpack.c.h.b16 %v934
    %v4733 = vunpack.c.l.b16 %v935
    %v4734 = vunpack.c.h.b16 %v935
    %v4735 = vunpack.c.l.b16 %v936
    %v4736 = vunpack.c.h.b16 %v936
    %v4737 = vunpack.c.l.b16 %v937
    %v4738 = vunpack.c.h.b16 %v937
    %v4739 = vunpack.c.l.b16 %v938
    %v4740 = vunpack.c.h.b16 %v938
    %v4741 = vunpack.c.l.b16 %v939
    %v4742 = vunpack.c.h.b16 %v939
    %v4743 = vunpack.c.l.b16 %v940
    %v4744 = vunpack.c.h.b16 %v940
    %v4745 = vunpack.c.l.b16 %v941
    %v4746 = vunpack.c.h.b16 %v941
    %v4747 = vunpack.c.l.b16 %v942
    %v4748 = vunpack.c.h.b16 %v942
    %v4749 = vunpack.c.l.b16 %v943
    %v4750 = vunpack.c.h.b16 %v943
    %v4751 = vunpack.c.l.b16 %v944
    %v4752 = vunpack.c.h.b16 %v944
    %v4753 = vunpack.c.l.b16 %v945
    %v4754 = vunpack.c.h.b16 %v945
    %v4755 = vunpack.c.l.b16 %v946
    %v4756 = vunpack.c.h.b16 %v946
    %v4757 = vunpack.c.l.b16 %v947
    %v4758 = vunpack.c.h.b16 %v947
    %v4759 = vunpack.c.l.b16 %v948
    %v4760 = vunpack.c.h.b16 %v948
    %v4761 = vunpack.c.l.b16 %v949
    %v4762 = vunpack.c.h.b16 %v949
    %v4763 = vunpack.c.l.b16 %v950
    %v4764 = vunpack.c.h.b16 %v950
    %v4765 = vunpack.c.l.b16 %v951
    %v4766 = vunpack.c.h.b16 %v951
    %v4767 = vunpack.c.l.b16 %v952
    %v4768 = vunpack.c.h.b16 %v952
    %v4769 = vunpack.c.l.b16 %v953
    %v4770 = vunpack.c.h.b16 %v953
    %v4771 = vunpack.c.l.b16 %v954
    %v4772 = vunpack.c.h.b16 %v954
    %v4773 = vunpack.c.l.b16 %v955
    %v4774 = vunpack.c.h.b16 %v955
    %v4775 = vunpack.c.l.b16 %v956
    %v4776 = vunpack.c.h.b16 %v956
    %v4777 = vunpack.c.l.b16 %v957
    %v4778 = vunpack.c.h.b16 %v957
    %v4779 = vunpack.c.l.b16 %v958
    %v4780 = vunpack.c.h.b16 %v958
    %v4781 = vunpack.c.l.b16 %v959
    %v4782 = vunpack.c.h.b16 %v959
    %v4783 = vunpack.c.l.b16 %v960
    %v4784 = vunpack.c.h.b16 %v960
    %v4785 = vunpack.c.l.b16 %v961
    %v4786 = vunpack.c.h.b16 %v961
    %v4787 = vunpack.c.l.b16 %v962
    %v4788 = vunpack.c.h.b16 %v962
    %v4789 = vunpack.c.l.b16 %v963
    %v4790 = vunpack.c.h.b16 %v963
    %v4791 = vunpack.c.l.b16 %v964
    %v4792 = vunpack.c.h.b16 %v964
    %v4793 = vunpack.c.l.b16 %v965
    %v4794 = vunpack.c.h.b16 %v965
    %v4795 = vunpack.c.l.b16 %v966
    %v4796 = vunpack.c.h.b16 %v966
    %v4797 = vunpack.c.l.b16 %v967
    %v4798 = vunpack.c.h.b16 %v967
    %v4799 = vunpack.c.l.b16 %v968
    %v4800 = vunpack.c.h.b16 %v968
    %v4801 = vunpack.c.l.b16 %v969
    %v4802 = vunpack.c.h.b16 %v969
    %v4803 = vunpack.c.l.b16 %v970
    %v4804 = vunpack.c.h.b16 %v970
    %v4805 = vunpack.c.l.b16 %v971
    %v4806 = vunpack.c.h.b16 %v971
    %v4807 = vunpack.c.l.b16 %v972
    %v4808 = vunpack.c.h.b16 %v972
    %v4809 = vunpack.c.l.b16 %v973
    %v4810 = vunpack.c.h.b16 %v973
    %v4811 = vunpack.c.l.b16 %v974
    %v4812 = vunpack.c.h.b16 %v974
    %v4813 = vunpack.c.l.b16 %v975
    %v4814 = vunpack.c.h.b16 %v975
    %v4815 = vunpack.c.l.b16 %v976
    %v4816 = vunpack.c.h.b16 %v976
    %v4817 = vunpack.c.l.b16 %v977
    %v4818 = vunpack.c.h.b16 %v977
    %v4819 = vunpack.c.l.b16 %v978
    %v4820 = vunpack.c.h.b16 %v978
    %v4821 = vunpack.c.l.b16 %v979
    %v4822 = vunpack.c.h.b16 %v979
    %v4823 = vunpack.c.l.b16 %v980
    %v4824 = vunpack.c.h.b16 %v980
    %v4825 = vunpack.c.l.b16 %v981
    %v4826 = vunpack.c.h.b16 %v981
    %v4827 = vunpack.c.l.b16 %v982
    %v4828 = vunpack.c.h.b16 %v982
    %v4829 = vunpack.c.l.b16 %v983
    %v4830 = vunpack.c.h.b16 %v983
    %v4831 = vunpack.c.l.b16 %v984
    %v4832 = vunpack.c.h.b16 %v984
    %v4833 = vunpack.c.l.b16 %v985
    %v4834 = vunpack.c.h.b16 %v985
    %v4835 = vunpack.c.l.b16 %v986
    %v4836 = vunpack.c.h.b16 %v986
    %v4837 = vunpack.c.l.b16 %v987
    %v4838 = vunpack.c.h.b16 %v987
    %v4839 = vunpack.c.l.b16 %v988
    %v4840 = vunpack.c.h.b16 %v988
    %v4841 = vunpack.c.l.b16 %v989
    %v4842 = vunpack.c.h.b16 %v989
    %v4843 = vunpack.c.l.b16 %v990
    %v4844 = vunpack.c.h.b16 %v990
    %v4845 = vunpack.c.l.b16 %v991
    %v4846 = vunpack.c.h.b16 %v991
    %v4847 = vunpack.c.l.b16 %v992
    %v4848 = vunpack.c.h.b16 %v992
    %v4849 = vunpack.c.l.b16 %v993
    %v4850 = vunpack.c.h.b16 %v993
    %v4851 = vunpack.c.l.b16 %v994
    %v4852 = vunpack.c.h.b16 %v994
    %v4853 = vunpack.c.l.b16 %v995
    %v4854 = vunpack.c.h.b16 %v995
    %v4855 = vunpack.c.l.b16 %v996
    %v4856 = vunpack.c.h.b16 %v996
    %v4857 = vunpack.c.l.b16 %v997
    %v4858 = vunpack.c.h.b16 %v997
    %v4859 = vunpack.c.l.b16 %v998
    %v4860 = vunpack.c.h.b16 %v998
    %v4861 = vunpack.c.l.b16 %v999
    %v4862 = vunpack.c.h.b16 %v999
    %v4863 = vunpack.c.l.b16 %v1000
    %v4864 = vunpack.c.h.b16 %v1000
    %v4865 = vunpack.c.l.b16 %v1001
    %v4866 = vunpack.c.h.b16 %v1001
    %v4867 = vunpack.c.l.b16 %v1002
    %v4868 = vunpack.c.h.b16 %v1002
    %v4869 = vunpack.c.l.b16 %v1003
    %v4870 = vunpack.c.h.b16 %v1003
    %v4871 = vunpack.c.l.b16 %v1004
    %v4872 = vunpack.c.h.b16 %v1004
    %v4873 = vunpack.c.l.b16 %v1005
    %v4874 = vunpack.c.h.b16 %v1005
    %v4875 = vunpack.c.l.b16 %v1006
    %v4876 = vunpack.c.h.b16 %v1006
    %v4877 = vunpack.c.l.b16 %v1007
    %v4878 = vunpack.c.h.b16 %v1007
    %v4879 = vunpack.c.l.b16 %v1008
    %v4880 = vunpack.c.h.b16 %v1008
    %v4881 = vunpack.c.l.b16 %v1009
    %v4882 = vunpack.c.h.b16 %v1009
    %v4883 = vunpack.c.l.b16 %v1010
    %v4884 = vunpack.c.h.b16 %v1010
    %v4885 = vunpack.c.l.b16 %v1011
    %v4886 = vunpack.c.h.b16 %v1011
    %v4887 = vunpack.c.l.b16 %v1012
    %v4888 = vunpack.c.h.b16 %v1012
    %v4889 = vunpack.c.l.b16 %v1013
    %v4890 = vunpack.c.h.b16 %v1013
    %v4891 = vunpack.c.l.b16 %v1014
    %v4892 = vunpack.c.h.b16 %v1014
    %v4893 = vunpack.c.l.b16 %v1015
    %v4894 = vunpack.c.h.b16 %v1015
    %v4895 = vunpack.c.l.b16 %v1016
    %v4896 = vunpack.c.h.b16 %v1016
    %v4897 = vunpack.c.l.b16 %v1017
    %v4898 = vunpack.c.h.b16 %v1017
    %v4899 = vunpack.c.l.b16 %v1018
    %v4900 = vunpack.c.h.b16 %v1018
    %v4901 = vunpack.c.l.b16 %v1019
    %v4902 = vunpack.c.h.b16 %v1019
    %v4903 = vunpack.c.l.b16 %v1020
    %v4904 = vunpack.c.h.b16 %v1020
    %v4905 = vunpack.c.l.b16 %v1021
    %v4906 = vunpack.c.h.b16 %v1021
    %v4907 = vunpack.c.l.b16 %v1022
    %v4908 = vunpack.c.h.b16 %v1022
    %v4909 = vunpack.c.l.b16 %v1023
    %v4910 = vunpack.c.h.b16 %v1023
    %v4911 = vunpack.c.l.b16 %v1024
    %v4912 = vunpack.c.h.b16 %v1024
    %v4913 = vunpack.c.l.b16 %v1025
    %v4914 = vunpack.c.h.b16 %v1025
    %v4915 = vunpack.c.l.b16 %v1026
    %v4916 = vunpack.c.h.b16 %v1026
    %v4917 = vunpack.c.l.b16 %v1027
    %v4918 = vunpack.c.h.b16 %v1027
    %v4919 = vunpack.c.l.b16 %v1028
    %v4920 = vunpack.c.h.b16 %v1028
    %v4921 = vunpack.c.l.b16 %v1029
    %v4922 = vunpack.c.h.b16 %v1029
    %v4923 = vunpack.c.l.b16 %v1030
    %v4924 = vunpack.c.h.b16 %v1030
    %v4925 = vunpack.c.l.b16 %v1031
    %v4926 = vunpack.c.h.b16 %v1031
    %v4927 = vunpack.c.l.b16 %v1032
    %v4928 = vunpack.c.h.b16 %v1032
    %v4929 = vunpack.c.l.b16 %v1033
    %v4930 = vunpack.c.h.b16 %v1033
    %v4931 = vunpack.c.l.b16 %v1034
    %v4932 = vunpack.c.h.b16 %v1034
    %v4933 = vunpack.c.l.b16 %v1035
    %v4934 = vunpack.c.h.b16 %v1035
    %v4935 = vunpack.c.l.b16 %v1036
    %v4936 = vunpack.c.h.b16 %v1036
    %v4937 = vunpack.c.l.b16 %v1037
    %v4938 = vunpack.c.h.b16 %v1037
    %v4939 = vunpack.c.l.b16 %v1038
    %v4940 = vunpack.c.h.b16 %v1038
    %v4941 = vunpack.c.l.b16 %v1039
    %v4942 = vunpack.c.h.b16 %v1039
    %v4943 = vunpack.c.l.b16 %v1040
    %v4944 = vunpack.c.h.b16 %v1040
    %v4945 = vunpack.c.l.b16 %v1041
    %v4946 = vunpack.c.h.b16 %v1041
    %v4947 = vunpack.c.l.b16 %v1042
    %v4948 = vunpack.c.h.b16 %v1042
    %v4949 = vunpack.c.l.b16 %v1043
    %v4950 = vunpack.c.h.b16 %v1043
    %v4951 = vunpack.c.l.b16 %v1044
    %v4952 = vunpack.c.h.b16 %v1044
    %v4953 = vunpack.c.l.b16 %v1045
    %v4954 = vunpack.c.h.b16 %v1045
    %v4955 = vunpack.c.l.b16 %v1046
    %v4956 = vunpack.c.h.b16 %v1046
    %v4957 = vunpack.c.l.b16 %v1047
    %v4958 = vunpack.c.h.b16 %v1047
    %v4959 = vunpack.c.l.b16 %v1048
    %v4960 = vunpack.c.h.b16 %v1048
    %v4961 = vunpack.c.l.b16 %v1049
    %v4962 = vunpack.c.h.b16 %v1049
    %v4963 = vunpack.c.l.b16 %v1050
    %v4964 = vunpack.c.h.b16 %v1050
    %v4965 = vunpack.c.l.b16 %v1051
    %v4966 = vunpack.c.h.b16 %v1051
    %v4967 = vunpack.c.l.b16 %v1052
    %v4968 = vunpack.c.h.b16 %v1052
    %v4969 = vunpack.c.l.b16 %v1053
    %v4970 = vunpack.c.h.b16 %v1053
    %v4971 = vunpack.c.l.b16 %v1054
    %v4972 = vunpack.c.h.b16 %v1054
    %v4973 = vunpack.c.l.b16 %v1055
    %v4974 = vunpack.c.h.b16 %v1055
    %v4975 = vunpack.c.l.b16 %v1056
    %v4976 = vunpack.c.h.b16 %v1056
    %v4977 = vunpack.c.l.b16 %v1057
    %v4978 = vunpack.c.h.b16 %v1057
    %v4979 = vunpack.c.l.b16 %v1058
    %v4980 = vunpack.c.h.b16 %v1058
    %v4981 = vunpack.c.l.b16 %v1059
    %v4982 = vunpack.c.h.b16 %v1059
    %v4983 = vunpack.c.l.b16 %v1060
    %v4984 = vunpack.c.h.b16 %v1060
    %v4985 = vunpack.c.l.b16 %v1061
    %v4986 = vunpack.c.h.b16 %v1061
    %v4987 = vunpack.c.l.b16 %v1062
    %v4988 = vunpack.c.h.b16 %v1062
    %v4989 = vunpack.c.l.b16 %v1063
    %v4990 = vunpack.c.h.b16 %v1063
    %v4991 = vunpack.c.l.b16 %v1064
    %v4992 = vunpack.c.h.b16 %v1064
    %v4993 = vunpack.c.l.b16 %v1065
    %v4994 = vunpack.c.h.b16 %v1065
    %v4995 = vunpack.c.l.b16 %v1066
    %v4996 = vunpack.c.h.b16 %v1066
    %v4997 = vunpack.c.l.b16 %v1067
    %v4998 = vunpack.c.h.b16 %v1067
    %v4999 = vunpack.c.l.b16 %v1068
    %v5000 = vunpack.c.h.b16 %v1068
    %v5001 = vunpack.c.l.b16 %v1069
    %v5002 = vunpack.c.h.b16 %v1069
    %v5003 = vunpack.c.l.b16 %v1070
    %v5004 = vunpack.c.h.b16 %v1070
    %v5005 = vunpack.c.l.b16 %v1071
    %v5006 = vunpack.c.h.b16 %v1071
    %v5007 = vunpack.c.l.b16 %v1072
    %v5008 = vunpack.c.h.b16 %v1072
    %v5009 = vunpack.c.l.b16 %v1073
    %v5010 = vunpack.c.h.b16 %v1073
    %v5011 = vunpack.c.l.b16 %v1074
    %v5012 = vunpack.c.h.b16 %v1074
    %v5013 = vunpack.c.l.b16 %v1075
    %v5014 = vunpack.c.h.b16 %v1075
    %v5015 = vunpack.c.l.b16 %v1076
    %v5016 = vunpack.c.h.b16 %v1076
    %v5017 = vunpack.c.l.b16 %v1077
    %v5018 = vunpack.c.h.b16 %v1077
    %v5019 = vunpack.c.l.b16 %v1078
    %v5020 = vunpack.c.h.b16 %v1078
    %v5021 = vunpack.c.l.b16 %v1079
    %v5022 = vunpack.c.h.b16 %v1079
    %v5023 = vunpack.c.l.b16 %v1080
    %v5024 = vunpack.c.h.b16 %v1080
    %v5025 = vunpack.c.l.b16 %v1081
    %v5026 = vunpack.c.h.b16 %v1081
    %v5027 = vunpack.c.l.b16 %v1082
    %v5028 = vunpack.c.h.b16 %v1082
    %v5029 = vunpack.c.l.b16 %v1083
    %v5030 = vunpack.c.h.b16 %v1083
    %v5031 = vunpack.c.l.b16 %v1084
    %v5032 = vunpack.c.h.b16 %v1084
    %v5033 = vunpack.c.l.b16 %v1085
    %v5034 = vunpack.c.h.b16 %v1085
    %v5035 = vunpack.c.l.b16 %v1086
    %v5036 = vunpack.c.h.b16 %v1086
    %v5037 = vunpack.c.l.b16 %v1087
    %v5038 = vunpack.c.h.b16 %v1087
    %v5039 = vunpack.c.l.b16 %v1088
    %v5040 = vunpack.c.h.b16 %v1088
    %v5041 = vunpack.c.l.b16 %v1089
    %v5042 = vunpack.c.h.b16 %v1089
    %v5043 = vunpack.c.l.b16 %v1090
    %v5044 = vunpack.c.h.b16 %v1090
    %v5045 = vunpack.c.l.b16 %v1091
    %v5046 = vunpack.c.h.b16 %v1091
    %v5047 = vunpack.c.l.b16 %v1092
    %v5048 = vunpack.c.h.b16 %v1092
    %v5049 = vunpack.c.l.b16 %v1093
    %v5050 = vunpack.c.h.b16 %v1093
    %v5051 = vunpack.c.l.b16 %v1094
    %v5052 = vunpack.c.h.b16 %v1094
    %v5053 = vunpack.c.l.b16 %v1095
    %v5054 = vunpack.c.h.b16 %v1095
    %v5055 = vunpack.c.l.b16 %v1096
    %v5056 = vunpack.c.h.b16 %v1096
    %v5057 = vunpack.c.l.b16 %v1097
    %v5058 = vunpack.c.h.b16 %v1097
    %v5059 = vunpack.c.l.b16 %v1098
    %v5060 = vunpack.c.h.b16 %v1098
    %v5061 = vunpack.c.l.b16 %v1099
    %v5062 = vunpack.c.h.b16 %v1099
    %v5063 = vunpack.c.l.b16 %v1100
    %v5064 = vunpack.c.h.b16 %v1100
    %v5065 = vunpack.c.l.b16 %v1101
    %v5066 = vunpack.c.h.b16 %v1101
    %v5067 = vunpack.c.l.b16 %v1102
    %v5068 = vunpack.c.h.b16 %v1102
    %v5069 = vunpack.c.l.b16 %v1103
    %v5070 = vunpack.c.h.b16 %v1103
    %v5071 = vunpack.c.l.b16 %v1104
    %v5072 = vunpack.c.h.b16 %v1104
    %v5073 = vunpack.c.l.b16 %v1105
    %v5074 = vunpack.c.h.b16 %v1105
    %v5075 = vunpack.c.l.b16 %v1106
    %v5076 = vunpack.c.h.b16 %v1106
    %v5077 = vunpack.c.l.b16 %v1107
    %v5078 = vunpack.c.h.b16 %v1107
    %v5079 = vunpack.c.l.b16 %v1108
    %v5080 = vunpack.c.h.b16 %v1108
    %v5081 = vunpack.c.l.b16 %v1109
    %v5082 = vunpack.c.h.b16 %v1109
    %v5083 = vunpack.c.l.b16 %v1110
    %v5084 = vunpack.c.h.b16 %v1110
    %v5085 = vunpack.c.l.b16 %v1111
    %v5086 = vunpack.c.h.b16 %v1111
    %v5087 = vunpack.c.l.b16 %v1112
    %v5088 = vunpack.c.h.b16 %v1112
    %v5089 = vunpack.c.l.b16 %v1113
    %v5090 = vunpack.c.h.b16 %v1113
    %v5091 = vunpack.c.l.b16 %v1114
    %v5092 = vunpack.c.h.b16 %v1114
    %v5093 = vunpack.c.l.b16 %v1115
    %v5094 = vunpack.c.h.b16 %v1115
    %v5095 = vunpack.c.l.b16 %v1116
    %v5096 = vunpack.c.h.b16 %v1116
    %v5097 = vunpack.c.l.b16 %v1117
    %v5098 = vunpack.c.h.b16 %v1117
    %v5099 = vunpack.c.l.b16 %v1118
    %v5100 = vunpack.c.h.b16 %v1118
    %v5101 = vunpack.c.l.b16 %v1119
    %v5102 = vunpack.c.h.b16 %v1119
    %v5103 = vunpack.c.l.b16 %v1120
    %v5104 = vunpack.c.h.b16 %v1120
    %v5105 = vunpack.c.l.b16 %v1121
    %v5106 = vunpack.c.h.b16 %v1121
    %v5107 = vunpack.c.l.b16 %v1122
    %v5108 = vunpack.c.h.b16 %v1122
    %v5109 = vunpack.c.l.b16 %v1123
    %v5110 = vunpack.c.h.b16 %v1123
    %v5111 = vunpack.c.l.b16 %v1124
    %v5112 = vunpack.c.h.b16 %v1124
    %v5113 = vunpack.c.l.b16 %v1125
    %v5114 = vunpack.c.h.b16 %v1125
    %v5115 = vunpack.c.l.b16 %v1126
    %v5116 = vunpack.c.h.b16 %v1126
    %v5117 = vunpack.c.l.b16 %v1127
    %v5118 = vunpack.c.h.b16 %v1127
    %v5119 = vunpack.c.l.b16 %v1128
    %v5120 = vunpack.c.h.b16 %v1128
    %v5121 = vunpack.c.l.b16 %v1129
    %v5122 = vunpack.c.h.b16 %v1129
    %v5123 = vunpack.c.l.b16 %v1130
    %v5124 = vunpack.c.h.b16 %v1130
    %v5125 = vunpack.c.l.b16 %v1131
    %v5126 = vunpack.c.h.b16 %v1131
    %v5127 = vunpack.c.l.b16 %v1132
    %v5128 = vunpack.c.h.b16 %v1132
    %v5129 = vunpack.c.l.b16 %v1133
    %v5130 = vunpack.c.h.b16 %v1133
    %v5131 = vunpack.c.l.b16 %v1134
    %v5132 = vunpack.c.h.b16 %v1134
    %v5133 = vunpack.c.l.b16 %v1135
    %v5134 = vunpack.c.h.b16 %v1135
    %v5135 = vunpack.c.l.b16 %v1136
    %v5136 = vunpack.c.h.b16 %v1136
    %v5137 = vunpack.c.l.b16 %v1137
    %v5138 = vunpack.c.h.b16 %v1137
    %v5139 = vunpack.c.l.b16 %v1138
    %v5140 = vunpack.c.h.b16 %v1138
    %v5141 = vunpack.c.l.b16 %v1139
    %v5142 = vunpack.c.h.b16 %v1139
    %v5143 = vunpack.c.l.b16 %v1140
    %v5144 = vunpack.c.h.b16 %v1140
    %v5145 = vunpack.c.l.b16 %v1141
    %v5146 = vunpack.c.h.b16 %v1141
    %v5147 = vunpack.c.l.b16 %v1142
    %v5148 = vunpack.c.h.b16 %v1142
    %v5149 = vunpack.c.l.b16 %v1143
    %v5150 = vunpack.c.h.b16 %v1143
    %v5151 = vunpack.c.l.b16 %v1144
    %v5152 = vunpack.c.h.b16 %v1144
    %v5153 = vunpack.c.l.b16 %v1145
    %v5154 = vunpack.c.h.b16 %v1145
    %v5155 = vunpack.c.l.b16 %v1146
    %v5156 = vunpack.c.h.b16 %v1146
    %v5157 = vunpack.c.l.b16 %v1147
    %v5158 = vunpack.c.h.b16 %v1147
    %v5159 = vunpack.c.l.b16 %v1148
    %v5160 = vunpack.c.h.b16 %v1148
    %v5161 = vunpack.c.l.b16 %v1149
    %v5162 = vunpack.c.h.b16 %v1149
    %v5163 = vunpack.c.l.b16 %v1150
    %v5164 = vunpack.c.h.b16 %v1150
    %v5165 = vunpack.c.l.b16 %v1151
    %v5166 = vunpack.c.h.b16 %v1151
    %v5167 = vunpack.c.l.b16 %v1152
    %v5168 = vunpack.c.h.b16 %v1152
    %v5169 = vunpack.c.l.b16 %v1153
    %v5170 = vunpack.c.h.b16 %v1153
    %v5171 = vunpack.c.l.b16 %v1154
    %v5172 = vunpack.c.h.b16 %v1154
    %v5173 = vunpack.c.l.b16 %v1155
    %v5174 = vunpack.c.h.b16 %v1155
    %v5175 = vunpack.c.l.b16 %v1156
    %v5176 = vunpack.c.h.b16 %v1156
    %v5177 = vunpack.c.l.b16 %v1157
    %v5178 = vunpack.c.h.b16 %v1157
    %v5179 = vunpack.c.l.b16 %v1158
    %v5180 = vunpack.c.h.b16 %v1158
    %v5181 = vunpack.c.l.b16 %v1159
    %v5182 = vunpack.c.h.b16 %v1159
    %v5183 = vunpack.c.l.b16 %v1160
    %v5184 = vunpack.c.h.b16 %v1160
    %v5185 = vunpack.c.l.b16 %v1161
    %v5186 = vunpack.c.h.b16 %v1161
    %v5187 = vunpack.c.l.b16 %v1162
    %v5188 = vunpack.c.h.b16 %v1162
    %v5189 = vunpack.c.l.b16 %v1163
    %v5190 = vunpack.c.h.b16 %v1163
    %v5191 = vunpack.c.l.b16 %v1164
    %v5192 = vunpack.c.h.b16 %v1164
    %v5193 = vunpack.c.l.b16 %v1165
    %v5194 = vunpack.c.h.b16 %v1165
    %v5195 = vunpack.c.l.b16 %v1166
    %v5196 = vunpack.c.h.b16 %v1166
    %v5197 = vunpack.c.l.b16 %v1167
    %v5198 = vunpack.c.h.b16 %v1167
    %v5199 = vunpack.c.l.b16 %v1168
    %v5200 = vunpack.c.h.b16 %v1168
    %v5201 = vunpack.c.l.b16 %v1169
    %v5202 = vunpack.c.h.b16 %v1169
    %v5203 = vunpack.c.l.b16 %v1170
    %v5204 = vunpack.c.h.b16 %v1170
    %v5205 = vunpack.c.l.b16 %v1171
    %v5206 = vunpack.c.h.b16 %v1171
    %v5207 = vunpack.c.l.b16 %v1172
    %v5208 = vunpack.c.h.b16 %v1172
    %v5209 = vunpack.c.l.b16 %v1173
    %v5210 = vunpack.c.h.b16 %v1173
    %v5211 = vunpack.c.l.b16 %v1174
    %v5212 = vunpack.c.h.b16 %v1174
    %v5213 = vunpack.c.l.b16 %v1175
    %v5214 = vunpack.c.h.b16 %v1175
    %v5215 = vunpack.c.l.b16 %v1176
    %v5216 = vunpack.c.h.b16 %v1176
    %v5217 = vunpack.c.l.b16 %v1177
    %v5218 = vunpack.c.h.b16 %v1177
    %v5219 = vunpack.c.l.b16 %v1178
    %v5220 = vunpack.c.h.b16 %v1178
    %v5221 = vunpack.c.l.b16 %v1179
    %v5222 = vunpack.c.h.b16 %v1179
    %v5223 = vunpack.c.l.b16 %v1180
    %v5224 = vunpack.c.h.b16 %v1180
    %v5225 = vunpack.c.l.b16 %v1181
    %v5226 = vunpack.c.h.b16 %v1181
    %v5227 = vunpack.c.l.b16 %v1182
    %v5228 = vunpack.c.h.b16 %v1182
    %v5229 = vunpack.c.l.b16 %v1183
    %v5230 = vunpack.c.h.b16 %v1183
    %v5231 = vunpack.c.l.b16 %v1184
    %v5232 = vunpack.c.h.b16 %v1184
    %v5233 = vunpack.c.l.b16 %v1185
    %v5234 = vunpack.c.h.b16 %v1185
    %v5235 = vunpack.c.l.b16 %v1186
    %v5236 = vunpack.c.h.b16 %v1186
    %v5237 = vunpack.c.l.b16 %v1187
    %v5238 = vunpack.c.h.b16 %v1187
    %v5239 = vunpack.c.l.b16 %v1188
    %v5240 = vunpack.c.h.b16 %v1188
    %v5241 = vunpack.c.l.b16 %v1189
    %v5242 = vunpack.c.h.b16 %v1189
    %v5243 = vunpack.c.l.b16 %v1190
    %v5244 = vunpack.c.h.b16 %v1190
    %v5245 = vunpack.c.l.b16 %v1191
    %v5246 = vunpack.c.h.b16 %v1191
    %v5247 = vunpack.c.l.b16 %v1192
    %v5248 = vunpack.c.h.b16 %v1192
    %v5249 = vunpack.c.l.b16 %v1193
    %v5250 = vunpack.c.h.b16 %v1193
    %v5251 = vunpack.c.l.b16 %v1194
    %v5252 = vunpack.c.h.b16 %v1194
    %v5253 = vunpack.c.l.b16 %v1195
    %v5254 = vunpack.c.h.b16 %v1195
    %v5255 = vunpack.c.l.b16 %v1196
    %v5256 = vunpack.c.h.b16 %v1196
    %v5257 = vunpack.c.l.b16 %v1197
    %v5258 = vunpack.c.h.b16 %v1197
    %v5259 = vunpack.c.l.b16 %v1198
    %v5260 = vunpack.c.h.b16 %v1198
    %v5261 = vunpack.c.l.b16 %v1199
    %v5262 = vunpack.c.h.b16 %v1199
    %v5263 = vunpack.c.l.b16 %v1200
    %v5264 = vunpack.c.h.b16 %v1200
    %v5265 = vunpack.c.l.b16 %v1201
    %v5266 = vunpack.c.h.b16 %v1201
    %v5267 = vunpack.c.l.b16 %v1202
    %v5268 = vunpack.c.h.b16 %v1202
    %v5269 = vunpack.c.l.b16 %v1203
    %v5270 = vunpack.c.h.b16 %v1203
    %v5271 = vunpack.c.l.b16 %v1204
    %v5272 = vunpack.c.h.b16 %v1204
    %v5273 = vunpack.c.l.b16 %v1205
    %v5274 = vunpack.c.h.b16 %v1205
    %v5275 = vunpack.c.l.b16 %v1206
    %v5276 = vunpack.c.h.b16 %v1206
    %v5277 = vunpack.c.l.b16 %v1207
    %v5278 = vunpack.c.h.b16 %v1207
    %v5279 = vunpack.c.l.b16 %v1208
    %v5280 = vunpack.c.h.b16 %v1208
    %v5281 = vunpack.c.l.b16 %v1209
    %v5282 = vunpack.c.h.b16 %v1209
    %v5283 = vunpack.c.l.b16 %v1210
    %v5284 = vunpack.c.h.b16 %v1210
    %v5285 = vunpack.c.l.b16 %v1211
    %v5286 = vunpack.c.h.b16 %v1211
    %v5287 = vunpack.c.l.b16 %v1212
    %v5288 = vunpack.c.h.b16 %v1212
    %v5289 = vunpack.c.l.b16 %v1213
    %v5290 = vunpack.c.h.b16 %v1213
    %v5291 = vunpack.c.l.b16 %v1214
    %v5292 = vunpack.c.h.b16 %v1214
    %v5293 = vunpack.c.l.b16 %v1215
    %v5294 = vunpack.c.h.b16 %v1215
    %v5295 = vunpack.c.l.b16 %v1216
    %v5296 = vunpack.c.h.b16 %v1216
    %v5297 = vunpack.c.l.b16 %v1217
    %v5298 = vunpack.c.h.b16 %v1217
    %v5299 = vunpack.c.l.b16 %v1218
    %v5300 = vunpack.c.h.b16 %v1218
    %v5301 = vunpack.c.l.b16 %v1219
    %v5302 = vunpack.c.h.b16 %v1219
    %v5303 = vunpack.c.l.b16 %v1220
    %v5304 = vunpack.c.h.b16 %v1220
    %v5305 = vunpack.c.l.b16 %v1221
    %v5306 = vunpack.c.h.b16 %v1221
    %v5307 = vunpack.c.l.b16 %v1222
    %v5308 = vunpack.c.h.b16 %v1222
    %v5309 = vunpack.c.l.b16 %v1223
    %v5310 = vunpack.c.h.b16 %v1223
    %v5311 = vunpack.c.l.b16 %v1224
    %v5312 = vunpack.c.h.b16 %v1224
    %v5313 = vunpack.c.l.b16 %v1225
    %v5314 = vunpack.c.h.b16 %v1225
    %v5315 = vunpack.c.l.b16 %v1226
    %v5316 = vunpack.c.h.b16 %v1226
    %v5317 = vunpack.c.l.b16 %v1227
    %v5318 = vunpack.c.h.b16 %v1227
    %v5319 = vunpack.c.l.b16 %v1228
    %v5320 = vunpack.c.h.b16 %v1228
    %v5321 = vunpack.c.l.b16 %v1229
    %v5322 = vunpack.c.h.b16 %v1229
    %v5323 = vunpack.c.l.b16 %v1230
    %v5324 = vunpack.c.h.b16 %v1230
    %v5325 = vunpack.c.l.b16 %v1231
    %v5326 = vunpack.c.h.b16 %v1231
    %v5327 = vunpack.c.l.b16 %v1232
    %v5328 = vunpack.c.h.b16 %v1232
    %v5329 = vunpack.c.l.b16 %v1233
    %v5330 = vunpack.c.h.b16 %v1233
    %v5331 = vunpack.c.l.b16 %v1234
    %v5332 = vunpack.c.h.b16 %v1234
    %v5333 = vunpack.c.l.b16 %v1235
    %v5334 = vunpack.c.h.b16 %v1235
    %v5335 = vunpack.c.l.b16 %v1236
    %v5336 = vunpack.c.h.b16 %v1236
    %v5337 = vunpack.c.l.b16 %v1237
    %v5338 = vunpack.c.h.b16 %v1237
    %v5339 = vunpack.c.l.b16 %v1238
    %v5340 = vunpack.c.h.b16 %v1238
    %v5341 = vunpack.c.l.b16 %v1239
    %v5342 = vunpack.c.h.b16 %v1239
    %v5343 = vunpack.c.l.b16 %v1240
    %v5344 = vunpack.c.h.b16 %v1240
    %v5345 = vunpack.c.l.b16 %v1241
    %v5346 = vunpack.c.h.b16 %v1241
    %v5347 = vunpack.c.l.b16 %v1242
    %v5348 = vunpack.c.h.b16 %v1242
    %v5349 = vunpack.c.l.b16 %v1243
    %v5350 = vunpack.c.h.b16 %v1243
    %v5351 = vunpack.c.l.b16 %v1244
    %v5352 = vunpack.c.h.b16 %v1244
    %v5353 = vunpack.c.l.b16 %v1245
    %v5354 = vunpack.c.h.b16 %v1245
    %v5355 = vunpack.c.l.b16 %v1246
    %v5356 = vunpack.c.h.b16 %v1246
    %v5357 = vunpack.c.l.b16 %v1247
    %v5358 = vunpack.c.h.b16 %v1247
    %v5359 = vunpack.c.l.b16 %v1248
    %v5360 = vunpack.c.h.b16 %v1248
    %v5361 = vunpack.c.l.b16 %v1249
    %v5362 = vunpack.c.h.b16 %v1249
    %v5363 = vunpack.c.l.b16 %v1250
    %v5364 = vunpack.c.h.b16 %v1250
    %v5365 = vunpack.c.l.b16 %v1251
    %v5366 = vunpack.c.h.b16 %v1251
    %v5367 = vunpack.c.l.b16 %v1252
    %v5368 = vunpack.c.h.b16 %v1252
    %v5369 = vunpack.c.l.b16 %v1253
    %v5370 = vunpack.c.h.b16 %v1253
    %v5371 = vunpack.c.l.b16 %v1254
    %v5372 = vunpack.c.h.b16 %v1254
    %v5373 = vunpack.c.l.b16 %v1255
    %v5374 = vunpack.c.h.b16 %v1255
    %v5375 = vunpack.c.l.b16 %v1256
    %v5376 = vunpack.c.h.b16 %v1256
    %v5377 = vunpack.c.l.b16 %v1257
    %v5378 = vunpack.c.h.b16 %v1257
    %v5379 = vunpack.c.l.b16 %v1258
    %v5380 = vunpack.c.h.b16 %v1258
    %v5381 = vunpack.c.l.b16 %v1259
    %v5382 = vunpack.c.h.b16 %v1259
    %v5383 = vunpack.c.l.b16 %v1260
    %v5384 = vunpack.c.h.b16 %v1260
    %v5385 = vunpack.c.l.b16 %v1261
    %v5386 = vunpack.c.h.b16 %v1261
    %v5387 = vunpack.c.l.b16 %v1262
    %v5388 = vunpack.c.h.b16 %v1262
    %v5389 = vunpack.c.l.b16 %v1263
    %v5390 = vunpack.c.h.b16 %v1263
    %v5391 = vunpack.c.l.b16 %v1264
    %v5392 = vunpack.c.h.b16 %v1264
    %v5393 = vunpack.c.l.b16 %v1265
    %v5394 = vunpack.c.h.b16 %v1265
    %v5395 = vunpack.c.l.b16 %v1266
    %v5396 = vunpack.c.h.b16 %v1266
    %v5397 = vunpack.c.l.b16 %v1267
    %v5398 = vunpack.c.h.b16 %v1267
    %v5399 = vunpack.c.l.b16 %v1268
    %v5400 = vunpack.c.h.b16 %v1268
    %v5401 = vunpack.c.l.b16 %v1269
    %v5402 = vunpack.c.h.b16 %v1269
    %v5403 = vunpack.c.l.b16 %v1270
    %v5404 = vunpack.c.h.b16 %v1270
    %v5405 = vunpack.c.l.b16 %v1271
    %v5406 = vunpack.c.h.b16 %v1271
    %v5407 = vunpack.c.l.b16 %v1272
    %v5408 = vunpack.c.h.b16 %v1272
    %v5409 = vunpack.c.l.b16 %v1273
    %v5410 = vunpack.c.h.b16 %v1273
    %v5411 = vunpack.c.l.b16 %v1274
    %v5412 = vunpack.c.h.b16 %v1274
    %v5413 = vunpack.c.l.b16 %v1275
    %v5414 = vunpack.c.h.b16 %v1275
    %v5415 = vunpack.c.l.b16 %v1276
    %v5416 = vunpack.c.h.b16 %v1276
    %v5417 = vunpack.c.l.b16 %v1277
    %v5418 = vunpack.c.h.b16 %v1277
    %v5419 = vunpack.c.l.b16 %v1278
    %v5420 = vunpack.c.h.b16 %v1278
    %v5421 = vunpack.c.l.b16 %v1279
    %v5422 = vunpack.c.h.b16 %v1279
    %v5423 = vunpack.c.l.b16 %v1280
    %v5424 = vunpack.c.h.b16 %v1280
    %v5425 = vunpack.c.l.b16 %v1281
    %v5426 = vunpack.c.h.b16 %v1281
    %v5427 = vunpack.c.l.b16 %v1282
    %v5428 = vunpack.c.h.b16 %v1282
    %v5429 = vunpack.c.l.b16 %v1283
    %v5430 = vunpack.c.h.b16 %v1283
    %v5431 = vunpack.c.l.b16 %v1284
    %v5432 = vunpack.c.h.b16 %v1284
    %v5433 = vunpack.c.l.b16 %v1285
    %v5434 = vunpack.c.h.b16 %v1285
    %v5435 = vunpack.c.l.b16 %v1286
    %v5436 = vunpack.c.h.b16 %v1286
    %v5437 = vunpack.c.l.b16 %v1287
    %v5438 = vunpack.c.h.b16 %v1287
    %v5439 = vunpack.c.l.b16 %v1288
    %v5440 = vunpack.c.h.b16 %v1288
    %v5441 = vunpack.c.l.b16 %v1289
    %v5442 = vunpack.c.h.b16 %v1289
    %v5443 = vunpack.c.l.b16 %v1290
    %v5444 = vunpack.c.h.b16 %v1290
    %v5445 = vunpack.c.l.b16 %v1291
    %v5446 = vunpack.c.h.b16 %v1291
    %v5447 = vunpack.c.l.b16 %v1292
    %v5448 = vunpack.c.h.b16 %v1292
    %v5449 = vunpack.c.l.b16 %v1293
    %v5450 = vunpack.c.h.b16 %v1293
    %v5451 = vunpack.c.l.b16 %v1294
    %v5452 = vunpack.c.h.b16 %v1294
    %v5453 = vunpack.c.l.b16 %v1295
    %v5454 = vunpack.c.h.b16 %v1295
    %v5455 = vunpack.c.l.b16 %v1296
    %v5456 = vunpack.c.h.b16 %v1296
    %v5457 = vunpack.c.l.b16 %v1297
    %v5458 = vunpack.c.h.b16 %v1297
    %v5459 = vunpack.c.l.b16 %v1298
    %v5460 = vunpack.c.h.b16 %v1298
    %v5461 = vunpack.c.l.b16 %v1299
    %v5462 = vunpack.c.h.b16 %v1299
    %v5463 = vunpack.c.l.b16 %v1300
    %v5464 = vunpack.c.h.b16 %v1300
    %v5465 = vunpack.c.l.b16 %v1301
    %v5466 = vunpack.c.h.b16 %v1301
    %v5467 = vunpack.c.l.b16 %v1302
    %v5468 = vunpack.c.h.b16 %v1302
    %v5469 = vunpack.c.l.b16 %v1303
    %v5470 = vunpack.c.h.b16 %v1303
    %v5471 = vunpack.c.l.b16 %v1304
    %v5472 = vunpack.c.h.b16 %v1304
    %v5473 = vunpack.c.l.b16 %v1305
    %v5474 = vunpack.c.h.b16 %v1305
    %v5475 = vunpack.c.l.b16 %v1306
    %v5476 = vunpack.c.h.b16 %v1306
    %v5477 = vunpack.c.l.b16 %v1307
    %v5478 = vunpack.c.h.b16 %v1307
    %v5479 = vunpack.c.l.b16 %v1308
    %v5480 = vunpack.c.h.b16 %v1308
    %v5481 = vunpack.c.l.b16 %v1309
    %v5482 = vunpack.c.h.b16 %v1309
    %v5483 = vunpack.c.l.b16 %v1310
    %v5484 = vunpack.c.h.b16 %v1310
    %v5485 = vunpack.c.l.b16 %v1311
    %v5486 = vunpack.c.h.b16 %v1311
    %v5487 = vunpack.c.l.b16 %v1312
    %v5488 = vunpack.c.h.b16 %v1312
    %v5489 = vunpack.c.l.b16 %v1313
    %v5490 = vunpack.c.h.b16 %v1313
    %v5491 = vunpack.c.l.b16 %v1314
    %v5492 = vunpack.c.h.b16 %v1314
    %v5493 = vunpack.c.l.b16 %v1315
    %v5494 = vunpack.c.h.b16 %v1315
    %v5495 = vunpack.c.l.b16 %v1316
    %v5496 = vunpack.c.h.b16 %v1316
    %v5497 = vunpack.c.l.b16 %v1317
    %v5498 = vunpack.c.h.b16 %v1317
    %v5499 = vunpack.c.l.b16 %v1318
    %v5500 = vunpack.c.h.b16 %v1318
    %v5501 = vunpack.c.l.b16 %v1319
    %v5502 = vunpack.c.h.b16 %v1319
    %v5503 = vunpack.c.l.b16 %v1320
    %v5504 = vunpack.c.h.b16 %v1320
    %v5505 = vunpack.c.l.b16 %v1321
    %v5506 = vunpack.c.h.b16 %v1321
    %v5507 = vunpack.c.l.b16 %v1322
    %v5508 = vunpack.c.h.b16 %v1322
    %v5509 = vunpack.c.l.b16 %v1323
    %v5510 = vunpack.c.h.b16 %v1323
    %v5511 = vunpack.c.l.b16 %v1324
    %v5512 = vunpack.c.h.b16 %v1324
    %v5513 = vunpack.c.l.b16 %v1325
    %v5514 = vunpack.c.h.b16 %v1325
    %v5515 = vunpack.c.l.b16 %v1326
    %v5516 = vunpack.c.h.b16 %v1326
    %v5517 = vunpack.c.l.b16 %v1327
    %v5518 = vunpack.c.h.b16 %v1327
    %v5519 = vunpack.c.l.b16 %v1328
    %v5520 = vunpack.c.h.b16 %v1328
    %v5521 = vunpack.c.l.b16 %v1329
    %v5522 = vunpack.c.h.b16 %v1329
    %v5523 = vunpack.c.l.b16 %v1330
    %v5524 = vunpack.c.h.b16 %v1330
    %v5525 = vunpack.c.l.b16 %v1331
    %v5526 = vunpack.c.h.b16 %v1331
    %v5527 = vunpack.c.l.b16 %v1332
    %v5528 = vunpack.c.h.b16 %v1332
    %v5529 = vunpack.c.l.b16 %v1333
    %v5530 = vunpack.c.h.b16 %v1333
    %v5531 = vunpack.c.l.b16 %v1334
    %v5532 = vunpack.c.h.b16 %v1334
    %v5533 = vunpack.c.l.b16 %v1335
    %v5534 = vunpack.c.h.b16 %v1335
    %v5535 = vunpack.c.l.b16 %v1336
    %v5536 = vunpack.c.h.b16 %v1336
    %v5537 = vunpack.c.l.b16 %v1337
    %v5538 = vunpack.c.h.b16 %v1337
    %v5539 = vunpack.c.l.b16 %v1338
    %v5540 = vunpack.c.h.b16 %v1338
    %v5541 = vunpack.c.l.b16 %v1339
    %v5542 = vunpack.c.h.b16 %v1339
    %v5543 = vunpack.c.l.b16 %v1340
    %v5544 = vunpack.c.h.b16 %v1340
    %v5545 = vunpack.c.l.b16 %v1341
    %v5546 = vunpack.c.h.b16 %v1341
    %v5547 = vunpack.c.l.b16 %v1342
    %v5548 = vunpack.c.h.b16 %v1342
    %v5549 = vunpack.c.l.b16 %v1343
    %v5550 = vunpack.c.h.b16 %v1343
    %v5551 = vunpack.c.l.b16 %v1344
    %v5552 = vunpack.c.h.b16 %v1344
    %v5553 = vunpack.c.l.b16 %v1345
    %v5554 = vunpack.c.h.b16 %v1345
    %v5555 = vunpack.c.l.b16 %v1346
    %v5556 = vunpack.c.h.b16 %v1346
    %v5557 = vunpack.c.l.b16 %v1347
    %v5558 = vunpack.c.h.b16 %v1347
    %v5559 = vunpack.c.l.b16 %v1348
    %v5560 = vunpack.c.h.b16 %v1348
    %v5561 = vunpack.c.l.b16 %v1349
    %v5562 = vunpack.c.h.b16 %v1349
    %v5563 = vunpack.c.l.b16 %v1350
    %v5564 = vunpack.c.h.b16 %v1350
    %v5565 = vunpack.c.l.b16 %v1351
    %v5566 = vunpack.c.h.b16 %v1351
    %v5567 = vunpack.c.l.b16 %v1352
    %v5568 = vunpack.c.h.b16 %v1352
    %v5569 = vunpack.c.l.b16 %v1353
    %v5570 = vunpack.c.h.b16 %v1353
    %v5571 = vunpack.c.l.b16 %v1354
    %v5572 = vunpack.c.h.b16 %v1354
    %v5573 = vunpack.c.l.b16 %v1355
    %v5574 = vunpack.c.h.b16 %v1355
    %v5575 = vunpack.c.l.b16 %v1356
    %v5576 = vunpack.c.h.b16 %v1356
    %v5577 = vunpack.c.l.b16 %v1357
    %v5578 = vunpack.c.h.b16 %v1357
    %v5579 = vunpack.c.l.b16 %v1358
    %v5580 = vunpack.c.h.b16 %v1358
    %v5581 = vunpack.c.l.b16 %v1359
    %v5582 = vunpack.c.h.b16 %v1359
    %v5583 = vunpack.c.l.b16 %v1360
    %v5584 = vunpack.c.h.b16 %v1360
    %v5585 = vunpack.c.l.b16 %v1361
    %v5586 = vunpack.c.h.b16 %v1361
    %v5587 = vunpack.c.l.b16 %v1362
    %v5588 = vunpack.c.h.b16 %v1362
    %v5589 = vunpack.c.l.b16 %v1363
    %v5590 = vunpack.c.h.b16 %v1363
    %v5591 = vunpack.c.l.b16 %v1364
    %v5592 = vunpack.c.h.b16 %v1364
    %v5593 = vunpack.c.l.b16 %v1365
    %v5594 = vunpack.c.h.b16 %v1365
    %v5595 = vunpack.c.l.b16 %v1366
    %v5596 = vunpack.c.h.b16 %v1366
    %v5597 = vunpack.c.l.b16 %v1367
    %v5598 = vunpack.c.h.b16 %v1367
    %v5599 = vunpack.c.l.b16 %v1368
    %v5600 = vunpack.c.h.b16 %v1368
    %v5601 = vunpack.c.l.b16 %v1369
    %v5602 = vunpack.c.h.b16 %v1369
    %v5603 = vunpack.c.l.b16 %v1370
    %v5604 = vunpack.c.h.b16 %v1370
    %v5605 = vunpack.c.l.b16 %v1371
    %v5606 = vunpack.c.h.b16 %v1371
    %v5607 = vunpack.c.l.b16 %v1372
    %v5608 = vunpack.c.h.b16 %v1372
    %v5609 = vunpack.c.l.b16 %v1373
    %v5610 = vunpack.c.h.b16 %v1373
    %v5611 = vunpack.c.l.b16 %v1374
    %v5612 = vunpack.c.h.b16 %v1374
    %v5613 = vunpack.c.l.b16 %v1375
    %v5614 = vunpack.c.h.b16 %v1375
    %v5615 = vunpack.c.l.b16 %v1376
    %v5616 = vunpack.c.h.b16 %v1376
    %v5617 = vunpack.c.l.b16 %v1377
    %v5618 = vunpack.c.h.b16 %v1377
    %v5619 = vunpack.c.l.b16 %v1378
    %v5620 = vunpack.c.h.b16 %v1378
    %v5621 = vunpack.c.l.b16 %v1379
    %v5622 = vunpack.c.h.b16 %v1379
    %v5623 = vunpack.c.l.b16 %v1380
    %v5624 = vunpack.c.h.b16 %v1380
    %v5625 = vunpack.c.l.b16 %v1381
    %v5626 = vunpack.c.h.b16 %v1381
    %v5627 = vunpack.c.l.b16 %v1382
    %v5628 = vunpack.c.h.b16 %v1382
    %v5629 = vunpack.c.l.b16 %v1383
    %v5630 = vunpack.c.h.b16 %v1383
    %v5631 = vunpack.c.l.b16 %v1384
    %v5632 = vunpack.c.h.b16 %v1384
    %v5633 = vunpack.c.l.b16 %v1385
    %v5634 = vunpack.c.h.b16 %v1385
    %v5635 = vunpack.c.l.b16 %v1386
    %v5636 = vunpack.c.h.b16 %v1386
    %v5637 = vunpack.c.l.b16 %v1387
    %v5638 = vunpack.c.h.b16 %v1387
    %v5639 = vunpack.c.l.b16 %v1388
    %v5640 = vunpack.c.h.b16 %v1388
    %v5641 = vunpack.c.l.b16 %v1389
    %v5642 = vunpack.c.h.b16 %v1389
    %v5643 = vunpack.c.l.b16 %v1390
    %v5644 = vunpack.c.h.b16 %v1390
    %v5645 = vunpack.c.l.b16 %v1391
    %v5646 = vunpack.c.h.b16 %v1391
    %v5647 = vunpack.c.l.b16 %v1392
    %v5648 = vunpack.c.h.b16 %v1392
    %v5649 = vunpack.c.l.b16 %v1393
    %v5650 = vunpack.c.h.b16 %v1393
    %v5651 = vunpack.c.l.b16 %v1394
    %v5652 = vunpack.c.h.b16 %v1394
    %v5653 = vunpack.c.l.b16 %v1395
    %v5654 = vunpack.c.h.b16 %v1395
    %v5655 = vunpack.c.l.b16 %v1396
    %v5656 = vunpack.c.h.b16 %v1396
    %v5657 = vunpack.c.l.b16 %v1397
    %v5658 = vunpack.c.h.b16 %v1397
    %v5659 = vunpack.c.l.b16 %v1398
    %v5660 = vunpack.c.h.b16 %v1398
    %v5661 = vunpack.c.l.b16 %v1399
    %v5662 = vunpack.c.h.b16 %v1399
    %v5663 = vunpack.c.l.b16 %v1400
    %v5664 = vunpack.c.h.b16 %v1400
    %v5665 = vunpack.c.l.b16 %v1401
    %v5666 = vunpack.c.h.b16 %v1401
    %v5667 = vunpack.c.l.b16 %v1402
    %v5668 = vunpack.c.h.b16 %v1402
    %v5669 = vunpack.c.l.b16 %v1403
    %v5670 = vunpack.c.h.b16 %v1403
    %v5671 = vunpack.c.l.b16 %v1404
    %v5672 = vunpack.c.h.b16 %v1404
    %v5673 = vunpack.c.l.b16 %v1405
    %v5674 = vunpack.c.h.b16 %v1405
    %v5675 = vunpack.c.l.b16 %v1406
    %v5676 = vunpack.c.h.b16 %v1406
    %v5677 = vunpack.c.l.b16 %v1407
    %v5678 = vunpack.c.h.b16 %v1407
    %v5679 = vunpack.c.l.b16 %v1408
    %v5680 = vunpack.c.h.b16 %v1408
    %v5681 = vunpack.c.l.b16 %v1409
    %v5682 = vunpack.c.h.b16 %v1409
    %v5683 = vunpack.c.l.b16 %v1410
    %v5684 = vunpack.c.h.b16 %v1410
    %v5685 = vunpack.c.l.b16 %v1411
    %v5686 = vunpack.c.h.b16 %v1411
    %v5687 = vunpack.c.l.b16 %v1412
    %v5688 = vunpack.c.h.b16 %v1412
    %v5689 = vunpack.c.l.b16 %v1413
    %v5690 = vunpack.c.h.b16 %v1413
    %v5691 = vunpack.c.l.b16 %v1414
    %v5692 = vunpack.c.h.b16 %v1414
    %v5693 = vunpack.c.l.b16 %v1415
    %v5694 = vunpack.c.h.b16 %v1415
    %v5695 = vunpack.c.l.b16 %v1416
    %v5696 = vunpack.c.h.b16 %v1416
    %v5697 = vunpack.c.l.b16 %v1417
    %v5698 = vunpack.c.h.b16 %v1417
    %v5699 = vunpack.c.l.b16 %v1418
    %v5700 = vunpack.c.h.b16 %v1418
    %v5701 = vunpack.c.l.b16 %v1419
    %v5702 = vunpack.c.h.b16 %v1419
    %v5703 = vunpack.c.l.b16 %v1420
    %v5704 = vunpack.c.h.b16 %v1420
    %v5705 = vunpack.c.l.b16 %v1421
    %v5706 = vunpack.c.h.b16 %v1421
    %v5707 = vunpack.c.l.b16 %v1422
    %v5708 = vunpack.c.h.b16 %v1422
    %v5709 = vunpack.c.l.b16 %v1423
    %v5710 = vunpack.c.h.b16 %v1423
    %v5711 = vunpack.c.l.b16 %v1424
    %v5712 = vunpack.c.h.b16 %v1424
    %v5713 = vunpack.c.l.b16 %v1425
    %v5714 = vunpack.c.h.b16 %v1425
    %v5715 = vunpack.c.l.b16 %v1426
    %v5716 = vunpack.c.h.b16 %v1426
    %v5717 = vunpack.c.l.b16 %v1427
    %v5718 = vunpack.c.h.b16 %v1427
    %v5719 = vunpack.c.l.b16 %v1428
    %v5720 = vunpack.c.h.b16 %v1428
    %v5721 = vunpack.c.l.b16 %v1429
    %v5722 = vunpack.c.h.b16 %v1429
    %v5723 = vunpack.c.l.b16 %v1430
    %v5724 = vunpack.c.h.b16 %v1430
    %v5725 = vunpack.c.l.b16 %v1431
    %v5726 = vunpack.c.h.b16 %v1431
    %v5727 = vunpack.c.l.b16 %v1432
    %v5728 = vunpack.c.h.b16 %v1432
    %v5729 = vunpack.c.l.b16 %v1433
    %v5730 = vunpack.c.h.b16 %v1433
    %v5731 = vunpack.c.l.b16 %v1434
    %v5732 = vunpack.c.h.b16 %v1434
    %v5733 = vunpack.c.l.b16 %v1435
    %v5734 = vunpack.c.h.b16 %v1435
    %v5735 = vunpack.c.l.b16 %v1436
    %v5736 = vunpack.c.h.b16 %v1436
    %v5737 = vunpack.c.l.b16 %v1437
    %v5738 = vunpack.c.h.b16 %v1437
    %v5739 = vunpack.c.l.b16 %v1438
    %v5740 = vunpack.c.h.b16 %v1438
    %v5741 = vunpack.c.l.b16 %v1439
    %v5742 = vunpack.c.h.b16 %v1439
    %v5743 = vunpack.c.l.b16 %v1440
    %v5744 = vunpack.c.h.b16 %v1440
    %v5745 = vunpack.c.l.b16 %v1441
    %v5746 = vunpack.c.h.b16 %v1441
    %v5747 = vunpack.c.l.b16 %v1442
    %v5748 = vunpack.c.h.b16 %v1442
    %v5749 = vunpack.c.l.b16 %v1443
    %v5750 = vunpack.c.h.b16 %v1443
    %v5751 = vunpack.c.l.b16 %v1444
    %v5752 = vunpack.c.h.b16 %v1444
    %v5753 = vunpack.c.l.b16 %v1445
    %v5754 = vunpack.c.h.b16 %v1445
    %v5755 = vunpack.c.l.b16 %v1446
    %v5756 = vunpack.c.h.b16 %v1446
    %v5757 = vunpack.c.l.b16 %v1447
    %v5758 = vunpack.c.h.b16 %v1447
    %v5759 = vunpack.c.l.b16 %v1448
    %v5760 = vunpack.c.h.b16 %v1448
    %v5761 = vunpack.c.l.b16 %v1449
    %v5762 = vunpack.c.h.b16 %v1449
    %v5763 = vunpack.c.l.b16 %v1450
    %v5764 = vunpack.c.h.b16 %v1450
    %v5765 = vunpack.c.l.b16 %v1451
    %v5766 = vunpack.c.h.b16 %v1451
    %v5767 = vunpack.c.l.b16 %v1452
    %v5768 = vunpack.c.h.b16 %v1452
    %v5769 = vunpack.c.l.b16 %v1453
    %v5770 = vunpack.c.h.b16 %v1453
    %v5771 = vunpack.c.l.b16 %v1454
    %v5772 = vunpack.c.h.b16 %v1454
    %v5773 = vunpack.c.l.b16 %v1455
    %v5774 = vunpack.c.h.b16 %v1455
    %v5775 = vunpack.c.l.b16 %v1456
    %v5776 = vunpack.c.h.b16 %v1456
    %v5777 = vunpack.c.l.b16 %v1457
    %v5778 = vunpack.c.h.b16 %v1457
    %v5779 = vunpack.c.l.b16 %v1458
    %v5780 = vunpack.c.h.b16 %v1458
    %v5781 = vunpack.c.l.b16 %v1459
    %v5782 = vunpack.c.h.b16 %v1459
    %v5783 = vunpack.c.l.b16 %v1460
    %v5784 = vunpack.c.h.b16 %v1460
    %v5785 = vunpack.c.l.b16 %v1461
    %v5786 = vunpack.c.h.b16 %v1461
    %v5787 = vunpack.c.l.b16 %v1462
    %v5788 = vunpack.c.h.b16 %v1462
    %v5789 = vunpack.c.l.b16 %v1463
    %v5790 = vunpack.c.h.b16 %v1463
    %v5791 = vunpack.c.l.b16 %v1464
    %v5792 = vunpack.c.h.b16 %v1464
    %v5793 = vunpack.c.l.b16 %v1465
    %v5794 = vunpack.c.h.b16 %v1465
    %v5795 = vunpack.c.l.b16 %v1466
    %v5796 = vunpack.c.h.b16 %v1466
    %v5797 = vunpack.c.l.b16 %v1467
    %v5798 = vunpack.c.h.b16 %v1467
    %v5799 = vunpack.c.l.b16 %v1468
    %v5800 = vunpack.c.h.b16 %v1468
    %v5801 = vunpack.c.l.b16 %v1469
    %v5802 = vunpack.c.h.b16 %v1469
    %v5803 = vunpack.c.l.b16 %v1470
    %v5804 = vunpack.c.h.b16 %v1470
    %v5805 = vunpack.c.l.b16 %v1471
    %v5806 = vunpack.c.h.b16 %v1471
    %v5807 = vunpack.c.l.b16 %v1472
    %v5808 = vunpack.c.h.b16 %v1472
    %v5809 = vunpack.c.l.b16 %v1473
    %v5810 = vunpack.c.h.b16 %v1473
    %v5811 = vunpack.c.l.b16 %v1474
    %v5812 = vunpack.c.h.b16 %v1474
    %v5813 = vunpack.c.l.b16 %v1475
    %v5814 = vunpack.c.h.b16 %v1475
    %v5815 = vunpack.c.l.b16 %v1476
    %v5816 = vunpack.c.h.b16 %v1476
    %v5817 = vunpack.c.l.b16 %v1477
    %v5818 = vunpack.c.h.b16 %v1477
    %v5819 = vunpack.c.l.b16 %v1478
    %v5820 = vunpack.c.h.b16 %v1478
    %v5821 = vunpack.c.l.b16 %v1479
    %v5822 = vunpack.c.h.b16 %v1479
    %v5823 = vunpack.c.l.b16 %v1480
    %v5824 = vunpack.c.h.b16 %v1480
    %v5825 = vunpack.c.l.b16 %v1481
    %v5826 = vunpack.c.h.b16 %v1481
    %v5827 = vunpack.c.l.b16 %v1482
    %v5828 = vunpack.c.h.b16 %v1482
    %v5829 = vunpack.c.l.b16 %v1483
    %v5830 = vunpack.c.h.b16 %v1483
    %v5831 = vunpack.c.l.b16 %v1484
    %v5832 = vunpack.c.h.b16 %v1484
    %v5833 = vunpack.c.l.b16 %v1485
    %v5834 = vunpack.c.h.b16 %v1485
    %v5835 = vunpack.c.l.b16 %v1486
    %v5836 = vunpack.c.h.b16 %v1486
    %v5837 = vunpack.c.l.b16 %v1487
    %v5838 = vunpack.c.h.b16 %v1487
    %v5839 = vunpack.c.l.b16 %v1488
    %v5840 = vunpack.c.h.b16 %v1488
    %v5841 = vunpack.c.l.b16 %v1489
    %v5842 = vunpack.c.h.b16 %v1489
    %v5843 = vunpack.c.l.b16 %v1490
    %v5844 = vunpack.c.h.b16 %v1490
    %v5845 = vunpack.c.l.b16 %v1491
    %v5846 = vunpack.c.h.b16 %v1491
    %v5847 = vunpack.c.l.b16 %v1492
    %v5848 = vunpack.c.h.b16 %v1492
    %v5849 = vunpack.c.l.b16 %v1493
    %v5850 = vunpack.c.h.b16 %v1493
    %v5851 = vunpack.c.l.b16 %v1494
    %v5852 = vunpack.c.h.b16 %v1494
    %v5853 = vunpack.c.l.b16 %v1495
    %v5854 = vunpack.c.h.b16 %v1495
    %v5855 = vunpack.c.l.b16 %v1496
    %v5856 = vunpack.c.h.b16 %v1496
    %v5857 = vunpack.c.l.b16 %v1497
    %v5858 = vunpack.c.h.b16 %v1497
    %v5859 = vunpack.c.l.b16 %v1498
    %v5860 = vunpack.c.h.b16 %v1498
    %v5861 = vunpack.c.l.b16 %v1499
    %v5862 = vunpack.c.h.b16 %v1499
    %v5863 = vunpack.c.l.b16 %v1500
    %v5864 = vunpack.c.h.b16 %v1500
    %v5865 = vunpack.c.l.b16 %v1501
    %v5866 = vunpack.c.h.b16 %v1501
    %v5867 = vunpack.c.l.b16 %v1502
    %v5868 = vunpack.c.h.b16 %v1502
    %v5869 = vunpack.c.l.b16 %v1503
    %v5870 = vunpack.c.h.b16 %v1503
    %v5871 = vunpack.c.l.b16 %v1504
    %v5872 = vunpack.c.h.b16 %v1504
    %v5873 = vunpack.c.l.b16 %v1505
    %v5874 = vunpack.c.h.b16 %v1505
    %v5875 = vunpack.c.l.b16 %v1506
    %v5876 = vunpack.c.h.b16 %v1506
    %v5877 = vunpack.c.l.b16 %v1507
    %v5878 = vunpack.c.h.b16 %v1507
    %v5879 = vunpack.c.l.b16 %v1508
    %v5880 = vunpack.c.h.b16 %v1508
    %v5881 = vunpack.c.l.b16 %v1509
    %v5882 = vunpack.c.h.b16 %v1509
    %v5883 = vunpack.c.l.b16 %v1510
    %v5884 = vunpack.c.h.b16 %v1510
    %v5885 = vunpack.c.l.b16 %v1511
    %v5886 = vunpack.c.h.b16 %v1511
    %v5887 = vunpack.c.l.b16 %v1512
    %v5888 = vunpack.c.h.b16 %v1512
    %v5889 = vunpack.c.l.b16 %v1513
    %v5890 = vunpack.c.h.b16 %v1513
    %v5891 = vunpack.c.l.b16 %v1514
    %v5892 = vunpack.c.h.b16 %v1514
    %v5893 = vunpack.c.l.b16 %v1515
    %v5894 = vunpack.c.h.b16 %v1515
    %v5895 = vunpack.c.l.b16 %v1516
    %v5896 = vunpack.c.h.b16 %v1516
    %v5897 = vunpack.c.l.b16 %v1517
    %v5898 = vunpack.c.h.b16 %v1517
    %v5899 = vunpack.c.l.b16 %v1518
    %v5900 = vunpack.c.h.b16 %v1518
    %v5901 = vunpack.c.l.b16 %v1519
    %v5902 = vunpack.c.h.b16 %v1519
    %v5903 = vunpack.c.l.b16 %v1520
    %v5904 = vunpack.c.h.b16 %v1520
    %v5905 = vunpack.c.l.b16 %v1521
    %v5906 = vunpack.c.h.b16 %v1521
    %v5907 = vunpack.c.l.b16 %v1522
    %v5908 = vunpack.c.h.b16 %v1522
    %v5909 = vunpack.c.l.b16 %v1523
    %v5910 = vunpack.c.h.b16 %v1523
    %v5911 = vunpack.c.l.b16 %v1524
    %v5912 = vunpack.c.h.b16 %v1524
    %v5913 = vunpack.c.l.b16 %v1525
    %v5914 = vunpack.c.h.b16 %v1525
    %v5915 = vunpack.c.l.b16 %v1526
    %v5916 = vunpack.c.h.b16 %v1526
    %v5917 = vunpack.c.l.b16 %v1527
    %v5918 = vunpack.c.h.b16 %v1527
    %v5919 = vunpack.c.l.b16 %v1528
    %v5920 = vunpack.c.h.b16 %v1528
    %v5921 = vunpack.c.l.b16 %v1529
    %v5922 = vunpack.c.h.b16 %v1529
    %v5923 = vunpack.c.l.b16 %v1530
    %v5924 = vunpack.c.h.b16 %v1530
    %v5925 = vunpack.c.l.b16 %v1531
    %v5926 = vunpack.c.h.b16 %v1531
    %v5927 = vunpack.c.l.b16 %v1532
    %v5928 = vunpack.c.h.b16 %v1532
    %v5929 = vunpack.c.l.b16 %v1533
    %v5930 = vunpack.c.h.b16 %v1533
    %v5931 = vunpack.c.l.b16 %v1534
    %v5932 = vunpack.c.h.b16 %v1534
    %v5933 = vunpack.c.l.b16 %v1535
    %v5934 = vunpack.c.h.b16 %v1535
    %v5935 = vunpack.c.l.b16 %v1536
    %v5936 = vunpack.c.h.b16 %v1536
    %v5937 = vunpack.c.l.b16 %v1537
    %v5938 = vunpack.c.h.b16 %v1537
    %v5939 = vunpack.c.l.b16 %v1538
    %v5940 = vunpack.c.h.b16 %v1538
    %v5941 = vunpack.c.l.b16 %v1539
    %v5942 = vunpack.c.h.b16 %v1539
    %v5943 = vunpack.c.l.b16 %v1540
    %v5944 = vunpack.c.h.b16 %v1540
    %v5945 = vunpack.c.l.b16 %v1541
    %v5946 = vunpack.c.h.b16 %v1541
    %v5947 = vunpack.c.l.b16 %v1542
    %v5948 = vunpack.c.h.b16 %v1542
    %v5949 = vunpack.c.l.b16 %v1543
    %v5950 = vunpack.c.h.b16 %v1543
    %v5951 = vunpack.c.l.b16 %v1544
    %v5952 = vunpack.c.h.b16 %v1544
    %v5953 = vunpack.c.l.b16 %v1545
    %v5954 = vunpack.c.h.b16 %v1545
    %v5955 = vunpack.c.l.b16 %v1546
    %v5956 = vunpack.c.h.b16 %v1546
    %v5957 = vunpack.c.l.b16 %v1547
    %v5958 = vunpack.c.h.b16 %v1547
    %v5959 = vunpack.c.l.b16 %v1548
    %v5960 = vunpack.c.h.b16 %v1548
    %v5961 = vunpack.c.l.b16 %v1549
    %v5962 = vunpack.c.h.b16 %v1549
    %v5963 = vunpack.c.l.b16 %v1550
    %v5964 = vunpack.c.h.b16 %v1550
    %v5965 = vunpack.c.l.b16 %v1551
    %v5966 = vunpack.c.h.b16 %v1551
    %v5967 = vunpack.c.l.b16 %v1552
    %v5968 = vunpack.c.h.b16 %v1552
    %v5969 = vunpack.c.l.b16 %v1553
    %v5970 = vunpack.c.h.b16 %v1553
    %v5971 = vunpack.c.l.b16 %v1554
    %v5972 = vunpack.c.h.b16 %v1554
    %v5973 = vunpack.c.l.b16 %v1555
    %v5974 = vunpack.c.h.b16 %v1555
    %v5975 = vunpack.c.l.b16 %v1556
    %v5976 = vunpack.c.h.b16 %v1556
    %v5977 = vunpack.c.l.b16 %v1557
    %v5978 = vunpack.c.h.b16 %v1557
    %v5979 = vunpack.c.l.b16 %v1558
    %v5980 = vunpack.c.h.b16 %v1558
    %v5981 = vunpack.c.l.b16 %v1559
    %v5982 = vunpack.c.h.b16 %v1559
    %v5983 = vunpack.c.l.b16 %v1560
    %v5984 = vunpack.c.h.b16 %v1560
    %v5985 = vunpack.c.l.b16 %v1561
    %v5986 = vunpack.c.h.b16 %v1561
    %v5987 = vunpack.c.l.b16 %v1562
    %v5988 = vunpack.c.h.b16 %v1562
    %v5989 = vunpack.c.l.b16 %v1563
    %v5990 = vunpack.c.h.b16 %v1563
    %v5991 = vunpack.c.l.b16 %v1564
    %v5992 = vunpack.c.h.b16 %v1564
    %v5993 = vunpack.c.l.b16 %v1565
    %v5994 = vunpack.c.h.b16 %v1565
    %v5995 = vunpack.c.l.b16 %v1566
    %v5996 = vunpack.c.h.b16 %v1566
    %v5997 = vunpack.c.l.b16 %v1567
    %v5998 = vunpack.c.h.b16 %v1567
    %v5999 = vunpack.c.l.b16 %v1568
    %v6000 = vunpack.c.h.b16 %v1568
    %v6001 = vunpack.c.l.b16 %v1569
    %v6002 = vunpack.c.h.b16 %v1569
    %v6003 = vunpack.c.l.b16 %v1570
    %v6004 = vunpack.c.h.b16 %v1570
    %v6005 = vunpack.c.l.b16 %v1571
    %v6006 = vunpack.c.h.b16 %v1571
    %v6007 = vunpack.c.l.b16 %v1572
    %v6008 = vunpack.c.h.b16 %v1572
    %v6009 = vunpack.c.l.b16 %v1573
    %v6010 = vunpack.c.h.b16 %v1573
    %v6011 = vunpack.c.l.b16 %v1574
    %v6012 = vunpack.c.h.b16 %v1574
    %v6013 = vunpack.c.l.b16 %v1575
    %v6014 = vunpack.c.h.b16 %v1575
    %v6015 = vunpack.c.l.b16 %v1576
    %v6016 = vunpack.c.h.b16 %v1576
    %v6017 = vunpack.c.l.b16 %v1577
    %v6018 = vunpack.c.h.b16 %v1577
    %v6019 = vunpack.c.l.b16 %v1578
    %v6020 = vunpack.c.h.b16 %v1578
    %v6021 = vunpack.c.l.b16 %v1579
    %v6022 = vunpack.c.h.b16 %v1579
    %v6023 = vunpack.c.l.b16 %v1580
    %v6024 = vunpack.c.h.b16 %v1580
    %v6025 = vunpack.c.l.b16 %v1581
    %v6026 = vunpack.c.h.b16 %v1581
    %v6027 = vunpack.c.l.b16 %v1582
    %v6028 = vunpack.c.h.b16 %v1582
    %v6029 = vunpack.c.l.b16 %v1583
    %v6030 = vunpack.c.h.b16 %v1583
    %v6031 = vunpack.c.l.b16 %v1584
    %v6032 = vunpack.c.h.b16 %v1584
    %v6033 = vunpack.c.l.b16 %v1585
    %v6034 = vunpack.c.h.b16 %v1585
    %v6035 = vunpack.c.l.b16 %v1586
    %v6036 = vunpack.c.h.b16 %v1586
    %v6037 = vunpack.c.l.b16 %v1587
    %v6038 = vunpack.c.h.b16 %v1587
    %v6039 = vunpack.c.l.b16 %v1588
    %v6040 = vunpack.c.h.b16 %v1588
    %v6041 = vunpack.c.l.b16 %v1589
    %v6042 = vunpack.c.h.b16 %v1589
    %v6043 = vunpack.c.l.b16 %v1590
    %v6044 = vunpack.c.h.b16 %v1590
    %v6045 = vunpack.c.l.b16 %v1591
    %v6046 = vunpack.c.h.b16 %v1591
    %v6047 = vunpack.c.l.b16 %v1592
    %v6048 = vunpack.c.h.b16 %v1592
    %v6049 = vunpack.c.l.b16 %v1593
    %v6050 = vunpack.c.h.b16 %v1593
    %v6051 = vunpack.c.l.b16 %v1594
    %v6052 = vunpack.c.h.b16 %v1594
    %v6053 = vunpack.c.l.b16 %v1595
    %v6054 = vunpack.c.h.b16 %v1595
    %v6055 = vunpack.c.l.b16 %v1596
    %v6056 = vunpack.c.h.b16 %v1596
    %v6057 = vunpack.c.l.b16 %v1597
    %v6058 = vunpack.c.h.b16 %v1597
    %v6059 = vunpack.c.l.b16 %v1598
    %v6060 = vunpack.c.h.b16 %v1598
    %v6061 = vunpack.c.l.b16 %v1599
    %v6062 = vunpack.c.h.b16 %v1599
    %v6063 = vunpack.c.l.b16 %v1600
    %v6064 = vunpack.c.h.b16 %v1600
    %v6065 = vunpack.c.l.b16 %v1601
    %v6066 = vunpack.c.h.b16 %v1601
    %v6067 = vunpack.c.l.b16 %v1602
    %v6068 = vunpack.c.h.b16 %v1602
    %v6069 = vunpack.c.l.b16 %v1603
    %v6070 = vunpack.c.h.b16 %v1603
    %v6071 = vunpack.c.l.b16 %v1604
    %v6072 = vunpack.c.h.b16 %v1604
    %v6073 = vunpack.c.l.b16 %v1605
    %v6074 = vunpack.c.h.b16 %v1605
    %v6075 = vunpack.c.l.b16 %v1606
    %v6076 = vunpack.c.h.b16 %v1606
    %v6077 = vunpack.c.l.b16 %v1607
    %v6078 = vunpack.c.h.b16 %v1607
    %v6079 = vunpack.c.l.b16 %v1608
    %v6080 = vunpack.c.h.b16 %v1608
    %v6081 = vunpack.c.l.b16 %v1609
    %v6082 = vunpack.c.h.b16 %v1609
    %v6083 = vunpack.c.l.b16 %v1610
    %v6084 = vunpack.c.h.b16 %v1610
    %v6085 = vunpack.c.l.b16 %v1611
    %v6086 = vunpack.c.h.b16 %v1611
    %v6087 = vunpack.c.l.b16 %v1612
    %v6088 = vunpack.c.h.b16 %v1612
    %v6089 = vunpack.c.l.b16 %v1613
    %v6090 = vunpack.c.h.b16 %v1613
    %v6091 = vunpack.c.l.b16 %v1614
    %v6092 = vunpack.c.h.b16 %v1614
    %v6093 = vunpack.c.l.b16 %v1615
    %v6094 = vunpack.c.h.b16 %v1615
    %v6095 = vunpack.c.l.b16 %v1616
    %v6096 = vunpack.c.h.b16 %v1616
    %v6097 = vunpack.c.l.b16 %v1617
    %v6098 = vunpack.c.h.b16 %v1617
    %v6099 = vunpack.c.l.b16 %v1618
    %v6100 = vunpack.c.h.b16 %v1618
    %v6101 = vunpack.c.l.b16 %v1619
    %v6102 = vunpack.c.h.b16 %v1619
    %v6103 = vunpack.c.l.b16 %v1620
    %v6104 = vunpack.c.h.b16 %v1620
    %v6105 = vunpack.c.l.b16 %v1621
    %v6106 = vunpack.c.h.b16 %v1621
    %v6107 = vunpack.c.l.b16 %v1622
    %v6108 = vunpack.c.h.b16 %v1622
    %v6109 = vunpack.c.l.b16 %v1623
    %v6110 = vunpack.c.h.b16 %v1623
    %v6111 = vunpack.c.l.b16 %v1624
    %v6112 = vunpack.c.h.b16 %v1624
    %v6113 = vunpack.c.l.b16 %v1625
    %v6114 = vunpack.c.h.b16 %v1625
    %v6115 = vunpack.c.l.b16 %v1626
    %v6116 = vunpack.c.h.b16 %v1626
    %v6117 = vunpack.c.l.b16 %v1627
    %v6118 = vunpack.c.h.b16 %v1627
    %v6119 = vunpack.c.l.b16 %v1628
    %v6120 = vunpack.c.h.b16 %v1628
    %v6121 = vunpack.c.l.b16 %v1629
    %v6122 = vunpack.c.h.b16 %v1629
    %v6123 = vunpack.c.l.b16 %v1630
    %v6124 = vunpack.c.h.b16 %v1630
    %v6125 = vunpack.c.l.b16 %v1631
    %v6126 = vunpack.c.h.b16 %v1631
    %v6127 = vunpack.c.l.b16 %v1632
    %v6128 = vunpack.c.h.b16 %v1632
    %v6129 = vunpack.c.l.b16 %v1633
    %v6130 = vunpack.c.h.b16 %v1633
    %v6131 = vunpack.c.l.b16 %v1634
    %v6132 = vunpack.c.h.b16 %v1634
    %v6133 = vunpack.c.l.b16 %v1635
    %v6134 = vunpack.c.h.b16 %v1635
    %v6135 = vunpack.c.l.b16 %v1636
    %v6136 = vunpack.c.h.b16 %v1636
    %v6137 = vunpack.c.l.b16 %v1637
    %v6138 = vunpack.c.h.b16 %v1637
    %v6139 = vunpack.c.l.b16 %v1638
    %v6140 = vunpack.c.h.b16 %v1638
    %v6141 = vunpack.c.l.b16 %v1639
    %v6142 = vunpack.c.h.b16 %v1639
    %v6143 = vunpack.c.l.b16 %v1640
    %v6144 = vunpack.c.h.b16 %v1640
    %v6145 = vunpack.c.l.b16 %v1641
    %v6146 = vunpack.c.h.b16 %v1641
    %v6147 = vunpack.c.l.b16 %v1642
    %v6148 = vunpack.c.h.b16 %v1642
    %v6149 = vunpack.c.l.b16 %v1643
    %v6150 = vunpack.c.h.b16 %v1643
    %v6151 = vunpack.c.l.b16 %v1644
    %v6152 = vunpack.c.h.b16 %v1644
    %v6153 = vunpack.c.l.b16 %v1645
    %v6154 = vunpack.c.h.b16 %v1645
    %v6155 = vunpack.c.l.b16 %v1646
    %v6156 = vunpack.c.h.b16 %v1646
    %v6157 = vunpack.c.l.b16 %v1647
    %v6158 = vunpack.c.h.b16 %v1647
    %v6159 = vunpack.c.l.b16 %v1648
    %v6160 = vunpack.c.h.b16 %v1648
    %v6161 = vunpack.c.l.b16 %v1649
    %v6162 = vunpack.c.h.b16 %v1649
    %v6163 = vunpack.c.l.b16 %v1650
    %v6164 = vunpack.c.h.b16 %v1650
    %v6165 = vunpack.c.l.b16 %v1651
    %v6166 = vunpack.c.h.b16 %v1651
    %v6167 = vunpack.c.l.b16 %v1652
    %v6168 = vunpack.c.h.b16 %v1652
    %v6169 = vunpack.c.l.b16 %v1653
    %v6170 = vunpack.c.h.b16 %v1653
    %v6171 = vunpack.c.l.b16 %v1654
    %v6172 = vunpack.c.h.b16 %v1654
    %v6173 = vunpack.c.l.b16 %v1655
    %v6174 = vunpack.c.h.b16 %v1655
    %v6175 = vunpack.c.l.b16 %v1656
    %v6176 = vunpack.c.h.b16 %v1656
    %v6177 = vunpack.c.l.b16 %v1657
    %v6178 = vunpack.c.h.b16 %v1657
    %v6179 = vunpack.c.l.b16 %v1658
    %v6180 = vunpack.c.h.b16 %v1658
    %v6181 = vunpack.c.l.b16 %v1659
    %v6182 = vunpack.c.h.b16 %v1659
    %v6183 = vunpack.c.l.b16 %v1660
    %v6184 = vunpack.c.h.b16 %v1660
    %v6185 = vunpack.c.l.b16 %v1661
    %v6186 = vunpack.c.h.b16 %v1661
    %v6187 = vunpack.c.l.b16 %v1662
    %v6188 = vunpack.c.h.b16 %v1662
    %v6189 = vunpack.c.l.b16 %v1663
    %v6190 = vunpack.c.h.b16 %v1663
    %v6191 = vunpack.c.l.b16 %v1664
    %v6192 = vunpack.c.h.b16 %v1664
    %v6193 = vunpack.c.l.b16 %v1665
    %v6194 = vunpack.c.h.b16 %v1665
    %v6195 = vunpack.c.l.b16 %v1666
    %v6196 = vunpack.c.h.b16 %v1666
    %v6197 = vunpack.c.l.b16 %v1667
    %v6198 = vunpack.c.h.b16 %v1667
    %v6199 = vunpack.c.l.b16 %v1668
    %v6200 = vunpack.c.h.b16 %v1668
    %v6201 = vunpack.c.l.b16 %v1669
    %v6202 = vunpack.c.h.b16 %v1669
    %v6203 = vunpack.c.l.b16 %v1670
    %v6204 = vunpack.c.h.b16 %v1670
    %v6205 = vunpack.c.l.b16 %v1671
    %v6206 = vunpack.c.h.b16 %v1671
    %v6207 = vunpack.c.l.b16 %v1672
    %v6208 = vunpack.c.h.b16 %v1672
    %v6209 = vunpack.c.l.b16 %v1673
    %v6210 = vunpack.c.h.b16 %v1673
    %v6211 = vunpack.c.l.b16 %v1674
    %v6212 = vunpack.c.h.b16 %v1674
    %v6213 = vunpack.c.l.b16 %v1675
    %v6214 = vunpack.c.h.b16 %v1675
    %v6215 = vunpack.c.l.b16 %v1676
    %v6216 = vunpack.c.h.b16 %v1676
    %v6217 = vunpack.c.l.b16 %v1677
    %v6218 = vunpack.c.h.b16 %v1677
    %v6219 = vunpack.c.l.b16 %v1678
    %v6220 = vunpack.c.h.b16 %v1678
    %v6221 = vunpack.c.l.b16 %v1679
    %v6222 = vunpack.c.h.b16 %v1679
    %v6223 = vunpack.c.l.b16 %v1680
    %v6224 = vunpack.c.h.b16 %v1680
    %v6225 = vunpack.c.l.b16 %v1681
    %v6226 = vunpack.c.h.b16 %v1681
    %v6227 = vunpack.c.l.b16 %v1682
    %v6228 = vunpack.c.h.b16 %v1682
    %v6229 = vunpack.c.l.b16 %v1683
    %v6230 = vunpack.c.h.b16 %v1683
    %v6231 = vunpack.c.l.b16 %v1684
    %v6232 = vunpack.c.h.b16 %v1684
    %v6233 = vunpack.c.l.b16 %v1685
    %v6234 = vunpack.c.h.b16 %v1685
    %v6235 = vunpack.c.l.b16 %v1686
    %v6236 = vunpack.c.h.b16 %v1686
    %v6237 = vunpack.c.l.b16 %v1687
    %v6238 = vunpack.c.h.b16 %v1687
    %v6239 = vunpack.c.l.b16 %v1688
    %v6240 = vunpack.c.h.b16 %v1688
    %v6241 = vunpack.c.l.b16 %v1689
    %v6242 = vunpack.c.h.b16 %v1689
    %v6243 = vunpack.c.l.b16 %v1690
    %v6244 = vunpack.c.h.b16 %v1690
    %v6245 = vunpack.c.l.b16 %v1691
    %v6246 = vunpack.c.h.b16 %v1691
    %v6247 = vunpack.c.l.b16 %v1692
    %v6248 = vunpack.c.h.b16 %v1692
    %v6249 = vunpack.c.l.b16 %v1693
    %v6250 = vunpack.c.h.b16 %v1693
    %v6251 = vunpack.c.l.b16 %v1694
    %v6252 = vunpack.c.h.b16 %v1694
    %v6253 = vunpack.c.l.b16 %v1695
    %v6254 = vunpack.c.h.b16 %v1695
    %v6255 = vunpack.c.l.b16 %v1696
    %v6256 = vunpack.c.h.b16 %v1696
    %v6257 = vunpack.c.l.b16 %v1697
    %v6258 = vunpack.c.h.b16 %v1697
    %v6259 = vunpack.c.l.b16 %v1698
    %v6260 = vunpack.c.h.b16 %v1698
    %v6261 = vunpack.c.l.b16 %v1699
    %v6262 = vunpack.c.h.b16 %v1699
    %v6263 = vunpack.c.l.b16 %v1700
    %v6264 = vunpack.c.h.b16 %v1700
    %v6265 = vunpack.c.l.b16 %v1701
    %v6266 = vunpack.c.h.b16 %v1701
    %v6267 = vunpack.c.l.b16 %v1702
    %v6268 = vunpack.c.h.b16 %v1702
    %v6269 = vunpack.c.l.b16 %v1703
    %v6270 = vunpack.c.h.b16 %v1703
    %v6271 = vunpack.c.l.b16 %v1704
    %v6272 = vunpack.c.h.b16 %v1704
    %v6273 = vunpack.c.l.b16 %v1705
    %v6274 = vunpack.c.h.b16 %v1705
    %v6275 = vunpack.c.l.b16 %v1706
    %v6276 = vunpack.c.h.b16 %v1706
    %v6277 = vunpack.c.l.b16 %v1707
    %v6278 = vunpack.c.h.b16 %v1707
    %v6279 = vunpack.c.l.b16 %v1708
    %v6280 = vunpack.c.h.b16 %v1708
    %v6281 = vunpack.c.l.b16 %v1709
    %v6282 = vunpack.c.h.b16 %v1709
    %v6283 = vunpack.c.l.b16 %v1710
    %v6284 = vunpack.c.h.b16 %v1710
    %v6285 = vunpack.c.l.b16 %v1711
    %v6286 = vunpack.c.h.b16 %v1711
    %v6287 = vunpack.c.l.b16 %v1712
    %v6288 = vunpack.c.h.b16 %v1712
    %v6289 = vunpack.c.l.b16 %v1713
    %v6290 = vunpack.c.h.b16 %v1713
    %v6291 = vunpack.c.l.b16 %v1714
    %v6292 = vunpack.c.h.b16 %v1714
    %v6293 = vunpack.c.l.b16 %v1715
    %v6294 = vunpack.c.h.b16 %v1715
    %v6295 = vunpack.c.l.b16 %v1716
    %v6296 = vunpack.c.h.b16 %v1716
    %v6297 = vunpack.c.l.b16 %v1717
    %v6298 = vunpack.c.h.b16 %v1717
    %v6299 = vunpack.c.l.b16 %v1718
    %v6300 = vunpack.c.h.b16 %v1718
    %v6301 = vunpack.c.l.b16 %v1719
    %v6302 = vunpack.c.h.b16 %v1719
    %v6303 = vunpack.c.l.b16 %v1720
    %v6304 = vunpack.c.h.b16 %v1720
    %v6305 = vunpack.c.l.b16 %v1721
    %v6306 = vunpack.c.h.b16 %v1721
    %v6307 = vunpack.c.l.b16 %v1722
    %v6308 = vunpack.c.h.b16 %v1722
    %v6309 = vunpack.c.l.b16 %v1723
    %v6310 = vunpack.c.h.b16 %v1723
    %v6311 = vunpack.c.l.b16 %v1724
    %v6312 = vunpack.c.h.b16 %v1724
    %v6313 = vunpack.c.l.b16 %v1725
    %v6314 = vunpack.c.h.b16 %v1725
    %v6315 = vunpack.c.l.b16 %v1726
    %v6316 = vunpack.c.h.b16 %v1726
    %v6317 = vunpack.c.l.b16 %v1727
    %v6318 = vunpack.c.h.b16 %v1727
    %v6319 = vunpack.c.l.b16 %v1728
    %v6320 = vunpack.c.h.b16 %v1728
    %v6321 = vunpack.c.l.b16 %v1729
    %v6322 = vunpack.c.h.b16 %v1729
    %v6323 = vunpack.c.l.b16 %v1730
    %v6324 = vunpack.c.h.b16 %v1730
    %v6325 = vunpack.c.l.b16 %v1731
    %v6326 = vunpack.c.h.b16 %v1731
    %v6327 = vunpack.c.l.b16 %v1732
    %v6328 = vunpack.c.h.b16 %v1732
    %v6329 = vunpack.c.l.b16 %v1733
    %v6330 = vunpack.c.h.b16 %v1733
    %v6331 = vunpack.c.l.b16 %v1734
    %v6332 = vunpack.c.h.b16 %v1734
    %v6333 = vunpack.c.l.b16 %v1735
    %v6334 = vunpack.c.h.b16 %v1735
    %v6335 = vunpack.c.l.b16 %v1736
    %v6336 = vunpack.c.h.b16 %v1736
    %v6337 = vunpack.c.l.b16 %v1737
    %v6338 = vunpack.c.h.b16 %v1737
    %v6339 = vunpack.c.l.b16 %v1738
    %v6340 = vunpack.c.h.b16 %v1738
    %v6341 = vunpack.c.l.b16 %v1739
    %v6342 = vunpack.c.h.b16 %v1739
    %v6343 = vunpack.c.l.b16 %v1740
    %v6344 = vunpack.c.h.b16 %v1740
    %v6345 = vunpack.c.l.b16 %v1741
    %v6346 = vunpack.c.h.b16 %v1741
    %v6347 = vunpack.c.l.b16 %v1742
    %v6348 = vunpack.c.h.b16 %v1742
    %v6349 = vunpack.c.l.b16 %v1743
    %v6350 = vunpack.c.h.b16 %v1743
    %v6351 = vunpack.c.l.b16 %v1744
    %v6352 = vunpack.c.h.b16 %v1744
    %v6353 = vunpack.c.l.b16 %v1745
    %v6354 = vunpack.c.h.b16 %v1745
    %v6355 = vunpack.c.l.b16 %v1746
    %v6356 = vunpack.c.h.b16 %v1746
    %v6357 = vunpack.c.l.b16 %v1747
    %v6358 = vunpack.c.h.b16 %v1747
    %v6359 = vunpack.c.l.b16 %v1748
    %v6360 = vunpack.c.h.b16 %v1748
    %v6361 = vunpack.c.l.b16 %v1749
    %v6362 = vunpack.c.h.b16 %v1749
    %v6363 = vunpack.c.l.b16 %v1750
    %v6364 = vunpack.c.h.b16 %v1750
    %v6365 = vunpack.c.l.b16 %v1751
    %v6366 = vunpack.c.h.b16 %v1751
    %v6367 = vunpack.c.l.b16 %v1752
    %v6368 = vunpack.c.h.b16 %v1752
    %v6369 = vunpack.c.l.b16 %v1753
    %v6370 = vunpack.c.h.b16 %v1753
    %v6371 = vunpack.c.l.b16 %v1754
    %v6372 = vunpack.c.h.b16 %v1754
    %v6373 = vunpack.c.l.b16 %v1755
    %v6374 = vunpack.c.h.b16 %v1755
    %v6375 = vunpack.c.l.b16 %v1756
    %v6376 = vunpack.c.h.b16 %v1756
    %v6377 = vunpack.c.l.b16 %v1757
    %v6378 = vunpack.c.h.b16 %v1757
    %v6379 = vunpack.c.l.b16 %v1758
    %v6380 = vunpack.c.h.b16 %v1758
    %v6381 = vunpack.c.l.b16 %v1759
    %v6382 = vunpack.c.h.b16 %v1759
    %v6383 = vunpack.c.l.b16 %v1760
    %v6384 = vunpack.c.h.b16 %v1760
    %v6385 = vunpack.c.l.b16 %v1761
    %v6386 = vunpack.c.h.b16 %v1761
    %v6387 = vunpack.c.l.b16 %v1762
    %v6388 = vunpack.c.h.b16 %v1762
    %v6389 = vunpack.c.l.b16 %v1763
    %v6390 = vunpack.c.h.b16 %v1763
    %v6391 = vunpack.c.l.b16 %v1764
    %v6392 = vunpack.c.h.b16 %v1764
    %v6393 = vunpack.c.l.b16 %v1765
    %v6394 = vunpack.c.h.b16 %v1765
    %v6395 = vunpack.c.l.b16 %v1766
    %v6396 = vunpack.c.h.b16 %v1766
    %v6397 = vunpack.c.l.b16 %v1767
    %v6398 = vunpack.c.h.b16 %v1767
    %v6399 = vunpack.c.l.b16 %v1768
    %v6400 = vunpack.c.h.b16 %v1768
    %v6401 = vunpack.c.l.b16 %v1769
    %v6402 = vunpack.c.h.b16 %v1769
    %v6403 = vunpack.c.l.b16 %v1770
    %v6404 = vunpack.c.h.b16 %v1770
    %v6405 = vunpack.c.l.b16 %v1771
    %v6406 = vunpack.c.h.b16 %v1771
    %v6407 = vunpack.c.l.b16 %v1772
    %v6408 = vunpack.c.h.b16 %v1772
    %v6409 = vunpack.c.l.b16 %v1773
    %v6410 = vunpack.c.h.b16 %v1773
    %v6411 = vunpack.c.l.b16 %v1774
    %v6412 = vunpack.c.h.b16 %v1774
    %v6413 = vunpack.c.l.b16 %v1775
    %v6414 = vunpack.c.h.b16 %v1775
    %v6415 = vunpack.c.l.b16 %v1776
    %v6416 = vunpack.c.h.b16 %v1776
    %v6417 = vunpack.c.l.b16 %v1777
    %v6418 = vunpack.c.h.b16 %v1777
    %v6419 = vunpack.c.l.b16 %v1778
    %v6420 = vunpack.c.h.b16 %v1778
    %v6421 = vunpack.c.l.b16 %v1779
    %v6422 = vunpack.c.h.b16 %v1779
    %v6423 = vunpack.c.l.b16 %v1780
    %v6424 = vunpack.c.h.b16 %v1780
    %v6425 = vunpack.c.l.b16 %v1781
    %v6426 = vunpack.c.h.b16 %v1781
    %v6427 = vunpack.c.l.b16 %v1782
    %v6428 = vunpack.c.h.b16 %v1782
    %v6429 = vunpack.c.l.b16 %v1783
    %v6430 = vunpack.c.h.b16 %v1783
    %v6431 = vunpack.c.l.b16 %v1784
    %v6432 = vunpack.c.h.b16 %v1784
    %v6433 = vunpack.c.l.b16 %v1785
    %v6434 = vunpack.c.h.b16 %v1785
    %v6435 = vunpack.c.l.b16 %v1786
    %v6436 = vunpack.c.h.b16 %v1786
    %v6437 = vpack.c.b16 %v3373, %v3365
    %v6438 = vpack.c.b16 %v3374, %v3366
    %v6439 = vpack.c.b16 %v3375, %v3367
    %v6440 = vpack.c.b16 %v3376, %v3368
    %v6441 = vpack.c.b16 %v3377, %v3369
    %v6442 = vpack.c.b16 %v3378, %v3370
    %v6443 = vpack.c.b16 %v3379, %v3371
    %v6444 = vpack.c.b16 %v3380, %v3372
    %v6445 = vpack.c.b16 %v3389, %v3381
    %v6446 = vpack.c.b16 %v3390, %v3382
    %v6447 = vpack.c.b16 %v3391, %v3383
    %v6448 = vpack.c.b16 %v3392, %v3384
    %v6449 = vpack.c.b16 %v3393, %v3385
    %v6450 = vpack.c.b16 %v3394, %v3386
    %v6451 = vpack.c.b16 %v3395, %v3387
    %v6452 = vpack.c.b16 %v3396, %v3388
    %v6453 = vpack.c.b16 %v3405, %v3397
    %v6454 = vpack.c.b16 %v3406, %v3398
    %v6455 = vpack.c.b16 %v3407, %v3399
    %v6456 = vpack.c.b16 %v3408, %v3400
    %v6457 = vpack.c.b16 %v3409, %v3401
    %v6458 = vpack.c.b16 %v3410, %v3402
    %v6459 = vpack.c.b16 %v3411, %v3403
    %v6460 = vpack.c.b16 %v3412, %v3404
    %v6461 = vpack.c.b16 %v3421, %v3413
    %v6462 = vpack.c.b16 %v3422, %v3414
    %v6463 = vpack.c.b16 %v3423, %v3415
    %v6464 = vpack.c.b16 %v3424, %v3416
    %v6465 = vpack.c.b16 %v3425, %v3417
    %v6466 = vpack.c.b16 %v3426, %v3418
    %v6467 = vpack.c.b16 %v3427, %v3419
    %v6468 = vpack.c.b16 %v3428, %v3420
    %v6469 = vpack.c.b16 %v3437, %v3429
    %v6470 = vpack.c.b16 %v3438, %v3430
    %v6471 = vpack.c.b16 %v3439, %v3431
    %v6472 = vpack.c.b16 %v3440, %v3432
    %v6473 = vpack.c.b16 %v3441, %v3433
    %v6474 = vpack.c.b16 %v3442, %v3434
    %v6475 = vpack.c.b16 %v3443, %v3435
    %v6476 = vpack.c.b16 %v3444, %v3436
    %v6477 = vpack.c.b16 %v3453, %v3445
    %v6478 = vpack.c.b16 %v3454, %v3446
    %v6479 = vpack.c.b16 %v3455, %v3447
    %v6480 = vpack.c.b16 %v3456, %v3448
    %v6481 = vpack.c.b16 %v3457, %v3449
    %v6482 = vpack.c.b16 %v3458, %v3450
    %v6483 = vpack.c.b16 %v3459, %v3451
    %v6484 = vpack.c.b16 %v3460, %v3452
    %v6485 = vpack.c.b16 %v3469, %v3461
    %v6486 = vpack.c.b16 %v3470, %v3462
    %v6487 = vpack.c.b16 %v3471, %v3463
    %v6488 = vpack.c.b16 %v3472, %v3464
    %v6489 = vpack.c.b16 %v3473, %v3465
    %v6490 = vpack.c.b16 %v3474, %v3466
    %v6491 = vpack.c.b16 %v3475, %v3467
    %v6492 = vpack.c.b16 %v3476, %v3468
    %v6493 = vpack.c.b16 %v3485, %v3477
    %v6494 = vpack.c.b16 %v3486, %v3478
    %v6495 = vpack.c.b16 %v3487, %v3479
    %v6496 = vpack.c.b16 %v3488, %v3480
    %v6497 = vpack.c.b16 %v3489, %v3481
    %v6498 = vpack.c.b16 %v3490, %v3482
    %v6499 = vpack.c.b16 %v3491, %v3483
    %v6500 = vpack.c.b16 %v3492, %v3484
    %v6501 = vpack.c.b16 %v3501, %v3493
    %v6502 = vpack.c.b16 %v3502, %v3494
    %v6503 = vpack.c.b16 %v3503, %v3495
    %v6504 = vpack.c.b16 %v3504, %v3496
    %v6505 = vpack.c.b16 %v3505, %v3497
    %v6506 = vpack.c.b16 %v3506, %v3498
    %v6507 = vpack.c.b16 %v3507, %v3499
    %v6508 = vpack.c.b16 %v3508, %v3500
    %v6509 = vpack.c.b16 %v3517, %v3509
    %v6510 = vpack.c.b16 %v3518, %v3510
    %v6511 = vpack.c.b16 %v3519, %v3511
    %v6512 = vpack.c.b16 %v3520, %v3512
    %v6513 = vpack.c.b16 %v3521, %v3513
    %v6514 = vpack.c.b16 %v3522, %v3514
    %v6515 = vpack.c.b16 %v3523, %v3515
    %v6516 = vpack.c.b16 %v3524, %v3516
    %v6517 = vpack.c.b16 %v3533, %v3525
    %v6518 = vpack.c.b16 %v3534, %v3526
    %v6519 = vpack.c.b16 %v3535, %v3527
    %v6520 = vpack.c.b16 %v3536, %v3528
    %v6521 = vpack.c.b16 %v3537, %v3529
    %v6522 = vpack.c.b16 %v3538, %v3530
    %v6523 = vpack.c.b16 %v3539, %v3531
    %v6524 = vpack.c.b16 %v3540, %v3532
    %v6525 = vpack.c.b16 %v3549, %v3541
    %v6526 = vpack.c.b16 %v3550, %v3542
    %v6527 = vpack.c.b16 %v3551, %v3543
    %v6528 = vpack.c.b16 %v3552, %v3544
    %v6529 = vpack.c.b16 %v3553, %v3545
    %v6530 = vpack.c.b16 %v3554, %v3546
    %v6531 = vpack.c.b16 %v3555, %v3547
    %v6532 = vpack.c.b16 %v3556, %v3548
    %v6533 = vpack.c.b16 %v3565, %v3557
    %v6534 = vpack.c.b16 %v3566, %v3558
    %v6535 = vpack.c.b16 %v3567, %v3559
    %v6536 = vpack.c.b16 %v3568, %v3560
    %v6537 = vpack.c.b16 %v3569, %v3561
    %v6538 = vpack.c.b16 %v3570, %v3562
    %v6539 = vpack.c.b16 %v3571, %v3563
    %v6540 = vpack.c.b16 %v3572, %v3564
    %v6541 = vpack.c.b16 %v3581, %v3573
    %v6542 = vpack.c.b16 %v3582, %v3574
    %v6543 = vpack.c.b16 %v3583, %v3575
    %v6544 = vpack.c.b16 %v3584, %v3576
    %v6545 = vpack.c.b16 %v3585, %v3577
    %v6546 = vpack.c.b16 %v3586, %v3578
    %v6547 = vpack.c.b16 %v3587, %v3579
    %v6548 = vpack.c.b16 %v3588, %v3580
    %v6549 = vpack.c.b16 %v3597, %v3589
    %v6550 = vpack.c.b16 %v3598, %v3590
    %v6551 = vpack.c.b16 %v3599, %v3591
    %v6552 = vpack.c.b16 %v3600, %v3592
    %v6553 = vpack.c.b16 %v3601, %v3593
    %v6554 = vpack.c.b16 %v3602, %v3594
    %v6555 = vpack.c.b16 %v3603, %v3595
    %v6556 = vpack.c.b16 %v3604, %v3596
    %v6557 = vpack.c.b16 %v3613, %v3605
    %v6558 = vpack.c.b16 %v3614, %v3606
    %v6559 = vpack.c.b16 %v3615, %v3607
    %v6560 = vpack.c.b16 %v3616, %v3608
    %v6561 = vpack.c.b16 %v3617, %v3609
    %v6562 = vpack.c.b16 %v3618, %v3610
    %v6563 = vpack.c.b16 %v3619, %v3611
    %v6564 = vpack.c.b16 %v3620, %v3612
    %v6565 = vpack.c.b16 %v3629, %v3621
    %v6566 = vpack.c.b16 %v3630, %v3622
    %v6567 = vpack.c.b16 %v3631, %v3623
    %v6568 = vpack.c.b16 %v3632, %v3624
    %v6569 = vpack.c.b16 %v3633, %v3625
    %v6570 = vpack.c.b16 %v3634, %v3626
    %v6571 = vpack.c.b16 %v3635, %v3627
    %v6572 = vpack.c.b16 %v3636, %v3628
    %v6573 = vpack.c.b16 %v3645, %v3637
    %v6574 = vpack.c.b16 %v3646, %v3638
    %v6575 = vpack.c.b16 %v3647, %v3639
    %v6576 = vpack.c.b16 %v3648, %v3640
    %v6577 = vpack.c.b16 %v3649, %v3641
    %v6578 = vpack.c.b16 %v3650, %v3642
    %v6579 = vpack.c.b16 %v3651, %v3643
    %v6580 = vpack.c.b16 %v3652, %v3644
    %v6581 = vpack.c.b16 %v3661, %v3653
    %v6582 = vpack.c.b16 %v3662, %v3654
    %v6583 = vpack.c.b16 %v3663, %v3655
    %v6584 = vpack.c.b16 %v3664, %v3656
    %v6585 = vpack.c.b16 %v3665, %v3657
    %v6586 = vpack.c.b16 %v3666, %v3658
    %v6587 = vpack.c.b16 %v3667, %v3659
    %v6588 = vpack.c.b16 %v3668, %v3660
    %v6589 = vpack.c.b16 %v3677, %v3669
    %v6590 = vpack.c.b16 %v3678, %v3670
    %v6591 = vpack.c.b16 %v3679, %v3671
    %v6592 = vpack.c.b16 %v3680, %v3672
    %v6593 = vpack.c.b16 %v3681, %v3673
    %v6594 = vpack.c.b16 %v3682, %v3674
    %v6595 = vpack.c.b16 %v3683, %v3675
    %v6596 = vpack.c.b16 %v3684, %v3676
    %v6597 = vpack.c.b16 %v3693, %v3685
    %v6598 = vpack.c.b16 %v3694, %v3686
    %v6599 = vpack.c.b16 %v3695, %v3687
    %v6600 = vpack.c.b16 %v3696, %v3688
    %v6601 = vpack.c.b16 %v3697, %v3689
    %v6602 = vpack.c.b16 %v3698, %v3690
    %v6603 = vpack.c.b16 %v3699, %v3691
    %v6604 = vpack.c.b16 %v3700, %v3692
    %v6605 = vpack.c.b16 %v3709, %v3701
    %v6606 = vpack.c.b16 %v3710, %v3702
    %v6607 = vpack.c.b16 %v3711, %v3703
    %v6608 = vpack.c.b16 %v3712, %v3704
    %v6609 = vpack.c.b16 %v3713, %v3705
    %v6610 = vpack.c.b16 %v3714, %v3706
    %v6611 = vpack.c.b16 %v3715, %v3707
    %v6612 = vpack.c.b16 %v3716, %v3708
    %v6613 = vpack.c.b16 %v3725, %v3717
    %v6614 = vpack.c.b16 %v3726, %v3718
    %v6615 = vpack.c.b16 %v3727, %v3719
    %v6616 = vpack.c.b16 %v3728, %v3720
    %v6617 = vpack.c.b16 %v3729, %v3721
    %v6618 = vpack.c.b16 %v3730, %v3722
    %v6619 = vpack.c.b16 %v3731, %v3723
    %v6620 = vpack.c.b16 %v3732, %v3724
    %v6621 = vpack.c.b16 %v3741, %v3733
    %v6622 = vpack.c.b16 %v3742, %v3734
    %v6623 = vpack.c.b16 %v3743, %v3735
    %v6624 = vpack.c.b16 %v3744, %v3736
    %v6625 = vpack.c.b16 %v3745, %v3737
    %v6626 = vpack.c.b16 %v3746, %v3738
    %v6627 = vpack.c.b16 %v3747, %v3739
    %v6628 = vpack.c.b16 %v3748, %v3740
    %v6629 = vpack.c.b16 %v3757, %v3749
    %v6630 = vpack.c.b16 %v3758, %v3750
    %v6631 = vpack.c.b16 %v3759, %v3751
    %v6632 = vpack.c.b16 %v3760, %v3752
    %v6633 = vpack.c.b16 %v3761, %v3753
    %v6634 = vpack.c.b16 %v3762, %v3754
    %v6635 = vpack.c.b16 %v3763, %v3755
    %v6636 = vpack.c.b16 %v3764, %v3756
    %v6637 = vpack.c.b16 %v3773, %v3765
    %v6638 = vpack.c.b16 %v3774, %v3766
    %v6639 = vpack.c.b16 %v3775, %v3767
    %v6640 = vpack.c.b16 %v3776, %v3768
    %v6641 = vpack.c.b16 %v3777, %v3769
    %v6642 = vpack.c.b16 %v3778, %v3770
    %v6643 = vpack.c.b16 %v3779, %v3771
    %v6644 = vpack.c.b16 %v3780, %v3772
    %v6645 = vpack.c.b16 %v3789, %v3781
    %v6646 = vpack.c.b16 %v3790, %v3782
    %v6647 = vpack.c.b16 %v3791, %v3783
    %v6648 = vpack.c.b16 %v3792, %v3784
    %v6649 = vpack.c.b16 %v3793, %v3785
    %v6650 = vpack.c.b16 %v3794, %v3786
    %v6651 = vpack.c.b16 %v3795, %v3787
    %v6652 = vpack.c.b16 %v3796, %v3788
    %v6653 = vpack.c.b16 %v3805, %v3797
    %v6654 = vpack.c.b16 %v3806, %v3798
    %v6655 = vpack.c.b16 %v3807, %v3799
    %v6656 = vpack.c.b16 %v3808, %v3800
    %v6657 = vpack.c.b16 %v3809, %v3801
    %v6658 = vpack.c.b16 %v3810, %v3802
    %v6659 = vpack.c.b16 %v3811, %v3803
    %v6660 = vpack.c.b16 %v3812, %v3804
    %v6661 = vpack.c.b16 %v3821, %v3813
    %v6662 = vpack.c.b16 %v3822, %v3814
    %v6663 = vpack.c.b16 %v3823, %v3815
    %v6664 = vpack.c.b16 %v3824, %v3816
    %v6665 = vpack.c.b16 %v3825, %v3817
    %v6666 = vpack.c.b16 %v3826, %v3818
    %v6667 = vpack.c.b16 %v3827, %v3819
    %v6668 = vpack.c.b16 %v3828, %v3820
    %v6669 = vpack.c.b16 %v3837, %v3829
    %v6670 = vpack.c.b16 %v3838, %v3830
    %v6671 = vpack.c.b16 %v3839, %v3831
    %v6672 = vpack.c.b16 %v3840, %v3832
    %v6673 = vpack.c.b16 %v3841, %v3833
    %v6674 = vpack.c.b16 %v3842, %v3834
    %v6675 = vpack.c.b16 %v3843, %v3835
    %v6676 = vpack.c.b16 %v3844, %v3836
    %v6677 = vpack.c.b16 %v3853, %v3845
    %v6678 = vpack.c.b16 %v3854, %v3846
    %v6679 = vpack.c.b16 %v3855, %v3847
    %v6680 = vpack.c.b16 %v3856, %v3848
    %v6681 = vpack.c.b16 %v3857, %v3849
    %v6682 = vpack.c.b16 %v3858, %v3850
    %v6683 = vpack.c.b16 %v3859, %v3851
    %v6684 = vpack.c.b16 %v3860, %v3852
    %v6685 = vpack.c.b16 %v3869, %v3861
    %v6686 = vpack.c.b16 %v3870, %v3862
    %v6687 = vpack.c.b16 %v3871, %v3863
    %v6688 = vpack.c.b16 %v3872, %v3864
    %v6689 = vpack.c.b16 %v3873, %v3865
    %v6690 = vpack.c.b16 %v3874, %v3866
    %v6691 = vpack.c.b16 %v3875, %v3867
    %v6692 = vpack.c.b16 %v3876, %v3868
    %v6693 = vpack.c.b16 %v3885, %v3877
    %v6694 = vpack.c.b16 %v3886, %v3878
    %v6695 = vpack.c.b16 %v3887, %v3879
    %v6696 = vpack.c.b16 %v3888, %v3880
    %v6697 = vpack.c.b16 %v3889, %v3881
    %v6698 = vpack.c.b16 %v3890, %v3882
    %v6699 = vpack.c.b16 %v3891, %v3883
    %v6700 = vpack.c.b16 %v3892, %v3884
    %v6701 = vpack.c.b16 %v3901, %v3893
    %v6702 = vpack.c.b16 %v3902, %v3894
    %v6703 = vpack.c.b16 %v3903, %v3895
    %v6704 = vpack.c.b16 %v3904, %v3896
    %v6705 = vpack.c.b16 %v3905, %v3897
    %v6706 = vpack.c.b16 %v3906, %v3898
    %v6707 = vpack.c.b16 %v3907, %v3899
    %v6708 = vpack.c.b16 %v3908, %v3900
    %v6709 = vpack.c.b16 %v3917, %v3909
    %v6710 = vpack.c.b16 %v3918, %v3910
    %v6711 = vpack.c.b16 %v3919, %v3911
    %v6712 = vpack.c.b16 %v3920, %v3912
    %v6713 = vpack.c.b16 %v3921, %v3913
    %v6714 = vpack.c.b16 %v3922, %v3914
    %v6715 = vpack.c.b16 %v3923, %v3915
    %v6716 = vpack.c.b16 %v3924, %v3916
    %v6717 = vpack.c.b16 %v3933, %v3925
    %v6718 = vpack.c.b16 %v3934, %v3926
    %v6719 = vpack.c.b16 %v3935, %v3927
    %v6720 = vpack.c.b16 %v3936, %v3928
    %v6721 = vpack.c.b16 %v3937, %v3929
    %v6722 = vpack.c.b16 %v3938, %v3930
    %v6723 = vpack.c.b16 %v3939, %v3931
    %v6724 = vpack.c.b16 %v3940, %v3932
    %v6725 = vpack.c.b16 %v3949, %v3941
    %v6726 = vpack.c.b16 %v3950, %v3942
    %v6727 = vpack.c.b16 %v3951, %v3943
    %v6728 = vpack.c.b16 %v3952, %v3944
    %v6729 = vpack.c.b16 %v3953, %v3945
    %v6730 = vpack.c.b16 %v3954, %v3946
    %v6731 = vpack.c.b16 %v3955, %v3947
    %v6732 = vpack.c.b16 %v3956, %v3948
    %v6733 = vpack.c.b16 %v3965, %v3957
    %v6734 = vpack.c.b16 %v3966, %v3958
    %v6735 = vpack.c.b16 %v3967, %v3959
    %v6736 = vpack.c.b16 %v3968, %v3960
    %v6737 = vpack.c.b16 %v3969, %v3961
    %v6738 = vpack.c.b16 %v3970, %v3962
    %v6739 = vpack.c.b16 %v3971, %v3963
    %v6740 = vpack.c.b16 %v3972, %v3964
    %v6741 = vpack.c.b16 %v3981, %v3973
    %v6742 = vpack.c.b16 %v3982, %v3974
    %v6743 = vpack.c.b16 %v3983, %v3975
    %v6744 = vpack.c.b16 %v3984, %v3976
    %v6745 = vpack.c.b16 %v3985, %v3977
    %v6746 = vpack.c.b16 %v3986, %v3978
    %v6747 = vpack.c.b16 %v3987, %v3979
    %v6748 = vpack.c.b16 %v3988, %v3980
    %v6749 = vpack.c.b16 %v3997, %v3989
    %v6750 = vpack.c.b16 %v3998, %v3990
    %v6751 = vpack.c.b16 %v3999, %v3991
    %v6752 = vpack.c.b16 %v4000, %v3992
    %v6753 = vpack.c.b16 %v4001, %v3993
    %v6754 = vpack.c.b16 %v4002, %v3994
    %v6755 = vpack.c.b16 %v4003, %v3995
    %v6756 = vpack.c.b16 %v4004, %v3996
    %v6757 = vpack.c.b16 %v4013, %v4005
    %v6758 = vpack.c.b16 %v4014, %v4006
    %v6759 = vpack.c.b16 %v4015, %v4007
    %v6760 = vpack.c.b16 %v4016, %v4008
    %v6761 = vpack.c.b16 %v4017, %v4009
    %v6762 = vpack.c.b16 %v4018, %v4010
    %v6763 = vpack.c.b16 %v4019, %v4011
    %v6764 = vpack.c.b16 %v4020, %v4012
    %v6765 = vpack.c.b16 %v4029, %v4021
    %v6766 = vpack.c.b16 %v4030, %v4022
    %v6767 = vpack.c.b16 %v4031, %v4023
    %v6768 = vpack.c.b16 %v4032, %v4024
    %v6769 = vpack.c.b16 %v4033, %v4025
    %v6770 = vpack.c.b16 %v4034, %v4026
    %v6771 = vpack.c.b16 %v4035, %v4027
    %v6772 = vpack.c.b16 %v4036, %v4028
    %v6773 = vpack.c.b16 %v4045, %v4037
    %v6774 = vpack.c.b16 %v4046, %v4038
    %v6775 = vpack.c.b16 %v4047, %v4039
    %v6776 = vpack.c.b16 %v4048, %v4040
    %v6777 = vpack.c.b16 %v4049, %v4041
    %v6778 = vpack.c.b16 %v4050, %v4042
    %v6779 = vpack.c.b16 %v4051, %v4043
    %v6780 = vpack.c.b16 %v4052, %v4044
    %v6781 = vpack.c.b16 %v4061, %v4053
    %v6782 = vpack.c.b16 %v4062, %v4054
    %v6783 = vpack.c.b16 %v4063, %v4055
    %v6784 = vpack.c.b16 %v4064, %v4056
    %v6785 = vpack.c.b16 %v4065, %v4057
    %v6786 = vpack.c.b16 %v4066, %v4058
    %v6787 = vpack.c.b16 %v4067, %v4059
    %v6788 = vpack.c.b16 %v4068, %v4060
    %v6789 = vpack.c.b16 %v4077, %v4069
    %v6790 = vpack.c.b16 %v4078, %v4070
    %v6791 = vpack.c.b16 %v4079, %v4071
    %v6792 = vpack.c.b16 %v4080, %v4072
    %v6793 = vpack.c.b16 %v4081, %v4073
    %v6794 = vpack.c.b16 %v4082, %v4074
    %v6795 = vpack.c.b16 %v4083, %v4075
    %v6796 = vpack.c.b16 %v4084, %v4076
    %v6797 = vpack.c.b16 %v4093, %v4085
    %v6798 = vpack.c.b16 %v4094, %v4086
    %v6799 = vpack.c.b16 %v4095, %v4087
    %v6800 = vpack.c.b16 %v4096, %v4088
    %v6801 = vpack.c.b16 %v4097, %v4089
    %v6802 = vpack.c.b16 %v4098, %v4090
    %v6803 = vpack.c.b16 %v4099, %v4091
    %v6804 = vpack.c.b16 %v4100, %v4092
    %v6805 = vpack.c.b16 %v4109, %v4101
    %v6806 = vpack.c.b16 %v4110, %v4102
    %v6807 = vpack.c.b16 %v4111, %v4103
    %v6808 = vpack.c.b16 %v4112, %v4104
    %v6809 = vpack.c.b16 %v4113, %v4105
    %v6810 = vpack.c.b16 %v4114, %v4106
    %v6811 = vpack.c.b16 %v4115, %v4107
    %v6812 = vpack.c.b16 %v4116, %v4108
    %v6813 = vpack.c.b16 %v4125, %v4117
    %v6814 = vpack.c.b16 %v4126, %v4118
    %v6815 = vpack.c.b16 %v4127, %v4119
    %v6816 = vpack.c.b16 %v4128, %v4120
    %v6817 = vpack.c.b16 %v4129, %v4121
    %v6818 = vpack.c.b16 %v4130, %v4122
    %v6819 = vpack.c.b16 %v4131, %v4123
    %v6820 = vpack.c.b16 %v4132, %v4124
    %v6821 = vpack.c.b16 %v4141, %v4133
    %v6822 = vpack.c.b16 %v4142, %v4134
    %v6823 = vpack.c.b16 %v4143, %v4135
    %v6824 = vpack.c.b16 %v4144, %v4136
    %v6825 = vpack.c.b16 %v4145, %v4137
    %v6826 = vpack.c.b16 %v4146, %v4138
    %v6827 = vpack.c.b16 %v4147, %v4139
    %v6828 = vpack.c.b16 %v4148, %v4140
    %v6829 = vpack.c.b16 %v4157, %v4149
    %v6830 = vpack.c.b16 %v4158, %v4150
    %v6831 = vpack.c.b16 %v4159, %v4151
    %v6832 = vpack.c.b16 %v4160, %v4152
    %v6833 = vpack.c.b16 %v4161, %v4153
    %v6834 = vpack.c.b16 %v4162, %v4154
    %v6835 = vpack.c.b16 %v4163, %v4155
    %v6836 = vpack.c.b16 %v4164, %v4156
    %v6837 = vpack.c.b16 %v4173, %v4165
    %v6838 = vpack.c.b16 %v4174, %v4166
    %v6839 = vpack.c.b16 %v4175, %v4167
    %v6840 = vpack.c.b16 %v4176, %v4168
    %v6841 = vpack.c.b16 %v4177, %v4169
    %v6842 = vpack.c.b16 %v4178, %v4170
    %v6843 = vpack.c.b16 %v4179, %v4171
    %v6844 = vpack.c.b16 %v4180, %v4172
    %v6845 = vpack.c.b16 %v4189, %v4181
    %v6846 = vpack.c.b16 %v4190, %v4182
    %v6847 = vpack.c.b16 %v4191, %v4183
    %v6848 = vpack.c.b16 %v4192, %v4184
    %v6849 = vpack.c.b16 %v4193, %v4185
    %v6850 = vpack.c.b16 %v4194, %v4186
    %v6851 = vpack.c.b16 %v4195, %v4187
    %v6852 = vpack.c.b16 %v4196, %v4188
    %v6853 = vpack.c.b16 %v4205, %v4197
    %v6854 = vpack.c.b16 %v4206, %v4198
    %v6855 = vpack.c.b16 %v4207, %v4199
    %v6856 = vpack.c.b16 %v4208, %v4200
    %v6857 = vpack.c.b16 %v4209, %v4201
    %v6858 = vpack.c.b16 %v4210, %v4202
    %v6859 = vpack.c.b16 %v4211, %v4203
    %v6860 = vpack.c.b16 %v4212, %v4204
    %v6861 = vpack.c.b16 %v4221, %v4213
    %v6862 = vpack.c.b16 %v4222, %v4214
    %v6863 = vpack.c.b16 %v4223, %v4215
    %v6864 = vpack.c.b16 %v4224, %v4216
    %v6865 = vpack.c.b16 %v4225, %v4217
    %v6866 = vpack.c.b16 %v4226, %v4218
    %v6867 = vpack.c.b16 %v4227, %v4219
    %v6868 = vpack.c.b16 %v4228, %v4220
    %v6869 = vpack.c.b16 %v4237, %v4229
    %v6870 = vpack.c.b16 %v4238, %v4230
    %v6871 = vpack.c.b16 %v4239, %v4231
    %v6872 = vpack.c.b16 %v4240, %v4232
    %v6873 = vpack.c.b16 %v4241, %v4233
    %v6874 = vpack.c.b16 %v4242, %v4234
    %v6875 = vpack.c.b16 %v4243, %v4235
    %v6876 = vpack.c.b16 %v4244, %v4236
    %v6877 = vpack.c.b16 %v4253, %v4245
    %v6878 = vpack.c.b16 %v4254, %v4246
    %v6879 = vpack.c.b16 %v4255, %v4247
    %v6880 = vpack.c.b16 %v4256, %v4248
    %v6881 = vpack.c.b16 %v4257, %v4249
    %v6882 = vpack.c.b16 %v4258, %v4250
    %v6883 = vpack.c.b16 %v4259, %v4251
    %v6884 = vpack.c.b16 %v4260, %v4252
    %v6885 = vpack.c.b16 %v4269, %v4261
    %v6886 = vpack.c.b16 %v4270, %v4262
    %v6887 = vpack.c.b16 %v4271, %v4263
    %v6888 = vpack.c.b16 %v4272, %v4264
    %v6889 = vpack.c.b16 %v4273, %v4265
    %v6890 = vpack.c.b16 %v4274, %v4266
    %v6891 = vpack.c.b16 %v4275, %v4267
    %v6892 = vpack.c.b16 %v4276, %v4268
    %v6893 = vpack.c.b16 %v4285, %v4277
    %v6894 = vpack.c.b16 %v4286, %v4278
    %v6895 = vpack.c.b16 %v4287, %v4279
    %v6896 = vpack.c.b16 %v4288, %v4280
    %v6897 = vpack.c.b16 %v4289, %v4281
    %v6898 = vpack.c.b16 %v4290, %v4282
    %v6899 = vpack.c.b16 %v4291, %v4283
    %v6900 = vpack.c.b16 %v4292, %v4284
    %v6901 = vpack.c.b16 %v4301, %v4293
    %v6902 = vpack.c.b16 %v4302, %v4294
    %v6903 = vpack.c.b16 %v4303, %v4295
    %v6904 = vpack.c.b16 %v4304, %v4296
    %v6905 = vpack.c.b16 %v4305, %v4297
    %v6906 = vpack.c.b16 %v4306, %v4298
    %v6907 = vpack.c.b16 %v4307, %v4299
    %v6908 = vpack.c.b16 %v4308, %v4300
    %v6909 = vpack.c.b16 %v4317, %v4309
    %v6910 = vpack.c.b16 %v4318, %v4310
    %v6911 = vpack.c.b16 %v4319, %v4311
    %v6912 = vpack.c.b16 %v4320, %v4312
    %v6913 = vpack.c.b16 %v4321, %v4313
    %v6914 = vpack.c.b16 %v4322, %v4314
    %v6915 = vpack.c.b16 %v4323, %v4315
    %v6916 = vpack.c.b16 %v4324, %v4316
    %v6917 = vpack.c.b16 %v4333, %v4325
    %v6918 = vpack.c.b16 %v4334, %v4326
    %v6919 = vpack.c.b16 %v4335, %v4327
    %v6920 = vpack.c.b16 %v4336, %v4328
    %v6921 = vpack.c.b16 %v4337, %v4329
    %v6922 = vpack.c.b16 %v4338, %v4330
    %v6923 = vpack.c.b16 %v4339, %v4331
    %v6924 = vpack.c.b16 %v4340, %v4332
    %v6925 = vpack.c.b16 %v4349, %v4341
    %v6926 = vpack.c.b16 %v4350, %v4342
    %v6927 = vpack.c.b16 %v4351, %v4343
    %v6928 = vpack.c.b16 %v4352, %v4344
    %v6929 = vpack.c.b16 %v4353, %v4345
    %v6930 = vpack.c.b16 %v4354, %v4346
    %v6931 = vpack.c.b16 %v4355, %v4347
    %v6932 = vpack.c.b16 %v4356, %v4348
    %v6933 = vpack.c.b16 %v4365, %v4357
    %v6934 = vpack.c.b16 %v4366, %v4358
    %v6935 = vpack.c.b16 %v4367, %v4359
    %v6936 = vpack.c.b16 %v4368, %v4360
    %v6937 = vpack.c.b16 %v4369, %v4361
    %v6938 = vpack.c.b16 %v4370, %v4362
    %v6939 = vpack.c.b16 %v4371, %v4363
    %v6940 = vpack.c.b16 %v4372, %v4364
    %v6941 = vpack.c.b16 %v4381, %v4373
    %v6942 = vpack.c.b16 %v4382, %v4374
    %v6943 = vpack.c.b16 %v4383, %v4375
    %v6944 = vpack.c.b16 %v4384, %v4376
    %v6945 = vpack.c.b16 %v4385, %v4377
    %v6946 = vpack.c.b16 %v4386, %v4378
    %v6947 = vpack.c.b16 %v4387, %v4379
    %v6948 = vpack.c.b16 %v4388, %v4380
    %v6949 = vpack.c.b16 %v4397, %v4389
    %v6950 = vpack.c.b16 %v4398, %v4390
    %v6951 = vpack.c.b16 %v4399, %v4391
    %v6952 = vpack.c.b16 %v4400, %v4392
    %v6953 = vpack.c.b16 %v4401, %v4393
    %v6954 = vpack.c.b16 %v4402, %v4394
    %v6955 = vpack.c.b16 %v4403, %v4395
    %v6956 = vpack.c.b16 %v4404, %v4396
    %v6957 = vpack.c.b16 %v4413, %v4405
    %v6958 = vpack.c.b16 %v4414, %v4406
    %v6959 = vpack.c.b16 %v4415, %v4407
    %v6960 = vpack.c.b16 %v4416, %v4408
    %v6961 = vpack.c.b16 %v4417, %v4409
    %v6962 = vpack.c.b16 %v4418, %v4410
    %v6963 = vpack.c.b16 %v4419, %v4411
    %v6964 = vpack.c.b16 %v4420, %v4412
    %v6965 = vpack.c.b16 %v4429, %v4421
    %v6966 = vpack.c.b16 %v4430, %v4422
    %v6967 = vpack.c.b16 %v4431, %v4423
    %v6968 = vpack.c.b16 %v4432, %v4424
    %v6969 = vpack.c.b16 %v4433, %v4425
    %v6970 = vpack.c.b16 %v4434, %v4426
    %v6971 = vpack.c.b16 %v4435, %v4427
    %v6972 = vpack.c.b16 %v4436, %v4428
    %v6973 = vpack.c.b16 %v4445, %v4437
    %v6974 = vpack.c.b16 %v4446, %v4438
    %v6975 = vpack.c.b16 %v4447, %v4439
    %v6976 = vpack.c.b16 %v4448, %v4440
    %v6977 = vpack.c.b16 %v4449, %v4441
    %v6978 = vpack.c.b16 %v4450, %v4442
    %v6979 = vpack.c.b16 %v4451, %v4443
    %v6980 = vpack.c.b16 %v4452, %v4444
    %v6981 = vpack.c.b16 %v4461, %v4453
    %v6982 = vpack.c.b16 %v4462, %v4454
    %v6983 = vpack.c.b16 %v4463, %v4455
    %v6984 = vpack.c.b16 %v4464, %v4456
    %v6985 = vpack.c.b16 %v4465, %v4457
    %v6986 = vpack.c.b16 %v4466, %v4458
    %v6987 = vpack.c.b16 %v4467, %v4459
    %v6988 = vpack.c.b16 %v4468, %v4460
    %v6989 = vpack.c.b16 %v4477, %v4469
    %v6990 = vpack.c.b16 %v4478, %v4470
    %v6991 = vpack.c.b16 %v4479, %v4471
    %v6992 = vpack.c.b16 %v4480, %v4472
    %v6993 = vpack.c.b16 %v4481, %v4473
    %v6994 = vpack.c.b16 %v4482, %v4474
    %v6995 = vpack.c.b16 %v4483, %v4475
    %v6996 = vpack.c.b16 %v4484, %v4476
    %v6997 = vpack.c.b16 %v4493, %v4485
    %v6998 = vpack.c.b16 %v4494, %v4486
    %v6999 = vpack.c.b16 %v4495, %v4487
    %v7000 = vpack.c.b16 %v4496, %v4488
    %v7001 = vpack.c.b16 %v4497, %v4489
    %v7002 = vpack.c.b16 %v4498, %v4490
    %v7003 = vpack.c.b16 %v4499, %v4491
    %v7004 = vpack.c.b16 %v4500, %v4492
    %v7005 = vpack.c.b16 %v4509, %v4501
    %v7006 = vpack.c.b16 %v4510, %v4502
    %v7007 = vpack.c.b16 %v4511, %v4503
    %v7008 = vpack.c.b16 %v4512, %v4504
    %v7009 = vpack.c.b16 %v4513, %v4505
    %v7010 = vpack.c.b16 %v4514, %v4506
    %v7011 = vpack.c.b16 %v4515, %v4507
    %v7012 = vpack.c.b16 %v4516, %v4508
    %v7013 = vpack.c.b16 %v4525, %v4517
    %v7014 = vpack.c.b16 %v4526, %v4518
    %v7015 = vpack.c.b16 %v4527, %v4519
    %v7016 = vpack.c.b16 %v4528, %v4520
    %v7017 = vpack.c.b16 %v4529, %v4521
    %v7018 = vpack.c.b16 %v4530, %v4522
    %v7019 = vpack.c.b16 %v4531, %v4523
    %v7020 = vpack.c.b16 %v4532, %v4524
    %v7021 = vpack.c.b16 %v4541, %v4533
    %v7022 = vpack.c.b16 %v4542, %v4534
    %v7023 = vpack.c.b16 %v4543, %v4535
    %v7024 = vpack.c.b16 %v4544, %v4536
    %v7025 = vpack.c.b16 %v4545, %v4537
    %v7026 = vpack.c.b16 %v4546, %v4538
    %v7027 = vpack.c.b16 %v4547, %v4539
    %v7028 = vpack.c.b16 %v4548, %v4540
    %v7029 = vpack.c.b16 %v4557, %v4549
    %v7030 = vpack.c.b16 %v4558, %v4550
    %v7031 = vpack.c.b16 %v4559, %v4551
    %v7032 = vpack.c.b16 %v4560, %v4552
    %v7033 = vpack.c.b16 %v4561, %v4553
    %v7034 = vpack.c.b16 %v4562, %v4554
    %v7035 = vpack.c.b16 %v4563, %v4555
    %v7036 = vpack.c.b16 %v4564, %v4556
    %v7037 = vpack.c.b16 %v4573, %v4565
    %v7038 = vpack.c.b16 %v4574, %v4566
    %v7039 = vpack.c.b16 %v4575, %v4567
    %v7040 = vpack.c.b16 %v4576, %v4568
    %v7041 = vpack.c.b16 %v4577, %v4569
    %v7042 = vpack.c.b16 %v4578, %v4570
    %v7043 = vpack.c.b16 %v4579, %v4571
    %v7044 = vpack.c.b16 %v4580, %v4572
    %v7045 = vpack.c.b16 %v4589, %v4581
    %v7046 = vpack.c.b16 %v4590, %v4582
    %v7047 = vpack.c.b16 %v4591, %v4583
    %v7048 = vpack.c.b16 %v4592, %v4584
    %v7049 = vpack.c.b16 %v4593, %v4585
    %v7050 = vpack.c.b16 %v4594, %v4586
    %v7051 = vpack.c.b16 %v4595, %v4587
    %v7052 = vpack.c.b16 %v4596, %v4588
    %v7053 = vpack.c.b16 %v4605, %v4597
    %v7054 = vpack.c.b16 %v4606, %v4598
    %v7055 = vpack.c.b16 %v4607, %v4599
    %v7056 = vpack.c.b16 %v4608, %v4600
    %v7057 = vpack.c.b16 %v4609, %v4601
    %v7058 = vpack.c.b16 %v4610, %v4602
    %v7059 = vpack.c.b16 %v4611, %v4603
    %v7060 = vpack.c.b16 %v4612, %v4604
    %v7061 = vpack.c.b16 %v4621, %v4613
    %v7062 = vpack.c.b16 %v4622, %v4614
    %v7063 = vpack.c.b16 %v4623, %v4615
    %v7064 = vpack.c.b16 %v4624, %v4616
    %v7065 = vpack.c.b16 %v4625, %v4617
    %v7066 = vpack.c.b16 %v4626, %v4618
    %v7067 = vpack.c.b16 %v4627, %v4619
    %v7068 = vpack.c.b16 %v4628, %v4620
    %v7069 = vpack.c.b16 %v4637, %v4629
    %v7070 = vpack.c.b16 %v4638, %v4630
    %v7071 = vpack.c.b16 %v4639, %v4631
    %v7072 = vpack.c.b16 %v4640, %v4632
    %v7073 = vpack.c.b16 %v4641, %v4633
    %v7074 = vpack.c.b16 %v4642, %v4634
    %v7075 = vpack.c.b16 %v4643, %v4635
    %v7076 = vpack.c.b16 %v4644, %v4636
    %v7077 = vpack.c.b16 %v4653, %v4645
    %v7078 = vpack.c.b16 %v4654, %v4646
    %v7079 = vpack.c.b16 %v4655, %v4647
    %v7080 = vpack.c.b16 %v4656, %v4648
    %v7081 = vpack.c.b16 %v4657, %v4649
    %v7082 = vpack.c.b16 %v4658, %v4650
    %v7083 = vpack.c.b16 %v4659, %v4651
    %v7084 = vpack.c.b16 %v4660, %v4652
    %v7085 = vpack.c.b16 %v4669, %v4661
    %v7086 = vpack.c.b16 %v4670, %v4662
    %v7087 = vpack.c.b16 %v4671, %v4663
    %v7088 = vpack.c.b16 %v4672, %v4664
    %v7089 = vpack.c.b16 %v4673, %v4665
    %v7090 = vpack.c.b16 %v4674, %v4666
    %v7091 = vpack.c.b16 %v4675, %v4667
    %v7092 = vpack.c.b16 %v4676, %v4668
    %v7093 = vpack.c.b16 %v4685, %v4677
    %v7094 = vpack.c.b16 %v4686, %v4678
    %v7095 = vpack.c.b16 %v4687, %v4679
    %v7096 = vpack.c.b16 %v4688, %v4680
    %v7097 = vpack.c.b16 %v4689, %v4681
    %v7098 = vpack.c.b16 %v4690, %v4682
    %v7099 = vpack.c.b16 %v4691, %v4683
    %v7100 = vpack.c.b16 %v4692, %v4684
    %v7101 = vpack.c.b16 %v4701, %v4693
    %v7102 = vpack.c.b16 %v4702, %v4694
    %v7103 = vpack.c.b16 %v4703, %v4695
    %v7104 = vpack.c.b16 %v4704, %v4696
    %v7105 = vpack.c.b16 %v4705, %v4697
    %v7106 = vpack.c.b16 %v4706, %v4698
    %v7107 = vpack.c.b16 %v4707, %v4699
    %v7108 = vpack.c.b16 %v4708, %v4700
    %v7109 = vpack.c.b16 %v4717, %v4709
    %v7110 = vpack.c.b16 %v4718, %v4710
    %v7111 = vpack.c.b16 %v4719, %v4711
    %v7112 = vpack.c.b16 %v4720, %v4712
    %v7113 = vpack.c.b16 %v4721, %v4713
    %v7114 = vpack.c.b16 %v4722, %v4714
    %v7115 = vpack.c.b16 %v4723, %v4715
    %v7116 = vpack.c.b16 %v4724, %v4716
    %v7117 = vpack.c.b16 %v4733, %v4725
    %v7118 = vpack.c.b16 %v4734, %v4726
    %v7119 = vpack.c.b16 %v4735, %v4727
    %v7120 = vpack.c.b16 %v4736, %v4728
    %v7121 = vpack.c.b16 %v4737, %v4729
    %v7122 = vpack.c.b16 %v4738, %v4730
    %v7123 = vpack.c.b16 %v4739, %v4731
    %v7124 = vpack.c.b16 %v4740, %v4732
    %v7125 = vpack.c.b16 %v4749, %v4741
    %v7126 = vpack.c.b16 %v4750, %v4742
    %v7127 = vpack.c.b16 %v4751, %v4743
    %v7128 = vpack.c.b16 %v4752, %v4744
    %v7129 = vpack.c.b16 %v4753, %v4745
    %v7130 = vpack.c.b16 %v4754, %v4746
    %v7131 = vpack.c.b16 %v4755, %v4747
    %v7132 = vpack.c.b16 %v4756, %v4748
    %v7133 = vpack.c.b16 %v4765, %v4757
    %v7134 = vpack.c.b16 %v4766, %v4758
    %v7135 = vpack.c.b16 %v4767, %v4759
    %v7136 = vpack.c.b16 %v4768, %v4760
    %v7137 = vpack.c.b16 %v4769, %v4761
    %v7138 = vpack.c.b16 %v4770, %v4762
    %v7139 = vpack.c.b16 %v4771, %v4763
    %v7140 = vpack.c.b16 %v4772, %v4764
    %v7141 = vpack.c.b16 %v4781, %v4773
    %v7142 = vpack.c.b16 %v4782, %v4774
    %v7143 = vpack.c.b16 %v4783, %v4775
    %v7144 = vpack.c.b16 %v4784, %v4776
    %v7145 = vpack.c.b16 %v4785, %v4777
    %v7146 = vpack.c.b16 %v4786, %v4778
    %v7147 = vpack.c.b16 %v4787, %v4779
    %v7148 = vpack.c.b16 %v4788, %v4780
    %v7149 = vpack.c.b16 %v4797, %v4789
    %v7150 = vpack.c.b16 %v4798, %v4790
    %v7151 = vpack.c.b16 %v4799, %v4791
    %v7152 = vpack.c.b16 %v4800, %v4792
    %v7153 = vpack.c.b16 %v4801, %v4793
    %v7154 = vpack.c.b16 %v4802, %v4794
    %v7155 = vpack.c.b16 %v4803, %v4795
    %v7156 = vpack.c.b16 %v4804, %v4796
    %v7157 = vpack.c.b16 %v4813, %v4805
    %v7158 = vpack.c.b16 %v4814, %v4806
    %v7159 = vpack.c.b16 %v4815, %v4807
    %v7160 = vpack.c.b16 %v4816, %v4808
    %v7161 = vpack.c.b16 %v4817, %v4809
    %v7162 = vpack.c.b16 %v4818, %v4810
    %v7163 = vpack.c.b16 %v4819, %v4811
    %v7164 = vpack.c.b16 %v4820, %v4812
    %v7165 = vpack.c.b16 %v4829, %v4821
    %v7166 = vpack.c.b16 %v4830, %v4822
    %v7167 = vpack.c.b16 %v4831, %v4823
    %v7168 = vpack.c.b16 %v4832, %v4824
    %v7169 = vpack.c.b16 %v4833, %v4825
    %v7170 = vpack.c.b16 %v4834, %v4826
    %v7171 = vpack.c.b16 %v4835, %v4827
    %v7172 = vpack.c.b16 %v4836, %v4828
    %v7173 = vpack.c.b16 %v4845, %v4837
    %v7174 = vpack.c.b16 %v4846, %v4838
    %v7175 = vpack.c.b16 %v4847, %v4839
    %v7176 = vpack.c.b16 %v4848, %v4840
    %v7177 = vpack.c.b16 %v4849, %v4841
    %v7178 = vpack.c.b16 %v4850, %v4842
    %v7179 = vpack.c.b16 %v4851, %v4843
    %v7180 = vpack.c.b16 %v4852, %v4844
    %v7181 = vpack.c.b16 %v4861, %v4853
    %v7182 = vpack.c.b16 %v4862, %v4854
    %v7183 = vpack.c.b16 %v4863, %v4855
    %v7184 = vpack.c.b16 %v4864, %v4856
    %v7185 = vpack.c.b16 %v4865, %v4857
    %v7186 = vpack.c.b16 %v4866, %v4858
    %v7187 = vpack.c.b16 %v4867, %v4859
    %v7188 = vpack.c.b16 %v4868, %v4860
    %v7189 = vpack.c.b16 %v4877, %v4869
    %v7190 = vpack.c.b16 %v4878, %v4870
    %v7191 = vpack.c.b16 %v4879, %v4871
    %v7192 = vpack.c.b16 %v4880, %v4872
    %v7193 = vpack.c.b16 %v4881, %v4873
    %v7194 = vpack.c.b16 %v4882, %v4874
    %v7195 = vpack.c.b16 %v4883, %v4875
    %v7196 = vpack.c.b16 %v4884, %v4876
    %v7197 = vpack.c.b16 %v4893, %v4885
    %v7198 = vpack.c.b16 %v4894, %v4886
    %v7199 = vpack.c.b16 %v4895, %v4887
    %v7200 = vpack.c.b16 %v4896, %v4888
    %v7201 = vpack.c.b16 %v4897, %v4889
    %v7202 = vpack.c.b16 %v4898, %v4890
    %v7203 = vpack.c.b16 %v4899, %v4891
    %v7204 = vpack.c.b16 %v4900, %v4892
    %v7205 = vpack.c.b16 %v4909, %v4901
    %v7206 = vpack.c.b16 %v4910, %v4902
    %v7207 = vpack.c.b16 %v4911, %v4903
    %v7208 = vpack.c.b16 %v4912, %v4904
    %v7209 = vpack.c.b16 %v4913, %v4905
    %v7210 = vpack.c.b16 %v4914, %v4906
    %v7211 = vpack.c.b16 %v4915, %v4907
    %v7212 = vpack.c.b16 %v4916, %v4908
    %v7213 = vpack.c.b16 %v4925, %v4917
    %v7214 = vpack.c.b16 %v4926, %v4918
    %v7215 = vpack.c.b16 %v4927, %v4919
    %v7216 = vpack.c.b16 %v4928, %v4920
    %v7217 = vpack.c.b16 %v4929, %v4921
    %v7218 = vpack.c.b16 %v4930, %v4922
    %v7219 = vpack.c.b16 %v4931, %v4923
    %v7220 = vpack.c.b16 %v4932, %v4924
    %v7221 = vpack.c.b16 %v4941, %v4933
    %v7222 = vpack.c.b16 %v4942, %v4934
    %v7223 = vpack.c.b16 %v4943, %v4935
    %v7224 = vpack.c.b16 %v4944, %v4936
    %v7225 = vpack.c.b16 %v4945, %v4937
    %v7226 = vpack.c.b16 %v4946, %v4938
    %v7227 = vpack.c.b16 %v4947, %v4939
    %v7228 = vpack.c.b16 %v4948, %v4940
    %v7229 = vpack.c.b16 %v4957, %v4949
    %v7230 = vpack.c.b16 %v4958, %v4950
    %v7231 = vpack.c.b16 %v4959, %v4951
    %v7232 = vpack.c.b16 %v4960, %v4952
    %v7233 = vpack.c.b16 %v4961, %v4953
    %v7234 = vpack.c.b16 %v4962, %v4954
    %v7235 = vpack.c.b16 %v4963, %v4955
    %v7236 = vpack.c.b16 %v4964, %v4956
    %v7237 = vpack.c.b16 %v4973, %v4965
    %v7238 = vpack.c.b16 %v4974, %v4966
    %v7239 = vpack.c.b16 %v4975, %v4967
    %v7240 = vpack.c.b16 %v4976, %v4968
    %v7241 = vpack.c.b16 %v4977, %v4969
    %v7242 = vpack.c.b16 %v4978, %v4970
    %v7243 = vpack.c.b16 %v4979, %v4971
    %v7244 = vpack.c.b16 %v4980, %v4972
    %v7245 = vpack.c.b16 %v4989, %v4981
    %v7246 = vpack.c.b16 %v4990, %v4982
    %v7247 = vpack.c.b16 %v4991, %v4983
    %v7248 = vpack.c.b16 %v4992, %v4984
    %v7249 = vpack.c.b16 %v4993, %v4985
    %v7250 = vpack.c.b16 %v4994, %v4986
    %v7251 = vpack.c.b16 %v4995, %v4987
    %v7252 = vpack.c.b16 %v4996, %v4988
    %v7253 = vpack.c.b16 %v5005, %v4997
    %v7254 = vpack.c.b16 %v5006, %v4998
    %v7255 = vpack.c.b16 %v5007, %v4999
    %v7256 = vpack.c.b16 %v5008, %v5000
    %v7257 = vpack.c.b16 %v5009, %v5001
    %v7258 = vpack.c.b16 %v5010, %v5002
    %v7259 = vpack.c.b16 %v5011, %v5003
    %v7260 = vpack.c.b16 %v5012, %v5004
    %v7261 = vpack.c.b16 %v5021, %v5013
    %v7262 = vpack.c.b16 %v5022, %v5014
    %v7263 = vpack.c.b16 %v5023, %v5015
    %v7264 = vpack.c.b16 %v5024, %v5016
    %v7265 = vpack.c.b16 %v5025, %v5017
    %v7266 = vpack.c.b16 %v5026, %v5018
    %v7267 = vpack.c.b16 %v5027, %v5019
    %v7268 = vpack.c.b16 %v5028, %v5020
    %v7269 = vpack.c.b16 %v5037, %v5029
    %v7270 = vpack.c.b16 %v5038, %v5030
    %v7271 = vpack.c.b16 %v5039, %v5031
    %v7272 = vpack.c.b16 %v5040, %v5032
    %v7273 = vpack.c.b16 %v5041, %v5033
    %v7274 = vpack.c.b16 %v5042, %v5034
    %v7275 = vpack.c.b16 %v5043, %v5035
    %v7276 = vpack.c.b16 %v5044, %v5036
    %v7277 = vpack.c.b16 %v5053, %v5045
    %v7278 = vpack.c.b16 %v5054, %v5046
    %v7279 = vpack.c.b16 %v5055, %v5047
    %v7280 = vpack.c.b16 %v5056, %v5048
    %v7281 = vpack.c.b16 %v5057, %v5049
    %v7282 = vpack.c.b16 %v5058, %v5050
    %v7283 = vpack.c.b16 %v5059, %v5051
    %v7284 = vpack.c.b16 %v5060, %v5052
    %v7285 = vpack.c.b16 %v5069, %v5061
    %v7286 = vpack.c.b16 %v5070, %v5062
    %v7287 = vpack.c.b16 %v5071, %v5063
    %v7288 = vpack.c.b16 %v5072, %v5064
    %v7289 = vpack.c.b16 %v5073, %v5065
    %v7290 = vpack.c.b16 %v5074, %v5066
    %v7291 = vpack.c.b16 %v5075, %v5067
    %v7292 = vpack.c.b16 %v5076, %v5068
    %v7293 = vpack.c.b16 %v5085, %v5077
    %v7294 = vpack.c.b16 %v5086, %v5078
    %v7295 = vpack.c.b16 %v5087, %v5079
    %v7296 = vpack.c.b16 %v5088, %v5080
    %v7297 = vpack.c.b16 %v5089, %v5081
    %v7298 = vpack.c.b16 %v5090, %v5082
    %v7299 = vpack.c.b16 %v5091, %v5083
    %v7300 = vpack.c.b16 %v5092, %v5084
    %v7301 = vpack.c.b16 %v5101, %v5093
    %v7302 = vpack.c.b16 %v5102, %v5094
    %v7303 = vpack.c.b16 %v5103, %v5095
    %v7304 = vpack.c.b16 %v5104, %v5096
    %v7305 = vpack.c.b16 %v5105, %v5097
    %v7306 = vpack.c.b16 %v5106, %v5098
    %v7307 = vpack.c.b16 %v5107, %v5099
    %v7308 = vpack.c.b16 %v5108, %v5100
    %v7309 = vpack.c.b16 %v5117, %v5109
    %v7310 = vpack.c.b16 %v5118, %v5110
    %v7311 = vpack.c.b16 %v5119, %v5111
    %v7312 = vpack.c.b16 %v5120, %v5112
    %v7313 = vpack.c.b16 %v5121, %v5113
    %v7314 = vpack.c.b16 %v5122, %v5114
    %v7315 = vpack.c.b16 %v5123, %v5115
    %v7316 = vpack.c.b16 %v5124, %v5116
    %v7317 = vpack.c.b16 %v5133, %v5125
    %v7318 = vpack.c.b16 %v5134, %v5126
    %v7319 = vpack.c.b16 %v5135, %v5127
    %v7320 = vpack.c.b16 %v5136, %v5128
    %v7321 = vpack.c.b16 %v5137, %v5129
    %v7322 = vpack.c.b16 %v5138, %v5130
    %v7323 = vpack.c.b16 %v5139, %v5131
    %v7324 = vpack.c.b16 %v5140, %v5132
    %v7325 = vpack.c.b16 %v5149, %v5141
    %v7326 = vpack.c.b16 %v5150, %v5142
    %v7327 = vpack.c.b16 %v5151, %v5143
    %v7328 = vpack.c.b16 %v5152, %v5144
    %v7329 = vpack.c.b16 %v5153, %v5145
    %v7330 = vpack.c.b16 %v5154, %v5146
    %v7331 = vpack.c.b16 %v5155, %v5147
    %v7332 = vpack.c.b16 %v5156, %v5148
    %v7333 = vpack.c.b16 %v5165, %v5157
    %v7334 = vpack.c.b16 %v5166, %v5158
    %v7335 = vpack.c.b16 %v5167, %v5159
    %v7336 = vpack.c.b16 %v5168, %v5160
    %v7337 = vpack.c.b16 %v5169, %v5161
    %v7338 = vpack.c.b16 %v5170, %v5162
    %v7339 = vpack.c.b16 %v5171, %v5163
    %v7340 = vpack.c.b16 %v5172, %v5164
    %v7341 = vpack.c.b16 %v5181, %v5173
    %v7342 = vpack.c.b16 %v5182, %v5174
    %v7343 = vpack.c.b16 %v5183, %v5175
    %v7344 = vpack.c.b16 %v5184, %v5176
    %v7345 = vpack.c.b16 %v5185, %v5177
    %v7346 = vpack.c.b16 %v5186, %v5178
    %v7347 = vpack.c.b16 %v5187, %v5179
    %v7348 = vpack.c.b16 %v5188, %v5180
    %v7349 = vpack.c.b16 %v5197, %v5189
    %v7350 = vpack.c.b16 %v5198, %v5190
    %v7351 = vpack.c.b16 %v5199, %v5191
    %v7352 = vpack.c.b16 %v5200, %v5192
    %v7353 = vpack.c.b16 %v5201, %v5193
    %v7354 = vpack.c.b16 %v5202, %v5194
    %v7355 = vpack.c.b16 %v5203, %v5195
    %v7356 = vpack.c.b16 %v5204, %v5196
    %v7357 = vpack.c.b16 %v5213, %v5205
    %v7358 = vpack.c.b16 %v5214, %v5206
    %v7359 = vpack.c.b16 %v5215, %v5207
    %v7360 = vpack.c.b16 %v5216, %v5208
    %v7361 = vpack.c.b16 %v5217, %v5209
    %v7362 = vpack.c.b16 %v5218, %v5210
    %v7363 = vpack.c.b16 %v5219, %v5211
    %v7364 = vpack.c.b16 %v5220, %v5212
    %v7365 = vpack.c.b16 %v5229, %v5221
    %v7366 = vpack.c.b16 %v5230, %v5222
    %v7367 = vpack.c.b16 %v5231, %v5223
    %v7368 = vpack.c.b16 %v5232, %v5224
    %v7369 = vpack.c.b16 %v5233, %v5225
    %v7370 = vpack.c.b16 %v5234, %v5226
    %v7371 = vpack.c.b16 %v5235, %v5227
    %v7372 = vpack.c.b16 %v5236, %v5228
    %v7373 = vpack.c.b16 %v5245, %v5237
    %v7374 = vpack.c.b16 %v5246, %v5238
    %v7375 = vpack.c.b16 %v5247, %v5239
    %v7376 = vpack.c.b16 %v5248, %v5240
    %v7377 = vpack.c.b16 %v5249, %v5241
    %v7378 = vpack.c.b16 %v5250, %v5242
    %v7379 = vpack.c.b16 %v5251, %v5243
    %v7380 = vpack.c.b16 %v5252, %v5244
    %v7381 = vpack.c.b16 %v5261, %v5253
    %v7382 = vpack.c.b16 %v5262, %v5254
    %v7383 = vpack.c.b16 %v5263, %v5255
    %v7384 = vpack.c.b16 %v5264, %v5256
    %v7385 = vpack.c.b16 %v5265, %v5257
    %v7386 = vpack.c.b16 %v5266, %v5258
    %v7387 = vpack.c.b16 %v5267, %v5259
    %v7388 = vpack.c.b16 %v5268, %v5260
    %v7389 = vpack.c.b16 %v5277, %v5269
    %v7390 = vpack.c.b16 %v5278, %v5270
    %v7391 = vpack.c.b16 %v5279, %v5271
    %v7392 = vpack.c.b16 %v5280, %v5272
    %v7393 = vpack.c.b16 %v5281, %v5273
    %v7394 = vpack.c.b16 %v5282, %v5274
    %v7395 = vpack.c.b16 %v5283, %v5275
    %v7396 = vpack.c.b16 %v5284, %v5276
    %v7397 = vpack.c.b16 %v5293, %v5285
    %v7398 = vpack.c.b16 %v5294, %v5286
    %v7399 = vpack.c.b16 %v5295, %v5287
    %v7400 = vpack.c.b16 %v5296, %v5288
    %v7401 = vpack.c.b16 %v5297, %v5289
    %v7402 = vpack.c.b16 %v5298, %v5290
    %v7403 = vpack.c.b16 %v5299, %v5291
    %v7404 = vpack.c.b16 %v5300, %v5292
    %v7405 = vpack.c.b16 %v5309, %v5301
    %v7406 = vpack.c.b16 %v5310, %v5302
    %v7407 = vpack.c.b16 %v5311, %v5303
    %v7408 = vpack.c.b16 %v5312, %v5304
    %v7409 = vpack.c.b16 %v5313, %v5305
    %v7410 = vpack.c.b16 %v5314, %v5306
    %v7411 = vpack.c.b16 %v5315, %v5307
    %v7412 = vpack.c.b16 %v5316, %v5308
    %v7413 = vpack.c.b16 %v5325, %v5317
    %v7414 = vpack.c.b16 %v5326, %v5318
    %v7415 = vpack.c.b16 %v5327, %v5319
    %v7416 = vpack.c.b16 %v5328, %v5320
    %v7417 = vpack.c.b16 %v5329, %v5321
    %v7418 = vpack.c.b16 %v5330, %v5322
    %v7419 = vpack.c.b16 %v5331, %v5323
    %v7420 = vpack.c.b16 %v5332, %v5324
    %v7421 = vpack.c.b16 %v5341, %v5333
    %v7422 = vpack.c.b16 %v5342, %v5334
    %v7423 = vpack.c.b16 %v5343, %v5335
    %v7424 = vpack.c.b16 %v5344, %v5336
    %v7425 = vpack.c.b16 %v5345, %v5337
    %v7426 = vpack.c.b16 %v5346, %v5338
    %v7427 = vpack.c.b16 %v5347, %v5339
    %v7428 = vpack.c.b16 %v5348, %v5340
    %v7429 = vpack.c.b16 %v5357, %v5349
    %v7430 = vpack.c.b16 %v5358, %v5350
    %v7431 = vpack.c.b16 %v5359, %v5351
    %v7432 = vpack.c.b16 %v5360, %v5352
    %v7433 = vpack.c.b16 %v5361, %v5353
    %v7434 = vpack.c.b16 %v5362, %v5354
    %v7435 = vpack.c.b16 %v5363, %v5355
    %v7436 = vpack.c.b16 %v5364, %v5356
    %v7437 = vpack.c.b16 %v5373, %v5365
    %v7438 = vpack.c.b16 %v5374, %v5366
    %v7439 = vpack.c.b16 %v5375, %v5367
    %v7440 = vpack.c.b16 %v5376, %v5368
    %v7441 = vpack.c.b16 %v5377, %v5369
    %v7442 = vpack.c.b16 %v5378, %v5370
    %v7443 = vpack.c.b16 %v5379, %v5371
    %v7444 = vpack.c.b16 %v5380, %v5372
    %v7445 = vpack.c.b16 %v5389, %v5381
    %v7446 = vpack.c.b16 %v5390, %v5382
    %v7447 = vpack.c.b16 %v5391, %v5383
    %v7448 = vpack.c.b16 %v5392, %v5384
    %v7449 = vpack.c.b16 %v5393, %v5385
    %v7450 = vpack.c.b16 %v5394, %v5386
    %v7451 = vpack.c.b16 %v5395, %v5387
    %v7452 = vpack.c.b16 %v5396, %v5388
    %v7453 = vpack.c.b16 %v5405, %v5397
    %v7454 = vpack.c.b16 %v5406, %v5398
    %v7455 = vpack.c.b16 %v5407, %v5399
    %v7456 = vpack.c.b16 %v5408, %v5400
    %v7457 = vpack.c.b16 %v5409, %v5401
    %v7458 = vpack.c.b16 %v5410, %v5402
    %v7459 = vpack.c.b16 %v5411, %v5403
    %v7460 = vpack.c.b16 %v5412, %v5404
    %v7461 = vpack.c.b16 %v5421, %v5413
    %v7462 = vpack.c.b16 %v5422, %v5414
    %v7463 = vpack.c.b16 %v5423, %v5415
    %v7464 = vpack.c.b16 %v5424, %v5416
    %v7465 = vpack.c.b16 %v5425, %v5417
    %v7466 = vpack.c.b16 %v5426, %v5418
    %v7467 = vpack.c.b16 %v5427, %v5419
    %v7468 = vpack.c.b16 %v5428, %v5420
    %v7469 = vpack.c.b16 %v5437, %v5429
    %v7470 = vpack.c.b16 %v5438, %v5430
    %v7471 = vpack.c.b16 %v5439, %v5431
    %v7472 = vpack.c.b16 %v5440, %v5432
    %v7473 = vpack.c.b16 %v5441, %v5433
    %v7474 = vpack.c.b16 %v5442, %v5434
    %v7475 = vpack.c.b16 %v5443, %v5435
    %v7476 = vpack.c.b16 %v5444, %v5436
    %v7477 = vpack.c.b16 %v5453, %v5445
    %v7478 = vpack.c.b16 %v5454, %v5446
    %v7479 = vpack.c.b16 %v5455, %v5447
    %v7480 = vpack.c.b16 %v5456, %v5448
    %v7481 = vpack.c.b16 %v5457, %v5449
    %v7482 = vpack.c.b16 %v5458, %v5450
    %v7483 = vpack.c.b16 %v5459, %v5451
    %v7484 = vpack.c.b16 %v5460, %v5452
    %v7485 = vpack.c.b16 %v5469, %v5461
    %v7486 = vpack.c.b16 %v5470, %v5462
    %v7487 = vpack.c.b16 %v5471, %v5463
    %v7488 = vpack.c.b16 %v5472, %v5464
    %v7489 = vpack.c.b16 %v5473, %v5465
    %v7490 = vpack.c.b16 %v5474, %v5466
    %v7491 = vpack.c.b16 %v5475, %v5467
    %v7492 = vpack.c.b16 %v5476, %v5468
    %v7493 = vpack.c.b16 %v5485, %v5477
    %v7494 = vpack.c.b16 %v5486, %v5478
    %v7495 = vpack.c.b16 %v5487, %v5479
    %v7496 = vpack.c.b16 %v5488, %v5480
    %v7497 = vpack.c.b16 %v5489, %v5481
    %v7498 = vpack.c.b16 %v5490, %v5482
    %v7499 = vpack.c.b16 %v5491, %v5483
    %v7500 = vpack.c.b16 %v5492, %v5484
    %v7501 = vpack.c.b16 %v5501, %v5493
    %v7502 = vpack.c.b16 %v5502, %v5494
    %v7503 = vpack.c.b16 %v5503, %v5495
    %v7504 = vpack.c.b16 %v5504, %v5496
    %v7505 = vpack.c.b16 %v5505, %v5497
    %v7506 = vpack.c.b16 %v5506, %v5498
    %v7507 = vpack.c.b16 %v5507, %v5499
    %v7508 = vpack.c.b16 %v5508, %v5500
    %v7509 = vpack.c.b16 %v5517, %v5509
    %v7510 = vpack.c.b16 %v5518, %v5510
    %v7511 = vpack.c.b16 %v5519, %v5511
    %v7512 = vpack.c.b16 %v5520, %v5512
    %v7513 = vpack.c.b16 %v5521, %v5513
    %v7514 = vpack.c.b16 %v5522, %v5514
    %v7515 = vpack.c.b16 %v5523, %v5515
    %v7516 = vpack.c.b16 %v5524, %v5516
    %v7517 = vpack.c.b16 %v5533, %v5525
    %v7518 = vpack.c.b16 %v5534, %v5526
    %v7519 = vpack.c.b16 %v5535, %v5527
    %v7520 = vpack.c.b16 %v5536, %v5528
    %v7521 = vpack.c.b16 %v5537, %v5529
    %v7522 = vpack.c.b16 %v5538, %v5530
    %v7523 = vpack.c.b16 %v5539, %v5531
    %v7524 = vpack.c.b16 %v5540, %v5532
    %v7525 = vpack.c.b16 %v5549, %v5541
    %v7526 = vpack.c.b16 %v5550, %v5542
    %v7527 = vpack.c.b16 %v5551, %v5543
    %v7528 = vpack.c.b16 %v5552, %v5544
    %v7529 = vpack.c.b16 %v5553, %v5545
    %v7530 = vpack.c.b16 %v5554, %v5546
    %v7531 = vpack.c.b16 %v5555, %v5547
    %v7532 = vpack.c.b16 %v5556, %v5548
    %v7533 = vpack.c.b16 %v5565, %v5557
    %v7534 = vpack.c.b16 %v5566, %v5558
    %v7535 = vpack.c.b16 %v5567, %v5559
    %v7536 = vpack.c.b16 %v5568, %v5560
    %v7537 = vpack.c.b16 %v5569, %v5561
    %v7538 = vpack.c.b16 %v5570, %v5562
    %v7539 = vpack.c.b16 %v5571, %v5563
    %v7540 = vpack.c.b16 %v5572, %v5564
    %v7541 = vpack.c.b16 %v5581, %v5573
    %v7542 = vpack.c.b16 %v5582, %v5574
    %v7543 = vpack.c.b16 %v5583, %v5575
    %v7544 = vpack.c.b16 %v5584, %v5576
    %v7545 = vpack.c.b16 %v5585, %v5577
    %v7546 = vpack.c.b16 %v5586, %v5578
    %v7547 = vpack.c.b16 %v5587, %v5579
    %v7548 = vpack.c.b16 %v5588, %v5580
    %v7549 = vpack.c.b16 %v5597, %v5589
    %v7550 = vpack.c.b16 %v5598, %v5590
    %v7551 = vpack.c.b16 %v5599, %v5591
    %v7552 = vpack.c.b16 %v5600, %v5592
    %v7553 = vpack.c.b16 %v5601, %v5593
    %v7554 = vpack.c.b16 %v5602, %v5594
    %v7555 = vpack.c.b16 %v5603, %v5595
    %v7556 = vpack.c.b16 %v5604, %v5596
    %v7557 = vpack.c.b16 %v5613, %v5605
    %v7558 = vpack.c.b16 %v5614, %v5606
    %v7559 = vpack.c.b16 %v5615, %v5607
    %v7560 = vpack.c.b16 %v5616, %v5608
    %v7561 = vpack.c.b16 %v5617, %v5609
    %v7562 = vpack.c.b16 %v5618, %v5610
    %v7563 = vpack.c.b16 %v5619, %v5611
    %v7564 = vpack.c.b16 %v5620, %v5612
    %v7565 = vpack.c.b16 %v5629, %v5621
    %v7566 = vpack.c.b16 %v5630, %v5622
    %v7567 = vpack.c.b16 %v5631, %v5623
    %v7568 = vpack.c.b16 %v5632, %v5624
    %v7569 = vpack.c.b16 %v5633, %v5625
    %v7570 = vpack.c.b16 %v5634, %v5626
    %v7571 = vpack.c.b16 %v5635, %v5627
    %v7572 = vpack.c.b16 %v5636, %v5628
    %v7573 = vpack.c.b16 %v5645, %v5637
    %v7574 = vpack.c.b16 %v5646, %v5638
    %v7575 = vpack.c.b16 %v5647, %v5639
    %v7576 = vpack.c.b16 %v5648, %v5640
    %v7577 = vpack.c.b16 %v5649, %v5641
    %v7578 = vpack.c.b16 %v5650, %v5642
    %v7579 = vpack.c.b16 %v5651, %v5643
    %v7580 = vpack.c.b16 %v5652, %v5644
    %v7581 = vpack.c.b16 %v5661, %v5653
    %v7582 = vpack.c.b16 %v5662, %v5654
    %v7583 = vpack.c.b16 %v5663, %v5655
    %v7584 = vpack.c.b16 %v5664, %v5656
    %v7585 = vpack.c.b16 %v5665, %v5657
    %v7586 = vpack.c.b16 %v5666, %v5658
    %v7587 = vpack.c.b16 %v5667, %v5659
    %v7588 = vpack.c.b16 %v5668, %v5660
    %v7589 = vpack.c.b16 %v5677, %v5669
    %v7590 = vpack.c.b16 %v5678, %v5670
    %v7591 = vpack.c.b16 %v5679, %v5671
    %v7592 = vpack.c.b16 %v5680, %v5672
    %v7593 = vpack.c.b16 %v5681, %v5673
    %v7594 = vpack.c.b16 %v5682, %v5674
    %v7595 = vpack.c.b16 %v5683, %v5675
    %v7596 = vpack.c.b16 %v5684, %v5676
    %v7597 = vpack.c.b16 %v5693, %v5685
    %v7598 = vpack.c.b16 %v5694, %v5686
    %v7599 = vpack.c.b16 %v5695, %v5687
    %v7600 = vpack.c.b16 %v5696, %v5688
    %v7601 = vpack.c.b16 %v5697, %v5689
    %v7602 = vpack.c.b16 %v5698, %v5690
    %v7603 = vpack.c.b16 %v5699, %v5691
    %v7604 = vpack.c.b16 %v5700, %v5692
    %v7605 = vpack.c.b16 %v5709, %v5701
    %v7606 = vpack.c.b16 %v5710, %v5702
    %v7607 = vpack.c.b16 %v5711, %v5703
    %v7608 = vpack.c.b16 %v5712, %v5704
    %v7609 = vpack.c.b16 %v5713, %v5705
    %v7610 = vpack.c.b16 %v5714, %v5706
    %v7611 = vpack.c.b16 %v5715, %v5707
    %v7612 = vpack.c.b16 %v5716, %v5708
    %v7613 = vpack.c.b16 %v5725, %v5717
    %v7614 = vpack.c.b16 %v5726, %v5718
    %v7615 = vpack.c.b16 %v5727, %v5719
    %v7616 = vpack.c.b16 %v5728, %v5720
    %v7617 = vpack.c.b16 %v5729, %v5721
    %v7618 = vpack.c.b16 %v5730, %v5722
    %v7619 = vpack.c.b16 %v5731, %v5723
    %v7620 = vpack.c.b16 %v5732, %v5724
    %v7621 = vpack.c.b16 %v5741, %v5733
    %v7622 = vpack.c.b16 %v5742, %v5734
    %v7623 = vpack.c.b16 %v5743, %v5735
    %v7624 = vpack.c.b16 %v5744, %v5736
    %v7625 = vpack.c.b16 %v5745, %v5737
    %v7626 = vpack.c.b16 %v5746, %v5738
    %v7627 = vpack.c.b16 %v5747, %v5739
    %v7628 = vpack.c.b16 %v5748, %v5740
    %v7629 = vpack.c.b16 %v5757, %v5749
    %v7630 = vpack.c.b16 %v5758, %v5750
    %v7631 = vpack.c.b16 %v5759, %v5751
    %v7632 = vpack.c.b16 %v5760, %v5752
    %v7633 = vpack.c.b16 %v5761, %v5753
    %v7634 = vpack.c.b16 %v5762, %v5754
    %v7635 = vpack.c.b16 %v5763, %v5755
    %v7636 = vpack.c.b16 %v5764, %v5756
    %v7637 = vpack.c.b16 %v5773, %v5765
    %v7638 = vpack.c.b16 %v5774, %v5766
    %v7639 = vpack.c.b16 %v5775, %v5767
    %v7640 = vpack.c.b16 %v5776, %v5768
    %v7641 = vpack.c.b16 %v5777, %v5769
    %v7642 = vpack.c.b16 %v5778, %v5770
    %v7643 = vpack.c.b16 %v5779, %v5771
    %v7644 = vpack.c.b16 %v5780, %v5772
    %v7645 = vpack.c.b16 %v5789, %v5781
    %v7646 = vpack.c.b16 %v5790, %v5782
    %v7647 = vpack.c.b16 %v5791, %v5783
    %v7648 = vpack.c.b16 %v5792, %v5784
    %v7649 = vpack.c.b16 %v5793, %v5785
    %v7650 = vpack.c.b16 %v5794, %v5786
    %v7651 = vpack.c.b16 %v5795, %v5787
    %v7652 = vpack.c.b16 %v5796, %v5788
    %v7653 = vpack.c.b16 %v5805, %v5797
    %v7654 = vpack.c.b16 %v5806, %v5798
    %v7655 = vpack.c.b16 %v5807, %v5799
    %v7656 = vpack.c.b16 %v5808, %v5800
    %v7657 = vpack.c.b16 %v5809, %v5801
    %v7658 = vpack.c.b16 %v5810, %v5802
    %v7659 = vpack.c.b16 %v5811, %v5803
    %v7660 = vpack.c.b16 %v5812, %v5804
    %v7661 = vpack.c.b16 %v5821, %v5813
    %v7662 = vpack.c.b16 %v5822, %v5814
    %v7663 = vpack.c.b16 %v5823, %v5815
    %v7664 = vpack.c.b16 %v5824, %v5816
    %v7665 = vpack.c.b16 %v5825, %v5817
    %v7666 = vpack.c.b16 %v5826, %v5818
    %v7667 = vpack.c.b16 %v5827, %v5819
    %v7668 = vpack.c.b16 %v5828, %v5820
    %v7669 = vpack.c.b16 %v5837, %v5829
    %v7670 = vpack.c.b16 %v5838, %v5830
    %v7671 = vpack.c.b16 %v5839, %v5831
    %v7672 = vpack.c.b16 %v5840, %v5832
    %v7673 = vpack.c.b16 %v5841, %v5833
    %v7674 = vpack.c.b16 %v5842, %v5834
    %v7675 = vpack.c.b16 %v5843, %v5835
    %v7676 = vpack.c.b16 %v5844, %v5836
    %v7677 = vpack.c.b16 %v5853, %v5845
    %v7678 = vpack.c.b16 %v5854, %v5846
    %v7679 = vpack.c.b16 %v5855, %v5847
    %v7680 = vpack.c.b16 %v5856, %v5848
    %v7681 = vpack.c.b16 %v5857, %v5849
    %v7682 = vpack.c.b16 %v5858, %v5850
    %v7683 = vpack.c.b16 %v5859, %v5851
    %v7684 = vpack.c.b16 %v5860, %v5852
    %v7685 = vpack.c.b16 %v5869, %v5861
    %v7686 = vpack.c.b16 %v5870, %v5862
    %v7687 = vpack.c.b16 %v5871, %v5863
    %v7688 = vpack.c.b16 %v5872, %v5864
    %v7689 = vpack.c.b16 %v5873, %v5865
    %v7690 = vpack.c.b16 %v5874, %v5866
    %v7691 = vpack.c.b16 %v5875, %v5867
    %v7692 = vpack.c.b16 %v5876, %v5868
    %v7693 = vpack.c.b16 %v5885, %v5877
    %v7694 = vpack.c.b16 %v5886, %v5878
    %v7695 = vpack.c.b16 %v5887, %v5879
    %v7696 = vpack.c.b16 %v5888, %v5880
    %v7697 = vpack.c.b16 %v5889, %v5881
    %v7698 = vpack.c.b16 %v5890, %v5882
    %v7699 = vpack.c.b16 %v5891, %v5883
    %v7700 = vpack.c.b16 %v5892, %v5884
    %v7701 = vpack.c.b16 %v5901, %v5893
    %v7702 = vpack.c.b16 %v5902, %v5894
    %v7703 = vpack.c.b16 %v5903, %v5895
    %v7704 = vpack.c.b16 %v5904, %v5896
    %v7705 = vpack.c.b16 %v5905, %v5897
    %v7706 = vpack.c.b16 %v5906, %v5898
    %v7707 = vpack.c.b16 %v5907, %v5899
    %v7708 = vpack.c.b16 %v5908, %v5900
    %v7709 = vpack.c.b16 %v5917, %v5909
    %v7710 = vpack.c.b16 %v5918, %v5910
    %v7711 = vpack.c.b16 %v5919, %v5911
    %v7712 = vpack.c.b16 %v5920, %v5912
    %v7713 = vpack.c.b16 %v5921, %v5913
    %v7714 = vpack.c.b16 %v5922, %v5914
    %v7715 = vpack.c.b16 %v5923, %v5915
    %v7716 = vpack.c.b16 %v5924, %v5916
    %v7717 = vpack.c.b16 %v5933, %v5925
    %v7718 = vpack.c.b16 %v5934, %v5926
    %v7719 = vpack.c.b16 %v5935, %v5927
    %v7720 = vpack.c.b16 %v5936, %v5928
    %v7721 = vpack.c.b16 %v5937, %v5929
    %v7722 = vpack.c.b16 %v5938, %v5930
    %v7723 = vpack.c.b16 %v5939, %v5931
    %v7724 = vpack.c.b16 %v5940, %v5932
    %v7725 = vpack.c.b16 %v5949, %v5941
    %v7726 = vpack.c.b16 %v5950, %v5942
    %v7727 = vpack.c.b16 %v5951, %v5943
    %v7728 = vpack.c.b16 %v5952, %v5944
    %v7729 = vpack.c.b16 %v5953, %v5945
    %v7730 = vpack.c.b16 %v5954, %v5946
    %v7731 = vpack.c.b16 %v5955, %v5947
    %v7732 = vpack.c.b16 %v5956, %v5948
    %v7733 = vpack.c.b16 %v5965, %v5957
    %v7734 = vpack.c.b16 %v5966, %v5958
    %v7735 = vpack.c.b16 %v5967, %v5959
    %v7736 = vpack.c.b16 %v5968, %v5960
    %v7737 = vpack.c.b16 %v5969, %v5961
    %v7738 = vpack.c.b16 %v5970, %v5962
    %v7739 = vpack.c.b16 %v5971, %v5963
    %v7740 = vpack.c.b16 %v5972, %v5964
    %v7741 = vpack.c.b16 %v5981, %v5973
    %v7742 = vpack.c.b16 %v5982, %v5974
    %v7743 = vpack.c.b16 %v5983, %v5975
    %v7744 = vpack.c.b16 %v5984, %v5976
    %v7745 = vpack.c.b16 %v5985, %v5977
    %v7746 = vpack.c.b16 %v5986, %v5978
    %v7747 = vpack.c.b16 %v5987, %v5979
    %v7748 = vpack.c.b16 %v5988, %v5980
    %v7749 = vpack.c.b16 %v5997, %v5989
    %v7750 = vpack.c.b16 %v5998, %v5990
    %v7751 = vpack.c.b16 %v5999, %v5991
    %v7752 = vpack.c.b16 %v6000, %v5992
    %v7753 = vpack.c.b16 %v6001, %v5993
    %v7754 = vpack.c.b16 %v6002, %v5994
    %v7755 = vpack.c.b16 %v6003, %v5995
    %v7756 = vpack.c.b16 %v6004, %v5996
    %v7757 = vpack.c.b16 %v6013, %v6005
    %v7758 = vpack.c.b16 %v6014, %v6006
    %v7759 = vpack.c.b16 %v6015, %v6007
    %v7760 = vpack.c.b16 %v6016, %v6008
    %v7761 = vpack.c.b16 %v6017, %v6009
    %v7762 = vpack.c.b16 %v6018, %v6010
    %v7763 = vpack.c.b16 %v6019, %v6011
    %v7764 = vpack.c.b16 %v6020, %v6012
    %v7765 = vpack.c.b16 %v6029, %v6021
    %v7766 = vpack.c.b16 %v6030, %v6022
    %v7767 = vpack.c.b16 %v6031, %v6023
    %v7768 = vpack.c.b16 %v6032, %v6024
    %v7769 = vpack.c.b16 %v6033, %v6025
    %v7770 = vpack.c.b16 %v6034, %v6026
    %v7771 = vpack.c.b16 %v6035, %v6027
    %v7772 = vpack.c.b16 %v6036, %v6028
    %v7773 = vpack.c.b16 %v6045, %v6037
    %v7774 = vpack.c.b16 %v6046, %v6038
    %v7775 = vpack.c.b16 %v6047, %v6039
    %v7776 = vpack.c.b16 %v6048, %v6040
    %v7777 = vpack.c.b16 %v6049, %v6041
    %v7778 = vpack.c.b16 %v6050, %v6042
    %v7779 = vpack.c.b16 %v6051, %v6043
    %v7780 = vpack.c.b16 %v6052, %v6044
    %v7781 = vpack.c.b16 %v6061, %v6053
    %v7782 = vpack.c.b16 %v6062, %v6054
    %v7783 = vpack.c.b16 %v6063, %v6055
    %v7784 = vpack.c.b16 %v6064, %v6056
    %v7785 = vpack.c.b16 %v6065, %v6057
    %v7786 = vpack.c.b16 %v6066, %v6058
    %v7787 = vpack.c.b16 %v6067, %v6059
    %v7788 = vpack.c.b16 %v6068, %v6060
    %v7789 = vpack.c.b16 %v6077, %v6069
    %v7790 = vpack.c.b16 %v6078, %v6070
    %v7791 = vpack.c.b16 %v6079, %v6071
    %v7792 = vpack.c.b16 %v6080, %v6072
    %v7793 = vpack.c.b16 %v6081, %v6073
    %v7794 = vpack.c.b16 %v6082, %v6074
    %v7795 = vpack.c.b16 %v6083, %v6075
    %v7796 = vpack.c.b16 %v6084, %v6076
    %v7797 = vpack.c.b16 %v6093, %v6085
    %v7798 = vpack.c.b16 %v6094, %v6086
    %v7799 = vpack.c.b16 %v6095, %v6087
    %v7800 = vpack.c.b16 %v6096, %v6088
    %v7801 = vpack.c.b16 %v6097, %v6089
    %v7802 = vpack.c.b16 %v6098, %v6090
    %v7803 = vpack.c.b16 %v6099, %v6091
    %v7804 = vpack.c.b16 %v6100, %v6092
    %v7805 = vpack.c.b16 %v6109, %v6101
    %v7806 = vpack.c.b16 %v6110, %v6102
    %v7807 = vpack.c.b16 %v6111, %v6103
    %v7808 = vpack.c.b16 %v6112, %v6104
    %v7809 = vpack.c.b16 %v6113, %v6105
    %v7810 = vpack.c.b16 %v6114, %v6106
    %v7811 = vpack.c.b16 %v6115, %v6107
    %v7812 = vpack.c.b16 %v6116, %v6108
    %v7813 = vpack.c.b16 %v6125, %v6117
    %v7814 = vpack.c.b16 %v6126, %v6118
    %v7815 = vpack.c.b16 %v6127, %v6119
    %v7816 = vpack.c.b16 %v6128, %v6120
    %v7817 = vpack.c.b16 %v6129, %v6121
    %v7818 = vpack.c.b16 %v6130, %v6122
    %v7819 = vpack.c.b16 %v6131, %v6123
    %v7820 = vpack.c.b16 %v6132, %v6124
    %v7821 = vpack.c.b16 %v6141, %v6133
    %v7822 = vpack.c.b16 %v6142, %v6134
    %v7823 = vpack.c.b16 %v6143, %v6135
    %v7824 = vpack.c.b16 %v6144, %v6136
    %v7825 = vpack.c.b16 %v6145, %v6137
    %v7826 = vpack.c.b16 %v6146, %v6138
    %v7827 = vpack.c.b16 %v6147, %v6139
    %v7828 = vpack.c.b16 %v6148, %v6140
    %v7829 = vpack.c.b16 %v6157, %v6149
    %v7830 = vpack.c.b16 %v6158, %v6150
    %v7831 = vpack.c.b16 %v6159, %v6151
    %v7832 = vpack.c.b16 %v6160, %v6152
    %v7833 = vpack.c.b16 %v6161, %v6153
    %v7834 = vpack.c.b16 %v6162, %v6154
    %v7835 = vpack.c.b16 %v6163, %v6155
    %v7836 = vpack.c.b16 %v6164, %v6156
    %v7837 = vpack.c.b16 %v6173, %v6165
    %v7838 = vpack.c.b16 %v6174, %v6166
    %v7839 = vpack.c.b16 %v6175, %v6167
    %v7840 = vpack.c.b16 %v6176, %v6168
    %v7841 = vpack.c.b16 %v6177, %v6169
    %v7842 = vpack.c.b16 %v6178, %v6170
    %v7843 = vpack.c.b16 %v6179, %v6171
    %v7844 = vpack.c.b16 %v6180, %v6172
    %v7845 = vpack.c.b16 %v6189, %v6181
    %v7846 = vpack.c.b16 %v6190, %v6182
    %v7847 = vpack.c.b16 %v6191, %v6183
    %v7848 = vpack.c.b16 %v6192, %v6184
    %v7849 = vpack.c.b16 %v6193, %v6185
    %v7850 = vpack.c.b16 %v6194, %v6186
    %v7851 = vpack.c.b16 %v6195, %v6187
    %v7852 = vpack.c.b16 %v6196, %v6188
    %v7853 = vpack.c.b16 %v6205, %v6197
    %v7854 = vpack.c.b16 %v6206, %v6198
    %v7855 = vpack.c.b16 %v6207, %v6199
    %v7856 = vpack.c.b16 %v6208, %v6200
    %v7857 = vpack.c.b16 %v6209, %v6201
    %v7858 = vpack.c.b16 %v6210, %v6202
    %v7859 = vpack.c.b16 %v6211, %v6203
    %v7860 = vpack.c.b16 %v6212, %v6204
    %v7861 = vpack.c.b16 %v6221, %v6213
    %v7862 = vpack.c.b16 %v6222, %v6214
    %v7863 = vpack.c.b16 %v6223, %v6215
    %v7864 = vpack.c.b16 %v6224, %v6216
    %v7865 = vpack.c.b16 %v6225, %v6217
    %v7866 = vpack.c.b16 %v6226, %v6218
    %v7867 = vpack.c.b16 %v6227, %v6219
    %v7868 = vpack.c.b16 %v6228, %v6220
    %v7869 = vpack.c.b16 %v6237, %v6229
    %v7870 = vpack.c.b16 %v6238, %v6230
    %v7871 = vpack.c.b16 %v6239, %v6231
    %v7872 = vpack.c.b16 %v6240, %v6232
    %v7873 = vpack.c.b16 %v6241, %v6233
    %v7874 = vpack.c.b16 %v6242, %v6234
    %v7875 = vpack.c.b16 %v6243, %v6235
    %v7876 = vpack.c.b16 %v6244, %v6236
    %v7877 = vpack.c.b16 %v6253, %v6245
    %v7878 = vpack.c.b16 %v6254, %v6246
    %v7879 = vpack.c.b16 %v6255, %v6247
    %v7880 = vpack.c.b16 %v6256, %v6248
    %v7881 = vpack.c.b16 %v6257, %v6249
    %v7882 = vpack.c.b16 %v6258, %v6250
    %v7883 = vpack.c.b16 %v6259, %v6251
    %v7884 = vpack.c.b16 %v6260, %v6252
    %v7885 = vpack.c.b16 %v6269, %v6261
    %v7886 = vpack.c.b16 %v6270, %v6262
    %v7887 = vpack.c.b16 %v6271, %v6263
    %v7888 = vpack.c.b16 %v6272, %v6264
    %v7889 = vpack.c.b16 %v6273, %v6265
    %v7890 = vpack.c.b16 %v6274, %v6266
    %v7891 = vpack.c.b16 %v6275, %v6267
    %v7892 = vpack.c.b16 %v6276, %v6268
    %v7893 = vpack.c.b16 %v6285, %v6277
    %v7894 = vpack.c.b16 %v6286, %v6278
    %v7895 = vpack.c.b16 %v6287, %v6279
    %v7896 = vpack.c.b16 %v6288, %v6280
    %v7897 = vpack.c.b16 %v6289, %v6281
    %v7898 = vpack.c.b16 %v6290, %v6282
    %v7899 = vpack.c.b16 %v6291, %v6283
    %v7900 = vpack.c.b16 %v6292, %v6284
    %v7901 = vpack.c.b16 %v6301, %v6293
    %v7902 = vpack.c.b16 %v6302, %v6294
    %v7903 = vpack.c.b16 %v6303, %v6295
    %v7904 = vpack.c.b16 %v6304, %v6296
    %v7905 = vpack.c.b16 %v6305, %v6297
    %v7906 = vpack.c.b16 %v6306, %v6298
    %v7907 = vpack.c.b16 %v6307, %v6299
    %v7908 = vpack.c.b16 %v6308, %v6300
    %v7909 = vpack.c.b16 %v6317, %v6309
    %v7910 = vpack.c.b16 %v6318, %v6310
    %v7911 = vpack.c.b16 %v6319, %v6311
    %v7912 = vpack.c.b16 %v6320, %v6312
    %v7913 = vpack.c.b16 %v6321, %v6313
    %v7914 = vpack.c.b16 %v6322, %v6314
    %v7915 = vpack.c.b16 %v6323, %v6315
    %v7916 = vpack.c.b16 %v6324, %v6316
    %v7917 = vpack.c.b16 %v6333, %v6325
    %v7918 = vpack.c.b16 %v6334, %v6326
    %v7919 = vpack.c.b16 %v6335, %v6327
    %v7920 = vpack.c.b16 %v6336, %v6328
    %v7921 = vpack.c.b16 %v6337, %v6329
    %v7922 = vpack.c.b16 %v6338, %v6330
    %v7923 = vpack.c.b16 %v6339, %v6331
    %v7924 = vpack.c.b16 %v6340, %v6332
    %v7925 = vpack.c.b16 %v6349, %v6341
    %v7926 = vpack.c.b16 %v6350, %v6342
    %v7927 = vpack.c.b16 %v6351, %v6343
    %v7928 = vpack.c.b16 %v6352, %v6344
    %v7929 = vpack.c.b16 %v6353, %v6345
    %v7930 = vpack.c.b16 %v6354, %v6346
    %v7931 = vpack.c.b16 %v6355, %v6347
    %v7932 = vpack.c.b16 %v6356, %v6348
    %v7933 = vpack.c.b16 %v6365, %v6357
    %v7934 = vpack.c.b16 %v6366, %v6358
    %v7935 = vpack.c.b16 %v6367, %v6359
    %v7936 = vpack.c.b16 %v6368, %v6360
    %v7937 = vpack.c.b16 %v6369, %v6361
    %v7938 = vpack.c.b16 %v6370, %v6362
    %v7939 = vpack.c.b16 %v6371, %v6363
    %v7940 = vpack.c.b16 %v6372, %v6364
    %v7941 = vpack.c.b16 %v6381, %v6373
    %v7942 = vpack.c.b16 %v6382, %v6374
    %v7943 = vpack.c.b16 %v6383, %v6375
    %v7944 = vpack.c.b16 %v6384, %v6376
    %v7945 = vpack.c.b16 %v6385, %v6377
    %v7946 = vpack.c.b16 %v6386, %v6378
    %v7947 = vpack.c.b16 %v6387, %v6379
    %v7948 = vpack.c.b16 %v6388, %v6380
    %v7949 = vpack.c.b16 %v6397, %v6389
    %v7950 = vpack.c.b16 %v6398, %v6390
    %v7951 = vpack.c.b16 %v6399, %v6391
    %v7952 = vpack.c.b16 %v6400, %v6392
    %v7953 = vpack.c.b16 %v6401, %v6393
    %v7954 = vpack.c.b16 %v6402, %v6394
    %v7955 = vpack.c.b16 %v6403, %v6395
    %v7956 = vpack.c.b16 %v6404, %v6396
    %v7957 = vpack.c.b16 %v6413, %v6405
    %v7958 = vpack.c.b16 %v6414, %v6406
    %v7959 = vpack.c.b16 %v6415, %v6407
    %v7960 = vpack.c.b16 %v6416, %v6408
    %v7961 = vpack.c.b16 %v6417, %v6409
    %v7962 = vpack.c.b16 %v6418, %v6410
    %v7963 = vpack.c.b16 %v6419, %v6411
    %v7964 = vpack.c.b16 %v6420, %v6412
    %v7965 = vpack.c.b16 %v6429, %v6421
    %v7966 = vpack.c.b16 %v6430, %v6422
    %v7967 = vpack.c.b16 %v6431, %v6423
    %v7968 = vpack.c.b16 %v6432, %v6424
    %v7969 = vpack.c.b16 %v6433, %v6425
    %v7970 = vpack.c.b16 %v6434, %v6426
    %v7971 = vpack.c.b16 %v6435, %v6427
    %v7972 = vpack.c.b16 %v6436, %v6428
    %9509 = vmatprep.subr.bf16.mxu0 %v6494
    %9510 = vmatpush1.bf16.msra.mxu0 %v6493
    %9511 = vmatprep.subr.bf16.mxu0 %v6486
    %9512 = vmatpush1.bf16.msra.mxu0 %v6485
    %9513 = vmatprep.subr.bf16.mxu0 %v6478
    %9514 = vmatpush1.bf16.msra.mxu0 %v6477
    %9515 = vmatprep.subr.bf16.mxu0 %v6470
    %9516 = vmatpush1.bf16.msra.mxu0 %v6469
    %9517 = vmatprep.subr.bf16.mxu0 %v6462
    %9518 = vmatpush1.bf16.msra.mxu0 %v6461
    %9519 = vmatprep.subr.bf16.mxu0 %v6454
    %9520 = vmatpush1.bf16.msra.mxu0 %v6453
    %9521 = vmatprep.subr.bf16.mxu0 %v6446
    %9522 = vmatpush1.bf16.msra.mxu0 %v6445
    %9523 = vmatprep.subr.bf16.mxu0 %v6438
    %9524 = vmatpush1.bf16.msra.mxu0 %v6437
    %9525 = vmatprep.subr.bf16.mxu0 %v6558
    %9526 = vmatpush2.bf16.msra.mxu0 %v6557
    %9527 = vmatprep.subr.bf16.mxu0 %v6550
    %9528 = vmatpush2.bf16.msra.mxu0 %v6549
    %9529 = vmatprep.subr.bf16.mxu0 %v6542
    %9530 = vmatpush2.bf16.msra.mxu0 %v6541
    %9531 = vmatprep.subr.bf16.mxu0 %v6534
    %9532 = vmatpush2.bf16.msra.mxu0 %v6533
    %9533 = vmatprep.subr.bf16.mxu0 %v6526
    %9534 = vmatpush2.bf16.msra.mxu0 %v6525
    %9535 = vmatprep.subr.bf16.mxu0 %v6518
    %9536 = vmatpush2.bf16.msra.mxu0 %v6517
    %9537 = vmatprep.subr.bf16.mxu0 %v6510
    %9538 = vmatpush2.bf16.msra.mxu0 %v6509
    %9539 = vmatprep.subr.bf16.mxu0 %v6502
    %9540 = vmatpush2.bf16.msra.mxu0 %v6501
    %9541 = vmatprep.mubr.bf16.mxu0 %v228
    %9542 = vmatmul.mubr.bf16.gmra.mxu0 %v227
    %v9543 = vpop.f32.mrf.mxu0
    %v9544 = vadd.f32 %v1792, %v9543
    %v9545 = vpop.f32.mrf.mxu0
    %v9546 = vadd.f32 %v1796, %v9545
    %v9547 = vpop.f32.mrf.mxu0
    %v9548 = vadd.f32 %v1792, %v9547
    %v9549 = vpop.f32.mrf.mxu0
    %v9550 = vadd.f32 %v1796, %v9549
    %9551 = vdwg.mxu0
    %9552 = vmatprep.subr.bf16.mxu0 %v6622
    %9553 = vmatpush1.bf16.msra.mxu0 %v6621
    %9554 = vmatprep.subr.bf16.mxu0 %v6614
    %9555 = vmatpush1.bf16.msra.mxu0 %v6613
    %9556 = vmatprep.subr.bf16.mxu0 %v6606
    %9557 = vmatpush1.bf16.msra.mxu0 %v6605
    %9558 = vmatprep.subr.bf16.mxu0 %v6598
    %9559 = vmatpush1.bf16.msra.mxu0 %v6597
    %9560 = vmatprep.subr.bf16.mxu0 %v6590
    %9561 = vmatpush1.bf16.msra.mxu0 %v6589
    %9562 = vmatprep.subr.bf16.mxu0 %v6582
    %9563 = vmatpush1.bf16.msra.mxu0 %v6581
    %9564 = vmatprep.subr.bf16.mxu0 %v6574
    %9565 = vmatpush1.bf16.msra.mxu0 %v6573
    %9566 = vmatprep.subr.bf16.mxu0 %v6566
    %9567 = vmatpush1.bf16.msra.mxu0 %v6565
    %9568 = vmatprep.subr.bf16.mxu0 %v6686
    %9569 = vmatpush2.bf16.msra.mxu0 %v6685
    %9570 = vmatprep.subr.bf16.mxu0 %v6678
    %9571 = vmatpush2.bf16.msra.mxu0 %v6677
    %9572 = vmatprep.subr.bf16.mxu0 %v6670
    %9573 = vmatpush2.bf16.msra.mxu0 %v6669
    %9574 = vmatprep.subr.bf16.mxu0 %v6662
    %9575 = vmatpush2.bf16.msra.mxu0 %v6661
    %9576 = vmatprep.subr.bf16.mxu0 %v6654
    %9577 = vmatpush2.bf16.msra.mxu0 %v6653
    %9578 = vmatprep.subr.bf16.mxu0 %v6646
    %9579 = vmatpush2.bf16.msra.mxu0 %v6645
    %9580 = vmatprep.subr.bf16.mxu0 %v6638
    %9581 = vmatpush2.bf16.msra.mxu0 %v6637
    %9582 = vmatprep.subr.bf16.mxu0 %v6630
    %9583 = vmatpush2.bf16.msra.mxu0 %v6629
    %9584 = vmatprep.mubr.bf16.mxu0 %v230
    %9585 = vmatmul.mubr.bf16.gmra.mxu0 %v229
    %v9586 = vpop.f32.mrf.mxu0
    %v9587 = vadd.f32 %v9544, %v9586
    %v9588 = vpop.f32.mrf.mxu0
    %v9589 = vadd.f32 %v9546, %v9588
    %v9590 = vpop.f32.mrf.mxu0
    %v9591 = vadd.f32 %v9548, %v9590
    %v9592 = vpop.f32.mrf.mxu0
    %v9593 = vadd.f32 %v9550, %v9592
    %9594 = vdwg.mxu0
    %9595 = vmatprep.subr.bf16.mxu0 %v6750
    %9596 = vmatpush1.bf16.msra.mxu0 %v6749
    %9597 = vmatprep.subr.bf16.mxu0 %v6742
    %9598 = vmatpush1.bf16.msra.mxu0 %v6741
    %9599 = vmatprep.subr.bf16.mxu0 %v6734
    %9600 = vmatpush1.bf16.msra.mxu0 %v6733
    %9601 = vmatprep.subr.bf16.mxu0 %v6726
    %9602 = vmatpush1.bf16.msra.mxu0 %v6725
    %9603 = vmatprep.subr.bf16.mxu0 %v6718
    %9604 = vmatpush1.bf16.msra.mxu0 %v6717
    %9605 = vmatprep.subr.bf16.mxu0 %v6710
    %9606 = vmatpush1.bf16.msra.mxu0 %v6709
    %9607 = vmatprep.subr.bf16.mxu0 %v6702
    %9608 = vmatpush1.bf16.msra.mxu0 %v6701
    %9609 = vmatprep.subr.bf16.mxu0 %v6694
    %9610 = vmatpush1.bf16.msra.mxu0 %v6693
    %9611 = vmatprep.subr.bf16.mxu0 %v6814
    %9612 = vmatpush2.bf16.msra.mxu0 %v6813
    %9613 = vmatprep.subr.bf16.mxu0 %v6806
    %9614 = vmatpush2.bf16.msra.mxu0 %v6805
    %9615 = vmatprep.subr.bf16.mxu0 %v6798
    %9616 = vmatpush2.bf16.msra.mxu0 %v6797
    %9617 = vmatprep.subr.bf16.mxu0 %v6790
    %9618 = vmatpush2.bf16.msra.mxu0 %v6789
    %9619 = vmatprep.subr.bf16.mxu0 %v6782
    %9620 = vmatpush2.bf16.msra.mxu0 %v6781
    %9621 = vmatprep.subr.bf16.mxu0 %v6774
    %9622 = vmatpush2.bf16.msra.mxu0 %v6773
    %9623 = vmatprep.subr.bf16.mxu0 %v6766
    %9624 = vmatpush2.bf16.msra.mxu0 %v6765
    %9625 = vmatprep.subr.bf16.mxu0 %v6758
    %9626 = vmatpush2.bf16.msra.mxu0 %v6757
    %9627 = vmatprep.mubr.bf16.mxu0 %v232
    %9628 = vmatmul.mubr.bf16.gmra.mxu0 %v231
    %v9629 = vpop.f32.mrf.mxu0
    %v9630 = vadd.f32 %v9587, %v9629
    %v9631 = vpop.f32.mrf.mxu0
    %v9632 = vadd.f32 %v9589, %v9631
    %v9633 = vpop.f32.mrf.mxu0
    %v9634 = vadd.f32 %v9591, %v9633
    %v9635 = vpop.f32.mrf.mxu0
    %v9636 = vadd.f32 %v9593, %v9635
    %9637 = vdwg.mxu0
    %9638 = vmatprep.subr.bf16.mxu0 %v6878
    %9639 = vmatpush1.bf16.msra.mxu0 %v6877
    %9640 = vmatprep.subr.bf16.mxu0 %v6870
    %9641 = vmatpush1.bf16.msra.mxu0 %v6869
    %9642 = vmatprep.subr.bf16.mxu0 %v6862
    %9643 = vmatpush1.bf16.msra.mxu0 %v6861
    %9644 = vmatprep.subr.bf16.mxu0 %v6854
    %9645 = vmatpush1.bf16.msra.mxu0 %v6853
    %9646 = vmatprep.subr.bf16.mxu0 %v6846
    %9647 = vmatpush1.bf16.msra.mxu0 %v6845
    %9648 = vmatprep.subr.bf16.mxu0 %v6838
    %9649 = vmatpush1.bf16.msra.mxu0 %v6837
    %9650 = vmatprep.subr.bf16.mxu0 %v6830
    %9651 = vmatpush1.bf16.msra.mxu0 %v6829
    %9652 = vmatprep.subr.bf16.mxu0 %v6822
    %9653 = vmatpush1.bf16.msra.mxu0 %v6821
    %9654 = vmatprep.subr.bf16.mxu0 %v6942
    %9655 = vmatpush2.bf16.msra.mxu0 %v6941
    %9656 = vmatprep.subr.bf16.mxu0 %v6934
    %9657 = vmatpush2.bf16.msra.mxu0 %v6933
    %9658 = vmatprep.subr.bf16.mxu0 %v6926
    %9659 = vmatpush2.bf16.msra.mxu0 %v6925
    %9660 = vmatprep.subr.bf16.mxu0 %v6918
    %9661 = vmatpush2.bf16.msra.mxu0 %v6917
    %9662 = vmatprep.subr.bf16.mxu0 %v6910
    %9663 = vmatpush2.bf16.msra.mxu0 %v6909
    %9664 = vmatprep.subr.bf16.mxu0 %v6902
    %9665 = vmatpush2.bf16.msra.mxu0 %v6901
    %9666 = vmatprep.subr.bf16.mxu0 %v6894
    %9667 = vmatpush2.bf16.msra.mxu0 %v6893
    %9668 = vmatprep.subr.bf16.mxu0 %v6886
    %9669 = vmatpush2.bf16.msra.mxu0 %v6885
    %9670 = vmatprep.mubr.bf16.mxu0 %v234
    %9671 = vmatmul.mubr.bf16.gmra.mxu0 %v233
    %v9672 = vpop.f32.mrf.mxu0
    %v9673 = vadd.f32 %v9630, %v9672
    %v9674 = vpop.f32.mrf.mxu0
    %v9675 = vadd.f32 %v9632, %v9674
    %v9676 = vpop.f32.mrf.mxu0
    %v9677 = vadd.f32 %v9634, %v9676
    %v9678 = vpop.f32.mrf.mxu0
    %v9679 = vadd.f32 %v9636, %v9678
    %9680 = vdwg.mxu0
    %9681 = vmatprep.subr.bf16.mxu0 %v7006
    %9682 = vmatpush1.bf16.msra.mxu0 %v7005
    %9683 = vmatprep.subr.bf16.mxu0 %v6998
    %9684 = vmatpush1.bf16.msra.mxu0 %v6997
    %9685 = vmatprep.subr.bf16.mxu0 %v6990
    %9686 = vmatpush1.bf16.msra.mxu0 %v6989
    %9687 = vmatprep.subr.bf16.mxu0 %v6982
    %9688 = vmatpush1.bf16.msra.mxu0 %v6981
    %9689 = vmatprep.subr.bf16.mxu0 %v6974
    %9690 = vmatpush1.bf16.msra.mxu0 %v6973
    %9691 = vmatprep.subr.bf16.mxu0 %v6966
    %9692 = vmatpush1.bf16.msra.mxu0 %v6965
    %9693 = vmatprep.subr.bf16.mxu0 %v6958
    %9694 = vmatpush1.bf16.msra.mxu0 %v6957
    %9695 = vmatprep.subr.bf16.mxu0 %v6950
    %9696 = vmatpush1.bf16.msra.mxu0 %v6949
    %9697 = vmatprep.subr.bf16.mxu0 %v7070
    %9698 = vmatpush2.bf16.msra.mxu0 %v7069
    %9699 = vmatprep.subr.bf16.mxu0 %v7062
    %9700 = vmatpush2.bf16.msra.mxu0 %v7061
    %9701 = vmatprep.subr.bf16.mxu0 %v7054
    %9702 = vmatpush2.bf16.msra.mxu0 %v7053
    %9703 = vmatprep.subr.bf16.mxu0 %v7046
    %9704 = vmatpush2.bf16.msra.mxu0 %v7045
    %9705 = vmatprep.subr.bf16.mxu0 %v7038
    %9706 = vmatpush2.bf16.msra.mxu0 %v7037
    %9707 = vmatprep.subr.bf16.mxu0 %v7030
    %9708 = vmatpush2.bf16.msra.mxu0 %v7029
    %9709 = vmatprep.subr.bf16.mxu0 %v7022
    %9710 = vmatpush2.bf16.msra.mxu0 %v7021
    %9711 = vmatprep.subr.bf16.mxu0 %v7014
    %9712 = vmatpush2.bf16.msra.mxu0 %v7013
    %9713 = vmatprep.mubr.bf16.mxu0 %v236
    %9714 = vmatmul.mubr.bf16.gmra.mxu0 %v235
    %v9715 = vpop.f32.mrf.mxu0
    %v9716 = vadd.f32 %v9673, %v9715
    %v9717 = vpop.f32.mrf.mxu0
    %v9718 = vadd.f32 %v9675, %v9717
    %v9719 = vpop.f32.mrf.mxu0
    %v9720 = vadd.f32 %v9677, %v9719
    %v9721 = vpop.f32.mrf.mxu0
    %v9722 = vadd.f32 %v9679, %v9721
    %9723 = vdwg.mxu0
    %9724 = vmatprep.subr.bf16.mxu0 %v7134
    %9725 = vmatpush1.bf16.msra.mxu0 %v7133
    %9726 = vmatprep.subr.bf16.mxu0 %v7126
    %9727 = vmatpush1.bf16.msra.mxu0 %v7125
    %9728 = vmatprep.subr.bf16.mxu0 %v7118
    %9729 = vmatpush1.bf16.msra.mxu0 %v7117
    %9730 = vmatprep.subr.bf16.mxu0 %v7110
    %9731 = vmatpush1.bf16.msra.mxu0 %v7109
    %9732 = vmatprep.subr.bf16.mxu0 %v7102
    %9733 = vmatpush1.bf16.msra.mxu0 %v7101
    %9734 = vmatprep.subr.bf16.mxu0 %v7094
    %9735 = vmatpush1.bf16.msra.mxu0 %v7093
    %9736 = vmatprep.subr.bf16.mxu0 %v7086
    %9737 = vmatpush1.bf16.msra.mxu0 %v7085
    %9738 = vmatprep.subr.bf16.mxu0 %v7078
    %9739 = vmatpush1.bf16.msra.mxu0 %v7077
    %9740 = vmatprep.subr.bf16.mxu0 %v7198
    %9741 = vmatpush2.bf16.msra.mxu0 %v7197
    %9742 = vmatprep.subr.bf16.mxu0 %v7190
    %9743 = vmatpush2.bf16.msra.mxu0 %v7189
    %9744 = vmatprep.subr.bf16.mxu0 %v7182
    %9745 = vmatpush2.bf16.msra.mxu0 %v7181
    %9746 = vmatprep.subr.bf16.mxu0 %v7174
    %9747 = vmatpush2.bf16.msra.mxu0 %v7173
    %9748 = vmatprep.subr.bf16.mxu0 %v7166
    %9749 = vmatpush2.bf16.msra.mxu0 %v7165
    %9750 = vmatprep.subr.bf16.mxu0 %v7158
    %9751 = vmatpush2.bf16.msra.mxu0 %v7157
    %9752 = vmatprep.subr.bf16.mxu0 %v7150
    %9753 = vmatpush2.bf16.msra.mxu0 %v7149
    %9754 = vmatprep.subr.bf16.mxu0 %v7142
    %9755 = vmatpush2.bf16.msra.mxu0 %v7141
    %9756 = vmatprep.mubr.bf16.mxu0 %v238
    %9757 = vmatmul.mubr.bf16.gmra.mxu0 %v237
    %v9758 = vpop.f32.mrf.mxu0
    %v9759 = vadd.f32 %v9716, %v9758
    %v9760 = vpop.f32.mrf.mxu0
    %v9761 = vadd.f32 %v9718, %v9760
    %v9762 = vpop.f32.mrf.mxu0
    %v9763 = vadd.f32 %v9720, %v9762
    %v9764 = vpop.f32.mrf.mxu0
    %v9765 = vadd.f32 %v9722, %v9764
    %9766 = vdwg.mxu0
    %9767 = vmatprep.subr.bf16.mxu0 %v7262
    %9768 = vmatpush1.bf16.msra.mxu0 %v7261
    %9769 = vmatprep.subr.bf16.mxu0 %v7254
    %9770 = vmatpush1.bf16.msra.mxu0 %v7253
    %9771 = vmatprep.subr.bf16.mxu0 %v7246
    %9772 = vmatpush1.bf16.msra.mxu0 %v7245
    %9773 = vmatprep.subr.bf16.mxu0 %v7238
    %9774 = vmatpush1.bf16.msra.mxu0 %v7237
    %9775 = vmatprep.subr.bf16.mxu0 %v7230
    %9776 = vmatpush1.bf16.msra.mxu0 %v7229
    %9777 = vmatprep.subr.bf16.mxu0 %v7222
    %9778 = vmatpush1.bf16.msra.mxu0 %v7221
    %9779 = vmatprep.subr.bf16.mxu0 %v7214
    %9780 = vmatpush1.bf16.msra.mxu0 %v7213
    %9781 = vmatprep.subr.bf16.mxu0 %v7206
    %9782 = vmatpush1.bf16.msra.mxu0 %v7205
    %9783 = vmatprep.subr.bf16.mxu0 %v7326
    %9784 = vmatpush2.bf16.msra.mxu0 %v7325
    %9785 = vmatprep.subr.bf16.mxu0 %v7318
    %9786 = vmatpush2.bf16.msra.mxu0 %v7317
    %9787 = vmatprep.subr.bf16.mxu0 %v7310
    %9788 = vmatpush2.bf16.msra.mxu0 %v7309
    %9789 = vmatprep.subr.bf16.mxu0 %v7302
    %9790 = vmatpush2.bf16.msra.mxu0 %v7301
    %9791 = vmatprep.subr.bf16.mxu0 %v7294
    %9792 = vmatpush2.bf16.msra.mxu0 %v7293
    %9793 = vmatprep.subr.bf16.mxu0 %v7286
    %9794 = vmatpush2.bf16.msra.mxu0 %v7285
    %9795 = vmatprep.subr.bf16.mxu0 %v7278
    %9796 = vmatpush2.bf16.msra.mxu0 %v7277
    %9797 = vmatprep.subr.bf16.mxu0 %v7270
    %9798 = vmatpush2.bf16.msra.mxu0 %v7269
    %9799 = vmatprep.mubr.bf16.mxu0 %v240
    %9800 = vmatmul.mubr.bf16.gmra.mxu0 %v239
    %v9801 = vpop.f32.mrf.mxu0
    %v9802 = vadd.f32 %v9759, %v9801
    %v9803 = vpop.f32.mrf.mxu0
    %v9804 = vadd.f32 %v9761, %v9803
    %v9805 = vpop.f32.mrf.mxu0
    %v9806 = vadd.f32 %v9763, %v9805
    %v9807 = vpop.f32.mrf.mxu0
    %v9808 = vadd.f32 %v9765, %v9807
    %9809 = vdwg.mxu0
    %9810 = vmatprep.subr.bf16.mxu0 %v7390
    %9811 = vmatpush1.bf16.msra.mxu0 %v7389
    %9812 = vmatprep.subr.bf16.mxu0 %v7382
    %9813 = vmatpush1.bf16.msra.mxu0 %v7381
    %9814 = vmatprep.subr.bf16.mxu0 %v7374
    %9815 = vmatpush1.bf16.msra.mxu0 %v7373
    %9816 = vmatprep.subr.bf16.mxu0 %v7366
    %9817 = vmatpush1.bf16.msra.mxu0 %v7365
    %9818 = vmatprep.subr.bf16.mxu0 %v7358
    %9819 = vmatpush1.bf16.msra.mxu0 %v7357
    %9820 = vmatprep.subr.bf16.mxu0 %v7350
    %9821 = vmatpush1.bf16.msra.mxu0 %v7349
    %9822 = vmatprep.subr.bf16.mxu0 %v7342
    %9823 = vmatpush1.bf16.msra.mxu0 %v7341
    %9824 = vmatprep.subr.bf16.mxu0 %v7334
    %9825 = vmatpush1.bf16.msra.mxu0 %v7333
    %9826 = vmatprep.subr.bf16.mxu0 %v7454
    %9827 = vmatpush2.bf16.msra.mxu0 %v7453
    %9828 = vmatprep.subr.bf16.mxu0 %v7446
    %9829 = vmatpush2.bf16.msra.mxu0 %v7445
    %9830 = vmatprep.subr.bf16.mxu0 %v7438
    %9831 = vmatpush2.bf16.msra.mxu0 %v7437
    %9832 = vmatprep.subr.bf16.mxu0 %v7430
    %9833 = vmatpush2.bf16.msra.mxu0 %v7429
    %9834 = vmatprep.subr.bf16.mxu0 %v7422
    %9835 = vmatpush2.bf16.msra.mxu0 %v7421
    %9836 = vmatprep.subr.bf16.mxu0 %v7414
    %9837 = vmatpush2.bf16.msra.mxu0 %v7413
    %9838 = vmatprep.subr.bf16.mxu0 %v7406
    %9839 = vmatpush2.bf16.msra.mxu0 %v7405
    %9840 = vmatprep.subr.bf16.mxu0 %v7398
    %9841 = vmatpush2.bf16.msra.mxu0 %v7397
    %9842 = vmatprep.mubr.bf16.mxu0 %v242
    %9843 = vmatmul.mubr.bf16.gmra.mxu0 %v241
    %v9844 = vpop.f32.mrf.mxu0
    %v9845 = vadd.f32 %v9802, %v9844
    %v9846 = vpop.f32.mrf.mxu0
    %v9847 = vadd.f32 %v9804, %v9846
    %v9848 = vpop.f32.mrf.mxu0
    %v9849 = vadd.f32 %v9806, %v9848
    %v9850 = vpop.f32.mrf.mxu0
    %v9851 = vadd.f32 %v9808, %v9850
    %9852 = vdwg.mxu0
    %9853 = vmatprep.subr.bf16.mxu0 %v7518
    %9854 = vmatpush1.bf16.msra.mxu0 %v7517
    %9855 = vmatprep.subr.bf16.mxu0 %v7510
    %9856 = vmatpush1.bf16.msra.mxu0 %v7509
    %9857 = vmatprep.subr.bf16.mxu0 %v7502
    %9858 = vmatpush1.bf16.msra.mxu0 %v7501
    %9859 = vmatprep.subr.bf16.mxu0 %v7494
    %9860 = vmatpush1.bf16.msra.mxu0 %v7493
    %9861 = vmatprep.subr.bf16.mxu0 %v7486
    %9862 = vmatpush1.bf16.msra.mxu0 %v7485
    %9863 = vmatprep.subr.bf16.mxu0 %v7478
    %9864 = vmatpush1.bf16.msra.mxu0 %v7477
    %9865 = vmatprep.subr.bf16.mxu0 %v7470
    %9866 = vmatpush1.bf16.msra.mxu0 %v7469
    %9867 = vmatprep.subr.bf16.mxu0 %v7462
    %9868 = vmatpush1.bf16.msra.mxu0 %v7461
    %9869 = vmatprep.subr.bf16.mxu0 %v7582
    %9870 = vmatpush2.bf16.msra.mxu0 %v7581
    %9871 = vmatprep.subr.bf16.mxu0 %v7574
    %9872 = vmatpush2.bf16.msra.mxu0 %v7573
    %9873 = vmatprep.subr.bf16.mxu0 %v7566
    %9874 = vmatpush2.bf16.msra.mxu0 %v7565
    %9875 = vmatprep.subr.bf16.mxu0 %v7558
    %9876 = vmatpush2.bf16.msra.mxu0 %v7557
    %9877 = vmatprep.subr.bf16.mxu0 %v7550
    %9878 = vmatpush2.bf16.msra.mxu0 %v7549
    %9879 = vmatprep.subr.bf16.mxu0 %v7542
    %9880 = vmatpush2.bf16.msra.mxu0 %v7541
    %9881 = vmatprep.subr.bf16.mxu0 %v7534
    %9882 = vmatpush2.bf16.msra.mxu0 %v7533
    %9883 = vmatprep.subr.bf16.mxu0 %v7526
    %9884 = vmatpush2.bf16.msra.mxu0 %v7525
    %9885 = vmatprep.mubr.bf16.mxu0 %v244
    %9886 = vmatmul.mubr.bf16.gmra.mxu0 %v243
    %v9887 = vpop.f32.mrf.mxu0
    %v9888 = vadd.f32 %v9845, %v9887
    %v9889 = vpop.f32.mrf.mxu0
    %v9890 = vadd.f32 %v9847, %v9889
    %v9891 = vpop.f32.mrf.mxu0
    %v9892 = vadd.f32 %v9849, %v9891
    %v9893 = vpop.f32.mrf.mxu0
    %v9894 = vadd.f32 %v9851, %v9893
    %9895 = vdwg.mxu0
    %9896 = vmatprep.subr.bf16.mxu0 %v7646
    %9897 = vmatpush1.bf16.msra.mxu0 %v7645
    %9898 = vmatprep.subr.bf16.mxu0 %v7638
    %9899 = vmatpush1.bf16.msra.mxu0 %v7637
    %9900 = vmatprep.subr.bf16.mxu0 %v7630
    %9901 = vmatpush1.bf16.msra.mxu0 %v7629
    %9902 = vmatprep.subr.bf16.mxu0 %v7622
    %9903 = vmatpush1.bf16.msra.mxu0 %v7621
    %9904 = vmatprep.subr.bf16.mxu0 %v7614
    %9905 = vmatpush1.bf16.msra.mxu0 %v7613
    %9906 = vmatprep.subr.bf16.mxu0 %v7606
    %9907 = vmatpush1.bf16.msra.mxu0 %v7605
    %9908 = vmatprep.subr.bf16.mxu0 %v7598
    %9909 = vmatpush1.bf16.msra.mxu0 %v7597
    %9910 = vmatprep.subr.bf16.mxu0 %v7590
    %9911 = vmatpush1.bf16.msra.mxu0 %v7589
    %9912 = vmatprep.subr.bf16.mxu0 %v7710
    %9913 = vmatpush2.bf16.msra.mxu0 %v7709
    %9914 = vmatprep.subr.bf16.mxu0 %v7702
    %9915 = vmatpush2.bf16.msra.mxu0 %v7701
    %9916 = vmatprep.subr.bf16.mxu0 %v7694
    %9917 = vmatpush2.bf16.msra.mxu0 %v7693
    %9918 = vmatprep.subr.bf16.mxu0 %v7686
    %9919 = vmatpush2.bf16.msra.mxu0 %v7685
    %9920 = vmatprep.subr.bf16.mxu0 %v7678
    %9921 = vmatpush2.bf16.msra.mxu0 %v7677
    %9922 = vmatprep.subr.bf16.mxu0 %v7670
    %9923 = vmatpush2.bf16.msra.mxu0 %v7669
    %9924 = vmatprep.subr.bf16.mxu0 %v7662
    %9925 = vmatpush2.bf16.msra.mxu0 %v7661
    %9926 = vmatprep.subr.bf16.mxu0 %v7654
    %9927 = vmatpush2.bf16.msra.mxu0 %v7653
    %9928 = vmatprep.mubr.bf16.mxu0 %v246
    %9929 = vmatmul.mubr.bf16.gmra.mxu0 %v245
    %v9930 = vpop.f32.mrf.mxu0
    %v9931 = vadd.f32 %v9888, %v9930
    %v9932 = vpop.f32.mrf.mxu0
    %v9933 = vadd.f32 %v9890, %v9932
    %v9934 = vpop.f32.mrf.mxu0
    %v9935 = vadd.f32 %v9892, %v9934
    %v9936 = vpop.f32.mrf.mxu0
    %v9937 = vadd.f32 %v9894, %v9936
    %9938 = vdwg.mxu0
    %9939 = vmatprep.subr.bf16.mxu0 %v7774
    %9940 = vmatpush1.bf16.msra.mxu0 %v7773
    %9941 = vmatprep.subr.bf16.mxu0 %v7766
    %9942 = vmatpush1.bf16.msra.mxu0 %v7765
    %9943 = vmatprep.subr.bf16.mxu0 %v7758
    %9944 = vmatpush1.bf16.msra.mxu0 %v7757
    %9945 = vmatprep.subr.bf16.mxu0 %v7750
    %9946 = vmatpush1.bf16.msra.mxu0 %v7749
    %9947 = vmatprep.subr.bf16.mxu0 %v7742
    %9948 = vmatpush1.bf16.msra.mxu0 %v7741
    %9949 = vmatprep.subr.bf16.mxu0 %v7734
    %9950 = vmatpush1.bf16.msra.mxu0 %v7733
    %9951 = vmatprep.subr.bf16.mxu0 %v7726
    %9952 = vmatpush1.bf16.msra.mxu0 %v7725
    %9953 = vmatprep.subr.bf16.mxu0 %v7718
    %9954 = vmatpush1.bf16.msra.mxu0 %v7717
    %9955 = vmatprep.subr.bf16.mxu0 %v7838
    %9956 = vmatpush2.bf16.msra.mxu0 %v7837
    %9957 = vmatprep.subr.bf16.mxu0 %v7830
    %9958 = vmatpush2.bf16.msra.mxu0 %v7829
    %9959 = vmatprep.subr.bf16.mxu0 %v7822
    %9960 = vmatpush2.bf16.msra.mxu0 %v7821
    %9961 = vmatprep.subr.bf16.mxu0 %v7814
    %9962 = vmatpush2.bf16.msra.mxu0 %v7813
    %9963 = vmatprep.subr.bf16.mxu0 %v7806
    %9964 = vmatpush2.bf16.msra.mxu0 %v7805
    %9965 = vmatprep.subr.bf16.mxu0 %v7798
    %9966 = vmatpush2.bf16.msra.mxu0 %v7797
    %9967 = vmatprep.subr.bf16.mxu0 %v7790
    %9968 = vmatpush2.bf16.msra.mxu0 %v7789
    %9969 = vmatprep.subr.bf16.mxu0 %v7782
    %9970 = vmatpush2.bf16.msra.mxu0 %v7781
    %9971 = vmatprep.mubr.bf16.mxu0 %v248
    %9972 = vmatmul.mubr.bf16.gmra.mxu0 %v247
    %v9973 = vpop.f32.mrf.mxu0
    %v9974 = vadd.f32 %v9931, %v9973
    %v9975 = vpop.f32.mrf.mxu0
    %v9976 = vadd.f32 %v9933, %v9975
    %v9977 = vpop.f32.mrf.mxu0
    %v9978 = vadd.f32 %v9935, %v9977
    %v9979 = vpop.f32.mrf.mxu0
    %v9980 = vadd.f32 %v9937, %v9979
    %9981 = vdwg.mxu0
    %9982 = vmatprep.subr.bf16.mxu0 %v7902
    %9983 = vmatpush1.bf16.msra.mxu0 %v7901
    %9984 = vmatprep.subr.bf16.mxu0 %v7894
    %9985 = vmatpush1.bf16.msra.mxu0 %v7893
    %9986 = vmatprep.subr.bf16.mxu0 %v7886
    %9987 = vmatpush1.bf16.msra.mxu0 %v7885
    %9988 = vmatprep.subr.bf16.mxu0 %v7878
    %9989 = vmatpush1.bf16.msra.mxu0 %v7877
    %9990 = vmatprep.subr.bf16.mxu0 %v7870
    %9991 = vmatpush1.bf16.msra.mxu0 %v7869
    %9992 = vmatprep.subr.bf16.mxu0 %v7862
    %9993 = vmatpush1.bf16.msra.mxu0 %v7861
    %9994 = vmatprep.subr.bf16.mxu0 %v7854
    %9995 = vmatpush1.bf16.msra.mxu0 %v7853
    %9996 = vmatprep.subr.bf16.mxu0 %v7846
    %9997 = vmatpush1.bf16.msra.mxu0 %v7845
    %9998 = vmatprep.subr.bf16.mxu0 %v7966
    %9999 = vmatpush2.bf16.msra.mxu0 %v7965
    %10000 = vmatprep.subr.bf16.mxu0 %v7958
    %10001 = vmatpush2.bf16.msra.mxu0 %v7957
    %10002 = vmatprep.subr.bf16.mxu0 %v7950
    %10003 = vmatpush2.bf16.msra.mxu0 %v7949
    %10004 = vmatprep.subr.bf16.mxu0 %v7942
    %10005 = vmatpush2.bf16.msra.mxu0 %v7941
    %10006 = vmatprep.subr.bf16.mxu0 %v7934
    %10007 = vmatpush2.bf16.msra.mxu0 %v7933
    %10008 = vmatprep.subr.bf16.mxu0 %v7926
    %10009 = vmatpush2.bf16.msra.mxu0 %v7925
    %10010 = vmatprep.subr.bf16.mxu0 %v7918
    %10011 = vmatpush2.bf16.msra.mxu0 %v7917
    %10012 = vmatprep.subr.bf16.mxu0 %v7910
    %10013 = vmatpush2.bf16.msra.mxu0 %v7909
    %10014 = vmatprep.mubr.bf16.mxu0 %v250
    %10015 = vmatmul.mubr.bf16.gmra.mxu0 %v249
    %v10016 = vpop.f32.mrf.mxu0
    %v10017 = vadd.f32 %v9974, %v10016
    %v10018 = vpop.f32.mrf.mxu0
    %v10019 = vadd.f32 %v9976, %v10018
    %v10020 = vpop.f32.mrf.mxu0
    %v10021 = vadd.f32 %v9978, %v10020
    %v10022 = vpop.f32.mrf.mxu0
    %v10023 = vadd.f32 %v9980, %v10022
    %10024 = vdwg.mxu0
    %10025 = vmatprep.subr.bf16.mxu0 %v6496
    %10026 = vmatpush1.bf16.msra.mxu0 %v6495
    %10027 = vmatprep.subr.bf16.mxu0 %v6488
    %10028 = vmatpush1.bf16.msra.mxu0 %v6487
    %10029 = vmatprep.subr.bf16.mxu0 %v6480
    %10030 = vmatpush1.bf16.msra.mxu0 %v6479
    %10031 = vmatprep.subr.bf16.mxu0 %v6472
    %10032 = vmatpush1.bf16.msra.mxu0 %v6471
    %10033 = vmatprep.subr.bf16.mxu0 %v6464
    %10034 = vmatpush1.bf16.msra.mxu0 %v6463
    %10035 = vmatprep.subr.bf16.mxu0 %v6456
    %10036 = vmatpush1.bf16.msra.mxu0 %v6455
    %10037 = vmatprep.subr.bf16.mxu0 %v6448
    %10038 = vmatpush1.bf16.msra.mxu0 %v6447
    %10039 = vmatprep.subr.bf16.mxu0 %v6440
    %10040 = vmatpush1.bf16.msra.mxu0 %v6439
    %10041 = vmatprep.subr.bf16.mxu0 %v6560
    %10042 = vmatpush2.bf16.msra.mxu0 %v6559
    %10043 = vmatprep.subr.bf16.mxu0 %v6552
    %10044 = vmatpush2.bf16.msra.mxu0 %v6551
    %10045 = vmatprep.subr.bf16.mxu0 %v6544
    %10046 = vmatpush2.bf16.msra.mxu0 %v6543
    %10047 = vmatprep.subr.bf16.mxu0 %v6536
    %10048 = vmatpush2.bf16.msra.mxu0 %v6535
    %10049 = vmatprep.subr.bf16.mxu0 %v6528
    %10050 = vmatpush2.bf16.msra.mxu0 %v6527
    %10051 = vmatprep.subr.bf16.mxu0 %v6520
    %10052 = vmatpush2.bf16.msra.mxu0 %v6519
    %10053 = vmatprep.subr.bf16.mxu0 %v6512
    %10054 = vmatpush2.bf16.msra.mxu0 %v6511
    %10055 = vmatprep.subr.bf16.mxu0 %v6504
    %10056 = vmatpush2.bf16.msra.mxu0 %v6503
    %10057 = vmatprep.mubr.bf16.mxu0 %v228
    %10058 = vmatmul.mubr.bf16.gmra.mxu0 %v227
    %v10059 = vpop.f32.mrf.mxu0
    %v10060 = vadd.f32 %v1800, %v10059
    %v10061 = vpop.f32.mrf.mxu0
    %v10062 = vadd.f32 %v1804, %v10061
    %v10063 = vpop.f32.mrf.mxu0
    %v10064 = vadd.f32 %v1800, %v10063
    %v10065 = vpop.f32.mrf.mxu0
    %v10066 = vadd.f32 %v1804, %v10065
    %10067 = vdwg.mxu0
    %10068 = vmatprep.subr.bf16.mxu0 %v6624
    %10069 = vmatpush1.bf16.msra.mxu0 %v6623
    %10070 = vmatprep.subr.bf16.mxu0 %v6616
    %10071 = vmatpush1.bf16.msra.mxu0 %v6615
    %10072 = vmatprep.subr.bf16.mxu0 %v6608
    %10073 = vmatpush1.bf16.msra.mxu0 %v6607
    %10074 = vmatprep.subr.bf16.mxu0 %v6600
    %10075 = vmatpush1.bf16.msra.mxu0 %v6599
    %10076 = vmatprep.subr.bf16.mxu0 %v6592
    %10077 = vmatpush1.bf16.msra.mxu0 %v6591
    %10078 = vmatprep.subr.bf16.mxu0 %v6584
    %10079 = vmatpush1.bf16.msra.mxu0 %v6583
    %10080 = vmatprep.subr.bf16.mxu0 %v6576
    %10081 = vmatpush1.bf16.msra.mxu0 %v6575
    %10082 = vmatprep.subr.bf16.mxu0 %v6568
    %10083 = vmatpush1.bf16.msra.mxu0 %v6567
    %10084 = vmatprep.subr.bf16.mxu0 %v6688
    %10085 = vmatpush2.bf16.msra.mxu0 %v6687
    %10086 = vmatprep.subr.bf16.mxu0 %v6680
    %10087 = vmatpush2.bf16.msra.mxu0 %v6679
    %10088 = vmatprep.subr.bf16.mxu0 %v6672
    %10089 = vmatpush2.bf16.msra.mxu0 %v6671
    %10090 = vmatprep.subr.bf16.mxu0 %v6664
    %10091 = vmatpush2.bf16.msra.mxu0 %v6663
    %10092 = vmatprep.subr.bf16.mxu0 %v6656
    %10093 = vmatpush2.bf16.msra.mxu0 %v6655
    %10094 = vmatprep.subr.bf16.mxu0 %v6648
    %10095 = vmatpush2.bf16.msra.mxu0 %v6647
    %10096 = vmatprep.subr.bf16.mxu0 %v6640
    %10097 = vmatpush2.bf16.msra.mxu0 %v6639
    %10098 = vmatprep.subr.bf16.mxu0 %v6632
    %10099 = vmatpush2.bf16.msra.mxu0 %v6631
    %10100 = vmatprep.mubr.bf16.mxu0 %v230
    %10101 = vmatmul.mubr.bf16.gmra.mxu0 %v229
    %v10102 = vpop.f32.mrf.mxu0
    %v10103 = vadd.f32 %v10060, %v10102
    %v10104 = vpop.f32.mrf.mxu0
    %v10105 = vadd.f32 %v10062, %v10104
    %v10106 = vpop.f32.mrf.mxu0
    %v10107 = vadd.f32 %v10064, %v10106
    %v10108 = vpop.f32.mrf.mxu0
    %v10109 = vadd.f32 %v10066, %v10108
    %10110 = vdwg.mxu0
    %10111 = vmatprep.subr.bf16.mxu0 %v6752
    %10112 = vmatpush1.bf16.msra.mxu0 %v6751
    %10113 = vmatprep.subr.bf16.mxu0 %v6744
    %10114 = vmatpush1.bf16.msra.mxu0 %v6743
    %10115 = vmatprep.subr.bf16.mxu0 %v6736
    %10116 = vmatpush1.bf16.msra.mxu0 %v6735
    %10117 = vmatprep.subr.bf16.mxu0 %v6728
    %10118 = vmatpush1.bf16.msra.mxu0 %v6727
    %10119 = vmatprep.subr.bf16.mxu0 %v6720
    %10120 = vmatpush1.bf16.msra.mxu0 %v6719
    %10121 = vmatprep.subr.bf16.mxu0 %v6712
    %10122 = vmatpush1.bf16.msra.mxu0 %v6711
    %10123 = vmatprep.subr.bf16.mxu0 %v6704
    %10124 = vmatpush1.bf16.msra.mxu0 %v6703
    %10125 = vmatprep.subr.bf16.mxu0 %v6696
    %10126 = vmatpush1.bf16.msra.mxu0 %v6695
    %10127 = vmatprep.subr.bf16.mxu0 %v6816
    %10128 = vmatpush2.bf16.msra.mxu0 %v6815
    %10129 = vmatprep.subr.bf16.mxu0 %v6808
    %10130 = vmatpush2.bf16.msra.mxu0 %v6807
    %10131 = vmatprep.subr.bf16.mxu0 %v6800
    %10132 = vmatpush2.bf16.msra.mxu0 %v6799
    %10133 = vmatprep.subr.bf16.mxu0 %v6792
    %10134 = vmatpush2.bf16.msra.mxu0 %v6791
    %10135 = vmatprep.subr.bf16.mxu0 %v6784
    %10136 = vmatpush2.bf16.msra.mxu0 %v6783
    %10137 = vmatprep.subr.bf16.mxu0 %v6776
    %10138 = vmatpush2.bf16.msra.mxu0 %v6775
    %10139 = vmatprep.subr.bf16.mxu0 %v6768
    %10140 = vmatpush2.bf16.msra.mxu0 %v6767
    %10141 = vmatprep.subr.bf16.mxu0 %v6760
    %10142 = vmatpush2.bf16.msra.mxu0 %v6759
    %10143 = vmatprep.mubr.bf16.mxu0 %v232
    %10144 = vmatmul.mubr.bf16.gmra.mxu0 %v231
    %v10145 = vpop.f32.mrf.mxu0
    %v10146 = vadd.f32 %v10103, %v10145
    %v10147 = vpop.f32.mrf.mxu0
    %v10148 = vadd.f32 %v10105, %v10147
    %v10149 = vpop.f32.mrf.mxu0
    %v10150 = vadd.f32 %v10107, %v10149
    %v10151 = vpop.f32.mrf.mxu0
    %v10152 = vadd.f32 %v10109, %v10151
    %10153 = vdwg.mxu0
    %10154 = vmatprep.subr.bf16.mxu0 %v6880
    %10155 = vmatpush1.bf16.msra.mxu0 %v6879
    %10156 = vmatprep.subr.bf16.mxu0 %v6872
    %10157 = vmatpush1.bf16.msra.mxu0 %v6871
    %10158 = vmatprep.subr.bf16.mxu0 %v6864
    %10159 = vmatpush1.bf16.msra.mxu0 %v6863
    %10160 = vmatprep.subr.bf16.mxu0 %v6856
    %10161 = vmatpush1.bf16.msra.mxu0 %v6855
    %10162 = vmatprep.subr.bf16.mxu0 %v6848
    %10163 = vmatpush1.bf16.msra.mxu0 %v6847
    %10164 = vmatprep.subr.bf16.mxu0 %v6840
    %10165 = vmatpush1.bf16.msra.mxu0 %v6839
    %10166 = vmatprep.subr.bf16.mxu0 %v6832
    %10167 = vmatpush1.bf16.msra.mxu0 %v6831
    %10168 = vmatprep.subr.bf16.mxu0 %v6824
    %10169 = vmatpush1.bf16.msra.mxu0 %v6823
    %10170 = vmatprep.subr.bf16.mxu0 %v6944
    %10171 = vmatpush2.bf16.msra.mxu0 %v6943
    %10172 = vmatprep.subr.bf16.mxu0 %v6936
    %10173 = vmatpush2.bf16.msra.mxu0 %v6935
    %10174 = vmatprep.subr.bf16.mxu0 %v6928
    %10175 = vmatpush2.bf16.msra.mxu0 %v6927
    %10176 = vmatprep.subr.bf16.mxu0 %v6920
    %10177 = vmatpush2.bf16.msra.mxu0 %v6919
    %10178 = vmatprep.subr.bf16.mxu0 %v6912
    %10179 = vmatpush2.bf16.msra.mxu0 %v6911
    %10180 = vmatprep.subr.bf16.mxu0 %v6904
    %10181 = vmatpush2.bf16.msra.mxu0 %v6903
    %10182 = vmatprep.subr.bf16.mxu0 %v6896
    %10183 = vmatpush2.bf16.msra.mxu0 %v6895
    %10184 = vmatprep.subr.bf16.mxu0 %v6888
    %10185 = vmatpush2.bf16.msra.mxu0 %v6887
    %10186 = vmatprep.mubr.bf16.mxu0 %v234
    %10187 = vmatmul.mubr.bf16.gmra.mxu0 %v233
    %v10188 = vpop.f32.mrf.mxu0
    %v10189 = vadd.f32 %v10146, %v10188
    %v10190 = vpop.f32.mrf.mxu0
    %v10191 = vadd.f32 %v10148, %v10190
    %v10192 = vpop.f32.mrf.mxu0
    %v10193 = vadd.f32 %v10150, %v10192
    %v10194 = vpop.f32.mrf.mxu0
    %v10195 = vadd.f32 %v10152, %v10194
    %10196 = vdwg.mxu0
    %10197 = vmatprep.subr.bf16.mxu0 %v7008
    %10198 = vmatpush1.bf16.msra.mxu0 %v7007
    %10199 = vmatprep.subr.bf16.mxu0 %v7000
    %10200 = vmatpush1.bf16.msra.mxu0 %v6999
    %10201 = vmatprep.subr.bf16.mxu0 %v6992
    %10202 = vmatpush1.bf16.msra.mxu0 %v6991
    %10203 = vmatprep.subr.bf16.mxu0 %v6984
    %10204 = vmatpush1.bf16.msra.mxu0 %v6983
    %10205 = vmatprep.subr.bf16.mxu0 %v6976
    %10206 = vmatpush1.bf16.msra.mxu0 %v6975
    %10207 = vmatprep.subr.bf16.mxu0 %v6968
    %10208 = vmatpush1.bf16.msra.mxu0 %v6967
    %10209 = vmatprep.subr.bf16.mxu0 %v6960
    %10210 = vmatpush1.bf16.msra.mxu0 %v6959
    %10211 = vmatprep.subr.bf16.mxu0 %v6952
    %10212 = vmatpush1.bf16.msra.mxu0 %v6951
    %10213 = vmatprep.subr.bf16.mxu0 %v7072
    %10214 = vmatpush2.bf16.msra.mxu0 %v7071
    %10215 = vmatprep.subr.bf16.mxu0 %v7064
    %10216 = vmatpush2.bf16.msra.mxu0 %v7063
    %10217 = vmatprep.subr.bf16.mxu0 %v7056
    %10218 = vmatpush2.bf16.msra.mxu0 %v7055
    %10219 = vmatprep.subr.bf16.mxu0 %v7048
    %10220 = vmatpush2.bf16.msra.mxu0 %v7047
    %10221 = vmatprep.subr.bf16.mxu0 %v7040
    %10222 = vmatpush2.bf16.msra.mxu0 %v7039
    %10223 = vmatprep.subr.bf16.mxu0 %v7032
    %10224 = vmatpush2.bf16.msra.mxu0 %v7031
    %10225 = vmatprep.subr.bf16.mxu0 %v7024
    %10226 = vmatpush2.bf16.msra.mxu0 %v7023
    %10227 = vmatprep.subr.bf16.mxu0 %v7016
    %10228 = vmatpush2.bf16.msra.mxu0 %v7015
    %10229 = vmatprep.mubr.bf16.mxu0 %v236
    %10230 = vmatmul.mubr.bf16.gmra.mxu0 %v235
    %v10231 = vpop.f32.mrf.mxu0
    %v10232 = vadd.f32 %v10189, %v10231
    %v10233 = vpop.f32.mrf.mxu0
    %v10234 = vadd.f32 %v10191, %v10233
    %v10235 = vpop.f32.mrf.mxu0
    %v10236 = vadd.f32 %v10193, %v10235
    %v10237 = vpop.f32.mrf.mxu0
    %v10238 = vadd.f32 %v10195, %v10237
    %10239 = vdwg.mxu0
    %10240 = vmatprep.subr.bf16.mxu0 %v7136
    %10241 = vmatpush1.bf16.msra.mxu0 %v7135
    %10242 = vmatprep.subr.bf16.mxu0 %v7128
    %10243 = vmatpush1.bf16.msra.mxu0 %v7127
    %10244 = vmatprep.subr.bf16.mxu0 %v7120
    %10245 = vmatpush1.bf16.msra.mxu0 %v7119
    %10246 = vmatprep.subr.bf16.mxu0 %v7112
    %10247 = vmatpush1.bf16.msra.mxu0 %v7111
    %10248 = vmatprep.subr.bf16.mxu0 %v7104
    %10249 = vmatpush1.bf16.msra.mxu0 %v7103
    %10250 = vmatprep.subr.bf16.mxu0 %v7096
    %10251 = vmatpush1.bf16.msra.mxu0 %v7095
    %10252 = vmatprep.subr.bf16.mxu0 %v7088
    %10253 = vmatpush1.bf16.msra.mxu0 %v7087
    %10254 = vmatprep.subr.bf16.mxu0 %v7080
    %10255 = vmatpush1.bf16.msra.mxu0 %v7079
    %10256 = vmatprep.subr.bf16.mxu0 %v7200
    %10257 = vmatpush2.bf16.msra.mxu0 %v7199
    %10258 = vmatprep.subr.bf16.mxu0 %v7192
    %10259 = vmatpush2.bf16.msra.mxu0 %v7191
    %10260 = vmatprep.subr.bf16.mxu0 %v7184
    %10261 = vmatpush2.bf16.msra.mxu0 %v7183
    %10262 = vmatprep.subr.bf16.mxu0 %v7176
    %10263 = vmatpush2.bf16.msra.mxu0 %v7175
    %10264 = vmatprep.subr.bf16.mxu0 %v7168
    %10265 = vmatpush2.bf16.msra.mxu0 %v7167
    %10266 = vmatprep.subr.bf16.mxu0 %v7160
    %10267 = vmatpush2.bf16.msra.mxu0 %v7159
    %10268 = vmatprep.subr.bf16.mxu0 %v7152
    %10269 = vmatpush2.bf16.msra.mxu0 %v7151
    %10270 = vmatprep.subr.bf16.mxu0 %v7144
    %10271 = vmatpush2.bf16.msra.mxu0 %v7143
    %10272 = vmatprep.mubr.bf16.mxu0 %v238
    %10273 = vmatmul.mubr.bf16.gmra.mxu0 %v237
    %v10274 = vpop.f32.mrf.mxu0
    %v10275 = vadd.f32 %v10232, %v10274
    %v10276 = vpop.f32.mrf.mxu0
    %v10277 = vadd.f32 %v10234, %v10276
    %v10278 = vpop.f32.mrf.mxu0
    %v10279 = vadd.f32 %v10236, %v10278
    %v10280 = vpop.f32.mrf.mxu0
    %v10281 = vadd.f32 %v10238, %v10280
    %10282 = vdwg.mxu0
    %10283 = vmatprep.subr.bf16.mxu0 %v7264
    %10284 = vmatpush1.bf16.msra.mxu0 %v7263
    %10285 = vmatprep.subr.bf16.mxu0 %v7256
    %10286 = vmatpush1.bf16.msra.mxu0 %v7255
    %10287 = vmatprep.subr.bf16.mxu0 %v7248
    %10288 = vmatpush1.bf16.msra.mxu0 %v7247
    %10289 = vmatprep.subr.bf16.mxu0 %v7240
    %10290 = vmatpush1.bf16.msra.mxu0 %v7239
    %10291 = vmatprep.subr.bf16.mxu0 %v7232
    %10292 = vmatpush1.bf16.msra.mxu0 %v7231
    %10293 = vmatprep.subr.bf16.mxu0 %v7224
    %10294 = vmatpush1.bf16.msra.mxu0 %v7223
    %10295 = vmatprep.subr.bf16.mxu0 %v7216
    %10296 = vmatpush1.bf16.msra.mxu0 %v7215
    %10297 = vmatprep.subr.bf16.mxu0 %v7208
    %10298 = vmatpush1.bf16.msra.mxu0 %v7207
    %10299 = vmatprep.subr.bf16.mxu0 %v7328
    %10300 = vmatpush2.bf16.msra.mxu0 %v7327
    %10301 = vmatprep.subr.bf16.mxu0 %v7320
    %10302 = vmatpush2.bf16.msra.mxu0 %v7319
    %10303 = vmatprep.subr.bf16.mxu0 %v7312
    %10304 = vmatpush2.bf16.msra.mxu0 %v7311
    %10305 = vmatprep.subr.bf16.mxu0 %v7304
    %10306 = vmatpush2.bf16.msra.mxu0 %v7303
    %10307 = vmatprep.subr.bf16.mxu0 %v7296
    %10308 = vmatpush2.bf16.msra.mxu0 %v7295
    %10309 = vmatprep.subr.bf16.mxu0 %v7288
    %10310 = vmatpush2.bf16.msra.mxu0 %v7287
    %10311 = vmatprep.subr.bf16.mxu0 %v7280
    %10312 = vmatpush2.bf16.msra.mxu0 %v7279
    %10313 = vmatprep.subr.bf16.mxu0 %v7272
    %10314 = vmatpush2.bf16.msra.mxu0 %v7271
    %10315 = vmatprep.mubr.bf16.mxu0 %v240
    %10316 = vmatmul.mubr.bf16.gmra.mxu0 %v239
    %v10317 = vpop.f32.mrf.mxu0
    %v10318 = vadd.f32 %v10275, %v10317
    %v10319 = vpop.f32.mrf.mxu0
    %v10320 = vadd.f32 %v10277, %v10319
    %v10321 = vpop.f32.mrf.mxu0
    %v10322 = vadd.f32 %v10279, %v10321
    %v10323 = vpop.f32.mrf.mxu0
    %v10324 = vadd.f32 %v10281, %v10323
    %10325 = vdwg.mxu0
    %10326 = vmatprep.subr.bf16.mxu0 %v7392
    %10327 = vmatpush1.bf16.msra.mxu0 %v7391
    %10328 = vmatprep.subr.bf16.mxu0 %v7384
    %10329 = vmatpush1.bf16.msra.mxu0 %v7383
    %10330 = vmatprep.subr.bf16.mxu0 %v7376
    %10331 = vmatpush1.bf16.msra.mxu0 %v7375
    %10332 = vmatprep.subr.bf16.mxu0 %v7368
    %10333 = vmatpush1.bf16.msra.mxu0 %v7367
    %10334 = vmatprep.subr.bf16.mxu0 %v7360
    %10335 = vmatpush1.bf16.msra.mxu0 %v7359
    %10336 = vmatprep.subr.bf16.mxu0 %v7352
    %10337 = vmatpush1.bf16.msra.mxu0 %v7351
    %10338 = vmatprep.subr.bf16.mxu0 %v7344
    %10339 = vmatpush1.bf16.msra.mxu0 %v7343
    %10340 = vmatprep.subr.bf16.mxu0 %v7336
    %10341 = vmatpush1.bf16.msra.mxu0 %v7335
    %10342 = vmatprep.subr.bf16.mxu0 %v7456
    %10343 = vmatpush2.bf16.msra.mxu0 %v7455
    %10344 = vmatprep.subr.bf16.mxu0 %v7448
    %10345 = vmatpush2.bf16.msra.mxu0 %v7447
    %10346 = vmatprep.subr.bf16.mxu0 %v7440
    %10347 = vmatpush2.bf16.msra.mxu0 %v7439
    %10348 = vmatprep.subr.bf16.mxu0 %v7432
    %10349 = vmatpush2.bf16.msra.mxu0 %v7431
    %10350 = vmatprep.subr.bf16.mxu0 %v7424
    %10351 = vmatpush2.bf16.msra.mxu0 %v7423
    %10352 = vmatprep.subr.bf16.mxu0 %v7416
    %10353 = vmatpush2.bf16.msra.mxu0 %v7415
    %10354 = vmatprep.subr.bf16.mxu0 %v7408
    %10355 = vmatpush2.bf16.msra.mxu0 %v7407
    %10356 = vmatprep.subr.bf16.mxu0 %v7400
    %10357 = vmatpush2.bf16.msra.mxu0 %v7399
    %10358 = vmatprep.mubr.bf16.mxu0 %v242
    %10359 = vmatmul.mubr.bf16.gmra.mxu0 %v241
    %v10360 = vpop.f32.mrf.mxu0
    %v10361 = vadd.f32 %v10318, %v10360
    %v10362 = vpop.f32.mrf.mxu0
    %v10363 = vadd.f32 %v10320, %v10362
    %v10364 = vpop.f32.mrf.mxu0
    %v10365 = vadd.f32 %v10322, %v10364
    %v10366 = vpop.f32.mrf.mxu0
    %v10367 = vadd.f32 %v10324, %v10366
    %10368 = vdwg.mxu0
    %10369 = vmatprep.subr.bf16.mxu0 %v7520
    %10370 = vmatpush1.bf16.msra.mxu0 %v7519
    %10371 = vmatprep.subr.bf16.mxu0 %v7512
    %10372 = vmatpush1.bf16.msra.mxu0 %v7511
    %10373 = vmatprep.subr.bf16.mxu0 %v7504
    %10374 = vmatpush1.bf16.msra.mxu0 %v7503
    %10375 = vmatprep.subr.bf16.mxu0 %v7496
    %10376 = vmatpush1.bf16.msra.mxu0 %v7495
    %10377 = vmatprep.subr.bf16.mxu0 %v7488
    %10378 = vmatpush1.bf16.msra.mxu0 %v7487
    %10379 = vmatprep.subr.bf16.mxu0 %v7480
    %10380 = vmatpush1.bf16.msra.mxu0 %v7479
    %10381 = vmatprep.subr.bf16.mxu0 %v7472
    %10382 = vmatpush1.bf16.msra.mxu0 %v7471
    %10383 = vmatprep.subr.bf16.mxu0 %v7464
    %10384 = vmatpush1.bf16.msra.mxu0 %v7463
    %10385 = vmatprep.subr.bf16.mxu0 %v7584
    %10386 = vmatpush2.bf16.msra.mxu0 %v7583
    %10387 = vmatprep.subr.bf16.mxu0 %v7576
    %10388 = vmatpush2.bf16.msra.mxu0 %v7575
    %10389 = vmatprep.subr.bf16.mxu0 %v7568
    %10390 = vmatpush2.bf16.msra.mxu0 %v7567
    %10391 = vmatprep.subr.bf16.mxu0 %v7560
    %10392 = vmatpush2.bf16.msra.mxu0 %v7559
    %10393 = vmatprep.subr.bf16.mxu0 %v7552
    %10394 = vmatpush2.bf16.msra.mxu0 %v7551
    %10395 = vmatprep.subr.bf16.mxu0 %v7544
    %10396 = vmatpush2.bf16.msra.mxu0 %v7543
    %10397 = vmatprep.subr.bf16.mxu0 %v7536
    %10398 = vmatpush2.bf16.msra.mxu0 %v7535
    %10399 = vmatprep.subr.bf16.mxu0 %v7528
    %10400 = vmatpush2.bf16.msra.mxu0 %v7527
    %10401 = vmatprep.mubr.bf16.mxu0 %v244
    %10402 = vmatmul.mubr.bf16.gmra.mxu0 %v243
    %v10403 = vpop.f32.mrf.mxu0
    %v10404 = vadd.f32 %v10361, %v10403
    %v10405 = vpop.f32.mrf.mxu0
    %v10406 = vadd.f32 %v10363, %v10405
    %v10407 = vpop.f32.mrf.mxu0
    %v10408 = vadd.f32 %v10365, %v10407
    %v10409 = vpop.f32.mrf.mxu0
    %v10410 = vadd.f32 %v10367, %v10409
    %10411 = vdwg.mxu0
    %10412 = vmatprep.subr.bf16.mxu0 %v7648
    %10413 = vmatpush1.bf16.msra.mxu0 %v7647
    %10414 = vmatprep.subr.bf16.mxu0 %v7640
    %10415 = vmatpush1.bf16.msra.mxu0 %v7639
    %10416 = vmatprep.subr.bf16.mxu0 %v7632
    %10417 = vmatpush1.bf16.msra.mxu0 %v7631
    %10418 = vmatprep.subr.bf16.mxu0 %v7624
    %10419 = vmatpush1.bf16.msra.mxu0 %v7623
    %10420 = vmatprep.subr.bf16.mxu0 %v7616
    %10421 = vmatpush1.bf16.msra.mxu0 %v7615
    %10422 = vmatprep.subr.bf16.mxu0 %v7608
    %10423 = vmatpush1.bf16.msra.mxu0 %v7607
    %10424 = vmatprep.subr.bf16.mxu0 %v7600
    %10425 = vmatpush1.bf16.msra.mxu0 %v7599
    %10426 = vmatprep.subr.bf16.mxu0 %v7592
    %10427 = vmatpush1.bf16.msra.mxu0 %v7591
    %10428 = vmatprep.subr.bf16.mxu0 %v7712
    %10429 = vmatpush2.bf16.msra.mxu0 %v7711
    %10430 = vmatprep.subr.bf16.mxu0 %v7704
    %10431 = vmatpush2.bf16.msra.mxu0 %v7703
    %10432 = vmatprep.subr.bf16.mxu0 %v7696
    %10433 = vmatpush2.bf16.msra.mxu0 %v7695
    %10434 = vmatprep.subr.bf16.mxu0 %v7688
    %10435 = vmatpush2.bf16.msra.mxu0 %v7687
    %10436 = vmatprep.subr.bf16.mxu0 %v7680
    %10437 = vmatpush2.bf16.msra.mxu0 %v7679
    %10438 = vmatprep.subr.bf16.mxu0 %v7672
    %10439 = vmatpush2.bf16.msra.mxu0 %v7671
    %10440 = vmatprep.subr.bf16.mxu0 %v7664
    %10441 = vmatpush2.bf16.msra.mxu0 %v7663
    %10442 = vmatprep.subr.bf16.mxu0 %v7656
    %10443 = vmatpush2.bf16.msra.mxu0 %v7655
    %10444 = vmatprep.mubr.bf16.mxu0 %v246
    %10445 = vmatmul.mubr.bf16.gmra.mxu0 %v245
    %v10446 = vpop.f32.mrf.mxu0
    %v10447 = vadd.f32 %v10404, %v10446
    %v10448 = vpop.f32.mrf.mxu0
    %v10449 = vadd.f32 %v10406, %v10448
    %v10450 = vpop.f32.mrf.mxu0
    %v10451 = vadd.f32 %v10408, %v10450
    %v10452 = vpop.f32.mrf.mxu0
    %v10453 = vadd.f32 %v10410, %v10452
    %10454 = vdwg.mxu0
    %10455 = vmatprep.subr.bf16.mxu0 %v7776
    %10456 = vmatpush1.bf16.msra.mxu0 %v7775
    %10457 = vmatprep.subr.bf16.mxu0 %v7768
    %10458 = vmatpush1.bf16.msra.mxu0 %v7767
    %10459 = vmatprep.subr.bf16.mxu0 %v7760
    %10460 = vmatpush1.bf16.msra.mxu0 %v7759
    %10461 = vmatprep.subr.bf16.mxu0 %v7752
    %10462 = vmatpush1.bf16.msra.mxu0 %v7751
    %10463 = vmatprep.subr.bf16.mxu0 %v7744
    %10464 = vmatpush1.bf16.msra.mxu0 %v7743
    %10465 = vmatprep.subr.bf16.mxu0 %v7736
    %10466 = vmatpush1.bf16.msra.mxu0 %v7735
    %10467 = vmatprep.subr.bf16.mxu0 %v7728
    %10468 = vmatpush1.bf16.msra.mxu0 %v7727
    %10469 = vmatprep.subr.bf16.mxu0 %v7720
    %10470 = vmatpush1.bf16.msra.mxu0 %v7719
    %10471 = vmatprep.subr.bf16.mxu0 %v7840
    %10472 = vmatpush2.bf16.msra.mxu0 %v7839
    %10473 = vmatprep.subr.bf16.mxu0 %v7832
    %10474 = vmatpush2.bf16.msra.mxu0 %v7831
    %10475 = vmatprep.subr.bf16.mxu0 %v7824
    %10476 = vmatpush2.bf16.msra.mxu0 %v7823
    %10477 = vmatprep.subr.bf16.mxu0 %v7816
    %10478 = vmatpush2.bf16.msra.mxu0 %v7815
    %10479 = vmatprep.subr.bf16.mxu0 %v7808
    %10480 = vmatpush2.bf16.msra.mxu0 %v7807
    %10481 = vmatprep.subr.bf16.mxu0 %v7800
    %10482 = vmatpush2.bf16.msra.mxu0 %v7799
    %10483 = vmatprep.subr.bf16.mxu0 %v7792
    %10484 = vmatpush2.bf16.msra.mxu0 %v7791
    %10485 = vmatprep.subr.bf16.mxu0 %v7784
    %10486 = vmatpush2.bf16.msra.mxu0 %v7783
    %10487 = vmatprep.mubr.bf16.mxu0 %v248
    %10488 = vmatmul.mubr.bf16.gmra.mxu0 %v247
    %v10489 = vpop.f32.mrf.mxu0
    %v10490 = vadd.f32 %v10447, %v10489
    %v10491 = vpop.f32.mrf.mxu0
    %v10492 = vadd.f32 %v10449, %v10491
    %v10493 = vpop.f32.mrf.mxu0
    %v10494 = vadd.f32 %v10451, %v10493
    %v10495 = vpop.f32.mrf.mxu0
    %v10496 = vadd.f32 %v10453, %v10495
    %10497 = vdwg.mxu0
    %10498 = vmatprep.subr.bf16.mxu0 %v7904
    %10499 = vmatpush1.bf16.msra.mxu0 %v7903
    %10500 = vmatprep.subr.bf16.mxu0 %v7896
    %10501 = vmatpush1.bf16.msra.mxu0 %v7895
    %10502 = vmatprep.subr.bf16.mxu0 %v7888
    %10503 = vmatpush1.bf16.msra.mxu0 %v7887
    %10504 = vmatprep.subr.bf16.mxu0 %v7880
    %10505 = vmatpush1.bf16.msra.mxu0 %v7879
    %10506 = vmatprep.subr.bf16.mxu0 %v7872
    %10507 = vmatpush1.bf16.msra.mxu0 %v7871
    %10508 = vmatprep.subr.bf16.mxu0 %v7864
    %10509 = vmatpush1.bf16.msra.mxu0 %v7863
    %10510 = vmatprep.subr.bf16.mxu0 %v7856
    %10511 = vmatpush1.bf16.msra.mxu0 %v7855
    %10512 = vmatprep.subr.bf16.mxu0 %v7848
    %10513 = vmatpush1.bf16.msra.mxu0 %v7847
    %10514 = vmatprep.subr.bf16.mxu0 %v7968
    %10515 = vmatpush2.bf16.msra.mxu0 %v7967
    %10516 = vmatprep.subr.bf16.mxu0 %v7960
    %10517 = vmatpush2.bf16.msra.mxu0 %v7959
    %10518 = vmatprep.subr.bf16.mxu0 %v7952
    %10519 = vmatpush2.bf16.msra.mxu0 %v7951
    %10520 = vmatprep.subr.bf16.mxu0 %v7944
    %10521 = vmatpush2.bf16.msra.mxu0 %v7943
    %10522 = vmatprep.subr.bf16.mxu0 %v7936
    %10523 = vmatpush2.bf16.msra.mxu0 %v7935
    %10524 = vmatprep.subr.bf16.mxu0 %v7928
    %10525 = vmatpush2.bf16.msra.mxu0 %v7927
    %10526 = vmatprep.subr.bf16.mxu0 %v7920
    %10527 = vmatpush2.bf16.msra.mxu0 %v7919
    %10528 = vmatprep.subr.bf16.mxu0 %v7912
    %10529 = vmatpush2.bf16.msra.mxu0 %v7911
    %10530 = vmatprep.mubr.bf16.mxu0 %v250
    %10531 = vmatmul.mubr.bf16.gmra.mxu0 %v249
    %v10532 = vpop.f32.mrf.mxu0
    %v10533 = vadd.f32 %v10490, %v10532
    %v10534 = vpop.f32.mrf.mxu0
    %v10535 = vadd.f32 %v10492, %v10534
    %v10536 = vpop.f32.mrf.mxu0
    %v10537 = vadd.f32 %v10494, %v10536
    %v10538 = vpop.f32.mrf.mxu0
    %v10539 = vadd.f32 %v10496, %v10538
    %10540 = vdwg.mxu0
    %10541 = vmatprep.subr.bf16.mxu0 %v6498
    %10542 = vmatpush1.bf16.msra.mxu0 %v6497
    %10543 = vmatprep.subr.bf16.mxu0 %v6490
    %10544 = vmatpush1.bf16.msra.mxu0 %v6489
    %10545 = vmatprep.subr.bf16.mxu0 %v6482
    %10546 = vmatpush1.bf16.msra.mxu0 %v6481
    %10547 = vmatprep.subr.bf16.mxu0 %v6474
    %10548 = vmatpush1.bf16.msra.mxu0 %v6473
    %10549 = vmatprep.subr.bf16.mxu0 %v6466
    %10550 = vmatpush1.bf16.msra.mxu0 %v6465
    %10551 = vmatprep.subr.bf16.mxu0 %v6458
    %10552 = vmatpush1.bf16.msra.mxu0 %v6457
    %10553 = vmatprep.subr.bf16.mxu0 %v6450
    %10554 = vmatpush1.bf16.msra.mxu0 %v6449
    %10555 = vmatprep.subr.bf16.mxu0 %v6442
    %10556 = vmatpush1.bf16.msra.mxu0 %v6441
    %10557 = vmatprep.subr.bf16.mxu0 %v6562
    %10558 = vmatpush2.bf16.msra.mxu0 %v6561
    %10559 = vmatprep.subr.bf16.mxu0 %v6554
    %10560 = vmatpush2.bf16.msra.mxu0 %v6553
    %10561 = vmatprep.subr.bf16.mxu0 %v6546
    %10562 = vmatpush2.bf16.msra.mxu0 %v6545
    %10563 = vmatprep.subr.bf16.mxu0 %v6538
    %10564 = vmatpush2.bf16.msra.mxu0 %v6537
    %10565 = vmatprep.subr.bf16.mxu0 %v6530
    %10566 = vmatpush2.bf16.msra.mxu0 %v6529
    %10567 = vmatprep.subr.bf16.mxu0 %v6522
    %10568 = vmatpush2.bf16.msra.mxu0 %v6521
    %10569 = vmatprep.subr.bf16.mxu0 %v6514
    %10570 = vmatpush2.bf16.msra.mxu0 %v6513
    %10571 = vmatprep.subr.bf16.mxu0 %v6506
    %10572 = vmatpush2.bf16.msra.mxu0 %v6505
    %10573 = vmatprep.mubr.bf16.mxu0 %v228
    %10574 = vmatmul.mubr.bf16.gmra.mxu0 %v227
    %v10575 = vpop.f32.mrf.mxu0
    %v10576 = vadd.f32 %v1808, %v10575
    %v10577 = vpop.f32.mrf.mxu0
    %v10578 = vadd.f32 %v1812, %v10577
    %v10579 = vpop.f32.mrf.mxu0
    %v10580 = vadd.f32 %v1808, %v10579
    %v10581 = vpop.f32.mrf.mxu0
    %v10582 = vadd.f32 %v1812, %v10581
    %10583 = vdwg.mxu0
    %10584 = vmatprep.subr.bf16.mxu0 %v6626
    %10585 = vmatpush1.bf16.msra.mxu0 %v6625
    %10586 = vmatprep.subr.bf16.mxu0 %v6618
    %10587 = vmatpush1.bf16.msra.mxu0 %v6617
    %10588 = vmatprep.subr.bf16.mxu0 %v6610
    %10589 = vmatpush1.bf16.msra.mxu0 %v6609
    %10590 = vmatprep.subr.bf16.mxu0 %v6602
    %10591 = vmatpush1.bf16.msra.mxu0 %v6601
    %10592 = vmatprep.subr.bf16.mxu0 %v6594
    %10593 = vmatpush1.bf16.msra.mxu0 %v6593
    %10594 = vmatprep.subr.bf16.mxu0 %v6586
    %10595 = vmatpush1.bf16.msra.mxu0 %v6585
    %10596 = vmatprep.subr.bf16.mxu0 %v6578
    %10597 = vmatpush1.bf16.msra.mxu0 %v6577
    %10598 = vmatprep.subr.bf16.mxu0 %v6570
    %10599 = vmatpush1.bf16.msra.mxu0 %v6569
    %10600 = vmatprep.subr.bf16.mxu0 %v6690
    %10601 = vmatpush2.bf16.msra.mxu0 %v6689
    %10602 = vmatprep.subr.bf16.mxu0 %v6682
    %10603 = vmatpush2.bf16.msra.mxu0 %v6681
    %10604 = vmatprep.subr.bf16.mxu0 %v6674
    %10605 = vmatpush2.bf16.msra.mxu0 %v6673
    %10606 = vmatprep.subr.bf16.mxu0 %v6666
    %10607 = vmatpush2.bf16.msra.mxu0 %v6665
    %10608 = vmatprep.subr.bf16.mxu0 %v6658
    %10609 = vmatpush2.bf16.msra.mxu0 %v6657
    %10610 = vmatprep.subr.bf16.mxu0 %v6650
    %10611 = vmatpush2.bf16.msra.mxu0 %v6649
    %10612 = vmatprep.subr.bf16.mxu0 %v6642
    %10613 = vmatpush2.bf16.msra.mxu0 %v6641
    %10614 = vmatprep.subr.bf16.mxu0 %v6634
    %10615 = vmatpush2.bf16.msra.mxu0 %v6633
    %10616 = vmatprep.mubr.bf16.mxu0 %v230
    %10617 = vmatmul.mubr.bf16.gmra.mxu0 %v229
    %v10618 = vpop.f32.mrf.mxu0
    %v10619 = vadd.f32 %v10576, %v10618
    %v10620 = vpop.f32.mrf.mxu0
    %v10621 = vadd.f32 %v10578, %v10620
    %v10622 = vpop.f32.mrf.mxu0
    %v10623 = vadd.f32 %v10580, %v10622
    %v10624 = vpop.f32.mrf.mxu0
    %v10625 = vadd.f32 %v10582, %v10624
    %10626 = vdwg.mxu0
    %10627 = vmatprep.subr.bf16.mxu0 %v6754
    %10628 = vmatpush1.bf16.msra.mxu0 %v6753
    %10629 = vmatprep.subr.bf16.mxu0 %v6746
    %10630 = vmatpush1.bf16.msra.mxu0 %v6745
    %10631 = vmatprep.subr.bf16.mxu0 %v6738
    %10632 = vmatpush1.bf16.msra.mxu0 %v6737
    %10633 = vmatprep.subr.bf16.mxu0 %v6730
    %10634 = vmatpush1.bf16.msra.mxu0 %v6729
    %10635 = vmatprep.subr.bf16.mxu0 %v6722
    %10636 = vmatpush1.bf16.msra.mxu0 %v6721
    %10637 = vmatprep.subr.bf16.mxu0 %v6714
    %10638 = vmatpush1.bf16.msra.mxu0 %v6713
    %10639 = vmatprep.subr.bf16.mxu0 %v6706
    %10640 = vmatpush1.bf16.msra.mxu0 %v6705
    %10641 = vmatprep.subr.bf16.mxu0 %v6698
    %10642 = vmatpush1.bf16.msra.mxu0 %v6697
    %10643 = vmatprep.subr.bf16.mxu0 %v6818
    %10644 = vmatpush2.bf16.msra.mxu0 %v6817
    %10645 = vmatprep.subr.bf16.mxu0 %v6810
    %10646 = vmatpush2.bf16.msra.mxu0 %v6809
    %10647 = vmatprep.subr.bf16.mxu0 %v6802
    %10648 = vmatpush2.bf16.msra.mxu0 %v6801
    %10649 = vmatprep.subr.bf16.mxu0 %v6794
    %10650 = vmatpush2.bf16.msra.mxu0 %v6793
    %10651 = vmatprep.subr.bf16.mxu0 %v6786
    %10652 = vmatpush2.bf16.msra.mxu0 %v6785
    %10653 = vmatprep.subr.bf16.mxu0 %v6778
    %10654 = vmatpush2.bf16.msra.mxu0 %v6777
    %10655 = vmatprep.subr.bf16.mxu0 %v6770
    %10656 = vmatpush2.bf16.msra.mxu0 %v6769
    %10657 = vmatprep.subr.bf16.mxu0 %v6762
    %10658 = vmatpush2.bf16.msra.mxu0 %v6761
    %10659 = vmatprep.mubr.bf16.mxu0 %v232
    %10660 = vmatmul.mubr.bf16.gmra.mxu0 %v231
    %v10661 = vpop.f32.mrf.mxu0
    %v10662 = vadd.f32 %v10619, %v10661
    %v10663 = vpop.f32.mrf.mxu0
    %v10664 = vadd.f32 %v10621, %v10663
    %v10665 = vpop.f32.mrf.mxu0
    %v10666 = vadd.f32 %v10623, %v10665
    %v10667 = vpop.f32.mrf.mxu0
    %v10668 = vadd.f32 %v10625, %v10667
    %10669 = vdwg.mxu0
    %10670 = vmatprep.subr.bf16.mxu0 %v6882
    %10671 = vmatpush1.bf16.msra.mxu0 %v6881
    %10672 = vmatprep.subr.bf16.mxu0 %v6874
    %10673 = vmatpush1.bf16.msra.mxu0 %v6873
    %10674 = vmatprep.subr.bf16.mxu0 %v6866
    %10675 = vmatpush1.bf16.msra.mxu0 %v6865
    %10676 = vmatprep.subr.bf16.mxu0 %v6858
    %10677 = vmatpush1.bf16.msra.mxu0 %v6857
    %10678 = vmatprep.subr.bf16.mxu0 %v6850
    %10679 = vmatpush1.bf16.msra.mxu0 %v6849
    %10680 = vmatprep.subr.bf16.mxu0 %v6842
    %10681 = vmatpush1.bf16.msra.mxu0 %v6841
    %10682 = vmatprep.subr.bf16.mxu0 %v6834
    %10683 = vmatpush1.bf16.msra.mxu0 %v6833
    %10684 = vmatprep.subr.bf16.mxu0 %v6826
    %10685 = vmatpush1.bf16.msra.mxu0 %v6825
    %10686 = vmatprep.subr.bf16.mxu0 %v6946
    %10687 = vmatpush2.bf16.msra.mxu0 %v6945
    %10688 = vmatprep.subr.bf16.mxu0 %v6938
    %10689 = vmatpush2.bf16.msra.mxu0 %v6937
    %10690 = vmatprep.subr.bf16.mxu0 %v6930
    %10691 = vmatpush2.bf16.msra.mxu0 %v6929
    %10692 = vmatprep.subr.bf16.mxu0 %v6922
    %10693 = vmatpush2.bf16.msra.mxu0 %v6921
    %10694 = vmatprep.subr.bf16.mxu0 %v6914
    %10695 = vmatpush2.bf16.msra.mxu0 %v6913
    %10696 = vmatprep.subr.bf16.mxu0 %v6906
    %10697 = vmatpush2.bf16.msra.mxu0 %v6905
    %10698 = vmatprep.subr.bf16.mxu0 %v6898
    %10699 = vmatpush2.bf16.msra.mxu0 %v6897
    %10700 = vmatprep.subr.bf16.mxu0 %v6890
    %10701 = vmatpush2.bf16.msra.mxu0 %v6889
    %10702 = vmatprep.mubr.bf16.mxu0 %v234
    %10703 = vmatmul.mubr.bf16.gmra.mxu0 %v233
    %v10704 = vpop.f32.mrf.mxu0
    %v10705 = vadd.f32 %v10662, %v10704
    %v10706 = vpop.f32.mrf.mxu0
    %v10707 = vadd.f32 %v10664, %v10706
    %v10708 = vpop.f32.mrf.mxu0
    %v10709 = vadd.f32 %v10666, %v10708
    %v10710 = vpop.f32.mrf.mxu0
    %v10711 = vadd.f32 %v10668, %v10710
    %10712 = vdwg.mxu0
    %10713 = vmatprep.subr.bf16.mxu0 %v7010
    %10714 = vmatpush1.bf16.msra.mxu0 %v7009
    %10715 = vmatprep.subr.bf16.mxu0 %v7002
    %10716 = vmatpush1.bf16.msra.mxu0 %v7001
    %10717 = vmatprep.subr.bf16.mxu0 %v6994
    %10718 = vmatpush1.bf16.msra.mxu0 %v6993
    %10719 = vmatprep.subr.bf16.mxu0 %v6986
    %10720 = vmatpush1.bf16.msra.mxu0 %v6985
    %10721 = vmatprep.subr.bf16.mxu0 %v6978
    %10722 = vmatpush1.bf16.msra.mxu0 %v6977
    %10723 = vmatprep.subr.bf16.mxu0 %v6970
    %10724 = vmatpush1.bf16.msra.mxu0 %v6969
    %10725 = vmatprep.subr.bf16.mxu0 %v6962
    %10726 = vmatpush1.bf16.msra.mxu0 %v6961
    %10727 = vmatprep.subr.bf16.mxu0 %v6954
    %10728 = vmatpush1.bf16.msra.mxu0 %v6953
    %10729 = vmatprep.subr.bf16.mxu0 %v7074
    %10730 = vmatpush2.bf16.msra.mxu0 %v7073
    %10731 = vmatprep.subr.bf16.mxu0 %v7066
    %10732 = vmatpush2.bf16.msra.mxu0 %v7065
    %10733 = vmatprep.subr.bf16.mxu0 %v7058
    %10734 = vmatpush2.bf16.msra.mxu0 %v7057
    %10735 = vmatprep.subr.bf16.mxu0 %v7050
    %10736 = vmatpush2.bf16.msra.mxu0 %v7049
    %10737 = vmatprep.subr.bf16.mxu0 %v7042
    %10738 = vmatpush2.bf16.msra.mxu0 %v7041
    %10739 = vmatprep.subr.bf16.mxu0 %v7034
    %10740 = vmatpush2.bf16.msra.mxu0 %v7033
    %10741 = vmatprep.subr.bf16.mxu0 %v7026
    %10742 = vmatpush2.bf16.msra.mxu0 %v7025
    %10743 = vmatprep.subr.bf16.mxu0 %v7018
    %10744 = vmatpush2.bf16.msra.mxu0 %v7017
    %10745 = vmatprep.mubr.bf16.mxu0 %v236
    %10746 = vmatmul.mubr.bf16.gmra.mxu0 %v235
    %v10747 = vpop.f32.mrf.mxu0
    %v10748 = vadd.f32 %v10705, %v10747
    %v10749 = vpop.f32.mrf.mxu0
    %v10750 = vadd.f32 %v10707, %v10749
    %v10751 = vpop.f32.mrf.mxu0
    %v10752 = vadd.f32 %v10709, %v10751
    %v10753 = vpop.f32.mrf.mxu0
    %v10754 = vadd.f32 %v10711, %v10753
    %10755 = vdwg.mxu0
    %10756 = vmatprep.subr.bf16.mxu0 %v7138
    %10757 = vmatpush1.bf16.msra.mxu0 %v7137
    %10758 = vmatprep.subr.bf16.mxu0 %v7130
    %10759 = vmatpush1.bf16.msra.mxu0 %v7129
    %10760 = vmatprep.subr.bf16.mxu0 %v7122
    %10761 = vmatpush1.bf16.msra.mxu0 %v7121
    %10762 = vmatprep.subr.bf16.mxu0 %v7114
    %10763 = vmatpush1.bf16.msra.mxu0 %v7113
    %10764 = vmatprep.subr.bf16.mxu0 %v7106
    %10765 = vmatpush1.bf16.msra.mxu0 %v7105
    %10766 = vmatprep.subr.bf16.mxu0 %v7098
    %10767 = vmatpush1.bf16.msra.mxu0 %v7097
    %10768 = vmatprep.subr.bf16.mxu0 %v7090
    %10769 = vmatpush1.bf16.msra.mxu0 %v7089
    %10770 = vmatprep.subr.bf16.mxu0 %v7082
    %10771 = vmatpush1.bf16.msra.mxu0 %v7081
    %10772 = vmatprep.subr.bf16.mxu0 %v7202
    %10773 = vmatpush2.bf16.msra.mxu0 %v7201
    %10774 = vmatprep.subr.bf16.mxu0 %v7194
    %10775 = vmatpush2.bf16.msra.mxu0 %v7193
    %10776 = vmatprep.subr.bf16.mxu0 %v7186
    %10777 = vmatpush2.bf16.msra.mxu0 %v7185
    %10778 = vmatprep.subr.bf16.mxu0 %v7178
    %10779 = vmatpush2.bf16.msra.mxu0 %v7177
    %10780 = vmatprep.subr.bf16.mxu0 %v7170
    %10781 = vmatpush2.bf16.msra.mxu0 %v7169
    %10782 = vmatprep.subr.bf16.mxu0 %v7162
    %10783 = vmatpush2.bf16.msra.mxu0 %v7161
    %10784 = vmatprep.subr.bf16.mxu0 %v7154
    %10785 = vmatpush2.bf16.msra.mxu0 %v7153
    %10786 = vmatprep.subr.bf16.mxu0 %v7146
    %10787 = vmatpush2.bf16.msra.mxu0 %v7145
    %10788 = vmatprep.mubr.bf16.mxu0 %v238
    %10789 = vmatmul.mubr.bf16.gmra.mxu0 %v237
    %v10790 = vpop.f32.mrf.mxu0
    %v10791 = vadd.f32 %v10748, %v10790
    %v10792 = vpop.f32.mrf.mxu0
    %v10793 = vadd.f32 %v10750, %v10792
    %v10794 = vpop.f32.mrf.mxu0
    %v10795 = vadd.f32 %v10752, %v10794
    %v10796 = vpop.f32.mrf.mxu0
    %v10797 = vadd.f32 %v10754, %v10796
    %10798 = vdwg.mxu0
    %10799 = vmatprep.subr.bf16.mxu0 %v7266
    %10800 = vmatpush1.bf16.msra.mxu0 %v7265
    %10801 = vmatprep.subr.bf16.mxu0 %v7258
    %10802 = vmatpush1.bf16.msra.mxu0 %v7257
    %10803 = vmatprep.subr.bf16.mxu0 %v7250
    %10804 = vmatpush1.bf16.msra.mxu0 %v7249
    %10805 = vmatprep.subr.bf16.mxu0 %v7242
    %10806 = vmatpush1.bf16.msra.mxu0 %v7241
    %10807 = vmatprep.subr.bf16.mxu0 %v7234
    %10808 = vmatpush1.bf16.msra.mxu0 %v7233
    %10809 = vmatprep.subr.bf16.mxu0 %v7226
    %10810 = vmatpush1.bf16.msra.mxu0 %v7225
    %10811 = vmatprep.subr.bf16.mxu0 %v7218
    %10812 = vmatpush1.bf16.msra.mxu0 %v7217
    %10813 = vmatprep.subr.bf16.mxu0 %v7210
    %10814 = vmatpush1.bf16.msra.mxu0 %v7209
    %10815 = vmatprep.subr.bf16.mxu0 %v7330
    %10816 = vmatpush2.bf16.msra.mxu0 %v7329
    %10817 = vmatprep.subr.bf16.mxu0 %v7322
    %10818 = vmatpush2.bf16.msra.mxu0 %v7321
    %10819 = vmatprep.subr.bf16.mxu0 %v7314
    %10820 = vmatpush2.bf16.msra.mxu0 %v7313
    %10821 = vmatprep.subr.bf16.mxu0 %v7306
    %10822 = vmatpush2.bf16.msra.mxu0 %v7305
    %10823 = vmatprep.subr.bf16.mxu0 %v7298
    %10824 = vmatpush2.bf16.msra.mxu0 %v7297
    %10825 = vmatprep.subr.bf16.mxu0 %v7290
    %10826 = vmatpush2.bf16.msra.mxu0 %v7289
    %10827 = vmatprep.subr.bf16.mxu0 %v7282
    %10828 = vmatpush2.bf16.msra.mxu0 %v7281
    %10829 = vmatprep.subr.bf16.mxu0 %v7274
    %10830 = vmatpush2.bf16.msra.mxu0 %v7273
    %10831 = vmatprep.mubr.bf16.mxu0 %v240
    %10832 = vmatmul.mubr.bf16.gmra.mxu0 %v239
    %v10833 = vpop.f32.mrf.mxu0
    %v10834 = vadd.f32 %v10791, %v10833
    %v10835 = vpop.f32.mrf.mxu0
    %v10836 = vadd.f32 %v10793, %v10835
    %v10837 = vpop.f32.mrf.mxu0
    %v10838 = vadd.f32 %v10795, %v10837
    %v10839 = vpop.f32.mrf.mxu0
    %v10840 = vadd.f32 %v10797, %v10839
    %10841 = vdwg.mxu0
    %10842 = vmatprep.subr.bf16.mxu0 %v7394
    %10843 = vmatpush1.bf16.msra.mxu0 %v7393
    %10844 = vmatprep.subr.bf16.mxu0 %v7386
    %10845 = vmatpush1.bf16.msra.mxu0 %v7385
    %10846 = vmatprep.subr.bf16.mxu0 %v7378
    %10847 = vmatpush1.bf16.msra.mxu0 %v7377
    %10848 = vmatprep.subr.bf16.mxu0 %v7370
    %10849 = vmatpush1.bf16.msra.mxu0 %v7369
    %10850 = vmatprep.subr.bf16.mxu0 %v7362
    %10851 = vmatpush1.bf16.msra.mxu0 %v7361
    %10852 = vmatprep.subr.bf16.mxu0 %v7354
    %10853 = vmatpush1.bf16.msra.mxu0 %v7353
    %10854 = vmatprep.subr.bf16.mxu0 %v7346
    %10855 = vmatpush1.bf16.msra.mxu0 %v7345
    %10856 = vmatprep.subr.bf16.mxu0 %v7338
    %10857 = vmatpush1.bf16.msra.mxu0 %v7337
    %10858 = vmatprep.subr.bf16.mxu0 %v7458
    %10859 = vmatpush2.bf16.msra.mxu0 %v7457
    %10860 = vmatprep.subr.bf16.mxu0 %v7450
    %10861 = vmatpush2.bf16.msra.mxu0 %v7449
    %10862 = vmatprep.subr.bf16.mxu0 %v7442
    %10863 = vmatpush2.bf16.msra.mxu0 %v7441
    %10864 = vmatprep.subr.bf16.mxu0 %v7434
    %10865 = vmatpush2.bf16.msra.mxu0 %v7433
    %10866 = vmatprep.subr.bf16.mxu0 %v7426
    %10867 = vmatpush2.bf16.msra.mxu0 %v7425
    %10868 = vmatprep.subr.bf16.mxu0 %v7418
    %10869 = vmatpush2.bf16.msra.mxu0 %v7417
    %10870 = vmatprep.subr.bf16.mxu0 %v7410
    %10871 = vmatpush2.bf16.msra.mxu0 %v7409
    %10872 = vmatprep.subr.bf16.mxu0 %v7402
    %10873 = vmatpush2.bf16.msra.mxu0 %v7401
    %10874 = vmatprep.mubr.bf16.mxu0 %v242
    %10875 = vmatmul.mubr.bf16.gmra.mxu0 %v241
    %v10876 = vpop.f32.mrf.mxu0
    %v10877 = vadd.f32 %v10834, %v10876
    %v10878 = vpop.f32.mrf.mxu0
    %v10879 = vadd.f32 %v10836, %v10878
    %v10880 = vpop.f32.mrf.mxu0
    %v10881 = vadd.f32 %v10838, %v10880
    %v10882 = vpop.f32.mrf.mxu0
    %v10883 = vadd.f32 %v10840, %v10882
    %10884 = vdwg.mxu0
    %10885 = vmatprep.subr.bf16.mxu0 %v7522
    %10886 = vmatpush1.bf16.msra.mxu0 %v7521
    %10887 = vmatprep.subr.bf16.mxu0 %v7514
    %10888 = vmatpush1.bf16.msra.mxu0 %v7513
    %10889 = vmatprep.subr.bf16.mxu0 %v7506
    %10890 = vmatpush1.bf16.msra.mxu0 %v7505
    %10891 = vmatprep.subr.bf16.mxu0 %v7498
    %10892 = vmatpush1.bf16.msra.mxu0 %v7497
    %10893 = vmatprep.subr.bf16.mxu0 %v7490
    %10894 = vmatpush1.bf16.msra.mxu0 %v7489
    %10895 = vmatprep.subr.bf16.mxu0 %v7482
    %10896 = vmatpush1.bf16.msra.mxu0 %v7481
    %10897 = vmatprep.subr.bf16.mxu0 %v7474
    %10898 = vmatpush1.bf16.msra.mxu0 %v7473
    %10899 = vmatprep.subr.bf16.mxu0 %v7466
    %10900 = vmatpush1.bf16.msra.mxu0 %v7465
    %10901 = vmatprep.subr.bf16.mxu0 %v7586
    %10902 = vmatpush2.bf16.msra.mxu0 %v7585
    %10903 = vmatprep.subr.bf16.mxu0 %v7578
    %10904 = vmatpush2.bf16.msra.mxu0 %v7577
    %10905 = vmatprep.subr.bf16.mxu0 %v7570
    %10906 = vmatpush2.bf16.msra.mxu0 %v7569
    %10907 = vmatprep.subr.bf16.mxu0 %v7562
    %10908 = vmatpush2.bf16.msra.mxu0 %v7561
    %10909 = vmatprep.subr.bf16.mxu0 %v7554
    %10910 = vmatpush2.bf16.msra.mxu0 %v7553
    %10911 = vmatprep.subr.bf16.mxu0 %v7546
    %10912 = vmatpush2.bf16.msra.mxu0 %v7545
    %10913 = vmatprep.subr.bf16.mxu0 %v7538
    %10914 = vmatpush2.bf16.msra.mxu0 %v7537
    %10915 = vmatprep.subr.bf16.mxu0 %v7530
    %10916 = vmatpush2.bf16.msra.mxu0 %v7529
    %10917 = vmatprep.mubr.bf16.mxu0 %v244
    %10918 = vmatmul.mubr.bf16.gmra.mxu0 %v243
    %v10919 = vpop.f32.mrf.mxu0
    %v10920 = vadd.f32 %v10877, %v10919
    %v10921 = vpop.f32.mrf.mxu0
    %v10922 = vadd.f32 %v10879, %v10921
    %v10923 = vpop.f32.mrf.mxu0
    %v10924 = vadd.f32 %v10881, %v10923
    %v10925 = vpop.f32.mrf.mxu0
    %v10926 = vadd.f32 %v10883, %v10925
    %10927 = vdwg.mxu0
    %10928 = vmatprep.subr.bf16.mxu0 %v7650
    %10929 = vmatpush1.bf16.msra.mxu0 %v7649
    %10930 = vmatprep.subr.bf16.mxu0 %v7642
    %10931 = vmatpush1.bf16.msra.mxu0 %v7641
    %10932 = vmatprep.subr.bf16.mxu0 %v7634
    %10933 = vmatpush1.bf16.msra.mxu0 %v7633
    %10934 = vmatprep.subr.bf16.mxu0 %v7626
    %10935 = vmatpush1.bf16.msra.mxu0 %v7625
    %10936 = vmatprep.subr.bf16.mxu0 %v7618
    %10937 = vmatpush1.bf16.msra.mxu0 %v7617
    %10938 = vmatprep.subr.bf16.mxu0 %v7610
    %10939 = vmatpush1.bf16.msra.mxu0 %v7609
    %10940 = vmatprep.subr.bf16.mxu0 %v7602
    %10941 = vmatpush1.bf16.msra.mxu0 %v7601
    %10942 = vmatprep.subr.bf16.mxu0 %v7594
    %10943 = vmatpush1.bf16.msra.mxu0 %v7593
    %10944 = vmatprep.subr.bf16.mxu0 %v7714
    %10945 = vmatpush2.bf16.msra.mxu0 %v7713
    %10946 = vmatprep.subr.bf16.mxu0 %v7706
    %10947 = vmatpush2.bf16.msra.mxu0 %v7705
    %10948 = vmatprep.subr.bf16.mxu0 %v7698
    %10949 = vmatpush2.bf16.msra.mxu0 %v7697
    %10950 = vmatprep.subr.bf16.mxu0 %v7690
    %10951 = vmatpush2.bf16.msra.mxu0 %v7689
    %10952 = vmatprep.subr.bf16.mxu0 %v7682
    %10953 = vmatpush2.bf16.msra.mxu0 %v7681
    %10954 = vmatprep.subr.bf16.mxu0 %v7674
    %10955 = vmatpush2.bf16.msra.mxu0 %v7673
    %10956 = vmatprep.subr.bf16.mxu0 %v7666
    %10957 = vmatpush2.bf16.msra.mxu0 %v7665
    %10958 = vmatprep.subr.bf16.mxu0 %v7658
    %10959 = vmatpush2.bf16.msra.mxu0 %v7657
    %10960 = vmatprep.mubr.bf16.mxu0 %v246
    %10961 = vmatmul.mubr.bf16.gmra.mxu0 %v245
    %v10962 = vpop.f32.mrf.mxu0
    %v10963 = vadd.f32 %v10920, %v10962
    %v10964 = vpop.f32.mrf.mxu0
    %v10965 = vadd.f32 %v10922, %v10964
    %v10966 = vpop.f32.mrf.mxu0
    %v10967 = vadd.f32 %v10924, %v10966
    %v10968 = vpop.f32.mrf.mxu0
    %v10969 = vadd.f32 %v10926, %v10968
    %10970 = vdwg.mxu0
    %10971 = vmatprep.subr.bf16.mxu0 %v7778
    %10972 = vmatpush1.bf16.msra.mxu0 %v7777
    %10973 = vmatprep.subr.bf16.mxu0 %v7770
    %10974 = vmatpush1.bf16.msra.mxu0 %v7769
    %10975 = vmatprep.subr.bf16.mxu0 %v7762
    %10976 = vmatpush1.bf16.msra.mxu0 %v7761
    %10977 = vmatprep.subr.bf16.mxu0 %v7754
    %10978 = vmatpush1.bf16.msra.mxu0 %v7753
    %10979 = vmatprep.subr.bf16.mxu0 %v7746
    %10980 = vmatpush1.bf16.msra.mxu0 %v7745
    %10981 = vmatprep.subr.bf16.mxu0 %v7738
    %10982 = vmatpush1.bf16.msra.mxu0 %v7737
    %10983 = vmatprep.subr.bf16.mxu0 %v7730
    %10984 = vmatpush1.bf16.msra.mxu0 %v7729
    %10985 = vmatprep.subr.bf16.mxu0 %v7722
    %10986 = vmatpush1.bf16.msra.mxu0 %v7721
    %10987 = vmatprep.subr.bf16.mxu0 %v7842
    %10988 = vmatpush2.bf16.msra.mxu0 %v7841
    %10989 = vmatprep.subr.bf16.mxu0 %v7834
    %10990 = vmatpush2.bf16.msra.mxu0 %v7833
    %10991 = vmatprep.subr.bf16.mxu0 %v7826
    %10992 = vmatpush2.bf16.msra.mxu0 %v7825
    %10993 = vmatprep.subr.bf16.mxu0 %v7818
    %10994 = vmatpush2.bf16.msra.mxu0 %v7817
    %10995 = vmatprep.subr.bf16.mxu0 %v7810
    %10996 = vmatpush2.bf16.msra.mxu0 %v7809
    %10997 = vmatprep.subr.bf16.mxu0 %v7802
    %10998 = vmatpush2.bf16.msra.mxu0 %v7801
    %10999 = vmatprep.subr.bf16.mxu0 %v7794
    %11000 = vmatpush2.bf16.msra.mxu0 %v7793
    %11001 = vmatprep.subr.bf16.mxu0 %v7786
    %11002 = vmatpush2.bf16.msra.mxu0 %v7785
    %11003 = vmatprep.mubr.bf16.mxu0 %v248
    %11004 = vmatmul.mubr.bf16.gmra.mxu0 %v247
    %v11005 = vpop.f32.mrf.mxu0
    %v11006 = vadd.f32 %v10963, %v11005
    %v11007 = vpop.f32.mrf.mxu0
    %v11008 = vadd.f32 %v10965, %v11007
    %v11009 = vpop.f32.mrf.mxu0
    %v11010 = vadd.f32 %v10967, %v11009
    %v11011 = vpop.f32.mrf.mxu0
    %v11012 = vadd.f32 %v10969, %v11011
    %11013 = vdwg.mxu0
    %11014 = vmatprep.subr.bf16.mxu0 %v7906
    %11015 = vmatpush1.bf16.msra.mxu0 %v7905
    %11016 = vmatprep.subr.bf16.mxu0 %v7898
    %11017 = vmatpush1.bf16.msra.mxu0 %v7897
    %11018 = vmatprep.subr.bf16.mxu0 %v7890
    %11019 = vmatpush1.bf16.msra.mxu0 %v7889
    %11020 = vmatprep.subr.bf16.mxu0 %v7882
    %11021 = vmatpush1.bf16.msra.mxu0 %v7881
    %11022 = vmatprep.subr.bf16.mxu0 %v7874
    %11023 = vmatpush1.bf16.msra.mxu0 %v7873
    %11024 = vmatprep.subr.bf16.mxu0 %v7866
    %11025 = vmatpush1.bf16.msra.mxu0 %v7865
    %11026 = vmatprep.subr.bf16.mxu0 %v7858
    %11027 = vmatpush1.bf16.msra.mxu0 %v7857
    %11028 = vmatprep.subr.bf16.mxu0 %v7850
    %11029 = vmatpush1.bf16.msra.mxu0 %v7849
    %11030 = vmatprep.subr.bf16.mxu0 %v7970
    %11031 = vmatpush2.bf16.msra.mxu0 %v7969
    %11032 = vmatprep.subr.bf16.mxu0 %v7962
    %11033 = vmatpush2.bf16.msra.mxu0 %v7961
    %11034 = vmatprep.subr.bf16.mxu0 %v7954
    %11035 = vmatpush2.bf16.msra.mxu0 %v7953
    %11036 = vmatprep.subr.bf16.mxu0 %v7946
    %11037 = vmatpush2.bf16.msra.mxu0 %v7945
    %11038 = vmatprep.subr.bf16.mxu0 %v7938
    %11039 = vmatpush2.bf16.msra.mxu0 %v7937
    %11040 = vmatprep.subr.bf16.mxu0 %v7930
    %11041 = vmatpush2.bf16.msra.mxu0 %v7929
    %11042 = vmatprep.subr.bf16.mxu0 %v7922
    %11043 = vmatpush2.bf16.msra.mxu0 %v7921
    %11044 = vmatprep.subr.bf16.mxu0 %v7914
    %11045 = vmatpush2.bf16.msra.mxu0 %v7913
    %11046 = vmatprep.mubr.bf16.mxu0 %v250
    %11047 = vmatmul.mubr.bf16.gmra.mxu0 %v249
    %v11048 = vpop.f32.mrf.mxu0
    %v11049 = vadd.f32 %v11006, %v11048
    %v11050 = vpop.f32.mrf.mxu0
    %v11051 = vadd.f32 %v11008, %v11050
    %v11052 = vpop.f32.mrf.mxu0
    %v11053 = vadd.f32 %v11010, %v11052
    %v11054 = vpop.f32.mrf.mxu0
    %v11055 = vadd.f32 %v11012, %v11054
    %11056 = vdwg.mxu0
    %11057 = vmatprep.subr.bf16.mxu0 %v6500
    %11058 = vmatpush1.bf16.msra.mxu0 %v6499
    %11059 = vmatprep.subr.bf16.mxu0 %v6492
    %11060 = vmatpush1.bf16.msra.mxu0 %v6491
    %11061 = vmatprep.subr.bf16.mxu0 %v6484
    %11062 = vmatpush1.bf16.msra.mxu0 %v6483
    %11063 = vmatprep.subr.bf16.mxu0 %v6476
    %11064 = vmatpush1.bf16.msra.mxu0 %v6475
    %11065 = vmatprep.subr.bf16.mxu0 %v6468
    %11066 = vmatpush1.bf16.msra.mxu0 %v6467
    %11067 = vmatprep.subr.bf16.mxu0 %v6460
    %11068 = vmatpush1.bf16.msra.mxu0 %v6459
    %11069 = vmatprep.subr.bf16.mxu0 %v6452
    %11070 = vmatpush1.bf16.msra.mxu0 %v6451
    %11071 = vmatprep.subr.bf16.mxu0 %v6444
    %11072 = vmatpush1.bf16.msra.mxu0 %v6443
    %11073 = vmatprep.subr.bf16.mxu0 %v6564
    %11074 = vmatpush2.bf16.msra.mxu0 %v6563
    %11075 = vmatprep.subr.bf16.mxu0 %v6556
    %11076 = vmatpush2.bf16.msra.mxu0 %v6555
    %11077 = vmatprep.subr.bf16.mxu0 %v6548
    %11078 = vmatpush2.bf16.msra.mxu0 %v6547
    %11079 = vmatprep.subr.bf16.mxu0 %v6540
    %11080 = vmatpush2.bf16.msra.mxu0 %v6539
    %11081 = vmatprep.subr.bf16.mxu0 %v6532
    %11082 = vmatpush2.bf16.msra.mxu0 %v6531
    %11083 = vmatprep.subr.bf16.mxu0 %v6524
    %11084 = vmatpush2.bf16.msra.mxu0 %v6523
    %11085 = vmatprep.subr.bf16.mxu0 %v6516
    %11086 = vmatpush2.bf16.msra.mxu0 %v6515
    %11087 = vmatprep.subr.bf16.mxu0 %v6508
    %11088 = vmatpush2.bf16.msra.mxu0 %v6507
    %11089 = vmatprep.mubr.bf16.mxu0 %v228
    %11090 = vmatmul.mubr.bf16.gmra.mxu0 %v227
    %v11091 = vpop.f32.mrf.mxu0
    %v11092 = vadd.f32 %v1816, %v11091
    %v11093 = vpop.f32.mrf.mxu0
    %v11094 = vadd.f32 %v1820, %v11093
    %v11095 = vpop.f32.mrf.mxu0
    %v11096 = vadd.f32 %v1816, %v11095
    %v11097 = vpop.f32.mrf.mxu0
    %v11098 = vadd.f32 %v1820, %v11097
    %11099 = vdwg.mxu0
    %11100 = vmatprep.subr.bf16.mxu0 %v6628
    %11101 = vmatpush1.bf16.msra.mxu0 %v6627
    %11102 = vmatprep.subr.bf16.mxu0 %v6620
    %11103 = vmatpush1.bf16.msra.mxu0 %v6619
    %11104 = vmatprep.subr.bf16.mxu0 %v6612
    %11105 = vmatpush1.bf16.msra.mxu0 %v6611
    %11106 = vmatprep.subr.bf16.mxu0 %v6604
    %11107 = vmatpush1.bf16.msra.mxu0 %v6603
    %11108 = vmatprep.subr.bf16.mxu0 %v6596
    %11109 = vmatpush1.bf16.msra.mxu0 %v6595
    %11110 = vmatprep.subr.bf16.mxu0 %v6588
    %11111 = vmatpush1.bf16.msra.mxu0 %v6587
    %11112 = vmatprep.subr.bf16.mxu0 %v6580
    %11113 = vmatpush1.bf16.msra.mxu0 %v6579
    %11114 = vmatprep.subr.bf16.mxu0 %v6572
    %11115 = vmatpush1.bf16.msra.mxu0 %v6571
    %11116 = vmatprep.subr.bf16.mxu0 %v6692
    %11117 = vmatpush2.bf16.msra.mxu0 %v6691
    %11118 = vmatprep.subr.bf16.mxu0 %v6684
    %11119 = vmatpush2.bf16.msra.mxu0 %v6683
    %11120 = vmatprep.subr.bf16.mxu0 %v6676
    %11121 = vmatpush2.bf16.msra.mxu0 %v6675
    %11122 = vmatprep.subr.bf16.mxu0 %v6668
    %11123 = vmatpush2.bf16.msra.mxu0 %v6667
    %11124 = vmatprep.subr.bf16.mxu0 %v6660
    %11125 = vmatpush2.bf16.msra.mxu0 %v6659
    %11126 = vmatprep.subr.bf16.mxu0 %v6652
    %11127 = vmatpush2.bf16.msra.mxu0 %v6651
    %11128 = vmatprep.subr.bf16.mxu0 %v6644
    %11129 = vmatpush2.bf16.msra.mxu0 %v6643
    %11130 = vmatprep.subr.bf16.mxu0 %v6636
    %11131 = vmatpush2.bf16.msra.mxu0 %v6635
    %11132 = vmatprep.mubr.bf16.mxu0 %v230
    %11133 = vmatmul.mubr.bf16.gmra.mxu0 %v229
    %v11134 = vpop.f32.mrf.mxu0
    %v11135 = vadd.f32 %v11092, %v11134
    %v11136 = vpop.f32.mrf.mxu0
    %v11137 = vadd.f32 %v11094, %v11136
    %v11138 = vpop.f32.mrf.mxu0
    %v11139 = vadd.f32 %v11096, %v11138
    %v11140 = vpop.f32.mrf.mxu0
    %v11141 = vadd.f32 %v11098, %v11140
    %11142 = vdwg.mxu0
    %11143 = vmatprep.subr.bf16.mxu0 %v6756
    %11144 = vmatpush1.bf16.msra.mxu0 %v6755
    %11145 = vmatprep.subr.bf16.mxu0 %v6748
    %11146 = vmatpush1.bf16.msra.mxu0 %v6747
    %11147 = vmatprep.subr.bf16.mxu0 %v6740
    %11148 = vmatpush1.bf16.msra.mxu0 %v6739
    %11149 = vmatprep.subr.bf16.mxu0 %v6732
    %11150 = vmatpush1.bf16.msra.mxu0 %v6731
    %11151 = vmatprep.subr.bf16.mxu0 %v6724
    %11152 = vmatpush1.bf16.msra.mxu0 %v6723
    %11153 = vmatprep.subr.bf16.mxu0 %v6716
    %11154 = vmatpush1.bf16.msra.mxu0 %v6715
    %11155 = vmatprep.subr.bf16.mxu0 %v6708
    %11156 = vmatpush1.bf16.msra.mxu0 %v6707
    %11157 = vmatprep.subr.bf16.mxu0 %v6700
    %11158 = vmatpush1.bf16.msra.mxu0 %v6699
    %11159 = vmatprep.subr.bf16.mxu0 %v6820
    %11160 = vmatpush2.bf16.msra.mxu0 %v6819
    %11161 = vmatprep.subr.bf16.mxu0 %v6812
    %11162 = vmatpush2.bf16.msra.mxu0 %v6811
    %11163 = vmatprep.subr.bf16.mxu0 %v6804
    %11164 = vmatpush2.bf16.msra.mxu0 %v6803
    %11165 = vmatprep.subr.bf16.mxu0 %v6796
    %11166 = vmatpush2.bf16.msra.mxu0 %v6795
    %11167 = vmatprep.subr.bf16.mxu0 %v6788
    %11168 = vmatpush2.bf16.msra.mxu0 %v6787
    %11169 = vmatprep.subr.bf16.mxu0 %v6780
    %11170 = vmatpush2.bf16.msra.mxu0 %v6779
    %11171 = vmatprep.subr.bf16.mxu0 %v6772
    %11172 = vmatpush2.bf16.msra.mxu0 %v6771
    %11173 = vmatprep.subr.bf16.mxu0 %v6764
    %11174 = vmatpush2.bf16.msra.mxu0 %v6763
    %11175 = vmatprep.mubr.bf16.mxu0 %v232
    %11176 = vmatmul.mubr.bf16.gmra.mxu0 %v231
    %v11177 = vpop.f32.mrf.mxu0
    %v11178 = vadd.f32 %v11135, %v11177
    %v11179 = vpop.f32.mrf.mxu0
    %v11180 = vadd.f32 %v11137, %v11179
    %v11181 = vpop.f32.mrf.mxu0
    %v11182 = vadd.f32 %v11139, %v11181
    %v11183 = vpop.f32.mrf.mxu0
    %v11184 = vadd.f32 %v11141, %v11183
    %11185 = vdwg.mxu0
    %11186 = vmatprep.subr.bf16.mxu0 %v6884
    %11187 = vmatpush1.bf16.msra.mxu0 %v6883
    %11188 = vmatprep.subr.bf16.mxu0 %v6876
    %11189 = vmatpush1.bf16.msra.mxu0 %v6875
    %11190 = vmatprep.subr.bf16.mxu0 %v6868
    %11191 = vmatpush1.bf16.msra.mxu0 %v6867
    %11192 = vmatprep.subr.bf16.mxu0 %v6860
    %11193 = vmatpush1.bf16.msra.mxu0 %v6859
    %11194 = vmatprep.subr.bf16.mxu0 %v6852
    %11195 = vmatpush1.bf16.msra.mxu0 %v6851
    %11196 = vmatprep.subr.bf16.mxu0 %v6844
    %11197 = vmatpush1.bf16.msra.mxu0 %v6843
    %11198 = vmatprep.subr.bf16.mxu0 %v6836
    %11199 = vmatpush1.bf16.msra.mxu0 %v6835
    %11200 = vmatprep.subr.bf16.mxu0 %v6828
    %11201 = vmatpush1.bf16.msra.mxu0 %v6827
    %11202 = vmatprep.subr.bf16.mxu0 %v6948
    %11203 = vmatpush2.bf16.msra.mxu0 %v6947
    %11204 = vmatprep.subr.bf16.mxu0 %v6940
    %11205 = vmatpush2.bf16.msra.mxu0 %v6939
    %11206 = vmatprep.subr.bf16.mxu0 %v6932
    %11207 = vmatpush2.bf16.msra.mxu0 %v6931
    %11208 = vmatprep.subr.bf16.mxu0 %v6924
    %11209 = vmatpush2.bf16.msra.mxu0 %v6923
    %11210 = vmatprep.subr.bf16.mxu0 %v6916
    %11211 = vmatpush2.bf16.msra.mxu0 %v6915
    %11212 = vmatprep.subr.bf16.mxu0 %v6908
    %11213 = vmatpush2.bf16.msra.mxu0 %v6907
    %11214 = vmatprep.subr.bf16.mxu0 %v6900
    %11215 = vmatpush2.bf16.msra.mxu0 %v6899
    %11216 = vmatprep.subr.bf16.mxu0 %v6892
    %11217 = vmatpush2.bf16.msra.mxu0 %v6891
    %11218 = vmatprep.mubr.bf16.mxu0 %v234
    %11219 = vmatmul.mubr.bf16.gmra.mxu0 %v233
    %v11220 = vpop.f32.mrf.mxu0
    %v11221 = vadd.f32 %v11178, %v11220
    %v11222 = vpop.f32.mrf.mxu0
    %v11223 = vadd.f32 %v11180, %v11222
    %v11224 = vpop.f32.mrf.mxu0
    %v11225 = vadd.f32 %v11182, %v11224
    %v11226 = vpop.f32.mrf.mxu0
    %v11227 = vadd.f32 %v11184, %v11226
    %11228 = vdwg.mxu0
    %11229 = vmatprep.subr.bf16.mxu0 %v7012
    %11230 = vmatpush1.bf16.msra.mxu0 %v7011
    %11231 = vmatprep.subr.bf16.mxu0 %v7004
    %11232 = vmatpush1.bf16.msra.mxu0 %v7003
    %11233 = vmatprep.subr.bf16.mxu0 %v6996
    %11234 = vmatpush1.bf16.msra.mxu0 %v6995
    %11235 = vmatprep.subr.bf16.mxu0 %v6988
    %11236 = vmatpush1.bf16.msra.mxu0 %v6987
    %11237 = vmatprep.subr.bf16.mxu0 %v6980
    %11238 = vmatpush1.bf16.msra.mxu0 %v6979
    %11239 = vmatprep.subr.bf16.mxu0 %v6972
    %11240 = vmatpush1.bf16.msra.mxu0 %v6971
    %11241 = vmatprep.subr.bf16.mxu0 %v6964
    %11242 = vmatpush1.bf16.msra.mxu0 %v6963
    %11243 = vmatprep.subr.bf16.mxu0 %v6956
    %11244 = vmatpush1.bf16.msra.mxu0 %v6955
    %11245 = vmatprep.subr.bf16.mxu0 %v7076
    %11246 = vmatpush2.bf16.msra.mxu0 %v7075
    %11247 = vmatprep.subr.bf16.mxu0 %v7068
    %11248 = vmatpush2.bf16.msra.mxu0 %v7067
    %11249 = vmatprep.subr.bf16.mxu0 %v7060
    %11250 = vmatpush2.bf16.msra.mxu0 %v7059
    %11251 = vmatprep.subr.bf16.mxu0 %v7052
    %11252 = vmatpush2.bf16.msra.mxu0 %v7051
    %11253 = vmatprep.subr.bf16.mxu0 %v7044
    %11254 = vmatpush2.bf16.msra.mxu0 %v7043
    %11255 = vmatprep.subr.bf16.mxu0 %v7036
    %11256 = vmatpush2.bf16.msra.mxu0 %v7035
    %11257 = vmatprep.subr.bf16.mxu0 %v7028
    %11258 = vmatpush2.bf16.msra.mxu0 %v7027
    %11259 = vmatprep.subr.bf16.mxu0 %v7020
    %11260 = vmatpush2.bf16.msra.mxu0 %v7019
    %11261 = vmatprep.mubr.bf16.mxu0 %v236
    %11262 = vmatmul.mubr.bf16.gmra.mxu0 %v235
    %v11263 = vpop.f32.mrf.mxu0
    %v11264 = vadd.f32 %v11221, %v11263
    %v11265 = vpop.f32.mrf.mxu0
    %v11266 = vadd.f32 %v11223, %v11265
    %v11267 = vpop.f32.mrf.mxu0
    %v11268 = vadd.f32 %v11225, %v11267
    %v11269 = vpop.f32.mrf.mxu0
    %v11270 = vadd.f32 %v11227, %v11269
    %11271 = vdwg.mxu0
    %11272 = vmatprep.subr.bf16.mxu0 %v7140
    %11273 = vmatpush1.bf16.msra.mxu0 %v7139
    %11274 = vmatprep.subr.bf16.mxu0 %v7132
    %11275 = vmatpush1.bf16.msra.mxu0 %v7131
    %11276 = vmatprep.subr.bf16.mxu0 %v7124
    %11277 = vmatpush1.bf16.msra.mxu0 %v7123
    %11278 = vmatprep.subr.bf16.mxu0 %v7116
    %11279 = vmatpush1.bf16.msra.mxu0 %v7115
    %11280 = vmatprep.subr.bf16.mxu0 %v7108
    %11281 = vmatpush1.bf16.msra.mxu0 %v7107
    %11282 = vmatprep.subr.bf16.mxu0 %v7100
    %11283 = vmatpush1.bf16.msra.mxu0 %v7099
    %11284 = vmatprep.subr.bf16.mxu0 %v7092
    %11285 = vmatpush1.bf16.msra.mxu0 %v7091
    %11286 = vmatprep.subr.bf16.mxu0 %v7084
    %11287 = vmatpush1.bf16.msra.mxu0 %v7083
    %11288 = vmatprep.subr.bf16.mxu0 %v7204
    %11289 = vmatpush2.bf16.msra.mxu0 %v7203
    %11290 = vmatprep.subr.bf16.mxu0 %v7196
    %11291 = vmatpush2.bf16.msra.mxu0 %v7195
    %11292 = vmatprep.subr.bf16.mxu0 %v7188
    %11293 = vmatpush2.bf16.msra.mxu0 %v7187
    %11294 = vmatprep.subr.bf16.mxu0 %v7180
    %11295 = vmatpush2.bf16.msra.mxu0 %v7179
    %11296 = vmatprep.subr.bf16.mxu0 %v7172
    %11297 = vmatpush2.bf16.msra.mxu0 %v7171
    %11298 = vmatprep.subr.bf16.mxu0 %v7164
    %11299 = vmatpush2.bf16.msra.mxu0 %v7163
    %11300 = vmatprep.subr.bf16.mxu0 %v7156
    %11301 = vmatpush2.bf16.msra.mxu0 %v7155
    %11302 = vmatprep.subr.bf16.mxu0 %v7148
    %11303 = vmatpush2.bf16.msra.mxu0 %v7147
    %11304 = vmatprep.mubr.bf16.mxu0 %v238
    %11305 = vmatmul.mubr.bf16.gmra.mxu0 %v237
    %v11306 = vpop.f32.mrf.mxu0
    %v11307 = vadd.f32 %v11264, %v11306
    %v11308 = vpop.f32.mrf.mxu0
    %v11309 = vadd.f32 %v11266, %v11308
    %v11310 = vpop.f32.mrf.mxu0
    %v11311 = vadd.f32 %v11268, %v11310
    %v11312 = vpop.f32.mrf.mxu0
    %v11313 = vadd.f32 %v11270, %v11312
    %11314 = vdwg.mxu0
    %11315 = vmatprep.subr.bf16.mxu0 %v7268
    %11316 = vmatpush1.bf16.msra.mxu0 %v7267
    %11317 = vmatprep.subr.bf16.mxu0 %v7260
    %11318 = vmatpush1.bf16.msra.mxu0 %v7259
    %11319 = vmatprep.subr.bf16.mxu0 %v7252
    %11320 = vmatpush1.bf16.msra.mxu0 %v7251
    %11321 = vmatprep.subr.bf16.mxu0 %v7244
    %11322 = vmatpush1.bf16.msra.mxu0 %v7243
    %11323 = vmatprep.subr.bf16.mxu0 %v7236
    %11324 = vmatpush1.bf16.msra.mxu0 %v7235
    %11325 = vmatprep.subr.bf16.mxu0 %v7228
    %11326 = vmatpush1.bf16.msra.mxu0 %v7227
    %11327 = vmatprep.subr.bf16.mxu0 %v7220
    %11328 = vmatpush1.bf16.msra.mxu0 %v7219
    %11329 = vmatprep.subr.bf16.mxu0 %v7212
    %11330 = vmatpush1.bf16.msra.mxu0 %v7211
    %11331 = vmatprep.subr.bf16.mxu0 %v7332
    %11332 = vmatpush2.bf16.msra.mxu0 %v7331
    %11333 = vmatprep.subr.bf16.mxu0 %v7324
    %11334 = vmatpush2.bf16.msra.mxu0 %v7323
    %11335 = vmatprep.subr.bf16.mxu0 %v7316
    %11336 = vmatpush2.bf16.msra.mxu0 %v7315
    %11337 = vmatprep.subr.bf16.mxu0 %v7308
    %11338 = vmatpush2.bf16.msra.mxu0 %v7307
    %11339 = vmatprep.subr.bf16.mxu0 %v7300
    %11340 = vmatpush2.bf16.msra.mxu0 %v7299
    %11341 = vmatprep.subr.bf16.mxu0 %v7292
    %11342 = vmatpush2.bf16.msra.mxu0 %v7291
    %11343 = vmatprep.subr.bf16.mxu0 %v7284
    %11344 = vmatpush2.bf16.msra.mxu0 %v7283
    %11345 = vmatprep.subr.bf16.mxu0 %v7276
    %11346 = vmatpush2.bf16.msra.mxu0 %v7275
    %11347 = vmatprep.mubr.bf16.mxu0 %v240
    %11348 = vmatmul.mubr.bf16.gmra.mxu0 %v239
    %v11349 = vpop.f32.mrf.mxu0
    %v11350 = vadd.f32 %v11307, %v11349
    %v11351 = vpop.f32.mrf.mxu0
    %v11352 = vadd.f32 %v11309, %v11351
    %v11353 = vpop.f32.mrf.mxu0
    %v11354 = vadd.f32 %v11311, %v11353
    %v11355 = vpop.f32.mrf.mxu0
    %v11356 = vadd.f32 %v11313, %v11355
    %11357 = vdwg.mxu0
    %11358 = vmatprep.subr.bf16.mxu0 %v7396
    %11359 = vmatpush1.bf16.msra.mxu0 %v7395
    %11360 = vmatprep.subr.bf16.mxu0 %v7388
    %11361 = vmatpush1.bf16.msra.mxu0 %v7387
    %11362 = vmatprep.subr.bf16.mxu0 %v7380
    %11363 = vmatpush1.bf16.msra.mxu0 %v7379
    %11364 = vmatprep.subr.bf16.mxu0 %v7372
    %11365 = vmatpush1.bf16.msra.mxu0 %v7371
    %11366 = vmatprep.subr.bf16.mxu0 %v7364
    %11367 = vmatpush1.bf16.msra.mxu0 %v7363
    %11368 = vmatprep.subr.bf16.mxu0 %v7356
    %11369 = vmatpush1.bf16.msra.mxu0 %v7355
    %11370 = vmatprep.subr.bf16.mxu0 %v7348
    %11371 = vmatpush1.bf16.msra.mxu0 %v7347
    %11372 = vmatprep.subr.bf16.mxu0 %v7340
    %11373 = vmatpush1.bf16.msra.mxu0 %v7339
    %11374 = vmatprep.subr.bf16.mxu0 %v7460
    %11375 = vmatpush2.bf16.msra.mxu0 %v7459
    %11376 = vmatprep.subr.bf16.mxu0 %v7452
    %11377 = vmatpush2.bf16.msra.mxu0 %v7451
    %11378 = vmatprep.subr.bf16.mxu0 %v7444
    %11379 = vmatpush2.bf16.msra.mxu0 %v7443
    %11380 = vmatprep.subr.bf16.mxu0 %v7436
    %11381 = vmatpush2.bf16.msra.mxu0 %v7435
    %11382 = vmatprep.subr.bf16.mxu0 %v7428
    %11383 = vmatpush2.bf16.msra.mxu0 %v7427
    %11384 = vmatprep.subr.bf16.mxu0 %v7420
    %11385 = vmatpush2.bf16.msra.mxu0 %v7419
    %11386 = vmatprep.subr.bf16.mxu0 %v7412
    %11387 = vmatpush2.bf16.msra.mxu0 %v7411
    %11388 = vmatprep.subr.bf16.mxu0 %v7404
    %11389 = vmatpush2.bf16.msra.mxu0 %v7403
    %11390 = vmatprep.mubr.bf16.mxu0 %v242
    %11391 = vmatmul.mubr.bf16.gmra.mxu0 %v241
    %v11392 = vpop.f32.mrf.mxu0
    %v11393 = vadd.f32 %v11350, %v11392
    %v11394 = vpop.f32.mrf.mxu0
    %v11395 = vadd.f32 %v11352, %v11394
    %v11396 = vpop.f32.mrf.mxu0
    %v11397 = vadd.f32 %v11354, %v11396
    %v11398 = vpop.f32.mrf.mxu0
    %v11399 = vadd.f32 %v11356, %v11398
    %11400 = vdwg.mxu0
    %11401 = vmatprep.subr.bf16.mxu0 %v7524
    %11402 = vmatpush1.bf16.msra.mxu0 %v7523
    %11403 = vmatprep.subr.bf16.mxu0 %v7516
    %11404 = vmatpush1.bf16.msra.mxu0 %v7515
    %11405 = vmatprep.subr.bf16.mxu0 %v7508
    %11406 = vmatpush1.bf16.msra.mxu0 %v7507
    %11407 = vmatprep.subr.bf16.mxu0 %v7500
    %11408 = vmatpush1.bf16.msra.mxu0 %v7499
    %11409 = vmatprep.subr.bf16.mxu0 %v7492
    %11410 = vmatpush1.bf16.msra.mxu0 %v7491
    %11411 = vmatprep.subr.bf16.mxu0 %v7484
    %11412 = vmatpush1.bf16.msra.mxu0 %v7483
    %11413 = vmatprep.subr.bf16.mxu0 %v7476
    %11414 = vmatpush1.bf16.msra.mxu0 %v7475
    %11415 = vmatprep.subr.bf16.mxu0 %v7468
    %11416 = vmatpush1.bf16.msra.mxu0 %v7467
    %11417 = vmatprep.subr.bf16.mxu0 %v7588
    %11418 = vmatpush2.bf16.msra.mxu0 %v7587
    %11419 = vmatprep.subr.bf16.mxu0 %v7580
    %11420 = vmatpush2.bf16.msra.mxu0 %v7579
    %11421 = vmatprep.subr.bf16.mxu0 %v7572
    %11422 = vmatpush2.bf16.msra.mxu0 %v7571
    %11423 = vmatprep.subr.bf16.mxu0 %v7564
    %11424 = vmatpush2.bf16.msra.mxu0 %v7563
    %11425 = vmatprep.subr.bf16.mxu0 %v7556
    %11426 = vmatpush2.bf16.msra.mxu0 %v7555
    %11427 = vmatprep.subr.bf16.mxu0 %v7548
    %11428 = vmatpush2.bf16.msra.mxu0 %v7547
    %11429 = vmatprep.subr.bf16.mxu0 %v7540
    %11430 = vmatpush2.bf16.msra.mxu0 %v7539
    %11431 = vmatprep.subr.bf16.mxu0 %v7532
    %11432 = vmatpush2.bf16.msra.mxu0 %v7531
    %11433 = vmatprep.mubr.bf16.mxu0 %v244
    %11434 = vmatmul.mubr.bf16.gmra.mxu0 %v243
    %v11435 = vpop.f32.mrf.mxu0
    %v11436 = vadd.f32 %v11393, %v11435
    %v11437 = vpop.f32.mrf.mxu0
    %v11438 = vadd.f32 %v11395, %v11437
    %v11439 = vpop.f32.mrf.mxu0
    %v11440 = vadd.f32 %v11397, %v11439
    %v11441 = vpop.f32.mrf.mxu0
    %v11442 = vadd.f32 %v11399, %v11441
    %11443 = vdwg.mxu0
    %11444 = vmatprep.subr.bf16.mxu0 %v7652
    %11445 = vmatpush1.bf16.msra.mxu0 %v7651
    %11446 = vmatprep.subr.bf16.mxu0 %v7644
    %11447 = vmatpush1.bf16.msra.mxu0 %v7643
    %11448 = vmatprep.subr.bf16.mxu0 %v7636
    %11449 = vmatpush1.bf16.msra.mxu0 %v7635
    %11450 = vmatprep.subr.bf16.mxu0 %v7628
    %11451 = vmatpush1.bf16.msra.mxu0 %v7627
    %11452 = vmatprep.subr.bf16.mxu0 %v7620
    %11453 = vmatpush1.bf16.msra.mxu0 %v7619
    %11454 = vmatprep.subr.bf16.mxu0 %v7612
    %11455 = vmatpush1.bf16.msra.mxu0 %v7611
    %11456 = vmatprep.subr.bf16.mxu0 %v7604
    %11457 = vmatpush1.bf16.msra.mxu0 %v7603
    %11458 = vmatprep.subr.bf16.mxu0 %v7596
    %11459 = vmatpush1.bf16.msra.mxu0 %v7595
    %11460 = vmatprep.subr.bf16.mxu0 %v7716
    %11461 = vmatpush2.bf16.msra.mxu0 %v7715
    %11462 = vmatprep.subr.bf16.mxu0 %v7708
    %11463 = vmatpush2.bf16.msra.mxu0 %v7707
    %11464 = vmatprep.subr.bf16.mxu0 %v7700
    %11465 = vmatpush2.bf16.msra.mxu0 %v7699
    %11466 = vmatprep.subr.bf16.mxu0 %v7692
    %11467 = vmatpush2.bf16.msra.mxu0 %v7691
    %11468 = vmatprep.subr.bf16.mxu0 %v7684
    %11469 = vmatpush2.bf16.msra.mxu0 %v7683
    %11470 = vmatprep.subr.bf16.mxu0 %v7676
    %11471 = vmatpush2.bf16.msra.mxu0 %v7675
    %11472 = vmatprep.subr.bf16.mxu0 %v7668
    %11473 = vmatpush2.bf16.msra.mxu0 %v7667
    %11474 = vmatprep.subr.bf16.mxu0 %v7660
    %11475 = vmatpush2.bf16.msra.mxu0 %v7659
    %11476 = vmatprep.mubr.bf16.mxu0 %v246
    %11477 = vmatmul.mubr.bf16.gmra.mxu0 %v245
    %v11478 = vpop.f32.mrf.mxu0
    %v11479 = vadd.f32 %v11436, %v11478
    %v11480 = vpop.f32.mrf.mxu0
    %v11481 = vadd.f32 %v11438, %v11480
    %v11482 = vpop.f32.mrf.mxu0
    %v11483 = vadd.f32 %v11440, %v11482
    %v11484 = vpop.f32.mrf.mxu0
    %v11485 = vadd.f32 %v11442, %v11484
    %11486 = vdwg.mxu0
    %11487 = vmatprep.subr.bf16.mxu0 %v7780
    %11488 = vmatpush1.bf16.msra.mxu0 %v7779
    %11489 = vmatprep.subr.bf16.mxu0 %v7772
    %11490 = vmatpush1.bf16.msra.mxu0 %v7771
    %11491 = vmatprep.subr.bf16.mxu0 %v7764
    %11492 = vmatpush1.bf16.msra.mxu0 %v7763
    %11493 = vmatprep.subr.bf16.mxu0 %v7756
    %11494 = vmatpush1.bf16.msra.mxu0 %v7755
    %11495 = vmatprep.subr.bf16.mxu0 %v7748
    %11496 = vmatpush1.bf16.msra.mxu0 %v7747
    %11497 = vmatprep.subr.bf16.mxu0 %v7740
    %11498 = vmatpush1.bf16.msra.mxu0 %v7739
    %11499 = vmatprep.subr.bf16.mxu0 %v7732
    %11500 = vmatpush1.bf16.msra.mxu0 %v7731
    %11501 = vmatprep.subr.bf16.mxu0 %v7724
    %11502 = vmatpush1.bf16.msra.mxu0 %v7723
    %11503 = vmatprep.subr.bf16.mxu0 %v7844
    %11504 = vmatpush2.bf16.msra.mxu0 %v7843
    %11505 = vmatprep.subr.bf16.mxu0 %v7836
    %11506 = vmatpush2.bf16.msra.mxu0 %v7835
    %11507 = vmatprep.subr.bf16.mxu0 %v7828
    %11508 = vmatpush2.bf16.msra.mxu0 %v7827
    %11509 = vmatprep.subr.bf16.mxu0 %v7820
    %11510 = vmatpush2.bf16.msra.mxu0 %v7819
    %11511 = vmatprep.subr.bf16.mxu0 %v7812
    %11512 = vmatpush2.bf16.msra.mxu0 %v7811
    %11513 = vmatprep.subr.bf16.mxu0 %v7804
    %11514 = vmatpush2.bf16.msra.mxu0 %v7803
    %11515 = vmatprep.subr.bf16.mxu0 %v7796
    %11516 = vmatpush2.bf16.msra.mxu0 %v7795
    %11517 = vmatprep.subr.bf16.mxu0 %v7788
    %11518 = vmatpush2.bf16.msra.mxu0 %v7787
    %11519 = vmatprep.mubr.bf16.mxu0 %v248
    %11520 = vmatmul.mubr.bf16.gmra.mxu0 %v247
    %v11521 = vpop.f32.mrf.mxu0
    %v11522 = vadd.f32 %v11479, %v11521
    %v11523 = vpop.f32.mrf.mxu0
    %v11524 = vadd.f32 %v11481, %v11523
    %v11525 = vpop.f32.mrf.mxu0
    %v11526 = vadd.f32 %v11483, %v11525
    %v11527 = vpop.f32.mrf.mxu0
    %v11528 = vadd.f32 %v11485, %v11527
    %11529 = vdwg.mxu0
    %11530 = vmatprep.subr.bf16.mxu0 %v7908
    %11531 = vmatpush1.bf16.msra.mxu0 %v7907
    %11532 = vmatprep.subr.bf16.mxu0 %v7900
    %11533 = vmatpush1.bf16.msra.mxu0 %v7899
    %11534 = vmatprep.subr.bf16.mxu0 %v7892
    %11535 = vmatpush1.bf16.msra.mxu0 %v7891
    %11536 = vmatprep.subr.bf16.mxu0 %v7884
    %11537 = vmatpush1.bf16.msra.mxu0 %v7883
    %11538 = vmatprep.subr.bf16.mxu0 %v7876
    %11539 = vmatpush1.bf16.msra.mxu0 %v7875
    %11540 = vmatprep.subr.bf16.mxu0 %v7868
    %11541 = vmatpush1.bf16.msra.mxu0 %v7867
    %11542 = vmatprep.subr.bf16.mxu0 %v7860
    %11543 = vmatpush1.bf16.msra.mxu0 %v7859
    %11544 = vmatprep.subr.bf16.mxu0 %v7852
    %11545 = vmatpush1.bf16.msra.mxu0 %v7851
    %11546 = vmatprep.subr.bf16.mxu0 %v7972
    %11547 = vmatpush2.bf16.msra.mxu0 %v7971
    %11548 = vmatprep.subr.bf16.mxu0 %v7964
    %11549 = vmatpush2.bf16.msra.mxu0 %v7963
    %11550 = vmatprep.subr.bf16.mxu0 %v7956
    %11551 = vmatpush2.bf16.msra.mxu0 %v7955
    %11552 = vmatprep.subr.bf16.mxu0 %v7948
    %11553 = vmatpush2.bf16.msra.mxu0 %v7947
    %11554 = vmatprep.subr.bf16.mxu0 %v7940
    %11555 = vmatpush2.bf16.msra.mxu0 %v7939
    %11556 = vmatprep.subr.bf16.mxu0 %v7932
    %11557 = vmatpush2.bf16.msra.mxu0 %v7931
    %11558 = vmatprep.subr.bf16.mxu0 %v7924
    %11559 = vmatpush2.bf16.msra.mxu0 %v7923
    %11560 = vmatprep.subr.bf16.mxu0 %v7916
    %11561 = vmatpush2.bf16.msra.mxu0 %v7915
    %11562 = vmatprep.mubr.bf16.mxu0 %v250
    %11563 = vmatmul.mubr.bf16.gmra.mxu0 %v249
    %v11564 = vpop.f32.mrf.mxu0
    %v11565 = vadd.f32 %v11522, %v11564
    %v11566 = vpop.f32.mrf.mxu0
    %v11567 = vadd.f32 %v11524, %v11566
    %v11568 = vpop.f32.mrf.mxu0
    %v11569 = vadd.f32 %v11526, %v11568
    %v11570 = vpop.f32.mrf.mxu0
    %v11571 = vadd.f32 %v11528, %v11570
    %11572 = vdwg.mxu0
    %v11573 = vmul.f32 %v10017, 0.01
    %v11574 = vmul.f32 %v10019, 0.01
    %v11575 = vmul.f32 %v10533, 0.01
    %v11576 = vmul.f32 %v10535, 0.01
    %v11577 = vmul.f32 %v11049, 0.01
    %v11578 = vmul.f32 %v11051, 0.01
    %v11579 = vmul.f32 %v11565, 0.01
    %v11580 = vmul.f32 %v11567, 0.01
    %v11581 = vmul.f32 %v10021, 0.01
    %v11582 = vmul.f32 %v10023, 0.01
    %v11583 = vmul.f32 %v10537, 0.01
    %v11584 = vmul.f32 %v10539, 0.01
    %v11585 = vmul.f32 %v11053, 0.01
    %v11586 = vmul.f32 %v11055, 0.01
    %v11587 = vmul.f32 %v11569, 0.01
    %v11588 = vmul.f32 %v11571, 0.01
    %v11589 = vmax.f32 %v10017, %v11573
    %v11590 = vmax.f32 %v10019, %v11574
    %v11591 = vmax.f32 %v10533, %v11575
    %v11592 = vmax.f32 %v10535, %v11576
    %v11593 = vmax.f32 %v11049, %v11577
    %v11594 = vmax.f32 %v11051, %v11578
    %v11595 = vmax.f32 %v11565, %v11579
    %v11596 = vmax.f32 %v11567, %v11580
    %v11597 = vmax.f32 %v10021, %v11581
    %v11598 = vmax.f32 %v10023, %v11582
    %v11599 = vmax.f32 %v10537, %v11583
    %v11600 = vmax.f32 %v10539, %v11584
    %v11601 = vmax.f32 %v11053, %v11585
    %v11602 = vmax.f32 %v11055, %v11586
    %v11603 = vmax.f32 %v11569, %v11587
    %v11604 = vmax.f32 %v11571, %v11588
    %v11605 = vpack.c.bf16 %v11597, %v11589
    %v11606 = vpack.c.bf16 %v11598, %v11590
    %v11607 = vpack.c.bf16 %v11599, %v11591
    %v11608 = vpack.c.bf16 %v11600, %v11592
    %v11609 = vpack.c.bf16 %v11601, %v11593
    %v11610 = vpack.c.bf16 %v11602, %v11594
    %v11611 = vpack.c.bf16 %v11603, %v11595
    %v11612 = vpack.c.bf16 %v11604, %v11596
    %v11613 = vld [vmem:[#allocation8] sm:$0xff]
    %v11614 = vld [vmem:[#allocation8 + $0x8] sm:$0xff]
    %v11615 = vld [vmem:[#allocation8 + $0x10] sm:$0xff]
    %v11616 = vld [vmem:[#allocation8 + $0x18] sm:$0xff]
    %v11617 = vld [vmem:[#allocation8 + $0x20] sm:$0xff]
    %v11618 = vld [vmem:[#allocation8 + $0x28] sm:$0xff]
    %v11619 = vld [vmem:[#allocation8 + $0x30] sm:$0xff]
    %v11620 = vld [vmem:[#allocation8 + $0x38] sm:$0xff]
    %v11621 = vld [vmem:[#allocation8 + $0x40] sm:$0xff]
    %v11622 = vld [vmem:[#allocation8 + $0x48] sm:$0xff]
    %v11623 = vld [vmem:[#allocation8 + $0x50] sm:$0xff]
    %v11624 = vld [vmem:[#allocation8 + $0x58] sm:$0xff]
    %v11625 = vld [vmem:[#allocation8 + $0x60] sm:$0xff]
    %v11626 = vld [vmem:[#allocation8 + $0x68] sm:$0xff]
    %v11627 = vld [vmem:[#allocation8 + $0x70] sm:$0xff]
    %v11628 = vld [vmem:[#allocation8 + $0x78] sm:$0xff]
    %v11629 = vld [vmem:[#allocation8 + $0x80] sm:$0xff]
    %v11630 = vld [vmem:[#allocation8 + $0x88] sm:$0xff]
    %v11631 = vld [vmem:[#allocation8 + $0x90] sm:$0xff]
    %v11632 = vld [vmem:[#allocation8 + $0x98] sm:$0xff]
    %v11633 = vld [vmem:[#allocation8 + $0xa0] sm:$0xff]
    %v11634 = vld [vmem:[#allocation8 + $0xa8] sm:$0xff]
    %v11635 = vld [vmem:[#allocation8 + $0xb0] sm:$0xff]
    %v11636 = vld [vmem:[#allocation8 + $0xb8] sm:$0xff]
    %v11637 = vld [vmem:[#allocation8 + $0xc0] sm:$0xff]
    %v11638 = vld [vmem:[#allocation8 + $0xc8] sm:$0xff]
    %v11639 = vld [vmem:[#allocation8 + $0xd0] sm:$0xff]
    %v11640 = vld [vmem:[#allocation8 + $0xd8] sm:$0xff]
    %v11641 = vld [vmem:[#allocation8 + $0xe0] sm:$0xff]
    %v11642 = vld [vmem:[#allocation8 + $0xe8] sm:$0xff]
    %v11643 = vld [vmem:[#allocation8 + $0xf0] sm:$0xff]
    %v11644 = vld [vmem:[#allocation8 + $0xf8] sm:$0xff]
    %v11645 = vld [vmem:[#allocation8 + $0x100] sm:$0xff]
    %v11646 = vld [vmem:[#allocation8 + $0x108] sm:$0xff]
    %v11647 = vld [vmem:[#allocation8 + $0x110] sm:$0xff]
    %v11648 = vld [vmem:[#allocation8 + $0x118] sm:$0xff]
    %v11649 = vld [vmem:[#allocation8 + $0x120] sm:$0xff]
    %v11650 = vld [vmem:[#allocation8 + $0x128] sm:$0xff]
    %v11651 = vld [vmem:[#allocation8 + $0x130] sm:$0xff]
    %v11652 = vld [vmem:[#allocation8 + $0x138] sm:$0xff]
    %v11653 = vld [vmem:[#allocation8 + $0x140] sm:$0xff]
    %v11654 = vld [vmem:[#allocation8 + $0x148] sm:$0xff]
    %v11655 = vld [vmem:[#allocation8 + $0x150] sm:$0xff]
    %v11656 = vld [vmem:[#allocation8 + $0x158] sm:$0xff]
    %v11657 = vld [vmem:[#allocation8 + $0x160] sm:$0xff]
    %v11658 = vld [vmem:[#allocation8 + $0x168] sm:$0xff]
    %v11659 = vld [vmem:[#allocation8 + $0x170] sm:$0xff]
    %v11660 = vld [vmem:[#allocation8 + $0x178] sm:$0xff]
    %v11661 = vld [vmem:[#allocation8 + $0x180] sm:$0xff]
    %v11662 = vld [vmem:[#allocation8 + $0x188] sm:$0xff]
    %v11663 = vld [vmem:[#allocation8 + $0x190] sm:$0xff]
    %v11664 = vld [vmem:[#allocation8 + $0x198] sm:$0xff]
    %v11665 = vld [vmem:[#allocation8 + $0x1a0] sm:$0xff]
    %v11666 = vld [vmem:[#allocation8 + $0x1a8] sm:$0xff]
    %v11667 = vld [vmem:[#allocation8 + $0x1b0] sm:$0xff]
    %v11668 = vld [vmem:[#allocation8 + $0x1b8] sm:$0xff]
    %v11669 = vld [vmem:[#allocation8 + $0x1c0] sm:$0xff]
    %v11670 = vld [vmem:[#allocation8 + $0x1c8] sm:$0xff]
    %v11671 = vld [vmem:[#allocation8 + $0x1d0] sm:$0xff]
    %v11672 = vld [vmem:[#allocation8 + $0x1d8] sm:$0xff]
    %v11673 = vld [vmem:[#allocation8 + $0x1e0] sm:$0xff]
    %v11674 = vld [vmem:[#allocation8 + $0x1e8] sm:$0xff]
    %v11675 = vld [vmem:[#allocation8 + $0x1f0] sm:$0xff]
    %v11676 = vld [vmem:[#allocation8 + $0x1f8] sm:$0xff]
    %v11677 = vld [vmem:[#allocation8 + $0x200] sm:$0xff]
    %v11678 = vld [vmem:[#allocation8 + $0x208] sm:$0xff]
    %v11679 = vld [vmem:[#allocation8 + $0x210] sm:$0xff]
    %v11680 = vld [vmem:[#allocation8 + $0x218] sm:$0xff]
    %v11681 = vld [vmem:[#allocation8 + $0x220] sm:$0xff]
    %v11682 = vld [vmem:[#allocation8 + $0x228] sm:$0xff]
    %v11683 = vld [vmem:[#allocation8 + $0x230] sm:$0xff]
    %v11684 = vld [vmem:[#allocation8 + $0x238] sm:$0xff]
    %v11685 = vld [vmem:[#allocation8 + $0x240] sm:$0xff]
    %v11686 = vld [vmem:[#allocation8 + $0x248] sm:$0xff]
    %v11687 = vld [vmem:[#allocation8 + $0x250] sm:$0xff]
    %v11688 = vld [vmem:[#allocation8 + $0x258] sm:$0xff]
    %v11689 = vld [vmem:[#allocation8 + $0x260] sm:$0xff]
    %v11690 = vld [vmem:[#allocation8 + $0x268] sm:$0xff]
    %v11691 = vld [vmem:[#allocation8 + $0x270] sm:$0xff]
    %v11692 = vld [vmem:[#allocation8 + $0x278] sm:$0xff]
    %v11693 = vld [vmem:[#allocation8 + $0x280] sm:$0xff]
    %v11694 = vld [vmem:[#allocation8 + $0x288] sm:$0xff]
    %v11695 = vld [vmem:[#allocation8 + $0x290] sm:$0xff]
    %v11696 = vld [vmem:[#allocation8 + $0x298] sm:$0xff]
    %v11697 = vld [vmem:[#allocation8 + $0x2a0] sm:$0xff]
    %v11698 = vld [vmem:[#allocation8 + $0x2a8] sm:$0xff]
    %v11699 = vld [vmem:[#allocation8 + $0x2b0] sm:$0xff]
    %v11700 = vld [vmem:[#allocation8 + $0x2b8] sm:$0xff]
    %v11701 = vld [vmem:[#allocation8 + $0x2c0] sm:$0xff]
    %v11702 = vld [vmem:[#allocation8 + $0x2c8] sm:$0xff]
    %v11703 = vld [vmem:[#allocation8 + $0x2d0] sm:$0xff]
    %v11704 = vld [vmem:[#allocation8 + $0x2d8] sm:$0xff]
    %v11705 = vld [vmem:[#allocation8 + $0x2e0] sm:$0xff]
    %v11706 = vld [vmem:[#allocation8 + $0x2e8] sm:$0xff]
    %v11707 = vld [vmem:[#allocation8 + $0x2f0] sm:$0xff]
    %v11708 = vld [vmem:[#allocation8 + $0x2f8] sm:$0xff]
    %v11709 = vld [vmem:[#allocation8 + $0x300] sm:$0xff]
    %v11710 = vld [vmem:[#allocation8 + $0x308] sm:$0xff]
    %v11711 = vld [vmem:[#allocation8 + $0x310] sm:$0xff]
    %v11712 = vld [vmem:[#allocation8 + $0x318] sm:$0xff]
    %v11713 = vld [vmem:[#allocation8 + $0x320] sm:$0xff]
    %v11714 = vld [vmem:[#allocation8 + $0x328] sm:$0xff]
    %v11715 = vld [vmem:[#allocation8 + $0x330] sm:$0xff]
    %v11716 = vld [vmem:[#allocation8 + $0x338] sm:$0xff]
    %v11717 = vld [vmem:[#allocation8 + $0x340] sm:$0xff]
    %v11718 = vld [vmem:[#allocation8 + $0x348] sm:$0xff]
    %v11719 = vld [vmem:[#allocation8 + $0x350] sm:$0xff]
    %v11720 = vld [vmem:[#allocation8 + $0x358] sm:$0xff]
    %v11721 = vld [vmem:[#allocation8 + $0x360] sm:$0xff]
    %v11722 = vld [vmem:[#allocation8 + $0x368] sm:$0xff]
    %v11723 = vld [vmem:[#allocation8 + $0x370] sm:$0xff]
    %v11724 = vld [vmem:[#allocation8 + $0x378] sm:$0xff]
    %v11725 = vld [vmem:[#allocation8 + $0x380] sm:$0xff]
    %v11726 = vld [vmem:[#allocation8 + $0x388] sm:$0xff]
    %v11727 = vld [vmem:[#allocation8 + $0x390] sm:$0xff]
    %v11728 = vld [vmem:[#allocation8 + $0x398] sm:$0xff]
    %v11729 = vld [vmem:[#allocation8 + $0x3a0] sm:$0xff]
    %v11730 = vld [vmem:[#allocation8 + $0x3a8] sm:$0xff]
    %v11731 = vld [vmem:[#allocation8 + $0x3b0] sm:$0xff]
    %v11732 = vld [vmem:[#allocation8 + $0x3b8] sm:$0xff]
    %v11733 = vld [vmem:[#allocation8 + $0x3c0] sm:$0xff]
    %v11734 = vld [vmem:[#allocation8 + $0x3c8] sm:$0xff]
    %v11735 = vld [vmem:[#allocation8 + $0x3d0] sm:$0xff]
    %v11736 = vld [vmem:[#allocation8 + $0x3d8] sm:$0xff]
    %v11737 = vld [vmem:[#allocation8 + $0x3e0] sm:$0xff]
    %v11738 = vld [vmem:[#allocation8 + $0x3e8] sm:$0xff]
    %v11739 = vld [vmem:[#allocation8 + $0x3f0] sm:$0xff]
    %v11740 = vld [vmem:[#allocation8 + $0x3f8] sm:$0xff]
    %v11741 = vld [vmem:[#allocation8 + $0x400] sm:$0xff]
    %v11742 = vld [vmem:[#allocation8 + $0x408] sm:$0xff]
    %v11743 = vld [vmem:[#allocation8 + $0x410] sm:$0xff]
    %v11744 = vld [vmem:[#allocation8 + $0x418] sm:$0xff]
    %v11745 = vld [vmem:[#allocation8 + $0x420] sm:$0xff]
    %v11746 = vld [vmem:[#allocation8 + $0x428] sm:$0xff]
    %v11747 = vld [vmem:[#allocation8 + $0x430] sm:$0xff]
    %v11748 = vld [vmem:[#allocation8 + $0x438] sm:$0xff]
    %v11749 = vld [vmem:[#allocation8 + $0x440] sm:$0xff]
    %v11750 = vld [vmem:[#allocation8 + $0x448] sm:$0xff]
    %v11751 = vld [vmem:[#allocation8 + $0x450] sm:$0xff]
    %v11752 = vld [vmem:[#allocation8 + $0x458] sm:$0xff]
    %v11753 = vld [vmem:[#allocation8 + $0x460] sm:$0xff]
    %v11754 = vld [vmem:[#allocation8 + $0x468] sm:$0xff]
    %v11755 = vld [vmem:[#allocation8 + $0x470] sm:$0xff]
    %v11756 = vld [vmem:[#allocation8 + $0x478] sm:$0xff]
    %v11757 = vld [vmem:[#allocation8 + $0x480] sm:$0xff]
    %v11758 = vld [vmem:[#allocation8 + $0x488] sm:$0xff]
    %v11759 = vld [vmem:[#allocation8 + $0x490] sm:$0xff]
    %v11760 = vld [vmem:[#allocation8 + $0x498] sm:$0xff]
    %v11761 = vld [vmem:[#allocation8 + $0x4a0] sm:$0xff]
    %v11762 = vld [vmem:[#allocation8 + $0x4a8] sm:$0xff]
    %v11763 = vld [vmem:[#allocation8 + $0x4b0] sm:$0xff]
    %v11764 = vld [vmem:[#allocation8 + $0x4b8] sm:$0xff]
    %v11765 = vld [vmem:[#allocation8 + $0x4c0] sm:$0xff]
    %v11766 = vld [vmem:[#allocation8 + $0x4c8] sm:$0xff]
    %v11767 = vld [vmem:[#allocation8 + $0x4d0] sm:$0xff]
    %v11768 = vld [vmem:[#allocation8 + $0x4d8] sm:$0xff]
    %v11769 = vld [vmem:[#allocation8 + $0x4e0] sm:$0xff]
    %v11770 = vld [vmem:[#allocation8 + $0x4e8] sm:$0xff]
    %v11771 = vld [vmem:[#allocation8 + $0x4f0] sm:$0xff]
    %v11772 = vld [vmem:[#allocation8 + $0x4f8] sm:$0xff]
    %v11773 = vld [vmem:[#allocation8 + $0x500] sm:$0xff]
    %v11774 = vld [vmem:[#allocation8 + $0x508] sm:$0xff]
    %v11775 = vld [vmem:[#allocation8 + $0x510] sm:$0xff]
    %v11776 = vld [vmem:[#allocation8 + $0x518] sm:$0xff]
    %v11777 = vld [vmem:[#allocation8 + $0x520] sm:$0xff]
    %v11778 = vld [vmem:[#allocation8 + $0x528] sm:$0xff]
    %v11779 = vld [vmem:[#allocation8 + $0x530] sm:$0xff]
    %v11780 = vld [vmem:[#allocation8 + $0x538] sm:$0xff]
    %v11781 = vld [vmem:[#allocation8 + $0x540] sm:$0xff]
    %v11782 = vld [vmem:[#allocation8 + $0x548] sm:$0xff]
    %v11783 = vld [vmem:[#allocation8 + $0x550] sm:$0xff]
    %v11784 = vld [vmem:[#allocation8 + $0x558] sm:$0xff]
    %v11785 = vld [vmem:[#allocation8 + $0x560] sm:$0xff]
    %v11786 = vld [vmem:[#allocation8 + $0x568] sm:$0xff]
    %v11787 = vld [vmem:[#allocation8 + $0x570] sm:$0xff]
    %v11788 = vld [vmem:[#allocation8 + $0x578] sm:$0xff]
    %v11789 = vld [vmem:[#allocation8 + $0x580] sm:$0xff]
    %v11790 = vld [vmem:[#allocation8 + $0x588] sm:$0xff]
    %v11791 = vld [vmem:[#allocation8 + $0x590] sm:$0xff]
    %v11792 = vld [vmem:[#allocation8 + $0x598] sm:$0xff]
    %v11793 = vld [vmem:[#allocation8 + $0x5a0] sm:$0xff]
    %v11794 = vld [vmem:[#allocation8 + $0x5a8] sm:$0xff]
    %v11795 = vld [vmem:[#allocation8 + $0x5b0] sm:$0xff]
    %v11796 = vld [vmem:[#allocation8 + $0x5b8] sm:$0xff]
    %v11797 = vld [vmem:[#allocation8 + $0x5c0] sm:$0xff]
    %v11798 = vld [vmem:[#allocation8 + $0x5c8] sm:$0xff]
    %v11799 = vld [vmem:[#allocation8 + $0x5d0] sm:$0xff]
    %v11800 = vld [vmem:[#allocation8 + $0x5d8] sm:$0xff]
    %v11801 = vld [vmem:[#allocation8 + $0x5e0] sm:$0xff]
    %v11802 = vld [vmem:[#allocation8 + $0x5e8] sm:$0xff]
    %v11803 = vld [vmem:[#allocation8 + $0x5f0] sm:$0xff]
    %v11804 = vld [vmem:[#allocation8 + $0x5f8] sm:$0xff]
    %v11805 = vld [vmem:[#allocation8 + $0x600] sm:$0xff]
    %v11806 = vld [vmem:[#allocation8 + $0x608] sm:$0xff]
    %v11807 = vld [vmem:[#allocation8 + $0x610] sm:$0xff]
    %v11808 = vld [vmem:[#allocation8 + $0x618] sm:$0xff]
    %v11809 = vld [vmem:[#allocation8 + $0x620] sm:$0xff]
    %v11810 = vld [vmem:[#allocation8 + $0x628] sm:$0xff]
    %v11811 = vld [vmem:[#allocation8 + $0x630] sm:$0xff]
    %v11812 = vld [vmem:[#allocation8 + $0x638] sm:$0xff]
    %v11813 = vld [vmem:[#allocation8 + $0x640] sm:$0xff]
    %v11814 = vld [vmem:[#allocation8 + $0x648] sm:$0xff]
    %v11815 = vld [vmem:[#allocation8 + $0x650] sm:$0xff]
    %v11816 = vld [vmem:[#allocation8 + $0x658] sm:$0xff]
    %v11817 = vld [vmem:[#allocation8 + $0x660] sm:$0xff]
    %v11818 = vld [vmem:[#allocation8 + $0x668] sm:$0xff]
    %v11819 = vld [vmem:[#allocation8 + $0x670] sm:$0xff]
    %v11820 = vld [vmem:[#allocation8 + $0x678] sm:$0xff]
    %v11821 = vld [vmem:[#allocation8 + $0x680] sm:$0xff]
    %v11822 = vld [vmem:[#allocation8 + $0x688] sm:$0xff]
    %v11823 = vld [vmem:[#allocation8 + $0x690] sm:$0xff]
    %v11824 = vld [vmem:[#allocation8 + $0x698] sm:$0xff]
    %v11825 = vld [vmem:[#allocation8 + $0x6a0] sm:$0xff]
    %v11826 = vld [vmem:[#allocation8 + $0x6a8] sm:$0xff]
    %v11827 = vld [vmem:[#allocation8 + $0x6b0] sm:$0xff]
    %v11828 = vld [vmem:[#allocation8 + $0x6b8] sm:$0xff]
    %v11829 = vld [vmem:[#allocation8 + $0x6c0] sm:$0xff]
    %v11830 = vld [vmem:[#allocation8 + $0x6c8] sm:$0xff]
    %v11831 = vld [vmem:[#allocation8 + $0x6d0] sm:$0xff]
    %v11832 = vld [vmem:[#allocation8 + $0x6d8] sm:$0xff]
    %v11833 = vld [vmem:[#allocation8 + $0x6e0] sm:$0xff]
    %v11834 = vld [vmem:[#allocation8 + $0x6e8] sm:$0xff]
    %v11835 = vld [vmem:[#allocation8 + $0x6f0] sm:$0xff]
    %v11836 = vld [vmem:[#allocation8 + $0x6f8] sm:$0xff]
    %v11837 = vld [vmem:[#allocation8 + $0x700] sm:$0xff]
    %v11838 = vld [vmem:[#allocation8 + $0x708] sm:$0xff]
    %v11839 = vld [vmem:[#allocation8 + $0x710] sm:$0xff]
    %v11840 = vld [vmem:[#allocation8 + $0x718] sm:$0xff]
    %v11841 = vld [vmem:[#allocation8 + $0x720] sm:$0xff]
    %v11842 = vld [vmem:[#allocation8 + $0x728] sm:$0xff]
    %v11843 = vld [vmem:[#allocation8 + $0x730] sm:$0xff]
    %v11844 = vld [vmem:[#allocation8 + $0x738] sm:$0xff]
    %v11845 = vld [vmem:[#allocation8 + $0x740] sm:$0xff]
    %v11846 = vld [vmem:[#allocation8 + $0x748] sm:$0xff]
    %v11847 = vld [vmem:[#allocation8 + $0x750] sm:$0xff]
    %v11848 = vld [vmem:[#allocation8 + $0x758] sm:$0xff]
    %v11849 = vld [vmem:[#allocation8 + $0x760] sm:$0xff]
    %v11850 = vld [vmem:[#allocation8 + $0x768] sm:$0xff]
    %v11851 = vld [vmem:[#allocation8 + $0x770] sm:$0xff]
    %v11852 = vld [vmem:[#allocation8 + $0x778] sm:$0xff]
    %v11853 = vld [vmem:[#allocation8 + $0x780] sm:$0xff]
    %v11854 = vld [vmem:[#allocation8 + $0x788] sm:$0xff]
    %v11855 = vld [vmem:[#allocation8 + $0x790] sm:$0xff]
    %v11856 = vld [vmem:[#allocation8 + $0x798] sm:$0xff]
    %v11857 = vld [vmem:[#allocation8 + $0x7a0] sm:$0xff]
    %v11858 = vld [vmem:[#allocation8 + $0x7a8] sm:$0xff]
    %v11859 = vld [vmem:[#allocation8 + $0x7b0] sm:$0xff]
    %v11860 = vld [vmem:[#allocation8 + $0x7b8] sm:$0xff]
    %v11861 = vld [vmem:[#allocation8 + $0x7c0] sm:$0xff]
    %v11862 = vld [vmem:[#allocation8 + $0x7c8] sm:$0xff]
    %v11863 = vld [vmem:[#allocation8 + $0x7d0] sm:$0xff]
    %v11864 = vld [vmem:[#allocation8 + $0x7d8] sm:$0xff]
    %v11865 = vld [vmem:[#allocation8 + $0x7e0] sm:$0xff]
    %v11866 = vld [vmem:[#allocation8 + $0x7e8] sm:$0xff]
    %v11867 = vld [vmem:[#allocation8 + $0x7f0] sm:$0xff]
    %v11868 = vld [vmem:[#allocation8 + $0x7f8] sm:$0xff]
    %v11869 = vld [vmem:[#allocation10] sm:$0xf]
    %v11871 = vlaneseq
    %v11872 = vshrl.u32 %v11871, 7
    %v11873 = vsub.s32 0, %v11872
    %v11874 = vrot.slane %v11869, %v11873
    %v11875 = vlaneseq
    %v11876 = vshrl.u32 %v11875, 7
    %v11877 = vsub.s32 1, %v11876
    %v11878 = vrot.slane %v11869, %v11877
    %v11879 = vlaneseq
    %v11880 = vshrl.u32 %v11879, 7
    %v11881 = vsub.s32 2, %v11880
    %v11882 = vrot.slane %v11869, %v11881
    %v11883 = vlaneseq
    %v11884 = vshrl.u32 %v11883, 7
    %v11885 = vsub.s32 3, %v11884
    %v11886 = vrot.slane %v11869, %v11885
    %v12147 = vunpack.c.l.b16 %v11613
    %v12148 = vunpack.c.h.b16 %v11613
    %v12149 = vunpack.c.l.b16 %v11614
    %v12150 = vunpack.c.h.b16 %v11614
    %v12151 = vunpack.c.l.b16 %v11615
    %v12152 = vunpack.c.h.b16 %v11615
    %v12153 = vunpack.c.l.b16 %v11616
    %v12154 = vunpack.c.h.b16 %v11616
    %v12155 = vunpack.c.l.b16 %v11617
    %v12156 = vunpack.c.h.b16 %v11617
    %v12157 = vunpack.c.l.b16 %v11618
    %v12158 = vunpack.c.h.b16 %v11618
    %v12159 = vunpack.c.l.b16 %v11619
    %v12160 = vunpack.c.h.b16 %v11619
    %v12161 = vunpack.c.l.b16 %v11620
    %v12162 = vunpack.c.h.b16 %v11620
    %v12163 = vunpack.c.l.b16 %v11621
    %v12164 = vunpack.c.h.b16 %v11621
    %v12165 = vunpack.c.l.b16 %v11622
    %v12166 = vunpack.c.h.b16 %v11622
    %v12167 = vunpack.c.l.b16 %v11623
    %v12168 = vunpack.c.h.b16 %v11623
    %v12169 = vunpack.c.l.b16 %v11624
    %v12170 = vunpack.c.h.b16 %v11624
    %v12171 = vunpack.c.l.b16 %v11625
    %v12172 = vunpack.c.h.b16 %v11625
    %v12173 = vunpack.c.l.b16 %v11626
    %v12174 = vunpack.c.h.b16 %v11626
    %v12175 = vunpack.c.l.b16 %v11627
    %v12176 = vunpack.c.h.b16 %v11627
    %v12177 = vunpack.c.l.b16 %v11628
    %v12178 = vunpack.c.h.b16 %v11628
    %v12179 = vunpack.c.l.b16 %v11629
    %v12180 = vunpack.c.h.b16 %v11629
    %v12181 = vunpack.c.l.b16 %v11630
    %v12182 = vunpack.c.h.b16 %v11630
    %v12183 = vunpack.c.l.b16 %v11631
    %v12184 = vunpack.c.h.b16 %v11631
    %v12185 = vunpack.c.l.b16 %v11632
    %v12186 = vunpack.c.h.b16 %v11632
    %v12187 = vunpack.c.l.b16 %v11633
    %v12188 = vunpack.c.h.b16 %v11633
    %v12189 = vunpack.c.l.b16 %v11634
    %v12190 = vunpack.c.h.b16 %v11634
    %v12191 = vunpack.c.l.b16 %v11635
    %v12192 = vunpack.c.h.b16 %v11635
    %v12193 = vunpack.c.l.b16 %v11636
    %v12194 = vunpack.c.h.b16 %v11636
    %v12195 = vunpack.c.l.b16 %v11637
    %v12196 = vunpack.c.h.b16 %v11637
    %v12197 = vunpack.c.l.b16 %v11638
    %v12198 = vunpack.c.h.b16 %v11638
    %v12199 = vunpack.c.l.b16 %v11639
    %v12200 = vunpack.c.h.b16 %v11639
    %v12201 = vunpack.c.l.b16 %v11640
    %v12202 = vunpack.c.h.b16 %v11640
    %v12203 = vunpack.c.l.b16 %v11641
    %v12204 = vunpack.c.h.b16 %v11641
    %v12205 = vunpack.c.l.b16 %v11642
    %v12206 = vunpack.c.h.b16 %v11642
    %v12207 = vunpack.c.l.b16 %v11643
    %v12208 = vunpack.c.h.b16 %v11643
    %v12209 = vunpack.c.l.b16 %v11644
    %v12210 = vunpack.c.h.b16 %v11644
    %v12211 = vunpack.c.l.b16 %v11645
    %v12212 = vunpack.c.h.b16 %v11645
    %v12213 = vunpack.c.l.b16 %v11646
    %v12214 = vunpack.c.h.b16 %v11646
    %v12215 = vunpack.c.l.b16 %v11647
    %v12216 = vunpack.c.h.b16 %v11647
    %v12217 = vunpack.c.l.b16 %v11648
    %v12218 = vunpack.c.h.b16 %v11648
    %v12219 = vunpack.c.l.b16 %v11649
    %v12220 = vunpack.c.h.b16 %v11649
    %v12221 = vunpack.c.l.b16 %v11650
    %v12222 = vunpack.c.h.b16 %v11650
    %v12223 = vunpack.c.l.b16 %v11651
    %v12224 = vunpack.c.h.b16 %v11651
    %v12225 = vunpack.c.l.b16 %v11652
    %v12226 = vunpack.c.h.b16 %v11652
    %v12227 = vunpack.c.l.b16 %v11653
    %v12228 = vunpack.c.h.b16 %v11653
    %v12229 = vunpack.c.l.b16 %v11654
    %v12230 = vunpack.c.h.b16 %v11654
    %v12231 = vunpack.c.l.b16 %v11655
    %v12232 = vunpack.c.h.b16 %v11655
    %v12233 = vunpack.c.l.b16 %v11656
    %v12234 = vunpack.c.h.b16 %v11656
    %v12235 = vunpack.c.l.b16 %v11657
    %v12236 = vunpack.c.h.b16 %v11657
    %v12237 = vunpack.c.l.b16 %v11658
    %v12238 = vunpack.c.h.b16 %v11658
    %v12239 = vunpack.c.l.b16 %v11659
    %v12240 = vunpack.c.h.b16 %v11659
    %v12241 = vunpack.c.l.b16 %v11660
    %v12242 = vunpack.c.h.b16 %v11660
    %v12243 = vunpack.c.l.b16 %v11661
    %v12244 = vunpack.c.h.b16 %v11661
    %v12245 = vunpack.c.l.b16 %v11662
    %v12246 = vunpack.c.h.b16 %v11662
    %v12247 = vunpack.c.l.b16 %v11663
    %v12248 = vunpack.c.h.b16 %v11663
    %v12249 = vunpack.c.l.b16 %v11664
    %v12250 = vunpack.c.h.b16 %v11664
    %v12251 = vunpack.c.l.b16 %v11665
    %v12252 = vunpack.c.h.b16 %v11665
    %v12253 = vunpack.c.l.b16 %v11666
    %v12254 = vunpack.c.h.b16 %v11666
    %v12255 = vunpack.c.l.b16 %v11667
    %v12256 = vunpack.c.h.b16 %v11667
    %v12257 = vunpack.c.l.b16 %v11668
    %v12258 = vunpack.c.h.b16 %v11668
    %v12259 = vunpack.c.l.b16 %v11669
    %v12260 = vunpack.c.h.b16 %v11669
    %v12261 = vunpack.c.l.b16 %v11670
    %v12262 = vunpack.c.h.b16 %v11670
    %v12263 = vunpack.c.l.b16 %v11671
    %v12264 = vunpack.c.h.b16 %v11671
    %v12265 = vunpack.c.l.b16 %v11672
    %v12266 = vunpack.c.h.b16 %v11672
    %v12267 = vunpack.c.l.b16 %v11673
    %v12268 = vunpack.c.h.b16 %v11673
    %v12269 = vunpack.c.l.b16 %v11674
    %v12270 = vunpack.c.h.b16 %v11674
    %v12271 = vunpack.c.l.b16 %v11675
    %v12272 = vunpack.c.h.b16 %v11675
    %v12273 = vunpack.c.l.b16 %v11676
    %v12274 = vunpack.c.h.b16 %v11676
    %v12275 = vunpack.c.l.b16 %v11677
    %v12276 = vunpack.c.h.b16 %v11677
    %v12277 = vunpack.c.l.b16 %v11678
    %v12278 = vunpack.c.h.b16 %v11678
    %v12279 = vunpack.c.l.b16 %v11679
    %v12280 = vunpack.c.h.b16 %v11679
    %v12281 = vunpack.c.l.b16 %v11680
    %v12282 = vunpack.c.h.b16 %v11680
    %v12283 = vunpack.c.l.b16 %v11681
    %v12284 = vunpack.c.h.b16 %v11681
    %v12285 = vunpack.c.l.b16 %v11682
    %v12286 = vunpack.c.h.b16 %v11682
    %v12287 = vunpack.c.l.b16 %v11683
    %v12288 = vunpack.c.h.b16 %v11683
    %v12289 = vunpack.c.l.b16 %v11684
    %v12290 = vunpack.c.h.b16 %v11684
    %v12291 = vunpack.c.l.b16 %v11685
    %v12292 = vunpack.c.h.b16 %v11685
    %v12293 = vunpack.c.l.b16 %v11686
    %v12294 = vunpack.c.h.b16 %v11686
    %v12295 = vunpack.c.l.b16 %v11687
    %v12296 = vunpack.c.h.b16 %v11687
    %v12297 = vunpack.c.l.b16 %v11688
    %v12298 = vunpack.c.h.b16 %v11688
    %v12299 = vunpack.c.l.b16 %v11689
    %v12300 = vunpack.c.h.b16 %v11689
    %v12301 = vunpack.c.l.b16 %v11690
    %v12302 = vunpack.c.h.b16 %v11690
    %v12303 = vunpack.c.l.b16 %v11691
    %v12304 = vunpack.c.h.b16 %v11691
    %v12305 = vunpack.c.l.b16 %v11692
    %v12306 = vunpack.c.h.b16 %v11692
    %v12307 = vunpack.c.l.b16 %v11693
    %v12308 = vunpack.c.h.b16 %v11693
    %v12309 = vunpack.c.l.b16 %v11694
    %v12310 = vunpack.c.h.b16 %v11694
    %v12311 = vunpack.c.l.b16 %v11695
    %v12312 = vunpack.c.h.b16 %v11695
    %v12313 = vunpack.c.l.b16 %v11696
    %v12314 = vunpack.c.h.b16 %v11696
    %v12315 = vunpack.c.l.b16 %v11697
    %v12316 = vunpack.c.h.b16 %v11697
    %v12317 = vunpack.c.l.b16 %v11698
    %v12318 = vunpack.c.h.b16 %v11698
    %v12319 = vunpack.c.l.b16 %v11699
    %v12320 = vunpack.c.h.b16 %v11699
    %v12321 = vunpack.c.l.b16 %v11700
    %v12322 = vunpack.c.h.b16 %v11700
    %v12323 = vunpack.c.l.b16 %v11701
    %v12324 = vunpack.c.h.b16 %v11701
    %v12325 = vunpack.c.l.b16 %v11702
    %v12326 = vunpack.c.h.b16 %v11702
    %v12327 = vunpack.c.l.b16 %v11703
    %v12328 = vunpack.c.h.b16 %v11703
    %v12329 = vunpack.c.l.b16 %v11704
    %v12330 = vunpack.c.h.b16 %v11704
    %v12331 = vunpack.c.l.b16 %v11705
    %v12332 = vunpack.c.h.b16 %v11705
    %v12333 = vunpack.c.l.b16 %v11706
    %v12334 = vunpack.c.h.b16 %v11706
    %v12335 = vunpack.c.l.b16 %v11707
    %v12336 = vunpack.c.h.b16 %v11707
    %v12337 = vunpack.c.l.b16 %v11708
    %v12338 = vunpack.c.h.b16 %v11708
    %v12339 = vunpack.c.l.b16 %v11709
    %v12340 = vunpack.c.h.b16 %v11709
    %v12341 = vunpack.c.l.b16 %v11710
    %v12342 = vunpack.c.h.b16 %v11710
    %v12343 = vunpack.c.l.b16 %v11711
    %v12344 = vunpack.c.h.b16 %v11711
    %v12345 = vunpack.c.l.b16 %v11712
    %v12346 = vunpack.c.h.b16 %v11712
    %v12347 = vunpack.c.l.b16 %v11713
    %v12348 = vunpack.c.h.b16 %v11713
    %v12349 = vunpack.c.l.b16 %v11714
    %v12350 = vunpack.c.h.b16 %v11714
    %v12351 = vunpack.c.l.b16 %v11715
    %v12352 = vunpack.c.h.b16 %v11715
    %v12353 = vunpack.c.l.b16 %v11716
    %v12354 = vunpack.c.h.b16 %v11716
    %v12355 = vunpack.c.l.b16 %v11717
    %v12356 = vunpack.c.h.b16 %v11717
    %v12357 = vunpack.c.l.b16 %v11718
    %v12358 = vunpack.c.h.b16 %v11718
    %v12359 = vunpack.c.l.b16 %v11719
    %v12360 = vunpack.c.h.b16 %v11719
    %v12361 = vunpack.c.l.b16 %v11720
    %v12362 = vunpack.c.h.b16 %v11720
    %v12363 = vunpack.c.l.b16 %v11721
    %v12364 = vunpack.c.h.b16 %v11721
    %v12365 = vunpack.c.l.b16 %v11722
    %v12366 = vunpack.c.h.b16 %v11722
    %v12367 = vunpack.c.l.b16 %v11723
    %v12368 = vunpack.c.h.b16 %v11723
    %v12369 = vunpack.c.l.b16 %v11724
    %v12370 = vunpack.c.h.b16 %v11724
    %v12371 = vunpack.c.l.b16 %v11725
    %v12372 = vunpack.c.h.b16 %v11725
    %v12373 = vunpack.c.l.b16 %v11726
    %v12374 = vunpack.c.h.b16 %v11726
    %v12375 = vunpack.c.l.b16 %v11727
    %v12376 = vunpack.c.h.b16 %v11727
    %v12377 = vunpack.c.l.b16 %v11728
    %v12378 = vunpack.c.h.b16 %v11728
    %v12379 = vunpack.c.l.b16 %v11729
    %v12380 = vunpack.c.h.b16 %v11729
    %v12381 = vunpack.c.l.b16 %v11730
    %v12382 = vunpack.c.h.b16 %v11730
    %v12383 = vunpack.c.l.b16 %v11731
    %v12384 = vunpack.c.h.b16 %v11731
    %v12385 = vunpack.c.l.b16 %v11732
    %v12386 = vunpack.c.h.b16 %v11732
    %v12387 = vunpack.c.l.b16 %v11733
    %v12388 = vunpack.c.h.b16 %v11733
    %v12389 = vunpack.c.l.b16 %v11734
    %v12390 = vunpack.c.h.b16 %v11734
    %v12391 = vunpack.c.l.b16 %v11735
    %v12392 = vunpack.c.h.b16 %v11735
    %v12393 = vunpack.c.l.b16 %v11736
    %v12394 = vunpack.c.h.b16 %v11736
    %v12395 = vunpack.c.l.b16 %v11737
    %v12396 = vunpack.c.h.b16 %v11737
    %v12397 = vunpack.c.l.b16 %v11738
    %v12398 = vunpack.c.h.b16 %v11738
    %v12399 = vunpack.c.l.b16 %v11739
    %v12400 = vunpack.c.h.b16 %v11739
    %v12401 = vunpack.c.l.b16 %v11740
    %v12402 = vunpack.c.h.b16 %v11740
    %v12403 = vunpack.c.l.b16 %v11741
    %v12404 = vunpack.c.h.b16 %v11741
    %v12405 = vunpack.c.l.b16 %v11742
    %v12406 = vunpack.c.h.b16 %v11742
    %v12407 = vunpack.c.l.b16 %v11743
    %v12408 = vunpack.c.h.b16 %v11743
    %v12409 = vunpack.c.l.b16 %v11744
    %v12410 = vunpack.c.h.b16 %v11744
    %v12411 = vunpack.c.l.b16 %v11745
    %v12412 = vunpack.c.h.b16 %v11745
    %v12413 = vunpack.c.l.b16 %v11746
    %v12414 = vunpack.c.h.b16 %v11746
    %v12415 = vunpack.c.l.b16 %v11747
    %v12416 = vunpack.c.h.b16 %v11747
    %v12417 = vunpack.c.l.b16 %v11748
    %v12418 = vunpack.c.h.b16 %v11748
    %v12419 = vunpack.c.l.b16 %v11749
    %v12420 = vunpack.c.h.b16 %v11749
    %v12421 = vunpack.c.l.b16 %v11750
    %v12422 = vunpack.c.h.b16 %v11750
    %v12423 = vunpack.c.l.b16 %v11751
    %v12424 = vunpack.c.h.b16 %v11751
    %v12425 = vunpack.c.l.b16 %v11752
    %v12426 = vunpack.c.h.b16 %v11752
    %v12427 = vunpack.c.l.b16 %v11753
    %v12428 = vunpack.c.h.b16 %v11753
    %v12429 = vunpack.c.l.b16 %v11754
    %v12430 = vunpack.c.h.b16 %v11754
    %v12431 = vunpack.c.l.b16 %v11755
    %v12432 = vunpack.c.h.b16 %v11755
    %v12433 = vunpack.c.l.b16 %v11756
    %v12434 = vunpack.c.h.b16 %v11756
    %v12435 = vunpack.c.l.b16 %v11757
    %v12436 = vunpack.c.h.b16 %v11757
    %v12437 = vunpack.c.l.b16 %v11758
    %v12438 = vunpack.c.h.b16 %v11758
    %v12439 = vunpack.c.l.b16 %v11759
    %v12440 = vunpack.c.h.b16 %v11759
    %v12441 = vunpack.c.l.b16 %v11760
    %v12442 = vunpack.c.h.b16 %v11760
    %v12443 = vunpack.c.l.b16 %v11761
    %v12444 = vunpack.c.h.b16 %v11761
    %v12445 = vunpack.c.l.b16 %v11762
    %v12446 = vunpack.c.h.b16 %v11762
    %v12447 = vunpack.c.l.b16 %v11763
    %v12448 = vunpack.c.h.b16 %v11763
    %v12449 = vunpack.c.l.b16 %v11764
    %v12450 = vunpack.c.h.b16 %v11764
    %v12451 = vunpack.c.l.b16 %v11765
    %v12452 = vunpack.c.h.b16 %v11765
    %v12453 = vunpack.c.l.b16 %v11766
    %v12454 = vunpack.c.h.b16 %v11766
    %v12455 = vunpack.c.l.b16 %v11767
    %v12456 = vunpack.c.h.b16 %v11767
    %v12457 = vunpack.c.l.b16 %v11768
    %v12458 = vunpack.c.h.b16 %v11768
    %v12459 = vunpack.c.l.b16 %v11769
    %v12460 = vunpack.c.h.b16 %v11769
    %v12461 = vunpack.c.l.b16 %v11770
    %v12462 = vunpack.c.h.b16 %v11770
    %v12463 = vunpack.c.l.b16 %v11771
    %v12464 = vunpack.c.h.b16 %v11771
    %v12465 = vunpack.c.l.b16 %v11772
    %v12466 = vunpack.c.h.b16 %v11772
    %v12467 = vunpack.c.l.b16 %v11773
    %v12468 = vunpack.c.h.b16 %v11773
    %v12469 = vunpack.c.l.b16 %v11774
    %v12470 = vunpack.c.h.b16 %v11774
    %v12471 = vunpack.c.l.b16 %v11775
    %v12472 = vunpack.c.h.b16 %v11775
    %v12473 = vunpack.c.l.b16 %v11776
    %v12474 = vunpack.c.h.b16 %v11776
    %v12475 = vunpack.c.l.b16 %v11777
    %v12476 = vunpack.c.h.b16 %v11777
    %v12477 = vunpack.c.l.b16 %v11778
    %v12478 = vunpack.c.h.b16 %v11778
    %v12479 = vunpack.c.l.b16 %v11779
    %v12480 = vunpack.c.h.b16 %v11779
    %v12481 = vunpack.c.l.b16 %v11780
    %v12482 = vunpack.c.h.b16 %v11780
    %v12483 = vunpack.c.l.b16 %v11781
    %v12484 = vunpack.c.h.b16 %v11781
    %v12485 = vunpack.c.l.b16 %v11782
    %v12486 = vunpack.c.h.b16 %v11782
    %v12487 = vunpack.c.l.b16 %v11783
    %v12488 = vunpack.c.h.b16 %v11783
    %v12489 = vunpack.c.l.b16 %v11784
    %v12490 = vunpack.c.h.b16 %v11784
    %v12491 = vunpack.c.l.b16 %v11785
    %v12492 = vunpack.c.h.b16 %v11785
    %v12493 = vunpack.c.l.b16 %v11786
    %v12494 = vunpack.c.h.b16 %v11786
    %v12495 = vunpack.c.l.b16 %v11787
    %v12496 = vunpack.c.h.b16 %v11787
    %v12497 = vunpack.c.l.b16 %v11788
    %v12498 = vunpack.c.h.b16 %v11788
    %v12499 = vunpack.c.l.b16 %v11789
    %v12500 = vunpack.c.h.b16 %v11789
    %v12501 = vunpack.c.l.b16 %v11790
    %v12502 = vunpack.c.h.b16 %v11790
    %v12503 = vunpack.c.l.b16 %v11791
    %v12504 = vunpack.c.h.b16 %v11791
    %v12505 = vunpack.c.l.b16 %v11792
    %v12506 = vunpack.c.h.b16 %v11792
    %v12507 = vunpack.c.l.b16 %v11793
    %v12508 = vunpack.c.h.b16 %v11793
    %v12509 = vunpack.c.l.b16 %v11794
    %v12510 = vunpack.c.h.b16 %v11794
    %v12511 = vunpack.c.l.b16 %v11795
    %v12512 = vunpack.c.h.b16 %v11795
    %v12513 = vunpack.c.l.b16 %v11796
    %v12514 = vunpack.c.h.b16 %v11796
    %v12515 = vunpack.c.l.b16 %v11797
    %v12516 = vunpack.c.h.b16 %v11797
    %v12517 = vunpack.c.l.b16 %v11798
    %v12518 = vunpack.c.h.b16 %v11798
    %v12519 = vunpack.c.l.b16 %v11799
    %v12520 = vunpack.c.h.b16 %v11799
    %v12521 = vunpack.c.l.b16 %v11800
    %v12522 = vunpack.c.h.b16 %v11800
    %v12523 = vunpack.c.l.b16 %v11801
    %v12524 = vunpack.c.h.b16 %v11801
    %v12525 = vunpack.c.l.b16 %v11802
    %v12526 = vunpack.c.h.b16 %v11802
    %v12527 = vunpack.c.l.b16 %v11803
    %v12528 = vunpack.c.h.b16 %v11803
    %v12529 = vunpack.c.l.b16 %v11804
    %v12530 = vunpack.c.h.b16 %v11804
    %v12531 = vunpack.c.l.b16 %v11805
    %v12532 = vunpack.c.h.b16 %v11805
    %v12533 = vunpack.c.l.b16 %v11806
    %v12534 = vunpack.c.h.b16 %v11806
    %v12535 = vunpack.c.l.b16 %v11807
    %v12536 = vunpack.c.h.b16 %v11807
    %v12537 = vunpack.c.l.b16 %v11808
    %v12538 = vunpack.c.h.b16 %v11808
    %v12539 = vunpack.c.l.b16 %v11809
    %v12540 = vunpack.c.h.b16 %v11809
    %v12541 = vunpack.c.l.b16 %v11810
    %v12542 = vunpack.c.h.b16 %v11810
    %v12543 = vunpack.c.l.b16 %v11811
    %v12544 = vunpack.c.h.b16 %v11811
    %v12545 = vunpack.c.l.b16 %v11812
    %v12546 = vunpack.c.h.b16 %v11812
    %v12547 = vunpack.c.l.b16 %v11813
    %v12548 = vunpack.c.h.b16 %v11813
    %v12549 = vunpack.c.l.b16 %v11814
    %v12550 = vunpack.c.h.b16 %v11814
    %v12551 = vunpack.c.l.b16 %v11815
    %v12552 = vunpack.c.h.b16 %v11815
    %v12553 = vunpack.c.l.b16 %v11816
    %v12554 = vunpack.c.h.b16 %v11816
    %v12555 = vunpack.c.l.b16 %v11817
    %v12556 = vunpack.c.h.b16 %v11817
    %v12557 = vunpack.c.l.b16 %v11818
    %v12558 = vunpack.c.h.b16 %v11818
    %v12559 = vunpack.c.l.b16 %v11819
    %v12560 = vunpack.c.h.b16 %v11819
    %v12561 = vunpack.c.l.b16 %v11820
    %v12562 = vunpack.c.h.b16 %v11820
    %v12563 = vunpack.c.l.b16 %v11821
    %v12564 = vunpack.c.h.b16 %v11821
    %v12565 = vunpack.c.l.b16 %v11822
    %v12566 = vunpack.c.h.b16 %v11822
    %v12567 = vunpack.c.l.b16 %v11823
    %v12568 = vunpack.c.h.b16 %v11823
    %v12569 = vunpack.c.l.b16 %v11824
    %v12570 = vunpack.c.h.b16 %v11824
    %v12571 = vunpack.c.l.b16 %v11825
    %v12572 = vunpack.c.h.b16 %v11825
    %v12573 = vunpack.c.l.b16 %v11826
    %v12574 = vunpack.c.h.b16 %v11826
    %v12575 = vunpack.c.l.b16 %v11827
    %v12576 = vunpack.c.h.b16 %v11827
    %v12577 = vunpack.c.l.b16 %v11828
    %v12578 = vunpack.c.h.b16 %v11828
    %v12579 = vunpack.c.l.b16 %v11829
    %v12580 = vunpack.c.h.b16 %v11829
    %v12581 = vunpack.c.l.b16 %v11830
    %v12582 = vunpack.c.h.b16 %v11830
    %v12583 = vunpack.c.l.b16 %v11831
    %v12584 = vunpack.c.h.b16 %v11831
    %v12585 = vunpack.c.l.b16 %v11832
    %v12586 = vunpack.c.h.b16 %v11832
    %v12587 = vunpack.c.l.b16 %v11833
    %v12588 = vunpack.c.h.b16 %v11833
    %v12589 = vunpack.c.l.b16 %v11834
    %v12590 = vunpack.c.h.b16 %v11834
    %v12591 = vunpack.c.l.b16 %v11835
    %v12592 = vunpack.c.h.b16 %v11835
    %v12593 = vunpack.c.l.b16 %v11836
    %v12594 = vunpack.c.h.b16 %v11836
    %v12595 = vunpack.c.l.b16 %v11837
    %v12596 = vunpack.c.h.b16 %v11837
    %v12597 = vunpack.c.l.b16 %v11838
    %v12598 = vunpack.c.h.b16 %v11838
    %v12599 = vunpack.c.l.b16 %v11839
    %v12600 = vunpack.c.h.b16 %v11839
    %v12601 = vunpack.c.l.b16 %v11840
    %v12602 = vunpack.c.h.b16 %v11840
    %v12603 = vunpack.c.l.b16 %v11841
    %v12604 = vunpack.c.h.b16 %v11841
    %v12605 = vunpack.c.l.b16 %v11842
    %v12606 = vunpack.c.h.b16 %v11842
    %v12607 = vunpack.c.l.b16 %v11843
    %v12608 = vunpack.c.h.b16 %v11843
    %v12609 = vunpack.c.l.b16 %v11844
    %v12610 = vunpack.c.h.b16 %v11844
    %v12611 = vunpack.c.l.b16 %v11845
    %v12612 = vunpack.c.h.b16 %v11845
    %v12613 = vunpack.c.l.b16 %v11846
    %v12614 = vunpack.c.h.b16 %v11846
    %v12615 = vunpack.c.l.b16 %v11847
    %v12616 = vunpack.c.h.b16 %v11847
    %v12617 = vunpack.c.l.b16 %v11848
    %v12618 = vunpack.c.h.b16 %v11848
    %v12619 = vunpack.c.l.b16 %v11849
    %v12620 = vunpack.c.h.b16 %v11849
    %v12621 = vunpack.c.l.b16 %v11850
    %v12622 = vunpack.c.h.b16 %v11850
    %v12623 = vunpack.c.l.b16 %v11851
    %v12624 = vunpack.c.h.b16 %v11851
    %v12625 = vunpack.c.l.b16 %v11852
    %v12626 = vunpack.c.h.b16 %v11852
    %v12627 = vunpack.c.l.b16 %v11853
    %v12628 = vunpack.c.h.b16 %v11853
    %v12629 = vunpack.c.l.b16 %v11854
    %v12630 = vunpack.c.h.b16 %v11854
    %v12631 = vunpack.c.l.b16 %v11855
    %v12632 = vunpack.c.h.b16 %v11855
    %v12633 = vunpack.c.l.b16 %v11856
    %v12634 = vunpack.c.h.b16 %v11856
    %v12635 = vunpack.c.l.b16 %v11857
    %v12636 = vunpack.c.h.b16 %v11857
    %v12637 = vunpack.c.l.b16 %v11858
    %v12638 = vunpack.c.h.b16 %v11858
    %v12639 = vunpack.c.l.b16 %v11859
    %v12640 = vunpack.c.h.b16 %v11859
    %v12641 = vunpack.c.l.b16 %v11860
    %v12642 = vunpack.c.h.b16 %v11860
    %v12643 = vunpack.c.l.b16 %v11861
    %v12644 = vunpack.c.h.b16 %v11861
    %v12645 = vunpack.c.l.b16 %v11862
    %v12646 = vunpack.c.h.b16 %v11862
    %v12647 = vunpack.c.l.b16 %v11863
    %v12648 = vunpack.c.h.b16 %v11863
    %v12649 = vunpack.c.l.b16 %v11864
    %v12650 = vunpack.c.h.b16 %v11864
    %v12651 = vunpack.c.l.b16 %v11865
    %v12652 = vunpack.c.h.b16 %v11865
    %v12653 = vunpack.c.l.b16 %v11866
    %v12654 = vunpack.c.h.b16 %v11866
    %v12655 = vunpack.c.l.b16 %v11867
    %v12656 = vunpack.c.h.b16 %v11867
    %v12657 = vunpack.c.l.b16 %v11868
    %v12658 = vunpack.c.h.b16 %v11868
    %v12659 = vpack.c.b16 %v12151, %v12147
    %v12660 = vpack.c.b16 %v12152, %v12148
    %v12661 = vpack.c.b16 %v12153, %v12149
    %v12662 = vpack.c.b16 %v12154, %v12150
    %v12663 = vpack.c.b16 %v12159, %v12155
    %v12664 = vpack.c.b16 %v12160, %v12156
    %v12665 = vpack.c.b16 %v12161, %v12157
    %v12666 = vpack.c.b16 %v12162, %v12158
    %v12667 = vpack.c.b16 %v12167, %v12163
    %v12668 = vpack.c.b16 %v12168, %v12164
    %v12669 = vpack.c.b16 %v12169, %v12165
    %v12670 = vpack.c.b16 %v12170, %v12166
    %v12671 = vpack.c.b16 %v12175, %v12171
    %v12672 = vpack.c.b16 %v12176, %v12172
    %v12673 = vpack.c.b16 %v12177, %v12173
    %v12674 = vpack.c.b16 %v12178, %v12174
    %v12675 = vpack.c.b16 %v12183, %v12179
    %v12676 = vpack.c.b16 %v12184, %v12180
    %v12677 = vpack.c.b16 %v12185, %v12181
    %v12678 = vpack.c.b16 %v12186, %v12182
    %v12679 = vpack.c.b16 %v12191, %v12187
    %v12680 = vpack.c.b16 %v12192, %v12188
    %v12681 = vpack.c.b16 %v12193, %v12189
    %v12682 = vpack.c.b16 %v12194, %v12190
    %v12683 = vpack.c.b16 %v12199, %v12195
    %v12684 = vpack.c.b16 %v12200, %v12196
    %v12685 = vpack.c.b16 %v12201, %v12197
    %v12686 = vpack.c.b16 %v12202, %v12198
    %v12687 = vpack.c.b16 %v12207, %v12203
    %v12688 = vpack.c.b16 %v12208, %v12204
    %v12689 = vpack.c.b16 %v12209, %v12205
    %v12690 = vpack.c.b16 %v12210, %v12206
    %v12691 = vpack.c.b16 %v12215, %v12211
    %v12692 = vpack.c.b16 %v12216, %v12212
    %v12693 = vpack.c.b16 %v12217, %v12213
    %v12694 = vpack.c.b16 %v12218, %v12214
    %v12695 = vpack.c.b16 %v12223, %v12219
    %v12696 = vpack.c.b16 %v12224, %v12220
    %v12697 = vpack.c.b16 %v12225, %v12221
    %v12698 = vpack.c.b16 %v12226, %v12222
    %v12699 = vpack.c.b16 %v12231, %v12227
    %v12700 = vpack.c.b16 %v12232, %v12228
    %v12701 = vpack.c.b16 %v12233, %v12229
    %v12702 = vpack.c.b16 %v12234, %v12230
    %v12703 = vpack.c.b16 %v12239, %v12235
    %v12704 = vpack.c.b16 %v12240, %v12236
    %v12705 = vpack.c.b16 %v12241, %v12237
    %v12706 = vpack.c.b16 %v12242, %v12238
    %v12707 = vpack.c.b16 %v12247, %v12243
    %v12708 = vpack.c.b16 %v12248, %v12244
    %v12709 = vpack.c.b16 %v12249, %v12245
    %v12710 = vpack.c.b16 %v12250, %v12246
    %v12711 = vpack.c.b16 %v12255, %v12251
    %v12712 = vpack.c.b16 %v12256, %v12252
    %v12713 = vpack.c.b16 %v12257, %v12253
    %v12714 = vpack.c.b16 %v12258, %v12254
    %v12715 = vpack.c.b16 %v12263, %v12259
    %v12716 = vpack.c.b16 %v12264, %v12260
    %v12717 = vpack.c.b16 %v12265, %v12261
    %v12718 = vpack.c.b16 %v12266, %v12262
    %v12719 = vpack.c.b16 %v12271, %v12267
    %v12720 = vpack.c.b16 %v12272, %v12268
    %v12721 = vpack.c.b16 %v12273, %v12269
    %v12722 = vpack.c.b16 %v12274, %v12270
    %v12723 = vpack.c.b16 %v12279, %v12275
    %v12724 = vpack.c.b16 %v12280, %v12276
    %v12725 = vpack.c.b16 %v12281, %v12277
    %v12726 = vpack.c.b16 %v12282, %v12278
    %v12727 = vpack.c.b16 %v12287, %v12283
    %v12728 = vpack.c.b16 %v12288, %v12284
    %v12729 = vpack.c.b16 %v12289, %v12285
    %v12730 = vpack.c.b16 %v12290, %v12286
    %v12731 = vpack.c.b16 %v12295, %v12291
    %v12732 = vpack.c.b16 %v12296, %v12292
    %v12733 = vpack.c.b16 %v12297, %v12293
    %v12734 = vpack.c.b16 %v12298, %v12294
    %v12735 = vpack.c.b16 %v12303, %v12299
    %v12736 = vpack.c.b16 %v12304, %v12300
    %v12737 = vpack.c.b16 %v12305, %v12301
    %v12738 = vpack.c.b16 %v12306, %v12302
    %v12739 = vpack.c.b16 %v12311, %v12307
    %v12740 = vpack.c.b16 %v12312, %v12308
    %v12741 = vpack.c.b16 %v12313, %v12309
    %v12742 = vpack.c.b16 %v12314, %v12310
    %v12743 = vpack.c.b16 %v12319, %v12315
    %v12744 = vpack.c.b16 %v12320, %v12316
    %v12745 = vpack.c.b16 %v12321, %v12317
    %v12746 = vpack.c.b16 %v12322, %v12318
    %v12747 = vpack.c.b16 %v12327, %v12323
    %v12748 = vpack.c.b16 %v12328, %v12324
    %v12749 = vpack.c.b16 %v12329, %v12325
    %v12750 = vpack.c.b16 %v12330, %v12326
    %v12751 = vpack.c.b16 %v12335, %v12331
    %v12752 = vpack.c.b16 %v12336, %v12332
    %v12753 = vpack.c.b16 %v12337, %v12333
    %v12754 = vpack.c.b16 %v12338, %v12334
    %v12755 = vpack.c.b16 %v12343, %v12339
    %v12756 = vpack.c.b16 %v12344, %v12340
    %v12757 = vpack.c.b16 %v12345, %v12341
    %v12758 = vpack.c.b16 %v12346, %v12342
    %v12759 = vpack.c.b16 %v12351, %v12347
    %v12760 = vpack.c.b16 %v12352, %v12348
    %v12761 = vpack.c.b16 %v12353, %v12349
    %v12762 = vpack.c.b16 %v12354, %v12350
    %v12763 = vpack.c.b16 %v12359, %v12355
    %v12764 = vpack.c.b16 %v12360, %v12356
    %v12765 = vpack.c.b16 %v12361, %v12357
    %v12766 = vpack.c.b16 %v12362, %v12358
    %v12767 = vpack.c.b16 %v12367, %v12363
    %v12768 = vpack.c.b16 %v12368, %v12364
    %v12769 = vpack.c.b16 %v12369, %v12365
    %v12770 = vpack.c.b16 %v12370, %v12366
    %v12771 = vpack.c.b16 %v12375, %v12371
    %v12772 = vpack.c.b16 %v12376, %v12372
    %v12773 = vpack.c.b16 %v12377, %v12373
    %v12774 = vpack.c.b16 %v12378, %v12374
    %v12775 = vpack.c.b16 %v12383, %v12379
    %v12776 = vpack.c.b16 %v12384, %v12380
    %v12777 = vpack.c.b16 %v12385, %v12381
    %v12778 = vpack.c.b16 %v12386, %v12382
    %v12779 = vpack.c.b16 %v12391, %v12387
    %v12780 = vpack.c.b16 %v12392, %v12388
    %v12781 = vpack.c.b16 %v12393, %v12389
    %v12782 = vpack.c.b16 %v12394, %v12390
    %v12783 = vpack.c.b16 %v12399, %v12395
    %v12784 = vpack.c.b16 %v12400, %v12396
    %v12785 = vpack.c.b16 %v12401, %v12397
    %v12786 = vpack.c.b16 %v12402, %v12398
    %v12787 = vpack.c.b16 %v12407, %v12403
    %v12788 = vpack.c.b16 %v12408, %v12404
    %v12789 = vpack.c.b16 %v12409, %v12405
    %v12790 = vpack.c.b16 %v12410, %v12406
    %v12791 = vpack.c.b16 %v12415, %v12411
    %v12792 = vpack.c.b16 %v12416, %v12412
    %v12793 = vpack.c.b16 %v12417, %v12413
    %v12794 = vpack.c.b16 %v12418, %v12414
    %v12795 = vpack.c.b16 %v12423, %v12419
    %v12796 = vpack.c.b16 %v12424, %v12420
    %v12797 = vpack.c.b16 %v12425, %v12421
    %v12798 = vpack.c.b16 %v12426, %v12422
    %v12799 = vpack.c.b16 %v12431, %v12427
    %v12800 = vpack.c.b16 %v12432, %v12428
    %v12801 = vpack.c.b16 %v12433, %v12429
    %v12802 = vpack.c.b16 %v12434, %v12430
    %v12803 = vpack.c.b16 %v12439, %v12435
    %v12804 = vpack.c.b16 %v12440, %v12436
    %v12805 = vpack.c.b16 %v12441, %v12437
    %v12806 = vpack.c.b16 %v12442, %v12438
    %v12807 = vpack.c.b16 %v12447, %v12443
    %v12808 = vpack.c.b16 %v12448, %v12444
    %v12809 = vpack.c.b16 %v12449, %v12445
    %v12810 = vpack.c.b16 %v12450, %v12446
    %v12811 = vpack.c.b16 %v12455, %v12451
    %v12812 = vpack.c.b16 %v12456, %v12452
    %v12813 = vpack.c.b16 %v12457, %v12453
    %v12814 = vpack.c.b16 %v12458, %v12454
    %v12815 = vpack.c.b16 %v12463, %v12459
    %v12816 = vpack.c.b16 %v12464, %v12460
    %v12817 = vpack.c.b16 %v12465, %v12461
    %v12818 = vpack.c.b16 %v12466, %v12462
    %v12819 = vpack.c.b16 %v12471, %v12467
    %v12820 = vpack.c.b16 %v12472, %v12468
    %v12821 = vpack.c.b16 %v12473, %v12469
    %v12822 = vpack.c.b16 %v12474, %v12470
    %v12823 = vpack.c.b16 %v12479, %v12475
    %v12824 = vpack.c.b16 %v12480, %v12476
    %v12825 = vpack.c.b16 %v12481, %v12477
    %v12826 = vpack.c.b16 %v12482, %v12478
    %v12827 = vpack.c.b16 %v12487, %v12483
    %v12828 = vpack.c.b16 %v12488, %v12484
    %v12829 = vpack.c.b16 %v12489, %v12485
    %v12830 = vpack.c.b16 %v12490, %v12486
    %v12831 = vpack.c.b16 %v12495, %v12491
    %v12832 = vpack.c.b16 %v12496, %v12492
    %v12833 = vpack.c.b16 %v12497, %v12493
    %v12834 = vpack.c.b16 %v12498, %v12494
    %v12835 = vpack.c.b16 %v12503, %v12499
    %v12836 = vpack.c.b16 %v12504, %v12500
    %v12837 = vpack.c.b16 %v12505, %v12501
    %v12838 = vpack.c.b16 %v12506, %v12502
    %v12839 = vpack.c.b16 %v12511, %v12507
    %v12840 = vpack.c.b16 %v12512, %v12508
    %v12841 = vpack.c.b16 %v12513, %v12509
    %v12842 = vpack.c.b16 %v12514, %v12510
    %v12843 = vpack.c.b16 %v12519, %v12515
    %v12844 = vpack.c.b16 %v12520, %v12516
    %v12845 = vpack.c.b16 %v12521, %v12517
    %v12846 = vpack.c.b16 %v12522, %v12518
    %v12847 = vpack.c.b16 %v12527, %v12523
    %v12848 = vpack.c.b16 %v12528, %v12524
    %v12849 = vpack.c.b16 %v12529, %v12525
    %v12850 = vpack.c.b16 %v12530, %v12526
    %v12851 = vpack.c.b16 %v12535, %v12531
    %v12852 = vpack.c.b16 %v12536, %v12532
    %v12853 = vpack.c.b16 %v12537, %v12533
    %v12854 = vpack.c.b16 %v12538, %v12534
    %v12855 = vpack.c.b16 %v12543, %v12539
    %v12856 = vpack.c.b16 %v12544, %v12540
    %v12857 = vpack.c.b16 %v12545, %v12541
    %v12858 = vpack.c.b16 %v12546, %v12542
    %v12859 = vpack.c.b16 %v12551, %v12547
    %v12860 = vpack.c.b16 %v12552, %v12548
    %v12861 = vpack.c.b16 %v12553, %v12549
    %v12862 = vpack.c.b16 %v12554, %v12550
    %v12863 = vpack.c.b16 %v12559, %v12555
    %v12864 = vpack.c.b16 %v12560, %v12556
    %v12865 = vpack.c.b16 %v12561, %v12557
    %v12866 = vpack.c.b16 %v12562, %v12558
    %v12867 = vpack.c.b16 %v12567, %v12563
    %v12868 = vpack.c.b16 %v12568, %v12564
    %v12869 = vpack.c.b16 %v12569, %v12565
    %v12870 = vpack.c.b16 %v12570, %v12566
    %v12871 = vpack.c.b16 %v12575, %v12571
    %v12872 = vpack.c.b16 %v12576, %v12572
    %v12873 = vpack.c.b16 %v12577, %v12573
    %v12874 = vpack.c.b16 %v12578, %v12574
    %v12875 = vpack.c.b16 %v12583, %v12579
    %v12876 = vpack.c.b16 %v12584, %v12580
    %v12877 = vpack.c.b16 %v12585, %v12581
    %v12878 = vpack.c.b16 %v12586, %v12582
    %v12879 = vpack.c.b16 %v12591, %v12587
    %v12880 = vpack.c.b16 %v12592, %v12588
    %v12881 = vpack.c.b16 %v12593, %v12589
    %v12882 = vpack.c.b16 %v12594, %v12590
    %v12883 = vpack.c.b16 %v12599, %v12595
    %v12884 = vpack.c.b16 %v12600, %v12596
    %v12885 = vpack.c.b16 %v12601, %v12597
    %v12886 = vpack.c.b16 %v12602, %v12598
    %v12887 = vpack.c.b16 %v12607, %v12603
    %v12888 = vpack.c.b16 %v12608, %v12604
    %v12889 = vpack.c.b16 %v12609, %v12605
    %v12890 = vpack.c.b16 %v12610, %v12606
    %v12891 = vpack.c.b16 %v12615, %v12611
    %v12892 = vpack.c.b16 %v12616, %v12612
    %v12893 = vpack.c.b16 %v12617, %v12613
    %v12894 = vpack.c.b16 %v12618, %v12614
    %v12895 = vpack.c.b16 %v12623, %v12619
    %v12896 = vpack.c.b16 %v12624, %v12620
    %v12897 = vpack.c.b16 %v12625, %v12621
    %v12898 = vpack.c.b16 %v12626, %v12622
    %v12899 = vpack.c.b16 %v12631, %v12627
    %v12900 = vpack.c.b16 %v12632, %v12628
    %v12901 = vpack.c.b16 %v12633, %v12629
    %v12902 = vpack.c.b16 %v12634, %v12630
    %v12903 = vpack.c.b16 %v12639, %v12635
    %v12904 = vpack.c.b16 %v12640, %v12636
    %v12905 = vpack.c.b16 %v12641, %v12637
    %v12906 = vpack.c.b16 %v12642, %v12638
    %v12907 = vpack.c.b16 %v12647, %v12643
    %v12908 = vpack.c.b16 %v12648, %v12644
    %v12909 = vpack.c.b16 %v12649, %v12645
    %v12910 = vpack.c.b16 %v12650, %v12646
    %v12911 = vpack.c.b16 %v12655, %v12651
    %v12912 = vpack.c.b16 %v12656, %v12652
    %v12913 = vpack.c.b16 %v12657, %v12653
    %v12914 = vpack.c.b16 %v12658, %v12654
    %13171 = vmatprep.subr.bf16.mxu0 %v12688
    %13172 = vmatpush1.bf16.msra.mxu0 %v12687
    %13173 = vmatprep.subr.bf16.mxu0 %v12684
    %13174 = vmatpush1.bf16.msra.mxu0 %v12683
    %13175 = vmatprep.subr.bf16.mxu0 %v12680
    %13176 = vmatpush1.bf16.msra.mxu0 %v12679
    %13177 = vmatprep.subr.bf16.mxu0 %v12676
    %13178 = vmatpush1.bf16.msra.mxu0 %v12675
    %13179 = vmatprep.subr.bf16.mxu0 %v12672
    %13180 = vmatpush1.bf16.msra.mxu0 %v12671
    %13181 = vmatprep.subr.bf16.mxu0 %v12668
    %13182 = vmatpush1.bf16.msra.mxu0 %v12667
    %13183 = vmatprep.subr.bf16.mxu0 %v12664
    %13184 = vmatpush1.bf16.msra.mxu0 %v12663
    %13185 = vmatprep.subr.bf16.mxu0 %v12660
    %13186 = vmatpush1.bf16.msra.mxu0 %v12659
    %13187 = vmatprep.subr.bf16.mxu0 %v12720
    %13188 = vmatpush2.bf16.msra.mxu0 %v12719
    %13189 = vmatprep.subr.bf16.mxu0 %v12716
    %13190 = vmatpush2.bf16.msra.mxu0 %v12715
    %13191 = vmatprep.subr.bf16.mxu0 %v12712
    %13192 = vmatpush2.bf16.msra.mxu0 %v12711
    %13193 = vmatprep.subr.bf16.mxu0 %v12708
    %13194 = vmatpush2.bf16.msra.mxu0 %v12707
    %13195 = vmatprep.subr.bf16.mxu0 %v12704
    %13196 = vmatpush2.bf16.msra.mxu0 %v12703
    %13197 = vmatprep.subr.bf16.mxu0 %v12700
    %13198 = vmatpush2.bf16.msra.mxu0 %v12699
    %13199 = vmatprep.subr.bf16.mxu0 %v12696
    %13200 = vmatpush2.bf16.msra.mxu0 %v12695
    %13201 = vmatprep.subr.bf16.mxu0 %v12692
    %13202 = vmatpush2.bf16.msra.mxu0 %v12691
    %13203 = vmatprep.mubr.bf16.mxu0 %v11606
    %13204 = vmatmul.mubr.bf16.gmra.mxu0 %v11605
    %v13205 = vpop.f32.mrf.mxu0
    %v13206 = vadd.f32 %v11874, %v13205
    %v13207 = vpop.f32.mrf.mxu0
    %v13208 = vadd.f32 %v11878, %v13207
    %v13209 = vpop.f32.mrf.mxu0
    %v13210 = vadd.f32 %v11874, %v13209
    %v13211 = vpop.f32.mrf.mxu0
    %v13212 = vadd.f32 %v11878, %v13211
    %13213 = vdwg.mxu0
    %13214 = vmatprep.subr.bf16.mxu0 %v12752
    %13215 = vmatpush1.bf16.msra.mxu0 %v12751
    %13216 = vmatprep.subr.bf16.mxu0 %v12748
    %13217 = vmatpush1.bf16.msra.mxu0 %v12747
    %13218 = vmatprep.subr.bf16.mxu0 %v12744
    %13219 = vmatpush1.bf16.msra.mxu0 %v12743
    %13220 = vmatprep.subr.bf16.mxu0 %v12740
    %13221 = vmatpush1.bf16.msra.mxu0 %v12739
    %13222 = vmatprep.subr.bf16.mxu0 %v12736
    %13223 = vmatpush1.bf16.msra.mxu0 %v12735
    %13224 = vmatprep.subr.bf16.mxu0 %v12732
    %13225 = vmatpush1.bf16.msra.mxu0 %v12731
    %13226 = vmatprep.subr.bf16.mxu0 %v12728
    %13227 = vmatpush1.bf16.msra.mxu0 %v12727
    %13228 = vmatprep.subr.bf16.mxu0 %v12724
    %13229 = vmatpush1.bf16.msra.mxu0 %v12723
    %13230 = vmatprep.subr.bf16.mxu0 %v12784
    %13231 = vmatpush2.bf16.msra.mxu0 %v12783
    %13232 = vmatprep.subr.bf16.mxu0 %v12780
    %13233 = vmatpush2.bf16.msra.mxu0 %v12779
    %13234 = vmatprep.subr.bf16.mxu0 %v12776
    %13235 = vmatpush2.bf16.msra.mxu0 %v12775
    %13236 = vmatprep.subr.bf16.mxu0 %v12772
    %13237 = vmatpush2.bf16.msra.mxu0 %v12771
    %13238 = vmatprep.subr.bf16.mxu0 %v12768
    %13239 = vmatpush2.bf16.msra.mxu0 %v12767
    %13240 = vmatprep.subr.bf16.mxu0 %v12764
    %13241 = vmatpush2.bf16.msra.mxu0 %v12763
    %13242 = vmatprep.subr.bf16.mxu0 %v12760
    %13243 = vmatpush2.bf16.msra.mxu0 %v12759
    %13244 = vmatprep.subr.bf16.mxu0 %v12756
    %13245 = vmatpush2.bf16.msra.mxu0 %v12755
    %13246 = vmatprep.mubr.bf16.mxu0 %v11608
    %13247 = vmatmul.mubr.bf16.gmra.mxu0 %v11607
    %v13248 = vpop.f32.mrf.mxu0
    %v13249 = vadd.f32 %v13206, %v13248
    %v13250 = vpop.f32.mrf.mxu0
    %v13251 = vadd.f32 %v13208, %v13250
    %v13252 = vpop.f32.mrf.mxu0
    %v13253 = vadd.f32 %v13210, %v13252
    %v13254 = vpop.f32.mrf.mxu0
    %v13255 = vadd.f32 %v13212, %v13254
    %13256 = vdwg.mxu0
    %13257 = vmatprep.subr.bf16.mxu0 %v12816
    %13258 = vmatpush1.bf16.msra.mxu0 %v12815
    %13259 = vmatprep.subr.bf16.mxu0 %v12812
    %13260 = vmatpush1.bf16.msra.mxu0 %v12811
    %13261 = vmatprep.subr.bf16.mxu0 %v12808
    %13262 = vmatpush1.bf16.msra.mxu0 %v12807
    %13263 = vmatprep.subr.bf16.mxu0 %v12804
    %13264 = vmatpush1.bf16.msra.mxu0 %v12803
    %13265 = vmatprep.subr.bf16.mxu0 %v12800
    %13266 = vmatpush1.bf16.msra.mxu0 %v12799
    %13267 = vmatprep.subr.bf16.mxu0 %v12796
    %13268 = vmatpush1.bf16.msra.mxu0 %v12795
    %13269 = vmatprep.subr.bf16.mxu0 %v12792
    %13270 = vmatpush1.bf16.msra.mxu0 %v12791
    %13271 = vmatprep.subr.bf16.mxu0 %v12788
    %13272 = vmatpush1.bf16.msra.mxu0 %v12787
    %13273 = vmatprep.subr.bf16.mxu0 %v12848
    %13274 = vmatpush2.bf16.msra.mxu0 %v12847
    %13275 = vmatprep.subr.bf16.mxu0 %v12844
    %13276 = vmatpush2.bf16.msra.mxu0 %v12843
    %13277 = vmatprep.subr.bf16.mxu0 %v12840
    %13278 = vmatpush2.bf16.msra.mxu0 %v12839
    %13279 = vmatprep.subr.bf16.mxu0 %v12836
    %13280 = vmatpush2.bf16.msra.mxu0 %v12835
    %13281 = vmatprep.subr.bf16.mxu0 %v12832
    %13282 = vmatpush2.bf16.msra.mxu0 %v12831
    %13283 = vmatprep.subr.bf16.mxu0 %v12828
    %13284 = vmatpush2.bf16.msra.mxu0 %v12827
    %13285 = vmatprep.subr.bf16.mxu0 %v12824
    %13286 = vmatpush2.bf16.msra.mxu0 %v12823
    %13287 = vmatprep.subr.bf16.mxu0 %v12820
    %13288 = vmatpush2.bf16.msra.mxu0 %v12819
    %13289 = vmatprep.mubr.bf16.mxu0 %v11610
    %13290 = vmatmul.mubr.bf16.gmra.mxu0 %v11609
    %v13291 = vpop.f32.mrf.mxu0
    %v13292 = vadd.f32 %v13249, %v13291
    %v13293 = vpop.f32.mrf.mxu0
    %v13294 = vadd.f32 %v13251, %v13293
    %v13295 = vpop.f32.mrf.mxu0
    %v13296 = vadd.f32 %v13253, %v13295
    %v13297 = vpop.f32.mrf.mxu0
    %v13298 = vadd.f32 %v13255, %v13297
    %13299 = vdwg.mxu0
    %13300 = vmatprep.subr.bf16.mxu0 %v12880
    %13301 = vmatpush1.bf16.msra.mxu0 %v12879
    %13302 = vmatprep.subr.bf16.mxu0 %v12876
    %13303 = vmatpush1.bf16.msra.mxu0 %v12875
    %13304 = vmatprep.subr.bf16.mxu0 %v12872
    %13305 = vmatpush1.bf16.msra.mxu0 %v12871
    %13306 = vmatprep.subr.bf16.mxu0 %v12868
    %13307 = vmatpush1.bf16.msra.mxu0 %v12867
    %13308 = vmatprep.subr.bf16.mxu0 %v12864
    %13309 = vmatpush1.bf16.msra.mxu0 %v12863
    %13310 = vmatprep.subr.bf16.mxu0 %v12860
    %13311 = vmatpush1.bf16.msra.mxu0 %v12859
    %13312 = vmatprep.subr.bf16.mxu0 %v12856
    %13313 = vmatpush1.bf16.msra.mxu0 %v12855
    %13314 = vmatprep.subr.bf16.mxu0 %v12852
    %13315 = vmatpush1.bf16.msra.mxu0 %v12851
    %13316 = vmatprep.subr.bf16.mxu0 %v12912
    %13317 = vmatpush2.bf16.msra.mxu0 %v12911
    %13318 = vmatprep.subr.bf16.mxu0 %v12908
    %13319 = vmatpush2.bf16.msra.mxu0 %v12907
    %13320 = vmatprep.subr.bf16.mxu0 %v12904
    %13321 = vmatpush2.bf16.msra.mxu0 %v12903
    %13322 = vmatprep.subr.bf16.mxu0 %v12900
    %13323 = vmatpush2.bf16.msra.mxu0 %v12899
    %13324 = vmatprep.subr.bf16.mxu0 %v12896
    %13325 = vmatpush2.bf16.msra.mxu0 %v12895
    %13326 = vmatprep.subr.bf16.mxu0 %v12892
    %13327 = vmatpush2.bf16.msra.mxu0 %v12891
    %13328 = vmatprep.subr.bf16.mxu0 %v12888
    %13329 = vmatpush2.bf16.msra.mxu0 %v12887
    %13330 = vmatprep.subr.bf16.mxu0 %v12884
    %13331 = vmatpush2.bf16.msra.mxu0 %v12883
    %13332 = vmatprep.mubr.bf16.mxu0 %v11612
    %13333 = vmatmul.mubr.bf16.gmra.mxu0 %v11611
    %v13334 = vpop.f32.mrf.mxu0
    %v13335 = vadd.f32 %v13292, %v13334
    %v13336 = vpop.f32.mrf.mxu0
    %v13337 = vadd.f32 %v13294, %v13336
    %v13338 = vpop.f32.mrf.mxu0
    %v13339 = vadd.f32 %v13296, %v13338
    %v13340 = vpop.f32.mrf.mxu0
    %v13341 = vadd.f32 %v13298, %v13340
    %13342 = vdwg.mxu0
    %13343 = vmatprep.subr.bf16.mxu0 %v12690
    %13344 = vmatpush1.bf16.msra.mxu0 %v12689
    %13345 = vmatprep.subr.bf16.mxu0 %v12686
    %13346 = vmatpush1.bf16.msra.mxu0 %v12685
    %13347 = vmatprep.subr.bf16.mxu0 %v12682
    %13348 = vmatpush1.bf16.msra.mxu0 %v12681
    %13349 = vmatprep.subr.bf16.mxu0 %v12678
    %13350 = vmatpush1.bf16.msra.mxu0 %v12677
    %13351 = vmatprep.subr.bf16.mxu0 %v12674
    %13352 = vmatpush1.bf16.msra.mxu0 %v12673
    %13353 = vmatprep.subr.bf16.mxu0 %v12670
    %13354 = vmatpush1.bf16.msra.mxu0 %v12669
    %13355 = vmatprep.subr.bf16.mxu0 %v12666
    %13356 = vmatpush1.bf16.msra.mxu0 %v12665
    %13357 = vmatprep.subr.bf16.mxu0 %v12662
    %13358 = vmatpush1.bf16.msra.mxu0 %v12661
    %13359 = vmatprep.subr.bf16.mxu0 %v12722
    %13360 = vmatpush2.bf16.msra.mxu0 %v12721
    %13361 = vmatprep.subr.bf16.mxu0 %v12718
    %13362 = vmatpush2.bf16.msra.mxu0 %v12717
    %13363 = vmatprep.subr.bf16.mxu0 %v12714
    %13364 = vmatpush2.bf16.msra.mxu0 %v12713
    %13365 = vmatprep.subr.bf16.mxu0 %v12710
    %13366 = vmatpush2.bf16.msra.mxu0 %v12709
    %13367 = vmatprep.subr.bf16.mxu0 %v12706
    %13368 = vmatpush2.bf16.msra.mxu0 %v12705
    %13369 = vmatprep.subr.bf16.mxu0 %v12702
    %13370 = vmatpush2.bf16.msra.mxu0 %v12701
    %13371 = vmatprep.subr.bf16.mxu0 %v12698
    %13372 = vmatpush2.bf16.msra.mxu0 %v12697
    %13373 = vmatprep.subr.bf16.mxu0 %v12694
    %13374 = vmatpush2.bf16.msra.mxu0 %v12693
    %13375 = vmatprep.mubr.bf16.mxu0 %v11606
    %13376 = vmatmul.mubr.bf16.gmra.mxu0 %v11605
    %v13377 = vpop.f32.mrf.mxu0
    %v13378 = vadd.f32 %v11882, %v13377
    %v13379 = vpop.f32.mrf.mxu0
    %v13380 = vadd.f32 %v11886, %v13379
    %v13381 = vpop.f32.mrf.mxu0
    %v13382 = vadd.f32 %v11882, %v13381
    %v13383 = vpop.f32.mrf.mxu0
    %v13384 = vadd.f32 %v11886, %v13383
    %13385 = vdwg.mxu0
    %13386 = vmatprep.subr.bf16.mxu0 %v12754
    %13387 = vmatpush1.bf16.msra.mxu0 %v12753
    %13388 = vmatprep.subr.bf16.mxu0 %v12750
    %13389 = vmatpush1.bf16.msra.mxu0 %v12749
    %13390 = vmatprep.subr.bf16.mxu0 %v12746
    %13391 = vmatpush1.bf16.msra.mxu0 %v12745
    %13392 = vmatprep.subr.bf16.mxu0 %v12742
    %13393 = vmatpush1.bf16.msra.mxu0 %v12741
    %13394 = vmatprep.subr.bf16.mxu0 %v12738
    %13395 = vmatpush1.bf16.msra.mxu0 %v12737
    %13396 = vmatprep.subr.bf16.mxu0 %v12734
    %13397 = vmatpush1.bf16.msra.mxu0 %v12733
    %13398 = vmatprep.subr.bf16.mxu0 %v12730
    %13399 = vmatpush1.bf16.msra.mxu0 %v12729
    %13400 = vmatprep.subr.bf16.mxu0 %v12726
    %13401 = vmatpush1.bf16.msra.mxu0 %v12725
    %13402 = vmatprep.subr.bf16.mxu0 %v12786
    %13403 = vmatpush2.bf16.msra.mxu0 %v12785
    %13404 = vmatprep.subr.bf16.mxu0 %v12782
    %13405 = vmatpush2.bf16.msra.mxu0 %v12781
    %13406 = vmatprep.subr.bf16.mxu0 %v12778
    %13407 = vmatpush2.bf16.msra.mxu0 %v12777
    %13408 = vmatprep.subr.bf16.mxu0 %v12774
    %13409 = vmatpush2.bf16.msra.mxu0 %v12773
    %13410 = vmatprep.subr.bf16.mxu0 %v12770
    %13411 = vmatpush2.bf16.msra.mxu0 %v12769
    %13412 = vmatprep.subr.bf16.mxu0 %v12766
    %13413 = vmatpush2.bf16.msra.mxu0 %v12765
    %13414 = vmatprep.subr.bf16.mxu0 %v12762
    %13415 = vmatpush2.bf16.msra.mxu0 %v12761
    %13416 = vmatprep.subr.bf16.mxu0 %v12758
    %13417 = vmatpush2.bf16.msra.mxu0 %v12757
    %13418 = vmatprep.mubr.bf16.mxu0 %v11608
    %13419 = vmatmul.mubr.bf16.gmra.mxu0 %v11607
    %v13420 = vpop.f32.mrf.mxu0
    %v13421 = vadd.f32 %v13378, %v13420
    %v13422 = vpop.f32.mrf.mxu0
    %v13423 = vadd.f32 %v13380, %v13422
    %v13424 = vpop.f32.mrf.mxu0
    %v13425 = vadd.f32 %v13382, %v13424
    %v13426 = vpop.f32.mrf.mxu0
    %v13427 = vadd.f32 %v13384, %v13426
    %13428 = vdwg.mxu0
    %13429 = vmatprep.subr.bf16.mxu0 %v12818
    %13430 = vmatpush1.bf16.msra.mxu0 %v12817
    %13431 = vmatprep.subr.bf16.mxu0 %v12814
    %13432 = vmatpush1.bf16.msra.mxu0 %v12813
    %13433 = vmatprep.subr.bf16.mxu0 %v12810
    %13434 = vmatpush1.bf16.msra.mxu0 %v12809
    %13435 = vmatprep.subr.bf16.mxu0 %v12806
    %13436 = vmatpush1.bf16.msra.mxu0 %v12805
    %13437 = vmatprep.subr.bf16.mxu0 %v12802
    %13438 = vmatpush1.bf16.msra.mxu0 %v12801
    %13439 = vmatprep.subr.bf16.mxu0 %v12798
    %13440 = vmatpush1.bf16.msra.mxu0 %v12797
    %13441 = vmatprep.subr.bf16.mxu0 %v12794
    %13442 = vmatpush1.bf16.msra.mxu0 %v12793
    %13443 = vmatprep.subr.bf16.mxu0 %v12790
    %13444 = vmatpush1.bf16.msra.mxu0 %v12789
    %13445 = vmatprep.subr.bf16.mxu0 %v12850
    %13446 = vmatpush2.bf16.msra.mxu0 %v12849
    %13447 = vmatprep.subr.bf16.mxu0 %v12846
    %13448 = vmatpush2.bf16.msra.mxu0 %v12845
    %13449 = vmatprep.subr.bf16.mxu0 %v12842
    %13450 = vmatpush2.bf16.msra.mxu0 %v12841
    %13451 = vmatprep.subr.bf16.mxu0 %v12838
    %13452 = vmatpush2.bf16.msra.mxu0 %v12837
    %13453 = vmatprep.subr.bf16.mxu0 %v12834
    %13454 = vmatpush2.bf16.msra.mxu0 %v12833
    %13455 = vmatprep.subr.bf16.mxu0 %v12830
    %13456 = vmatpush2.bf16.msra.mxu0 %v12829
    %13457 = vmatprep.subr.bf16.mxu0 %v12826
    %13458 = vmatpush2.bf16.msra.mxu0 %v12825
    %13459 = vmatprep.subr.bf16.mxu0 %v12822
    %13460 = vmatpush2.bf16.msra.mxu0 %v12821
    %13461 = vmatprep.mubr.bf16.mxu0 %v11610
    %13462 = vmatmul.mubr.bf16.gmra.mxu0 %v11609
    %v13463 = vpop.f32.mrf.mxu0
    %v13464 = vadd.f32 %v13421, %v13463
    %v13465 = vpop.f32.mrf.mxu0
    %v13466 = vadd.f32 %v13423, %v13465
    %v13467 = vpop.f32.mrf.mxu0
    %v13468 = vadd.f32 %v13425, %v13467
    %v13469 = vpop.f32.mrf.mxu0
    %v13470 = vadd.f32 %v13427, %v13469
    %13471 = vdwg.mxu0
    %13472 = vmatprep.subr.bf16.mxu0 %v12882
    %13473 = vmatpush1.bf16.msra.mxu0 %v12881
    %13474 = vmatprep.subr.bf16.mxu0 %v12878
    %13475 = vmatpush1.bf16.msra.mxu0 %v12877
    %13476 = vmatprep.subr.bf16.mxu0 %v12874
    %13477 = vmatpush1.bf16.msra.mxu0 %v12873
    %13478 = vmatprep.subr.bf16.mxu0 %v12870
    %13479 = vmatpush1.bf16.msra.mxu0 %v12869
    %13480 = vmatprep.subr.bf16.mxu0 %v12866
    %13481 = vmatpush1.bf16.msra.mxu0 %v12865
    %13482 = vmatprep.subr.bf16.mxu0 %v12862
    %13483 = vmatpush1.bf16.msra.mxu0 %v12861
    %13484 = vmatprep.subr.bf16.mxu0 %v12858
    %13485 = vmatpush1.bf16.msra.mxu0 %v12857
    %13486 = vmatprep.subr.bf16.mxu0 %v12854
    %13487 = vmatpush1.bf16.msra.mxu0 %v12853
    %13488 = vmatprep.subr.bf16.mxu0 %v12914
    %13489 = vmatpush2.bf16.msra.mxu0 %v12913
    %13490 = vmatprep.subr.bf16.mxu0 %v12910
    %13491 = vmatpush2.bf16.msra.mxu0 %v12909
    %13492 = vmatprep.subr.bf16.mxu0 %v12906
    %13493 = vmatpush2.bf16.msra.mxu0 %v12905
    %13494 = vmatprep.subr.bf16.mxu0 %v12902
    %13495 = vmatpush2.bf16.msra.mxu0 %v12901
    %13496 = vmatprep.subr.bf16.mxu0 %v12898
    %13497 = vmatpush2.bf16.msra.mxu0 %v12897
    %13498 = vmatprep.subr.bf16.mxu0 %v12894
    %13499 = vmatpush2.bf16.msra.mxu0 %v12893
    %13500 = vmatprep.subr.bf16.mxu0 %v12890
    %13501 = vmatpush2.bf16.msra.mxu0 %v12889
    %13502 = vmatprep.subr.bf16.mxu0 %v12886
    %13503 = vmatpush2.bf16.msra.mxu0 %v12885
    %13504 = vmatprep.mubr.bf16.mxu0 %v11612
    %13505 = vmatmul.mubr.bf16.gmra.mxu0 %v11611
    %v13506 = vpop.f32.mrf.mxu0
    %v13507 = vadd.f32 %v13464, %v13506
    %v13508 = vpop.f32.mrf.mxu0
    %v13509 = vadd.f32 %v13466, %v13508
    %v13510 = vpop.f32.mrf.mxu0
    %v13511 = vadd.f32 %v13468, %v13510
    %v13512 = vpop.f32.mrf.mxu0
    %v13513 = vadd.f32 %v13470, %v13512
    %13514 = vdwg.mxu0
    %v13515 = vmul.f32 %v13335, 0.01
    %v13516 = vmul.f32 %v13337, 0.01
    %v13517 = vmul.f32 %v13507, 0.01
    %v13518 = vmul.f32 %v13509, 0.01
    %v13519 = vmul.f32 %v13339, 0.01
    %v13520 = vmul.f32 %v13341, 0.01
    %v13521 = vmul.f32 %v13511, 0.01
    %v13522 = vmul.f32 %v13513, 0.01
    %v13523 = vmax.f32 %v13335, %v13515
    %v13524 = vmax.f32 %v13337, %v13516
    %v13525 = vmax.f32 %v13507, %v13517
    %v13526 = vmax.f32 %v13509, %v13518
    %v13527 = vmax.f32 %v13339, %v13519
    %v13528 = vmax.f32 %v13341, %v13520
    %v13529 = vmax.f32 %v13511, %v13521
    %v13530 = vmax.f32 %v13513, %v13522
    %v13531 = vpack.c.bf16 %v13527, %v13523
    %v13532 = vpack.c.bf16 %v13528, %v13524
    %v13533 = vpack.c.bf16 %v13529, %v13525
    %v13534 = vpack.c.bf16 %v13530, %v13526
    %v13535 = vld [vmem:[#allocation11] sm:$0xff]
    %v13536 = vld [vmem:[#allocation11 + $0x8] sm:$0xff]
    %v13537 = vld [vmem:[#allocation11 + $0x10] sm:$0xff]
    %v13538 = vld [vmem:[#allocation11 + $0x18] sm:$0xff]
    %v13539 = vld [vmem:[#allocation11 + $0x20] sm:$0xff]
    %v13540 = vld [vmem:[#allocation11 + $0x28] sm:$0xff]
    %v13541 = vld [vmem:[#allocation11 + $0x30] sm:$0xff]
    %v13542 = vld [vmem:[#allocation11 + $0x38] sm:$0xff]
    %v13543 = vld [vmem:[#allocation11 + $0x40] sm:$0xff]
    %v13544 = vld [vmem:[#allocation11 + $0x48] sm:$0xff]
    %v13545 = vld [vmem:[#allocation11 + $0x50] sm:$0xff]
    %v13546 = vld [vmem:[#allocation11 + $0x58] sm:$0xff]
    %v13547 = vld [vmem:[#allocation11 + $0x60] sm:$0xff]
    %v13548 = vld [vmem:[#allocation11 + $0x68] sm:$0xff]
    %v13549 = vld [vmem:[#allocation11 + $0x70] sm:$0xff]
    %v13550 = vld [vmem:[#allocation11 + $0x78] sm:$0xff]
    %v13551 = vld [vmem:[#allocation11 + $0x80] sm:$0xff]
    %v13552 = vld [vmem:[#allocation11 + $0x88] sm:$0xff]
    %v13553 = vld [vmem:[#allocation11 + $0x90] sm:$0xff]
    %v13554 = vld [vmem:[#allocation11 + $0x98] sm:$0xff]
    %v13555 = vld [vmem:[#allocation11 + $0xa0] sm:$0xff]
    %v13556 = vld [vmem:[#allocation11 + $0xa8] sm:$0xff]
    %v13557 = vld [vmem:[#allocation11 + $0xb0] sm:$0xff]
    %v13558 = vld [vmem:[#allocation11 + $0xb8] sm:$0xff]
    %v13559 = vld [vmem:[#allocation11 + $0xc0] sm:$0xff]
    %v13560 = vld [vmem:[#allocation11 + $0xc8] sm:$0xff]
    %v13561 = vld [vmem:[#allocation11 + $0xd0] sm:$0xff]
    %v13562 = vld [vmem:[#allocation11 + $0xd8] sm:$0xff]
    %v13563 = vld [vmem:[#allocation11 + $0xe0] sm:$0xff]
    %v13564 = vld [vmem:[#allocation11 + $0xe8] sm:$0xff]
    %v13565 = vld [vmem:[#allocation11 + $0xf0] sm:$0xff]
    %v13566 = vld [vmem:[#allocation11 + $0xf8] sm:$0xff]
    %v13567 = vld [vmem:[#allocation11 + $0x100] sm:$0xff]
    %v13568 = vld [vmem:[#allocation11 + $0x108] sm:$0xff]
    %v13569 = vld [vmem:[#allocation11 + $0x110] sm:$0xff]
    %v13570 = vld [vmem:[#allocation11 + $0x118] sm:$0xff]
    %v13571 = vld [vmem:[#allocation11 + $0x120] sm:$0xff]
    %v13572 = vld [vmem:[#allocation11 + $0x128] sm:$0xff]
    %v13573 = vld [vmem:[#allocation11 + $0x130] sm:$0xff]
    %v13574 = vld [vmem:[#allocation11 + $0x138] sm:$0xff]
    %v13575 = vld [vmem:[#allocation11 + $0x140] sm:$0xff]
    %v13576 = vld [vmem:[#allocation11 + $0x148] sm:$0xff]
    %v13577 = vld [vmem:[#allocation11 + $0x150] sm:$0xff]
    %v13578 = vld [vmem:[#allocation11 + $0x158] sm:$0xff]
    %v13579 = vld [vmem:[#allocation11 + $0x160] sm:$0xff]
    %v13580 = vld [vmem:[#allocation11 + $0x168] sm:$0xff]
    %v13581 = vld [vmem:[#allocation11 + $0x170] sm:$0xff]
    %v13582 = vld [vmem:[#allocation11 + $0x178] sm:$0xff]
    %v13583 = vld [vmem:[#allocation11 + $0x180] sm:$0xff]
    %v13584 = vld [vmem:[#allocation11 + $0x188] sm:$0xff]
    %v13585 = vld [vmem:[#allocation11 + $0x190] sm:$0xff]
    %v13586 = vld [vmem:[#allocation11 + $0x198] sm:$0xff]
    %v13587 = vld [vmem:[#allocation11 + $0x1a0] sm:$0xff]
    %v13588 = vld [vmem:[#allocation11 + $0x1a8] sm:$0xff]
    %v13589 = vld [vmem:[#allocation11 + $0x1b0] sm:$0xff]
    %v13590 = vld [vmem:[#allocation11 + $0x1b8] sm:$0xff]
    %v13591 = vld [vmem:[#allocation11 + $0x1c0] sm:$0xff]
    %v13592 = vld [vmem:[#allocation11 + $0x1c8] sm:$0xff]
    %v13593 = vld [vmem:[#allocation11 + $0x1d0] sm:$0xff]
    %v13594 = vld [vmem:[#allocation11 + $0x1d8] sm:$0xff]
    %v13595 = vld [vmem:[#allocation11 + $0x1e0] sm:$0xff]
    %v13596 = vld [vmem:[#allocation11 + $0x1e8] sm:$0xff]
    %v13597 = vld [vmem:[#allocation11 + $0x1f0] sm:$0xff]
    %v13598 = vld [vmem:[#allocation11 + $0x1f8] sm:$0xff]
    %v13599 = vld [vmem:[#allocation13] sm:$0x3]
    %v13601 = vlaneseq
    %v13602 = vshrl.u32 %v13601, 7
    %v13603 = vsub.s32 0, %v13602
    %v13604 = vrot.slane %v13599, %v13603
    %v13605 = vlaneseq
    %v13606 = vshrl.u32 %v13605, 7
    %v13607 = vsub.s32 1, %v13606
    %v13608 = vrot.slane %v13599, %v13607
    %v13675 = vunpack.c.l.b16 %v13535
    %v13676 = vunpack.c.h.b16 %v13535
    %v13677 = vunpack.c.l.b16 %v13536
    %v13678 = vunpack.c.h.b16 %v13536
    %v13679 = vunpack.c.l.b16 %v13537
    %v13680 = vunpack.c.h.b16 %v13537
    %v13681 = vunpack.c.l.b16 %v13538
    %v13682 = vunpack.c.h.b16 %v13538
    %v13683 = vunpack.c.l.b16 %v13539
    %v13684 = vunpack.c.h.b16 %v13539
    %v13685 = vunpack.c.l.b16 %v13540
    %v13686 = vunpack.c.h.b16 %v13540
    %v13687 = vunpack.c.l.b16 %v13541
    %v13688 = vunpack.c.h.b16 %v13541
    %v13689 = vunpack.c.l.b16 %v13542
    %v13690 = vunpack.c.h.b16 %v13542
    %v13691 = vunpack.c.l.b16 %v13543
    %v13692 = vunpack.c.h.b16 %v13543
    %v13693 = vunpack.c.l.b16 %v13544
    %v13694 = vunpack.c.h.b16 %v13544
    %v13695 = vunpack.c.l.b16 %v13545
    %v13696 = vunpack.c.h.b16 %v13545
    %v13697 = vunpack.c.l.b16 %v13546
    %v13698 = vunpack.c.h.b16 %v13546
    %v13699 = vunpack.c.l.b16 %v13547
    %v13700 = vunpack.c.h.b16 %v13547
    %v13701 = vunpack.c.l.b16 %v13548
    %v13702 = vunpack.c.h.b16 %v13548
    %v13703 = vunpack.c.l.b16 %v13549
    %v13704 = vunpack.c.h.b16 %v13549
    %v13705 = vunpack.c.l.b16 %v13550
    %v13706 = vunpack.c.h.b16 %v13550
    %v13707 = vunpack.c.l.b16 %v13551
    %v13708 = vunpack.c.h.b16 %v13551
    %v13709 = vunpack.c.l.b16 %v13552
    %v13710 = vunpack.c.h.b16 %v13552
    %v13711 = vunpack.c.l.b16 %v13553
    %v13712 = vunpack.c.h.b16 %v13553
    %v13713 = vunpack.c.l.b16 %v13554
    %v13714 = vunpack.c.h.b16 %v13554
    %v13715 = vunpack.c.l.b16 %v13555
    %v13716 = vunpack.c.h.b16 %v13555
    %v13717 = vunpack.c.l.b16 %v13556
    %v13718 = vunpack.c.h.b16 %v13556
    %v13719 = vunpack.c.l.b16 %v13557
    %v13720 = vunpack.c.h.b16 %v13557
    %v13721 = vunpack.c.l.b16 %v13558
    %v13722 = vunpack.c.h.b16 %v13558
    %v13723 = vunpack.c.l.b16 %v13559
    %v13724 = vunpack.c.h.b16 %v13559
    %v13725 = vunpack.c.l.b16 %v13560
    %v13726 = vunpack.c.h.b16 %v13560
    %v13727 = vunpack.c.l.b16 %v13561
    %v13728 = vunpack.c.h.b16 %v13561
    %v13729 = vunpack.c.l.b16 %v13562
    %v13730 = vunpack.c.h.b16 %v13562
    %v13731 = vunpack.c.l.b16 %v13563
    %v13732 = vunpack.c.h.b16 %v13563
    %v13733 = vunpack.c.l.b16 %v13564
    %v13734 = vunpack.c.h.b16 %v13564
    %v13735 = vunpack.c.l.b16 %v13565
    %v13736 = vunpack.c.h.b16 %v13565
    %v13737 = vunpack.c.l.b16 %v13566
    %v13738 = vunpack.c.h.b16 %v13566
    %v13739 = vunpack.c.l.b16 %v13567
    %v13740 = vunpack.c.h.b16 %v13567
    %v13741 = vunpack.c.l.b16 %v13568
    %v13742 = vunpack.c.h.b16 %v13568
    %v13743 = vunpack.c.l.b16 %v13569
    %v13744 = vunpack.c.h.b16 %v13569
    %v13745 = vunpack.c.l.b16 %v13570
    %v13746 = vunpack.c.h.b16 %v13570
    %v13747 = vunpack.c.l.b16 %v13571
    %v13748 = vunpack.c.h.b16 %v13571
    %v13749 = vunpack.c.l.b16 %v13572
    %v13750 = vunpack.c.h.b16 %v13572
    %v13751 = vunpack.c.l.b16 %v13573
    %v13752 = vunpack.c.h.b16 %v13573
    %v13753 = vunpack.c.l.b16 %v13574
    %v13754 = vunpack.c.h.b16 %v13574
    %v13755 = vunpack.c.l.b16 %v13575
    %v13756 = vunpack.c.h.b16 %v13575
    %v13757 = vunpack.c.l.b16 %v13576
    %v13758 = vunpack.c.h.b16 %v13576
    %v13759 = vunpack.c.l.b16 %v13577
    %v13760 = vunpack.c.h.b16 %v13577
    %v13761 = vunpack.c.l.b16 %v13578
    %v13762 = vunpack.c.h.b16 %v13578
    %v13763 = vunpack.c.l.b16 %v13579
    %v13764 = vunpack.c.h.b16 %v13579
    %v13765 = vunpack.c.l.b16 %v13580
    %v13766 = vunpack.c.h.b16 %v13580
    %v13767 = vunpack.c.l.b16 %v13581
    %v13768 = vunpack.c.h.b16 %v13581
    %v13769 = vunpack.c.l.b16 %v13582
    %v13770 = vunpack.c.h.b16 %v13582
    %v13771 = vunpack.c.l.b16 %v13583
    %v13772 = vunpack.c.h.b16 %v13583
    %v13773 = vunpack.c.l.b16 %v13584
    %v13774 = vunpack.c.h.b16 %v13584
    %v13775 = vunpack.c.l.b16 %v13585
    %v13776 = vunpack.c.h.b16 %v13585
    %v13777 = vunpack.c.l.b16 %v13586
    %v13778 = vunpack.c.h.b16 %v13586
    %v13779 = vunpack.c.l.b16 %v13587
    %v13780 = vunpack.c.h.b16 %v13587
    %v13781 = vunpack.c.l.b16 %v13588
    %v13782 = vunpack.c.h.b16 %v13588
    %v13783 = vunpack.c.l.b16 %v13589
    %v13784 = vunpack.c.h.b16 %v13589
    %v13785 = vunpack.c.l.b16 %v13590
    %v13786 = vunpack.c.h.b16 %v13590
    %v13787 = vunpack.c.l.b16 %v13591
    %v13788 = vunpack.c.h.b16 %v13591
    %v13789 = vunpack.c.l.b16 %v13592
    %v13790 = vunpack.c.h.b16 %v13592
    %v13791 = vunpack.c.l.b16 %v13593
    %v13792 = vunpack.c.h.b16 %v13593
    %v13793 = vunpack.c.l.b16 %v13594
    %v13794 = vunpack.c.h.b16 %v13594
    %v13795 = vunpack.c.l.b16 %v13595
    %v13796 = vunpack.c.h.b16 %v13595
    %v13797 = vunpack.c.l.b16 %v13596
    %v13798 = vunpack.c.h.b16 %v13596
    %v13799 = vunpack.c.l.b16 %v13597
    %v13800 = vunpack.c.h.b16 %v13597
    %v13801 = vunpack.c.l.b16 %v13598
    %v13802 = vunpack.c.h.b16 %v13598
    %v13803 = vpack.c.b16 %v13677, %v13675
    %v13804 = vpack.c.b16 %v13678, %v13676
    %v13805 = vpack.c.b16 %v13681, %v13679
    %v13806 = vpack.c.b16 %v13682, %v13680
    %v13807 = vpack.c.b16 %v13685, %v13683
    %v13808 = vpack.c.b16 %v13686, %v13684
    %v13809 = vpack.c.b16 %v13689, %v13687
    %v13810 = vpack.c.b16 %v13690, %v13688
    %v13811 = vpack.c.b16 %v13693, %v13691
    %v13812 = vpack.c.b16 %v13694, %v13692
    %v13813 = vpack.c.b16 %v13697, %v13695
    %v13814 = vpack.c.b16 %v13698, %v13696
    %v13815 = vpack.c.b16 %v13701, %v13699
    %v13816 = vpack.c.b16 %v13702, %v13700
    %v13817 = vpack.c.b16 %v13705, %v13703
    %v13818 = vpack.c.b16 %v13706, %v13704
    %v13819 = vpack.c.b16 %v13709, %v13707
    %v13820 = vpack.c.b16 %v13710, %v13708
    %v13821 = vpack.c.b16 %v13713, %v13711
    %v13822 = vpack.c.b16 %v13714, %v13712
    %v13823 = vpack.c.b16 %v13717, %v13715
    %v13824 = vpack.c.b16 %v13718, %v13716
    %v13825 = vpack.c.b16 %v13721, %v13719
    %v13826 = vpack.c.b16 %v13722, %v13720
    %v13827 = vpack.c.b16 %v13725, %v13723
    %v13828 = vpack.c.b16 %v13726, %v13724
    %v13829 = vpack.c.b16 %v13729, %v13727
    %v13830 = vpack.c.b16 %v13730, %v13728
    %v13831 = vpack.c.b16 %v13733, %v13731
    %v13832 = vpack.c.b16 %v13734, %v13732
    %v13833 = vpack.c.b16 %v13737, %v13735
    %v13834 = vpack.c.b16 %v13738, %v13736
    %v13835 = vpack.c.b16 %v13741, %v13739
    %v13836 = vpack.c.b16 %v13742, %v13740
    %v13837 = vpack.c.b16 %v13745, %v13743
    %v13838 = vpack.c.b16 %v13746, %v13744
    %v13839 = vpack.c.b16 %v13749, %v13747
    %v13840 = vpack.c.b16 %v13750, %v13748
    %v13841 = vpack.c.b16 %v13753, %v13751
    %v13842 = vpack.c.b16 %v13754, %v13752
    %v13843 = vpack.c.b16 %v13757, %v13755
    %v13844 = vpack.c.b16 %v13758, %v13756
    %v13845 = vpack.c.b16 %v13761, %v13759
    %v13846 = vpack.c.b16 %v13762, %v13760
    %v13847 = vpack.c.b16 %v13765, %v13763
    %v13848 = vpack.c.b16 %v13766, %v13764
    %v13849 = vpack.c.b16 %v13769, %v13767
    %v13850 = vpack.c.b16 %v13770, %v13768
    %v13851 = vpack.c.b16 %v13773, %v13771
    %v13852 = vpack.c.b16 %v13774, %v13772
    %v13853 = vpack.c.b16 %v13777, %v13775
    %v13854 = vpack.c.b16 %v13778, %v13776
    %v13855 = vpack.c.b16 %v13781, %v13779
    %v13856 = vpack.c.b16 %v13782, %v13780
    %v13857 = vpack.c.b16 %v13785, %v13783
    %v13858 = vpack.c.b16 %v13786, %v13784
    %v13859 = vpack.c.b16 %v13789, %v13787
    %v13860 = vpack.c.b16 %v13790, %v13788
    %v13861 = vpack.c.b16 %v13793, %v13791
    %v13862 = vpack.c.b16 %v13794, %v13792
    %v13863 = vpack.c.b16 %v13797, %v13795
    %v13864 = vpack.c.b16 %v13798, %v13796
    %v13865 = vpack.c.b16 %v13801, %v13799
    %v13866 = vpack.c.b16 %v13802, %v13800
    %13931 = vmatprep.subr.bf16.mxu0 %v13818
    %13932 = vmatpush1.bf16.msra.mxu0 %v13817
    %13933 = vmatprep.subr.bf16.mxu0 %v13816
    %13934 = vmatpush1.bf16.msra.mxu0 %v13815
    %13935 = vmatprep.subr.bf16.mxu0 %v13814
    %13936 = vmatpush1.bf16.msra.mxu0 %v13813
    %13937 = vmatprep.subr.bf16.mxu0 %v13812
    %13938 = vmatpush1.bf16.msra.mxu0 %v13811
    %13939 = vmatprep.subr.bf16.mxu0 %v13810
    %13940 = vmatpush1.bf16.msra.mxu0 %v13809
    %13941 = vmatprep.subr.bf16.mxu0 %v13808
    %13942 = vmatpush1.bf16.msra.mxu0 %v13807
    %13943 = vmatprep.subr.bf16.mxu0 %v13806
    %13944 = vmatpush1.bf16.msra.mxu0 %v13805
    %13945 = vmatprep.subr.bf16.mxu0 %v13804
    %13946 = vmatpush1.bf16.msra.mxu0 %v13803
    %13947 = vmatprep.subr.bf16.mxu0 %v13834
    %13948 = vmatpush2.bf16.msra.mxu0 %v13833
    %13949 = vmatprep.subr.bf16.mxu0 %v13832
    %13950 = vmatpush2.bf16.msra.mxu0 %v13831
    %13951 = vmatprep.subr.bf16.mxu0 %v13830
    %13952 = vmatpush2.bf16.msra.mxu0 %v13829
    %13953 = vmatprep.subr.bf16.mxu0 %v13828
    %13954 = vmatpush2.bf16.msra.mxu0 %v13827
    %13955 = vmatprep.subr.bf16.mxu0 %v13826
    %13956 = vmatpush2.bf16.msra.mxu0 %v13825
    %13957 = vmatprep.subr.bf16.mxu0 %v13824
    %13958 = vmatpush2.bf16.msra.mxu0 %v13823
    %13959 = vmatprep.subr.bf16.mxu0 %v13822
    %13960 = vmatpush2.bf16.msra.mxu0 %v13821
    %13961 = vmatprep.subr.bf16.mxu0 %v13820
    %13962 = vmatpush2.bf16.msra.mxu0 %v13819
    %13963 = vmatprep.mubr.bf16.mxu0 %v13532
    %13964 = vmatmul.mubr.bf16.gmra.mxu0 %v13531
    %v13965 = vpop.f32.mrf.mxu0
    %v13966 = vadd.f32 %v13604, %v13965
    %v13967 = vpop.f32.mrf.mxu0
    %v13968 = vadd.f32 %v13608, %v13967
    %v13969 = vpop.f32.mrf.mxu0
    %v13970 = vadd.f32 %v13604, %v13969
    %v13971 = vpop.f32.mrf.mxu0
    %v13972 = vadd.f32 %v13608, %v13971
    %13973 = vdwg.mxu0
    %13974 = vmatprep.subr.bf16.mxu0 %v13850
    %13975 = vmatpush1.bf16.msra.mxu0 %v13849
    %13976 = vmatprep.subr.bf16.mxu0 %v13848
    %13977 = vmatpush1.bf16.msra.mxu0 %v13847
    %13978 = vmatprep.subr.bf16.mxu0 %v13846
    %13979 = vmatpush1.bf16.msra.mxu0 %v13845
    %13980 = vmatprep.subr.bf16.mxu0 %v13844
    %13981 = vmatpush1.bf16.msra.mxu0 %v13843
    %13982 = vmatprep.subr.bf16.mxu0 %v13842
    %13983 = vmatpush1.bf16.msra.mxu0 %v13841
    %13984 = vmatprep.subr.bf16.mxu0 %v13840
    %13985 = vmatpush1.bf16.msra.mxu0 %v13839
    %13986 = vmatprep.subr.bf16.mxu0 %v13838
    %13987 = vmatpush1.bf16.msra.mxu0 %v13837
    %13988 = vmatprep.subr.bf16.mxu0 %v13836
    %13989 = vmatpush1.bf16.msra.mxu0 %v13835
    %13990 = vmatprep.subr.bf16.mxu0 %v13866
    %13991 = vmatpush2.bf16.msra.mxu0 %v13865
    %13992 = vmatprep.subr.bf16.mxu0 %v13864
    %13993 = vmatpush2.bf16.msra.mxu0 %v13863
    %13994 = vmatprep.subr.bf16.mxu0 %v13862
    %13995 = vmatpush2.bf16.msra.mxu0 %v13861
    %13996 = vmatprep.subr.bf16.mxu0 %v13860
    %13997 = vmatpush2.bf16.msra.mxu0 %v13859
    %13998 = vmatprep.subr.bf16.mxu0 %v13858
    %13999 = vmatpush2.bf16.msra.mxu0 %v13857
    %14000 = vmatprep.subr.bf16.mxu0 %v13856
    %14001 = vmatpush2.bf16.msra.mxu0 %v13855
    %14002 = vmatprep.subr.bf16.mxu0 %v13854
    %14003 = vmatpush2.bf16.msra.mxu0 %v13853
    %14004 = vmatprep.subr.bf16.mxu0 %v13852
    %14005 = vmatpush2.bf16.msra.mxu0 %v13851
    %14006 = vmatprep.mubr.bf16.mxu0 %v13534
    %14007 = vmatmul.mubr.bf16.gmra.mxu0 %v13533
    %v14008 = vpop.f32.mrf.mxu0
    %v14009 = vadd.f32 %v13966, %v14008
    %v14010 = vpop.f32.mrf.mxu0
    %v14011 = vadd.f32 %v13968, %v14010
    %v14012 = vpop.f32.mrf.mxu0
    %v14013 = vadd.f32 %v13970, %v14012
    %v14014 = vpop.f32.mrf.mxu0
    %v14015 = vadd.f32 %v13972, %v14014
    %14016 = vdwg.mxu0
    %v14017 = vmul.f32 %v14009, 0.01
    %v14018 = vmul.f32 %v14011, 0.01
    %v14019 = vmul.f32 %v14013, 0.01
    %v14020 = vmul.f32 %v14015, 0.01
    %v14021 = vmax.f32 %v14009, %v14017
    %v14022 = vmax.f32 %v14011, %v14018
    %v14023 = vmax.f32 %v14013, %v14019
    %v14024 = vmax.f32 %v14015, %v14020
    %v14025 = vpack.c.bf16 %v14023, %v14021
    %v14026 = vpack.c.bf16 %v14024, %v14022
    %v14027 = vld [vmem:[#allocation14] sm:$0xf]
    %v14028 = vld [vmem:[#allocation14 + $0x4] sm:$0xf]
    %v14029 = vld [vmem:[#allocation14 + $0x8] sm:$0xf]
    %v14030 = vld [vmem:[#allocation14 + $0xc] sm:$0xf]
    %v14031 = vld [vmem:[#allocation14 + $0x10] sm:$0xf]
    %v14032 = vld [vmem:[#allocation14 + $0x14] sm:$0xf]
    %v14033 = vld [vmem:[#allocation14 + $0x18] sm:$0xf]
    %v14034 = vld [vmem:[#allocation14 + $0x1c] sm:$0xf]
    %v14035 = vld [vmem:[#allocation14 + $0x20] sm:$0xf]
    %v14036 = vld [vmem:[#allocation14 + $0x24] sm:$0xf]
    %v14037 = vld [vmem:[#allocation14 + $0x28] sm:$0xf]
    %v14038 = vld [vmem:[#allocation14 + $0x2c] sm:$0xf]
    %v14039 = vld [vmem:[#allocation14 + $0x30] sm:$0xf]
    %v14040 = vld [vmem:[#allocation14 + $0x34] sm:$0xf]
    %v14041 = vld [vmem:[#allocation14 + $0x38] sm:$0xf]
    %v14042 = vld [vmem:[#allocation14 + $0x3c] sm:$0xf]
    %v14043 = vld [vmem:[#allocation14 + $0x40] sm:$0xf]
    %v14044 = vld [vmem:[#allocation14 + $0x44] sm:$0xf]
    %v14045 = vld [vmem:[#allocation14 + $0x48] sm:$0xf]
    %v14046 = vld [vmem:[#allocation14 + $0x4c] sm:$0xf]
    %v14047 = vld [vmem:[#allocation14 + $0x50] sm:$0xf]
    %v14048 = vld [vmem:[#allocation14 + $0x54] sm:$0xf]
    %v14049 = vld [vmem:[#allocation14 + $0x58] sm:$0xf]
    %v14050 = vld [vmem:[#allocation14 + $0x5c] sm:$0xf]
    %v14051 = vld [vmem:[#allocation14 + $0x60] sm:$0xf]
    %v14052 = vld [vmem:[#allocation14 + $0x64] sm:$0xf]
    %v14053 = vld [vmem:[#allocation14 + $0x68] sm:$0xf]
    %v14054 = vld [vmem:[#allocation14 + $0x6c] sm:$0xf]
    %v14055 = vld [vmem:[#allocation14 + $0x70] sm:$0xf]
    %v14056 = vld [vmem:[#allocation14 + $0x74] sm:$0xf]
    %v14057 = vld [vmem:[#allocation14 + $0x78] sm:$0xf]
    %v14058 = vld [vmem:[#allocation14 + $0x7c] sm:$0xf]
    %v14059 = vld [vmem:[#allocation16] sm:$0x1]
    %v14061 = vlaneseq
    %v14062 = vshrl.u32 %v14061, 7
    %v14063 = vsub.s32 0, %v14062
    %v14064 = vrot.slane %v14059, %v14063
    %v14098 = vunpack.c.l.b16 %v14027
    %v14099 = vunpack.c.l.b16 %v14028
    %v14100 = vunpack.c.l.b16 %v14029
    %v14101 = vunpack.c.l.b16 %v14030
    %v14102 = vunpack.c.l.b16 %v14031
    %v14103 = vunpack.c.l.b16 %v14032
    %v14104 = vunpack.c.l.b16 %v14033
    %v14105 = vunpack.c.l.b16 %v14034
    %v14106 = vunpack.c.l.b16 %v14035
    %v14107 = vunpack.c.l.b16 %v14036
    %v14108 = vunpack.c.l.b16 %v14037
    %v14109 = vunpack.c.l.b16 %v14038
    %v14110 = vunpack.c.l.b16 %v14039
    %v14111 = vunpack.c.l.b16 %v14040
    %v14112 = vunpack.c.l.b16 %v14041
    %v14113 = vunpack.c.l.b16 %v14042
    %v14114 = vunpack.c.l.b16 %v14043
    %v14115 = vunpack.c.l.b16 %v14044
    %v14116 = vunpack.c.l.b16 %v14045
    %v14117 = vunpack.c.l.b16 %v14046
    %v14118 = vunpack.c.l.b16 %v14047
    %v14119 = vunpack.c.l.b16 %v14048
    %v14120 = vunpack.c.l.b16 %v14049
    %v14121 = vunpack.c.l.b16 %v14050
    %v14122 = vunpack.c.l.b16 %v14051
    %v14123 = vunpack.c.l.b16 %v14052
    %v14124 = vunpack.c.l.b16 %v14053
    %v14125 = vunpack.c.l.b16 %v14054
    %v14126 = vunpack.c.l.b16 %v14055
    %v14127 = vunpack.c.l.b16 %v14056
    %v14128 = vunpack.c.l.b16 %v14057
    %v14129 = vunpack.c.l.b16 %v14058
    %v14130 = vpack.c.b16 %v14099, %v14098
    %v14131 = vpack.c.b16 %v14101, %v14100
    %v14132 = vpack.c.b16 %v14103, %v14102
    %v14133 = vpack.c.b16 %v14105, %v14104
    %v14134 = vpack.c.b16 %v14107, %v14106
    %v14135 = vpack.c.b16 %v14109, %v14108
    %v14136 = vpack.c.b16 %v14111, %v14110
    %v14137 = vpack.c.b16 %v14113, %v14112
    %v14138 = vpack.c.b16 %v14115, %v14114
    %v14139 = vpack.c.b16 %v14117, %v14116
    %v14140 = vpack.c.b16 %v14119, %v14118
    %v14141 = vpack.c.b16 %v14121, %v14120
    %v14142 = vpack.c.b16 %v14123, %v14122
    %v14143 = vpack.c.b16 %v14125, %v14124
    %v14144 = vpack.c.b16 %v14127, %v14126
    %v14145 = vpack.c.b16 %v14129, %v14128
    %14162 = vmatprep.subr.bf16.mxu0 0
    %14163 = vmatpush1.bf16.msra.mxu0 %v14137
    %14164 = vmatprep.subr.bf16.mxu0 0
    %14165 = vmatpush1.bf16.msra.mxu0 %v14136
    %14166 = vmatprep.subr.bf16.mxu0 0
    %14167 = vmatpush1.bf16.msra.mxu0 %v14135
    %14168 = vmatprep.subr.bf16.mxu0 0
    %14169 = vmatpush1.bf16.msra.mxu0 %v14134
    %14170 = vmatprep.subr.bf16.mxu0 0
    %14171 = vmatpush1.bf16.msra.mxu0 %v14133
    %14172 = vmatprep.subr.bf16.mxu0 0
    %14173 = vmatpush1.bf16.msra.mxu0 %v14132
    %14174 = vmatprep.subr.bf16.mxu0 0
    %14175 = vmatpush1.bf16.msra.mxu0 %v14131
    %14176 = vmatprep.subr.bf16.mxu0 0
    %14177 = vmatpush1.bf16.msra.mxu0 %v14130
    %14178 = vmatprep.subr.bf16.mxu0 0
    %14179 = vmatpush2.bf16.msra.mxu0 %v14145
    %14180 = vmatprep.subr.bf16.mxu0 0
    %14181 = vmatpush2.bf16.msra.mxu0 %v14144
    %14182 = vmatprep.subr.bf16.mxu0 0
    %14183 = vmatpush2.bf16.msra.mxu0 %v14143
    %14184 = vmatprep.subr.bf16.mxu0 0
    %14185 = vmatpush2.bf16.msra.mxu0 %v14142
    %14186 = vmatprep.subr.bf16.mxu0 0
    %14187 = vmatpush2.bf16.msra.mxu0 %v14141
    %14188 = vmatprep.subr.bf16.mxu0 0
    %14189 = vmatpush2.bf16.msra.mxu0 %v14140
    %14190 = vmatprep.subr.bf16.mxu0 0
    %14191 = vmatpush2.bf16.msra.mxu0 %v14139
    %14192 = vmatprep.subr.bf16.mxu0 0
    %14193 = vmatpush2.bf16.msra.mxu0 %v14138
    %14194 = vmatprep.mubr.bf16.mxu0 %v14026
    %14195 = vmatmul.mubr.bf16.gmra.mxu0 %v14025
    %v14196 = vpop.f32.mrf.mxu0
    %v14197 = vadd.f32 %v14064, %v14196
    %v14198 = vpop.f32.mrf.mxu0
    %v14199 = vpop.f32.mrf.mxu0
    %v14200 = vadd.f32 %v14064, %v14199
    %v14201 = vpop.f32.mrf.mxu0
    %14202 = vdwg.mxu0
    %v14203 = vmul.f32 %v14197, 0.01
    %v14204 = vmul.f32 %v14200, 0.01
    %v14205 = vmax.f32 %v14197, %v14203
    %v14206 = vmax.f32 %v14200, %v14204
    %v14207 = vpack.c.bf16 %v14206, %v14205
    %v14208 = vld [vmem:[#allocation17] sm:$0xf]
    %v14209 = vld [vmem:[#allocation17 + $0x4] sm:$0xf]
    %v14210 = vld [vmem:[#allocation17 + $0x8] sm:$0xf]
    %v14211 = vld [vmem:[#allocation17 + $0xc] sm:$0xf]
    %v14212 = vld [vmem:[#allocation17 + $0x10] sm:$0xf]
    %v14213 = vld [vmem:[#allocation17 + $0x14] sm:$0xf]
    %v14214 = vld [vmem:[#allocation17 + $0x18] sm:$0xf]
    %v14215 = vld [vmem:[#allocation17 + $0x1c] sm:$0xf]
    %v14216 = vld [vmem:[#allocation17 + $0x20] sm:$0xf]
    %v14217 = vld [vmem:[#allocation17 + $0x24] sm:$0xf]
    %v14218 = vld [vmem:[#allocation17 + $0x28] sm:$0xf]
    %v14219 = vld [vmem:[#allocation17 + $0x2c] sm:$0xf]
    %v14220 = vld [vmem:[#allocation17 + $0x30] sm:$0xf]
    %v14221 = vld [vmem:[#allocation17 + $0x34] sm:$0xf]
    %v14222 = vld [vmem:[#allocation17 + $0x38] sm:$0xf]
    %v14223 = vld [vmem:[#allocation17 + $0x3c] sm:$0xf]
    %v14224 = vld [vmem:[#allocation19] sm:$0x1]
    %v14226 = vlaneseq
    %v14227 = vshrl.u32 %v14226, 7
    %v14228 = vsub.s32 0, %v14227
    %v14229 = vrot.slane %v14224, %v14228
    %v14247 = vunpack.c.l.b16 %v14208
    %v14248 = vunpack.c.l.b16 %v14209
    %v14249 = vunpack.c.l.b16 %v14210
    %v14250 = vunpack.c.l.b16 %v14211
    %v14251 = vunpack.c.l.b16 %v14212
    %v14252 = vunpack.c.l.b16 %v14213
    %v14253 = vunpack.c.l.b16 %v14214
    %v14254 = vunpack.c.l.b16 %v14215
    %v14255 = vunpack.c.l.b16 %v14216
    %v14256 = vunpack.c.l.b16 %v14217
    %v14257 = vunpack.c.l.b16 %v14218
    %v14258 = vunpack.c.l.b16 %v14219
    %v14259 = vunpack.c.l.b16 %v14220
    %v14260 = vunpack.c.l.b16 %v14221
    %v14261 = vunpack.c.l.b16 %v14222
    %v14262 = vunpack.c.l.b16 %v14223
    %v14263 = vpack.c.b16 %v14248, %v14247
    %v14264 = vpack.c.b16 %v14250, %v14249
    %v14265 = vpack.c.b16 %v14252, %v14251
    %v14266 = vpack.c.b16 %v14254, %v14253
    %v14267 = vpack.c.b16 %v14256, %v14255
    %v14268 = vpack.c.b16 %v14258, %v14257
    %v14269 = vpack.c.b16 %v14260, %v14259
    %v14270 = vpack.c.b16 %v14262, %v14261
    %14279 = vmatprep.subr.bf16.mxu0 0
    %14280 = vmatpush1.bf16.msra.mxu0 %v14270
    %14281 = vmatprep.subr.bf16.mxu0 0
    %14282 = vmatpush1.bf16.msra.mxu0 %v14269
    %14283 = vmatprep.subr.bf16.mxu0 0
    %14284 = vmatpush1.bf16.msra.mxu0 %v14268
    %14285 = vmatprep.subr.bf16.mxu0 0
    %14286 = vmatpush1.bf16.msra.mxu0 %v14267
    %14287 = vmatprep.subr.bf16.mxu0 0
    %14288 = vmatpush1.bf16.msra.mxu0 %v14266
    %14289 = vmatprep.subr.bf16.mxu0 0
    %14290 = vmatpush1.bf16.msra.mxu0 %v14265
    %14291 = vmatprep.subr.bf16.mxu0 0
    %14292 = vmatpush1.bf16.msra.mxu0 %v14264
    %14293 = vmatprep.subr.bf16.mxu0 0
    %14294 = vmatpush1.bf16.msra.mxu0 %v14263
    %14295 = vmatprep.subr.bf16.mxu0 0
    %14296 = vmatpush2.bf16.msra.mxu0 0
    %14297 = vmatprep.subr.bf16.mxu0 0
    %14298 = vmatpush2.bf16.msra.mxu0 0
    %14299 = vmatprep.subr.bf16.mxu0 0
    %14300 = vmatpush2.bf16.msra.mxu0 0
    %14301 = vmatprep.subr.bf16.mxu0 0
    %14302 = vmatpush2.bf16.msra.mxu0 0
    %14303 = vmatprep.subr.bf16.mxu0 0
    %14304 = vmatpush2.bf16.msra.mxu0 0
    %14305 = vmatprep.subr.bf16.mxu0 0
    %14306 = vmatpush2.bf16.msra.mxu0 0
    %14307 = vmatprep.subr.bf16.mxu0 0
    %14308 = vmatpush2.bf16.msra.mxu0 0
    %14309 = vmatprep.subr.bf16.mxu0 0
    %14310 = vmatpush2.bf16.msra.mxu0 0
    %14311 = vmatprep.mubr.bf16.mxu0 0
    %14312 = vmatmul.mubr.bf16.gmra.mxu0 %v14207
    %v14313 = vpop.f32.mrf.mxu0
    %v14314 = vadd.f32 %v14229, %v14313
    %v14315 = vpop.f32.mrf.mxu0
    %v14316 = vpop.f32.mrf.mxu0
    %v14317 = vadd.f32 %v14229, %v14316
    %v14318 = vpop.f32.mrf.mxu0
    %14319 = vdwg.mxu0
    %v14320 = vpack.c.bf16 %v14317, %v14314
    %v14322 = vunpack.c.l.b16 %v14320
    %v14323 = vunpack.c.h.b16 %v14320
    %v14324 = vpack.c.b16 %v14322, %v14322
    %v14325 = vpack.c.b16 %v14323, %v14323
    %14328 = vst [vmem:[#allocation20] sm:$0xf] %v14324
    %14329 = vst [vmem:[#allocation20 + $0x4] sm:$0xf] %v14325
    // Predicated region
    $region90: #{tpu_custom_call.1} parent=1 // pred_check
      _
    $region91: #{tpu_custom_call.1} parent=1 // pred_check_branch
      %14331 = sbr.rel (0) target = $region93
    $region92: #{tpu_custom_call.1} parent=1 // pred_region
      %s14333 = ssub.s32 128, 128
      %14334 = vsyncadd [#allocation4], %s14333
      %s14335 = sshll.u32 [#allocation20], 4
      %s14336 = int_to_ptr.vmem [resolvable:$true] %s14335
      %14341 = dma.vmem_to_hbm [thread:$0]  %s14336, 128, %s11, [#allocation4], 64, 64, 4
    $region93: #{tpu_custom_call.1} parent=1 // pred_fallthru
      _
    // Predicated region
    $region94: #{tpu_custom_call.1} parent=1 // pred_check
      _
    $region95: #{tpu_custom_call.1} parent=1 // pred_check_branch
      %14343 = sbr.rel (0) target = $region97
    $region96: #{tpu_custom_call.1} parent=1 // pred_region
      %14344 = dma.done [#allocation4], 128
    $region97: #{tpu_custom_call.1} parent=1 // pred_fallthru
      _
    %14345 = vsyncpa [#allocation3], 1
    %14346 = vsyncpa [#allocation6], 1
    %14347 = vsyncpa [#allocation9], 1
    %14348 = vsyncpa [#allocation12], 1
    %14349 = vsyncpa [#allocation15], 1
    %14350 = vsyncpa [#allocation18], 1
    %14351 = vsyncpa [#allocation4], 1

</llo_original>
